<compile_context>
chip_gen: v6e
topology: v6e:2x2x1
jax: 0.10.0
libtpu: 0.0.40
codegen_flags: <defaults>
</compile_context>

<pallas_src>
import jax
import jax.numpy as jnp
from jax.experimental import pallas as pl
from jax.experimental.pallas import tpu as pltpu

I_SIZE = 27
H_SIZE = 54
N_LAYERS = 4
GP = 128              # per-gate padded width (lane-aligned)


# ----------------------------------------------------------------------------
# Fused forward kernel: 4 LSTM layers + fc2/ReLU/fc4 head, all in VMEM.
# Gate order follows PyTorch: i, f, g, o.
# ----------------------------------------------------------------------------
def _fused_forward_kernel(x_ref, h0_ref, c0_ref, wih0_ref, wihr_ref, whh_ref,
                          b_ref, fc2w_ref, fc2b_ref, fc4w_ref, fc4b_ref,
                          out_ref, ht_ref, ct_ref, y_sc):
    B, T, I = x_ref.shape
    L = h0_ref.shape[0]
    G = h0_ref.shape[-1]          # padded hidden width (128)
    H = ht_ref.shape[-1]          # true hidden size (54)

    # --- layer-0 input projection, hoisted over the whole sequence ----------
    x2d = x_ref[...].reshape(B * T, I)
    xg = (jnp.dot(x2d, wih0_ref[...], preferred_element_type=jnp.float32)
          + b_ref[0]).reshape(B, T, 4 * G)

    for layer in range(L):
        whh_l = whh_ref[layer]                       # (G, 4G)
        h = h0_ref[layer]                            # (B, G), zero-padded
        c = c0_ref[layer]                            # (B, G), zero-padded

        for t in range(T):                           # fully unrolled recurrence
            g = xg[:, t, :] + jnp.dot(h, whh_l,
                                      preferred_element_type=jnp.float32)
            i_g = jax.nn.sigmoid(g[:, 0 * G:1 * G])
            f_g = jax.nn.sigmoid(g[:, 1 * G:2 * G])
            g_g = jnp.tanh(g[:, 2 * G:3 * G])
            o_g = jax.nn.sigmoid(g[:, 3 * G:4 * G])
            c = f_g * c + i_g * g_g
            h = o_g * jnp.tanh(c)
            y_sc[:, t:t + 1, :] = h.reshape(B, 1, G)

        # final states written once per layer (valid lanes only)
        ht_ref[layer] = h[:, :H]
        ct_ref[layer] = c[:, :H]

        if layer + 1 < L:
            # next layer's input projection, hoisted over the whole sequence
            y2d = y_sc[...].reshape(B * T, G)
            xg = (jnp.dot(y2d, wihr_ref[layer],
                          preferred_element_type=jnp.float32)
                  + b_ref[layer + 1]).reshape(B, T, 4 * G)

    # --- FC head: relu(Y @ W2 + b2) @ W4 + b4, on the whole sequence --------
    y2d = y_sc[...].reshape(B * T, G)
    hid = jnp.maximum(
        jnp.dot(y2d, fc2w_ref[...], preferred_element_type=jnp.float32)
        + fc2b_ref[...], 0.0)
    out = (jnp.dot(hid, fc4w_ref[...], preferred_element_type=jnp.float32)
           + fc4b_ref[...])
    out_ref[...] = out.reshape(B, T, out_ref.shape[-1])


def _full_spec(shape):
    zeros = (0,) * len(shape)
    return pl.BlockSpec(shape, lambda: zeros)


@jax.jit
def model_forward(params, inp, ht, ct):
    """inp: (B, T, 27) batch_first; ht, ct: (n_layers, B, 54)."""
    inp = inp.astype(jnp.float32)
    B, T, _ = inp.shape
    L = ht.shape[0]
    pad = GP - H_SIZE
    h0p = jnp.pad(ht.astype(jnp.float32), ((0, 0), (0, 0), (0, pad)))
    c0p = jnp.pad(ct.astype(jnp.float32), ((0, 0), (0, 0), (0, pad)))

    args = (inp, h0p, c0p,
            params["wih0"], params["wihr"], params["whh"], params["bias"],
            params["fc2_wp"], params["fc2_b"], params["fc4_wt"], params["fc4_b"])

    out, ht_new, ct_new = pl.pallas_call(
        _fused_forward_kernel,
        out_shape=(jax.ShapeDtypeStruct((B, T, I_SIZE), jnp.float32),
                   jax.ShapeDtypeStruct((L, B, H_SIZE), jnp.float32),
                   jax.ShapeDtypeStruct((L, B, H_SIZE), jnp.float32)),
        in_specs=[_full_spec(a.shape) for a in args],
        out_specs=[_full_spec((B, T, I_SIZE)),
                   _full_spec((L, B, H_SIZE)),
                   _full_spec((L, B, H_SIZE))],
        scratch_shapes=[pltpu.VMEM((B, T, GP), jnp.float32)],
    )(*args)
    return out, (ht_new, ct_new)


# ----------------------------------------------------------------------------
# Parameter init (PyTorch default uniform(-k, k)) in raw torch layout, plus a
# packer that produces the fused / lane-padded kernel layout.
# ----------------------------------------------------------------------------
def init_raw_params(key):
    raw = {"lstm": []}
    k_lstm = 1.0 / jnp.sqrt(jnp.float32(H_SIZE))
    for layer in range(N_LAYERS):
        in_size = I_SIZE if layer == 0 else H_SIZE
        key, k1, k2, k3, k4 = jax.random.split(key, 5)
        w_ih = jax.random.uniform(k1, (4 * H_SIZE, in_size), jnp.float32,
                                  -k_lstm, k_lstm)
        w_hh = jax.random.uniform(k2, (4 * H_SIZE, H_SIZE), jnp.float32,
                                  -k_lstm, k_lstm)
        b_ih = jax.random.uniform(k3, (4 * H_SIZE,), jnp.float32, -k_lstm, k_lstm)
        b_hh = jax.random.uniform(k4, (4 * H_SIZE,), jnp.float32, -k_lstm, k_lstm)
        raw["lstm"].append((w_ih, w_hh, b_ih, b_hh))

    k_fc2 = 1.0 / jnp.sqrt(jnp.float32(H_SIZE))
    k_fc4 = 1.0 / jnp.sqrt(jnp.float32(I_SIZE))
    key, k1, k2, k3, k4 = jax.random.split(key, 5)
    raw["fc2_w"] = jax.random.uniform(k1, (I_SIZE, H_SIZE), jnp.float32,
                                      -k_fc2, k_fc2)
    raw["fc2_b"] = jax.random.uniform(k2, (I_SIZE,), jnp.float32, -k_fc2, k_fc2)
    raw["fc4_w"] = jax.random.uniform(k3, (I_SIZE, I_SIZE), jnp.float32,
                                      -k_fc4, k_fc4)
    raw["fc4_b"] = jax.random.uniform(k4, (I_SIZE,), jnp.float32, -k_fc4, k_fc4)
    return raw


def pack_params(raw):
    """Fused x@W^T convention, per-gate stride padded to GP=128 lanes."""
    pad_h = GP - H_SIZE
    wih0 = None
    wihr_list, whh_list, bias_list = [], [], []
    for layer, (w_ih, w_hh, b_ih, b_hh) in enumerate(raw["lstm"]):
        in_size = I_SIZE if layer == 0 else H_SIZE
        # (4H, in) -> (in, 4, H) -> pad gate width -> (in, 4*GP)
        wih = jnp.transpose(w_ih.reshape(4, H_SIZE, in_size), (2, 0, 1))
        wih = jnp.pad(wih, ((0, 0), (0, 0), (0, pad_h))).reshape(in_size, 4 * GP)
        # (4H, H) -> (H, 4, H) -> pad contraction rows & gate width -> (GP, 4*GP)
        whh = jnp.transpose(w_hh.reshape(4, H_SIZE, H_SIZE), (2, 0, 1))
        whh = jnp.pad(whh, ((0, pad_h), (0, 0), (0, pad_h))).reshape(GP, 4 * GP)
        # combined bias, padded per gate
        b = jnp.pad((b_ih + b_hh).reshape(4, H_SIZE),
                    ((0, 0), (0, pad_h))).reshape(1, 4 * GP)
        if layer == 0:
            wih0 = wih
        else:
            wihr_list.append(jnp.pad(wih, ((0, pad_h), (0, 0))))  # pad input rows
        whh_list.append(whh)
        bias_list.append(b)

    return {
        "wih0": wih0,                               # (27, 512)
        "wihr": jnp.stack(wihr_list, 0),            # (3, 128, 512)
        "whh": jnp.stack(whh_list, 0),              # (4, 128, 512)
        "bias": jnp.stack(bias_list, 0),            # (4, 1, 512)
        "fc2_wp": jnp.pad(raw["fc2_w"].T, ((0, pad_h), (0, 0))),   # (128, 27)
        "fc2_b": raw["fc2_b"].reshape(1, -1),       # (1, 27)
        "fc4_wt": raw["fc4_w"].T,                   # (27, 27)
        "fc4_b": raw["fc4_b"].reshape(1, -1),       # (1, 27)
    }


# ----------------------------------------------------------------------------
# Pure-JAX reference (torch-layout weights) for correctness checking.
# ----------------------------------------------------------------------------
def reference_forward(raw, inp, ht, ct):
    x = jnp.transpose(inp, (1, 0, 2)).astype(jnp.float32)  # (T, B, I)
    T = x.shape[0]
    ht_out, ct_out = [], []
    for layer in range(N_LAYERS):
        w_ih, w_hh, b_ih, b_hh = raw["lstm"][layer]
        h, c = ht[layer], ct[layer]
        ys = []
        for t in range(T):
            gates = x[t] @ w_ih.T + h @ w_hh.T + b_ih + b_hh
            i_g = jax.nn.sigmoid(gates[:, 0 * H_SIZE:1 * H_SIZE])
            f_g = jax.nn.sigmoid(gates[:, 1 * H_SIZE:2 * H_SIZE])
            g_g = jnp.tanh(gates[:, 2 * H_SIZE:3 * H_SIZE])
            o_g = jax.nn.sigmoid(gates[:, 3 * H_SIZE:4 * H_SIZE])
            c = f_g * c + i_g * g_g
            h = o_g * jnp.tanh(c)
            ys.append(h)
        x = jnp.stack(ys, axis=0)
        ht_out.append(h)
        ct_out.append(c)
    y = jnp.maximum(x @ raw["fc2_w"].T + raw["fc2_b"], 0.0)
    y = y @ raw["fc4_w"].T + raw["fc4_b"]
    return (jnp.transpose(y, (1, 0, 2)),
            (jnp.stack(ht_out, 0), jnp.stack(ct_out, 0)))


if __name__ == "__main__":
    key = jax.random.PRNGKey(0)
    kp, kx, kh, kc = jax.random.split(key, 4)

    raw = init_raw_params(kp)
    params = pack_params(raw)

    B, T = 2, 8
    inp = jax.random.normal(kx, (B, T, I_SIZE), jnp.float32)
    ht0 = jax.random.normal(kh, (N_LAYERS, B, H_SIZE), jnp.float32)
    ct0 = jax.random.normal(kc, (N_LAYERS, B, H_SIZE), jnp.float32)

    out, (ht, ct) = model_forward(params, inp, ht0, ct0)
    jax.block_until_ready((out, ht, ct))

    ref_out, (ref_ht, ref_ct) = reference_forward(raw, inp, ht0, ct0)
    assert out.shape == (B, T, I_SIZE)
    assert ht.shape == (N_LAYERS, B, H_SIZE) and ct.shape == (N_LAYERS, B, H_SIZE)
    assert jnp.allclose(out, ref_out, atol=1e-3), "output mismatch"
    assert jnp.allclose(ht, ref_ht, atol=1e-3), "ht mismatch"
    assert jnp.allclose(ct, ref_ct, atol=1e-3), "ct mismatch"

    print("KERNEL_OK")
</pallas_src>

<mosaic_0001>
module attributes {stable_mosaic.version = 11 : i64} {
  func.func @_fused_forward_kernel(%arg0: memref<2x8x27xf32, #tpu.memory_space<vmem>>, %arg1: memref<4x2x128xf32, #tpu.memory_space<vmem>>, %arg2: memref<4x2x128xf32, #tpu.memory_space<vmem>>, %arg3: memref<27x512xf32, #tpu.memory_space<vmem>>, %arg4: memref<3x128x512xf32, #tpu.memory_space<vmem>>, %arg5: memref<4x128x512xf32, #tpu.memory_space<vmem>>, %arg6: memref<4x1x512xf32, #tpu.memory_space<vmem>>, %arg7: memref<128x27xf32, #tpu.memory_space<vmem>>, %arg8: memref<1x27xf32, #tpu.memory_space<vmem>>, %arg9: memref<27x27xf32, #tpu.memory_space<vmem>>, %arg10: memref<1x27xf32, #tpu.memory_space<vmem>>, %arg11: memref<2x8x27xf32, #tpu.memory_space<vmem>>, %arg12: memref<4x2x54xf32, #tpu.memory_space<vmem>>, %arg13: memref<4x2x54xf32, #tpu.memory_space<vmem>>, %arg14: memref<2x8x128xf32, #tpu.memory_space<vmem>>) attributes {dimension_semantics = [], scalar_prefetch = 0 : i64, scratch_operands = 1 : i64, tpu.core_type = #tpu.core_type<tc>} {
    %c0 = arith.constant 0 : index
    %c0_0 = arith.constant 0 : index
    %c0_1 = arith.constant 0 : index
    %0 = vector.load %arg0[%c0, %c0_0, %c0_1] : memref<2x8x27xf32, #tpu.memory_space<vmem>>, vector<2x8x27xf32>
    %1 = vector.shape_cast %0 : vector<2x8x27xf32> to vector<16x27xf32>
    %c0_2 = arith.constant 0 : index
    %c0_3 = arith.constant 0 : index
    %2 = vector.load %arg3[%c0_2, %c0_3] : memref<27x512xf32, #tpu.memory_space<vmem>>, vector<27x512xf32>
    %cst = arith.constant dense<0.000000e+00> : vector<16x512xf32>
    %3 = tpu.matmul %1, %2, %cst {dimension_numbers = #tpu.dot_dimension_numbers<[1], [0], [0], [1], [0, 0, 1, 1], [], []>} : vector<16x27xf32>, vector<27x512xf32>, vector<16x512xf32> -> vector<16x512xf32>
    %c0_4 = arith.constant 0 : index
    %c0_5 = arith.constant 0 : index
    %c0_6 = arith.constant 0 : index
    %4 = vector.load %arg6[%c0_4, %c0_5, %c0_6] : memref<4x1x512xf32, #tpu.memory_space<vmem>>, vector<1x1x512xf32>
    %5 = vector.shape_cast %4 : vector<1x1x512xf32> to vector<1x512xf32>
    %6 = vector.broadcast %5 : vector<1x512xf32> to vector<16x512xf32>
    %7 = arith.addf %3, %6 : vector<16x512xf32>
    %8 = vector.shape_cast %7 : vector<16x512xf32> to vector<2x8x512xf32>
    %c0_7 = arith.constant 0 : index
    %c0_8 = arith.constant 0 : index
    %c0_9 = arith.constant 0 : index
    %9 = vector.load %arg5[%c0_7, %c0_8, %c0_9] : memref<4x128x512xf32, #tpu.memory_space<vmem>>, vector<1x128x512xf32>
    %10 = vector.shape_cast %9 : vector<1x128x512xf32> to vector<128x512xf32>
    %c0_10 = arith.constant 0 : index
    %c0_11 = arith.constant 0 : index
    %c0_12 = arith.constant 0 : index
    %11 = vector.load %arg1[%c0_10, %c0_11, %c0_12] : memref<4x2x128xf32, #tpu.memory_space<vmem>>, vector<1x2x128xf32>
    %12 = vector.shape_cast %11 : vector<1x2x128xf32> to vector<2x128xf32>
    %c0_13 = arith.constant 0 : index
    %c0_14 = arith.constant 0 : index
    %c0_15 = arith.constant 0 : index
    %13 = vector.load %arg2[%c0_13, %c0_14, %c0_15] : memref<4x2x128xf32, #tpu.memory_space<vmem>>, vector<1x2x128xf32>
    %14 = vector.shape_cast %13 : vector<1x2x128xf32> to vector<2x128xf32>
    %15 = vector.extract_strided_slice %8 {offsets = [0, 0, 0], sizes = [2, 1, 512], strides = [1, 1, 1]} : vector<2x8x512xf32> to vector<2x1x512xf32>
    %16 = vector.shape_cast %15 : vector<2x1x512xf32> to vector<2x512xf32>
    %cst_16 = arith.constant dense<0.000000e+00> : vector<2x512xf32>
    %17 = tpu.matmul %12, %10, %cst_16 {dimension_numbers = #tpu.dot_dimension_numbers<[1], [0], [0], [1], [0, 0, 1, 1], [], []>} : vector<2x128xf32>, vector<128x512xf32>, vector<2x512xf32> -> vector<2x512xf32>
    %18 = arith.addf %16, %17 : vector<2x512xf32>
    %19 = vector.extract_strided_slice %18 {offsets = [0, 0], sizes = [2, 128], strides = [1, 1]} : vector<2x512xf32> to vector<2x128xf32>
    %20 = arith.negf %19 : vector<2x128xf32>
    %21 = math.exp %20 : vector<2x128xf32>
    %cst_17 = arith.constant 1.000000e+00 : f32
    %22 = vector.broadcast %cst_17 : f32 to vector<2x128xf32>
    %23 = arith.addf %22, %21 : vector<2x128xf32>
    %24 = arith.divf %22, %23 : vector<2x128xf32>
    %25 = vector.extract_strided_slice %18 {offsets = [0, 128], sizes = [2, 128], strides = [1, 1]} : vector<2x512xf32> to vector<2x128xf32>
    %26 = arith.negf %25 : vector<2x128xf32>
    %27 = math.exp %26 : vector<2x128xf32>
    %cst_18 = arith.constant 1.000000e+00 : f32
    %28 = vector.broadcast %cst_18 : f32 to vector<2x128xf32>
    %29 = arith.addf %28, %27 : vector<2x128xf32>
    %30 = arith.divf %28, %29 : vector<2x128xf32>
    %31 = vector.extract_strided_slice %18 {offsets = [0, 256], sizes = [2, 128], strides = [1, 1]} : vector<2x512xf32> to vector<2x128xf32>
    %32 = math.tanh %31 : vector<2x128xf32>
    %33 = vector.extract_strided_slice %18 {offsets = [0, 384], sizes = [2, 128], strides = [1, 1]} : vector<2x512xf32> to vector<2x128xf32>
    %34 = arith.negf %33 : vector<2x128xf32>
    %35 = math.exp %34 : vector<2x128xf32>
    %cst_19 = arith.constant 1.000000e+00 : f32
    %36 = vector.broadcast %cst_19 : f32 to vector<2x128xf32>
    %37 = arith.addf %36, %35 : vector<2x128xf32>
    %38 = arith.divf %36, %37 : vector<2x128xf32>
    %39 = arith.mulf %30, %14 : vector<2x128xf32>
    %40 = arith.mulf %24, %32 : vector<2x128xf32>
    %41 = arith.addf %39, %40 : vector<2x128xf32>
    %42 = math.tanh %41 : vector<2x128xf32>
    %43 = arith.mulf %38, %42 : vector<2x128xf32>
    %44 = vector.shape_cast %43 : vector<2x128xf32> to vector<2x1x128xf32>
    %c0_20 = arith.constant 0 : index
    %c0_21 = arith.constant 0 : index
    %c0_22 = arith.constant 0 : index
    %45 = vector.load %arg14[%c0_20, %c0_21, %c0_22] : memref<2x8x128xf32, #tpu.memory_space<vmem>>, vector<2x1x128xf32>
    tpu.vector_store %arg14[%c0_20, %c0_21, %c0_22], %44 {strides = array<i32>} : memref<2x8x128xf32, #tpu.memory_space<vmem>>, vector<2x1x128xf32>,
    %46 = vector.extract_strided_slice %8 {offsets = [0, 1, 0], sizes = [2, 1, 512], strides = [1, 1, 1]} : vector<2x8x512xf32> to vector<2x1x512xf32>
    %47 = vector.shape_cast %46 : vector<2x1x512xf32> to vector<2x512xf32>
    %cst_23 = arith.constant dense<0.000000e+00> : vector<2x512xf32>
    %48 = tpu.matmul %43, %10, %cst_23 {dimension_numbers = #tpu.dot_dimension_numbers<[1], [0], [0], [1], [0, 0, 1, 1], [], []>} : vector<2x128xf32>, vector<128x512xf32>, vector<2x512xf32> -> vector<2x512xf32>
    %49 = arith.addf %47, %48 : vector<2x512xf32>
    %50 = vector.extract_strided_slice %49 {offsets = [0, 0], sizes = [2, 128], strides = [1, 1]} : vector<2x512xf32> to vector<2x128xf32>
    %51 = arith.negf %50 : vector<2x128xf32>
    %52 = math.exp %51 : vector<2x128xf32>
    %cst_24 = arith.constant 1.000000e+00 : f32
    %53 = vector.broadcast %cst_24 : f32 to vector<2x128xf32>
    %54 = arith.addf %53, %52 : vector<2x128xf32>
    %55 = arith.divf %53, %54 : vector<2x128xf32>
    %56 = vector.extract_strided_slice %49 {offsets = [0, 128], sizes = [2, 128], strides = [1, 1]} : vector<2x512xf32> to vector<2x128xf32>
    %57 = arith.negf %56 : vector<2x128xf32>
    %58 = math.exp %57 : vector<2x128xf32>
    %cst_25 = arith.constant 1.000000e+00 : f32
    %59 = vector.broadcast %cst_25 : f32 to vector<2x128xf32>
    %60 = arith.addf %59, %58 : vector<2x128xf32>
    %61 = arith.divf %59, %60 : vector<2x128xf32>
    %62 = vector.extract_strided_slice %49 {offsets = [0, 256], sizes = [2, 128], strides = [1, 1]} : vector<2x512xf32> to vector<2x128xf32>
    %63 = math.tanh %62 : vector<2x128xf32>
    %64 = vector.extract_strided_slice %49 {offsets = [0, 384], sizes = [2, 128], strides = [1, 1]} : vector<2x512xf32> to vector<2x128xf32>
    %65 = arith.negf %64 : vector<2x128xf32>
    %66 = math.exp %65 : vector<2x128xf32>
    %cst_26 = arith.constant 1.000000e+00 : f32
    %67 = vector.broadcast %cst_26 : f32 to vector<2x128xf32>
    %68 = arith.addf %67, %66 : vector<2x128xf32>
    %69 = arith.divf %67, %68 : vector<2x128xf32>
    %70 = arith.mulf %61, %41 : vector<2x128xf32>
    %71 = arith.mulf %55, %63 : vector<2x128xf32>
    %72 = arith.addf %70, %71 : vector<2x128xf32>
    %73 = math.tanh %72 : vector<2x128xf32>
    %74 = arith.mulf %69, %73 : vector<2x128xf32>
    %75 = vector.shape_cast %74 : vector<2x128xf32> to vector<2x1x128xf32>
    %c0_27 = arith.constant 0 : index
    %c1 = arith.constant 1 : index
    %c0_28 = arith.constant 0 : index
    %76 = vector.load %arg14[%c0_27, %c1, %c0_28] : memref<2x8x128xf32, #tpu.memory_space<vmem>>, vector<2x1x128xf32>
    tpu.vector_store %arg14[%c0_27, %c1, %c0_28], %75 {strides = array<i32>} : memref<2x8x128xf32, #tpu.memory_space<vmem>>, vector<2x1x128xf32>,
    %77 = vector.extract_strided_slice %8 {offsets = [0, 2, 0], sizes = [2, 1, 512], strides = [1, 1, 1]} : vector<2x8x512xf32> to vector<2x1x512xf32>
    %78 = vector.shape_cast %77 : vector<2x1x512xf32> to vector<2x512xf32>
    %cst_29 = arith.constant dense<0.000000e+00> : vector<2x512xf32>
    %79 = tpu.matmul %74, %10, %cst_29 {dimension_numbers = #tpu.dot_dimension_numbers<[1], [0], [0], [1], [0, 0, 1, 1], [], []>} : vector<2x128xf32>, vector<128x512xf32>, vector<2x512xf32> -> vector<2x512xf32>
    %80 = arith.addf %78, %79 : vector<2x512xf32>
    %81 = vector.extract_strided_slice %80 {offsets = [0, 0], sizes = [2, 128], strides = [1, 1]} : vector<2x512xf32> to vector<2x128xf32>
    %82 = arith.negf %81 : vector<2x128xf32>
    %83 = math.exp %82 : vector<2x128xf32>
    %cst_30 = arith.constant 1.000000e+00 : f32
    %84 = vector.broadcast %cst_30 : f32 to vector<2x128xf32>
    %85 = arith.addf %84, %83 : vector<2x128xf32>
    %86 = arith.divf %84, %85 : vector<2x128xf32>
    %87 = vector.extract_strided_slice %80 {offsets = [0, 128], sizes = [2, 128], strides = [1, 1]} : vector<2x512xf32> to vector<2x128xf32>
    %88 = arith.negf %87 : vector<2x128xf32>
    %89 = math.exp %88 : vector<2x128xf32>
    %cst_31 = arith.constant 1.000000e+00 : f32
    %90 = vector.broadcast %cst_31 : f32 to vector<2x128xf32>
    %91 = arith.addf %90, %89 : vector<2x128xf32>
    %92 = arith.divf %90, %91 : vector<2x128xf32>
    %93 = vector.extract_strided_slice %80 {offsets = [0, 256], sizes = [2, 128], strides = [1, 1]} : vector<2x512xf32> to vector<2x128xf32>
    %94 = math.tanh %93 : vector<2x128xf32>
    %95 = vector.extract_strided_slice %80 {offsets = [0, 384], sizes = [2, 128], strides = [1, 1]} : vector<2x512xf32> to vector<2x128xf32>
    %96 = arith.negf %95 : vector<2x128xf32>
    %97 = math.exp %96 : vector<2x128xf32>
    %cst_32 = arith.constant 1.000000e+00 : f32
    %98 = vector.broadcast %cst_32 : f32 to vector<2x128xf32>
    %99 = arith.addf %98, %97 : vector<2x128xf32>
    %100 = arith.divf %98, %99 : vector<2x128xf32>
    %101 = arith.mulf %92, %72 : vector<2x128xf32>
    %102 = arith.mulf %86, %94 : vector<2x128xf32>
    %103 = arith.addf %101, %102 : vector<2x128xf32>
    %104 = math.tanh %103 : vector<2x128xf32>
    %105 = arith.mulf %100, %104 : vector<2x128xf32>
    %106 = vector.shape_cast %105 : vector<2x128xf32> to vector<2x1x128xf32>
    %c0_33 = arith.constant 0 : index
    %c2 = arith.constant 2 : index
    %c0_34 = arith.constant 0 : index
    %107 = vector.load %arg14[%c0_33, %c2, %c0_34] : memref<2x8x128xf32, #tpu.memory_space<vmem>>, vector<2x1x128xf32>
    tpu.vector_store %arg14[%c0_33, %c2, %c0_34], %106 {strides = array<i32>} : memref<2x8x128xf32, #tpu.memory_space<vmem>>, vector<2x1x128xf32>,
    %108 = vector.extract_strided_slice %8 {offsets = [0, 3, 0], sizes = [2, 1, 512], strides = [1, 1, 1]} : vector<2x8x512xf32> to vector<2x1x512xf32>
    %109 = vector.shape_cast %108 : vector<2x1x512xf32> to vector<2x512xf32>
    %cst_35 = arith.constant dense<0.000000e+00> : vector<2x512xf32>
    %110 = tpu.matmul %105, %10, %cst_35 {dimension_numbers = #tpu.dot_dimension_numbers<[1], [0], [0], [1], [0, 0, 1, 1], [], []>} : vector<2x128xf32>, vector<128x512xf32>, vector<2x512xf32> -> vector<2x512xf32>
    %111 = arith.addf %109, %110 : vector<2x512xf32>
    %112 = vector.extract_strided_slice %111 {offsets = [0, 0], sizes = [2, 128], strides = [1, 1]} : vector<2x512xf32> to vector<2x128xf32>
    %113 = arith.negf %112 : vector<2x128xf32>
    %114 = math.exp %113 : vector<2x128xf32>
    %cst_36 = arith.constant 1.000000e+00 : f32
    %115 = vector.broadcast %cst_36 : f32 to vector<2x128xf32>
    %116 = arith.addf %115, %114 : vector<2x128xf32>
    %117 = arith.divf %115, %116 : vector<2x128xf32>
    %118 = vector.extract_strided_slice %111 {offsets = [0, 128], sizes = [2, 128], strides = [1, 1]} : vector<2x512xf32> to vector<2x128xf32>
    %119 = arith.negf %118 : vector<2x128xf32>
    %120 = math.exp %119 : vector<2x128xf32>
    %cst_37 = arith.constant 1.000000e+00 : f32
    %121 = vector.broadcast %cst_37 : f32 to vector<2x128xf32>
    %122 = arith.addf %121, %120 : vector<2x128xf32>
    %123 = arith.divf %121, %122 : vector<2x128xf32>
    %124 = vector.extract_strided_slice %111 {offsets = [0, 256], sizes = [2, 128], strides = [1, 1]} : vector<2x512xf32> to vector<2x128xf32>
    %125 = math.tanh %124 : vector<2x128xf32>
    %126 = vector.extract_strided_slice %111 {offsets = [0, 384], sizes = [2, 128], strides = [1, 1]} : vector<2x512xf32> to vector<2x128xf32>
    %127 = arith.negf %126 : vector<2x128xf32>
    %128 = math.exp %127 : vector<2x128xf32>
    %cst_38 = arith.constant 1.000000e+00 : f32
    %129 = vector.broadcast %cst_38 : f32 to vector<2x128xf32>
    %130 = arith.addf %129, %128 : vector<2x128xf32>
    %131 = arith.divf %129, %130 : vector<2x128xf32>
    %132 = arith.mulf %123, %103 : vector<2x128xf32>
    %133 = arith.mulf %117, %125 : vector<2x128xf32>
    %134 = arith.addf %132, %133 : vector<2x128xf32>
    %135 = math.tanh %134 : vector<2x128xf32>
    %136 = arith.mulf %131, %135 : vector<2x128xf32>
    %137 = vector.shape_cast %136 : vector<2x128xf32> to vector<2x1x128xf32>
    %c0_39 = arith.constant 0 : index
    %c3 = arith.constant 3 : index
    %c0_40 = arith.constant 0 : index
    %138 = vector.load %arg14[%c0_39, %c3, %c0_40] : memref<2x8x128xf32, #tpu.memory_space<vmem>>, vector<2x1x128xf32>
    tpu.vector_store %arg14[%c0_39, %c3, %c0_40], %137 {strides = array<i32>} : memref<2x8x128xf32, #tpu.memory_space<vmem>>, vector<2x1x128xf32>,
    %139 = vector.extract_strided_slice %8 {offsets = [0, 4, 0], sizes = [2, 1, 512], strides = [1, 1, 1]} : vector<2x8x512xf32> to vector<2x1x512xf32>
    %140 = vector.shape_cast %139 : vector<2x1x512xf32> to vector<2x512xf32>
    %cst_41 = arith.constant dense<0.000000e+00> : vector<2x512xf32>
    %141 = tpu.matmul %136, %10, %cst_41 {dimension_numbers = #tpu.dot_dimension_numbers<[1], [0], [0], [1], [0, 0, 1, 1], [], []>} : vector<2x128xf32>, vector<128x512xf32>, vector<2x512xf32> -> vector<2x512xf32>
    %142 = arith.addf %140, %141 : vector<2x512xf32>
    %143 = vector.extract_strided_slice %142 {offsets = [0, 0], sizes = [2, 128], strides = [1, 1]} : vector<2x512xf32> to vector<2x128xf32>
    %144 = arith.negf %143 : vector<2x128xf32>
    %145 = math.exp %144 : vector<2x128xf32>
    %cst_42 = arith.constant 1.000000e+00 : f32
    %146 = vector.broadcast %cst_42 : f32 to vector<2x128xf32>
    %147 = arith.addf %146, %145 : vector<2x128xf32>
    %148 = arith.divf %146, %147 : vector<2x128xf32>
    %149 = vector.extract_strided_slice %142 {offsets = [0, 128], sizes = [2, 128], strides = [1, 1]} : vector<2x512xf32> to vector<2x128xf32>
    %150 = arith.negf %149 : vector<2x128xf32>
    %151 = math.exp %150 : vector<2x128xf32>
    %cst_43 = arith.constant 1.000000e+00 : f32
    %152 = vector.broadcast %cst_43 : f32 to vector<2x128xf32>
    %153 = arith.addf %152, %151 : vector<2x128xf32>
    %154 = arith.divf %152, %153 : vector<2x128xf32>
    %155 = vector.extract_strided_slice %142 {offsets = [0, 256], sizes = [2, 128], strides = [1, 1]} : vector<2x512xf32> to vector<2x128xf32>
    %156 = math.tanh %155 : vector<2x128xf32>
    %157 = vector.extract_strided_slice %142 {offsets = [0, 384], sizes = [2, 128], strides = [1, 1]} : vector<2x512xf32> to vector<2x128xf32>
    %158 = arith.negf %157 : vector<2x128xf32>
    %159 = math.exp %158 : vector<2x128xf32>
    %cst_44 = arith.constant 1.000000e+00 : f32
    %160 = vector.broadcast %cst_44 : f32 to vector<2x128xf32>
    %161 = arith.addf %160, %159 : vector<2x128xf32>
    %162 = arith.divf %160, %161 : vector<2x128xf32>
    %163 = arith.mulf %154, %134 : vector<2x128xf32>
    %164 = arith.mulf %148, %156 : vector<2x128xf32>
    %165 = arith.addf %163, %164 : vector<2x128xf32>
    %166 = math.tanh %165 : vector<2x128xf32>
    %167 = arith.mulf %162, %166 : vector<2x128xf32>
    %168 = vector.shape_cast %167 : vector<2x128xf32> to vector<2x1x128xf32>
    %c0_45 = arith.constant 0 : index
    %c4 = arith.constant 4 : index
    %c0_46 = arith.constant 0 : index
    %169 = vector.load %arg14[%c0_45, %c4, %c0_46] : memref<2x8x128xf32, #tpu.memory_space<vmem>>, vector<2x1x128xf32>
    tpu.vector_store %arg14[%c0_45, %c4, %c0_46], %168 {strides = array<i32>} : memref<2x8x128xf32, #tpu.memory_space<vmem>>, vector<2x1x128xf32>,
    %170 = vector.extract_strided_slice %8 {offsets = [0, 5, 0], sizes = [2, 1, 512], strides = [1, 1, 1]} : vector<2x8x512xf32> to vector<2x1x512xf32>
    %171 = vector.shape_cast %170 : vector<2x1x512xf32> to vector<2x512xf32>
    %cst_47 = arith.constant dense<0.000000e+00> : vector<2x512xf32>
    %172 = tpu.matmul %167, %10, %cst_47 {dimension_numbers = #tpu.dot_dimension_numbers<[1], [0], [0], [1], [0, 0, 1, 1], [], []>} : vector<2x128xf32>, vector<128x512xf32>, vector<2x512xf32> -> vector<2x512xf32>
    %173 = arith.addf %171, %172 : vector<2x512xf32>
    %174 = vector.extract_strided_slice %173 {offsets = [0, 0], sizes = [2, 128], strides = [1, 1]} : vector<2x512xf32> to vector<2x128xf32>
    %175 = arith.negf %174 : vector<2x128xf32>
    %176 = math.exp %175 : vector<2x128xf32>
    %cst_48 = arith.constant 1.000000e+00 : f32
    %177 = vector.broadcast %cst_48 : f32 to vector<2x128xf32>
    %178 = arith.addf %177, %176 : vector<2x128xf32>
    %179 = arith.divf %177, %178 : vector<2x128xf32>
    %180 = vector.extract_strided_slice %173 {offsets = [0, 128], sizes = [2, 128], strides = [1, 1]} : vector<2x512xf32> to vector<2x128xf32>
    %181 = arith.negf %180 : vector<2x128xf32>
    %182 = math.exp %181 : vector<2x128xf32>
    %cst_49 = arith.constant 1.000000e+00 : f32
    %183 = vector.broadcast %cst_49 : f32 to vector<2x128xf32>
    %184 = arith.addf %183, %182 : vector<2x128xf32>
    %185 = arith.divf %183, %184 : vector<2x128xf32>
    %186 = vector.extract_strided_slice %173 {offsets = [0, 256], sizes = [2, 128], strides = [1, 1]} : vector<2x512xf32> to vector<2x128xf32>
    %187 = math.tanh %186 : vector<2x128xf32>
    %188 = vector.extract_strided_slice %173 {offsets = [0, 384], sizes = [2, 128], strides = [1, 1]} : vector<2x512xf32> to vector<2x128xf32>
    %189 = arith.negf %188 : vector<2x128xf32>
    %190 = math.exp %189 : vector<2x128xf32>
    %cst_50 = arith.constant 1.000000e+00 : f32
    %191 = vector.broadcast %cst_50 : f32 to vector<2x128xf32>
    %192 = arith.addf %191, %190 : vector<2x128xf32>
    %193 = arith.divf %191, %192 : vector<2x128xf32>
    %194 = arith.mulf %185, %165 : vector<2x128xf32>
    %195 = arith.mulf %179, %187 : vector<2x128xf32>
    %196 = arith.addf %194, %195 : vector<2x128xf32>
    %197 = math.tanh %196 : vector<2x128xf32>
    %198 = arith.mulf %193, %197 : vector<2x128xf32>
    %199 = vector.shape_cast %198 : vector<2x128xf32> to vector<2x1x128xf32>
    %c0_51 = arith.constant 0 : index
    %c5 = arith.constant 5 : index
    %c0_52 = arith.constant 0 : index
    %200 = vector.load %arg14[%c0_51, %c5, %c0_52] : memref<2x8x128xf32, #tpu.memory_space<vmem>>, vector<2x1x128xf32>
    tpu.vector_store %arg14[%c0_51, %c5, %c0_52], %199 {strides = array<i32>} : memref<2x8x128xf32, #tpu.memory_space<vmem>>, vector<2x1x128xf32>,
    %201 = vector.extract_strided_slice %8 {offsets = [0, 6, 0], sizes = [2, 1, 512], strides = [1, 1, 1]} : vector<2x8x512xf32> to vector<2x1x512xf32>
    %202 = vector.shape_cast %201 : vector<2x1x512xf32> to vector<2x512xf32>
    %cst_53 = arith.constant dense<0.000000e+00> : vector<2x512xf32>
    %203 = tpu.matmul %198, %10, %cst_53 {dimension_numbers = #tpu.dot_dimension_numbers<[1], [0], [0], [1], [0, 0, 1, 1], [], []>} : vector<2x128xf32>, vector<128x512xf32>, vector<2x512xf32> -> vector<2x512xf32>
    %204 = arith.addf %202, %203 : vector<2x512xf32>
    %205 = vector.extract_strided_slice %204 {offsets = [0, 0], sizes = [2, 128], strides = [1, 1]} : vector<2x512xf32> to vector<2x128xf32>
    %206 = arith.negf %205 : vector<2x128xf32>
    %207 = math.exp %206 : vector<2x128xf32>
    %cst_54 = arith.constant 1.000000e+00 : f32
    %208 = vector.broadcast %cst_54 : f32 to vector<2x128xf32>
    %209 = arith.addf %208, %207 : vector<2x128xf32>
    %210 = arith.divf %208, %209 : vector<2x128xf32>
    %211 = vector.extract_strided_slice %204 {offsets = [0, 128], sizes = [2, 128], strides = [1, 1]} : vector<2x512xf32> to vector<2x128xf32>
    %212 = arith.negf %211 : vector<2x128xf32>
    %213 = math.exp %212 : vector<2x128xf32>
    %cst_55 = arith.constant 1.000000e+00 : f32
    %214 = vector.broadcast %cst_55 : f32 to vector<2x128xf32>
    %215 = arith.addf %214, %213 : vector<2x128xf32>
    %216 = arith.divf %214, %215 : vector<2x128xf32>
    %217 = vector.extract_strided_slice %204 {offsets = [0, 256], sizes = [2, 128], strides = [1, 1]} : vector<2x512xf32> to vector<2x128xf32>
    %218 = math.tanh %217 : vector<2x128xf32>
    %219 = vector.extract_strided_slice %204 {offsets = [0, 384], sizes = [2, 128], strides = [1, 1]} : vector<2x512xf32> to vector<2x128xf32>
    %220 = arith.negf %219 : vector<2x128xf32>
    %221 = math.exp %220 : vector<2x128xf32>
    %cst_56 = arith.constant 1.000000e+00 : f32
    %222 = vector.broadcast %cst_56 : f32 to vector<2x128xf32>
    %223 = arith.addf %222, %221 : vector<2x128xf32>
    %224 = arith.divf %222, %223 : vector<2x128xf32>
    %225 = arith.mulf %216, %196 : vector<2x128xf32>
    %226 = arith.mulf %210, %218 : vector<2x128xf32>
    %227 = arith.addf %225, %226 : vector<2x128xf32>
    %228 = math.tanh %227 : vector<2x128xf32>
    %229 = arith.mulf %224, %228 : vector<2x128xf32>
    %230 = vector.shape_cast %229 : vector<2x128xf32> to vector<2x1x128xf32>
    %c0_57 = arith.constant 0 : index
    %c6 = arith.constant 6 : index
    %c0_58 = arith.constant 0 : index
    %231 = vector.load %arg14[%c0_57, %c6, %c0_58] : memref<2x8x128xf32, #tpu.memory_space<vmem>>, vector<2x1x128xf32>
    tpu.vector_store %arg14[%c0_57, %c6, %c0_58], %230 {strides = array<i32>} : memref<2x8x128xf32, #tpu.memory_space<vmem>>, vector<2x1x128xf32>,
    %232 = vector.extract_strided_slice %8 {offsets = [0, 7, 0], sizes = [2, 1, 512], strides = [1, 1, 1]} : vector<2x8x512xf32> to vector<2x1x512xf32>
    %233 = vector.shape_cast %232 : vector<2x1x512xf32> to vector<2x512xf32>
    %cst_59 = arith.constant dense<0.000000e+00> : vector<2x512xf32>
    %234 = tpu.matmul %229, %10, %cst_59 {dimension_numbers = #tpu.dot_dimension_numbers<[1], [0], [0], [1], [0, 0, 1, 1], [], []>} : vector<2x128xf32>, vector<128x512xf32>, vector<2x512xf32> -> vector<2x512xf32>
    %235 = arith.addf %233, %234 : vector<2x512xf32>
    %236 = vector.extract_strided_slice %235 {offsets = [0, 0], sizes = [2, 128], strides = [1, 1]} : vector<2x512xf32> to vector<2x128xf32>
    %237 = arith.negf %236 : vector<2x128xf32>
    %238 = math.exp %237 : vector<2x128xf32>
    %cst_60 = arith.constant 1.000000e+00 : f32
    %239 = vector.broadcast %cst_60 : f32 to vector<2x128xf32>
    %240 = arith.addf %239, %238 : vector<2x128xf32>
    %241 = arith.divf %239, %240 : vector<2x128xf32>
    %242 = vector.extract_strided_slice %235 {offsets = [0, 128], sizes = [2, 128], strides = [1, 1]} : vector<2x512xf32> to vector<2x128xf32>
    %243 = arith.negf %242 : vector<2x128xf32>
    %244 = math.exp %243 : vector<2x128xf32>
    %cst_61 = arith.constant 1.000000e+00 : f32
    %245 = vector.broadcast %cst_61 : f32 to vector<2x128xf32>
    %246 = arith.addf %245, %244 : vector<2x128xf32>
    %247 = arith.divf %245, %246 : vector<2x128xf32>
    %248 = vector.extract_strided_slice %235 {offsets = [0, 256], sizes = [2, 128], strides = [1, 1]} : vector<2x512xf32> to vector<2x128xf32>
    %249 = math.tanh %248 : vector<2x128xf32>
    %250 = vector.extract_strided_slice %235 {offsets = [0, 384], sizes = [2, 128], strides = [1, 1]} : vector<2x512xf32> to vector<2x128xf32>
    %251 = arith.negf %250 : vector<2x128xf32>
    %252 = math.exp %251 : vector<2x128xf32>
    %cst_62 = arith.constant 1.000000e+00 : f32
    %253 = vector.broadcast %cst_62 : f32 to vector<2x128xf32>
    %254 = arith.addf %253, %252 : vector<2x128xf32>
    %255 = arith.divf %253, %254 : vector<2x128xf32>
    %256 = arith.mulf %247, %227 : vector<2x128xf32>
    %257 = arith.mulf %241, %249 : vector<2x128xf32>
    %258 = arith.addf %256, %257 : vector<2x128xf32>
    %259 = math.tanh %258 : vector<2x128xf32>
    %260 = arith.mulf %255, %259 : vector<2x128xf32>
    %261 = vector.shape_cast %260 : vector<2x128xf32> to vector<2x1x128xf32>
    %c0_63 = arith.constant 0 : index
    %c7 = arith.constant 7 : index
    %c0_64 = arith.constant 0 : index
    %262 = vector.load %arg14[%c0_63, %c7, %c0_64] : memref<2x8x128xf32, #tpu.memory_space<vmem>>, vector<2x1x128xf32>
    tpu.vector_store %arg14[%c0_63, %c7, %c0_64], %261 {strides = array<i32>} : memref<2x8x128xf32, #tpu.memory_space<vmem>>, vector<2x1x128xf32>,
    %263 = vector.extract_strided_slice %260 {offsets = [0, 0], sizes = [2, 54], strides = [1, 1]} : vector<2x128xf32> to vector<2x54xf32>
    %c0_65 = arith.constant 0 : index
    %c0_66 = arith.constant 0 : index
    %c0_67 = arith.constant 0 : index
    %264 = vector.load %arg12[%c0_65, %c0_66, %c0_67] : memref<4x2x54xf32, #tpu.memory_space<vmem>>, vector<1x2x54xf32>
    %265 = vector.shape_cast %264 : vector<1x2x54xf32> to vector<2x54xf32>
    %266 = vector.shape_cast %263 : vector<2x54xf32> to vector<1x2x54xf32>
    tpu.vector_store %arg12[%c0_65, %c0_66, %c0_67], %266 {strides = array<i32>} : memref<4x2x54xf32, #tpu.memory_space<vmem>>, vector<1x2x54xf32>,
    %267 = vector.extract_strided_slice %258 {offsets = [0, 0], sizes = [2, 54], strides = [1, 1]} : vector<2x128xf32> to vector<2x54xf32>
    %c0_68 = arith.constant 0 : index
    %c0_69 = arith.constant 0 : index
    %c0_70 = arith.constant 0 : index
    %268 = vector.load %arg13[%c0_68, %c0_69, %c0_70] : memref<4x2x54xf32, #tpu.memory_space<vmem>>, vector<1x2x54xf32>
    %269 = vector.shape_cast %268 : vector<1x2x54xf32> to vector<2x54xf32>
    %270 = vector.shape_cast %267 : vector<2x54xf32> to vector<1x2x54xf32>
    tpu.vector_store %arg13[%c0_68, %c0_69, %c0_70], %270 {strides = array<i32>} : memref<4x2x54xf32, #tpu.memory_space<vmem>>, vector<1x2x54xf32>,
    %c0_71 = arith.constant 0 : index
    %c0_72 = arith.constant 0 : index
    %c0_73 = arith.constant 0 : index
    %271 = vector.load %arg14[%c0_71, %c0_72, %c0_73] : memref<2x8x128xf32, #tpu.memory_space<vmem>>, vector<2x8x128xf32>
    %272 = vector.shape_cast %271 : vector<2x8x128xf32> to vector<16x128xf32>
    %c0_74 = arith.constant 0 : index
    %c0_75 = arith.constant 0 : index
    %c0_76 = arith.constant 0 : index
    %273 = vector.load %arg4[%c0_74, %c0_75, %c0_76] : memref<3x128x512xf32, #tpu.memory_space<vmem>>, vector<1x128x512xf32>
    %274 = vector.shape_cast %273 : vector<1x128x512xf32> to vector<128x512xf32>
    %cst_77 = arith.constant dense<0.000000e+00> : vector<16x512xf32>
    %275 = tpu.matmul %272, %274, %cst_77 {dimension_numbers = #tpu.dot_dimension_numbers<[1], [0], [0], [1], [0, 0, 1, 1], [], []>} : vector<16x128xf32>, vector<128x512xf32>, vector<16x512xf32> -> vector<16x512xf32>
    %c1_78 = arith.constant 1 : index
    %c0_79 = arith.constant 0 : index
    %c0_80 = arith.constant 0 : index
    %276 = vector.load %arg6[%c1_78, %c0_79, %c0_80] : memref<4x1x512xf32, #tpu.memory_space<vmem>>, vector<1x1x512xf32>
    %277 = vector.shape_cast %276 : vector<1x1x512xf32> to vector<1x512xf32>
    %278 = vector.broadcast %277 : vector<1x512xf32> to vector<16x512xf32>
    %279 = arith.addf %275, %278 : vector<16x512xf32>
    %280 = vector.shape_cast %279 : vector<16x512xf32> to vector<2x8x512xf32>
    %c1_81 = arith.constant 1 : index
    %c0_82 = arith.constant 0 : index
    %c0_83 = arith.constant 0 : index
    %281 = vector.load %arg5[%c1_81, %c0_82, %c0_83] : memref<4x128x512xf32, #tpu.memory_space<vmem>>, vector<1x128x512xf32>
    %282 = vector.shape_cast %281 : vector<1x128x512xf32> to vector<128x512xf32>
    %c1_84 = arith.constant 1 : index
    %c0_85 = arith.constant 0 : index
    %c0_86 = arith.constant 0 : index
    %283 = vector.load %arg1[%c1_84, %c0_85, %c0_86] : memref<4x2x128xf32, #tpu.memory_space<vmem>>, vector<1x2x128xf32>
    %284 = vector.shape_cast %283 : vector<1x2x128xf32> to vector<2x128xf32>
    %c1_87 = arith.constant 1 : index
    %c0_88 = arith.constant 0 : index
    %c0_89 = arith.constant 0 : index
    %285 = vector.load %arg2[%c1_87, %c0_88, %c0_89] : memref<4x2x128xf32, #tpu.memory_space<vmem>>, vector<1x2x128xf32>
    %286 = vector.shape_cast %285 : vector<1x2x128xf32> to vector<2x128xf32>
    %287 = vector.extract_strided_slice %280 {offsets = [0, 0, 0], sizes = [2, 1, 512], strides = [1, 1, 1]} : vector<2x8x512xf32> to vector<2x1x512xf32>
    %288 = vector.shape_cast %287 : vector<2x1x512xf32> to vector<2x512xf32>
    %cst_90 = arith.constant dense<0.000000e+00> : vector<2x512xf32>
    %289 = tpu.matmul %284, %282, %cst_90 {dimension_numbers = #tpu.dot_dimension_numbers<[1], [0], [0], [1], [0, 0, 1, 1], [], []>} : vector<2x128xf32>, vector<128x512xf32>, vector<2x512xf32> -> vector<2x512xf32>
    %290 = arith.addf %288, %289 : vector<2x512xf32>
    %291 = vector.extract_strided_slice %290 {offsets = [0, 0], sizes = [2, 128], strides = [1, 1]} : vector<2x512xf32> to vector<2x128xf32>
    %292 = arith.negf %291 : vector<2x128xf32>
    %293 = math.exp %292 : vector<2x128xf32>
    %cst_91 = arith.constant 1.000000e+00 : f32
    %294 = vector.broadcast %cst_91 : f32 to vector<2x128xf32>
    %295 = arith.addf %294, %293 : vector<2x128xf32>
    %296 = arith.divf %294, %295 : vector<2x128xf32>
    %297 = vector.extract_strided_slice %290 {offsets = [0, 128], sizes = [2, 128], strides = [1, 1]} : vector<2x512xf32> to vector<2x128xf32>
    %298 = arith.negf %297 : vector<2x128xf32>
    %299 = math.exp %298 : vector<2x128xf32>
    %cst_92 = arith.constant 1.000000e+00 : f32
    %300 = vector.broadcast %cst_92 : f32 to vector<2x128xf32>
    %301 = arith.addf %300, %299 : vector<2x128xf32>
    %302 = arith.divf %300, %301 : vector<2x128xf32>
    %303 = vector.extract_strided_slice %290 {offsets = [0, 256], sizes = [2, 128], strides = [1, 1]} : vector<2x512xf32> to vector<2x128xf32>
    %304 = math.tanh %303 : vector<2x128xf32>
    %305 = vector.extract_strided_slice %290 {offsets = [0, 384], sizes = [2, 128], strides = [1, 1]} : vector<2x512xf32> to vector<2x128xf32>
    %306 = arith.negf %305 : vector<2x128xf32>
    %307 = math.exp %306 : vector<2x128xf32>
    %cst_93 = arith.constant 1.000000e+00 : f32
    %308 = vector.broadcast %cst_93 : f32 to vector<2x128xf32>
    %309 = arith.addf %308, %307 : vector<2x128xf32>
    %310 = arith.divf %308, %309 : vector<2x128xf32>
    %311 = arith.mulf %302, %286 : vector<2x128xf32>
    %312 = arith.mulf %296, %304 : vector<2x128xf32>
    %313 = arith.addf %311, %312 : vector<2x128xf32>
    %314 = math.tanh %313 : vector<2x128xf32>
    %315 = arith.mulf %310, %314 : vector<2x128xf32>
    %316 = vector.shape_cast %315 : vector<2x128xf32> to vector<2x1x128xf32>
    %c0_94 = arith.constant 0 : index
    %c0_95 = arith.constant 0 : index
    %c0_96 = arith.constant 0 : index
    %317 = vector.load %arg14[%c0_94, %c0_95, %c0_96] : memref<2x8x128xf32, #tpu.memory_space<vmem>>, vector<2x1x128xf32>
    tpu.vector_store %arg14[%c0_94, %c0_95, %c0_96], %316 {strides = array<i32>} : memref<2x8x128xf32, #tpu.memory_space<vmem>>, vector<2x1x128xf32>,
    %318 = vector.extract_strided_slice %280 {offsets = [0, 1, 0], sizes = [2, 1, 512], strides = [1, 1, 1]} : vector<2x8x512xf32> to vector<2x1x512xf32>
    %319 = vector.shape_cast %318 : vector<2x1x512xf32> to vector<2x512xf32>
    %cst_97 = arith.constant dense<0.000000e+00> : vector<2x512xf32>
    %320 = tpu.matmul %315, %282, %cst_97 {dimension_numbers = #tpu.dot_dimension_numbers<[1], [0], [0], [1], [0, 0, 1, 1], [], []>} : vector<2x128xf32>, vector<128x512xf32>, vector<2x512xf32> -> vector<2x512xf32>
    %321 = arith.addf %319, %320 : vector<2x512xf32>
    %322 = vector.extract_strided_slice %321 {offsets = [0, 0], sizes = [2, 128], strides = [1, 1]} : vector<2x512xf32> to vector<2x128xf32>
    %323 = arith.negf %322 : vector<2x128xf32>
    %324 = math.exp %323 : vector<2x128xf32>
    %cst_98 = arith.constant 1.000000e+00 : f32
    %325 = vector.broadcast %cst_98 : f32 to vector<2x128xf32>
    %326 = arith.addf %325, %324 : vector<2x128xf32>
    %327 = arith.divf %325, %326 : vector<2x128xf32>
    %328 = vector.extract_strided_slice %321 {offsets = [0, 128], sizes = [2, 128], strides = [1, 1]} : vector<2x512xf32> to vector<2x128xf32>
    %329 = arith.negf %328 : vector<2x128xf32>
    %330 = math.exp %329 : vector<2x128xf32>
    %cst_99 = arith.constant 1.000000e+00 : f32
    %331 = vector.broadcast %cst_99 : f32 to vector<2x128xf32>
    %332 = arith.addf %331, %330 : vector<2x128xf32>
    %333 = arith.divf %331, %332 : vector<2x128xf32>
    %334 = vector.extract_strided_slice %321 {offsets = [0, 256], sizes = [2, 128], strides = [1, 1]} : vector<2x512xf32> to vector<2x128xf32>
    %335 = math.tanh %334 : vector<2x128xf32>
    %336 = vector.extract_strided_slice %321 {offsets = [0, 384], sizes = [2, 128], strides = [1, 1]} : vector<2x512xf32> to vector<2x128xf32>
    %337 = arith.negf %336 : vector<2x128xf32>
    %338 = math.exp %337 : vector<2x128xf32>
    %cst_100 = arith.constant 1.000000e+00 : f32
    %339 = vector.broadcast %cst_100 : f32 to vector<2x128xf32>
    %340 = arith.addf %339, %338 : vector<2x128xf32>
    %341 = arith.divf %339, %340 : vector<2x128xf32>
    %342 = arith.mulf %333, %313 : vector<2x128xf32>
    %343 = arith.mulf %327, %335 : vector<2x128xf32>
    %344 = arith.addf %342, %343 : vector<2x128xf32>
    %345 = math.tanh %344 : vector<2x128xf32>
    %346 = arith.mulf %341, %345 : vector<2x128xf32>
    %347 = vector.shape_cast %346 : vector<2x128xf32> to vector<2x1x128xf32>
    %c0_101 = arith.constant 0 : index
    %c1_102 = arith.constant 1 : index
    %c0_103 = arith.constant 0 : index
    %348 = vector.load %arg14[%c0_101, %c1_102, %c0_103] : memref<2x8x128xf32, #tpu.memory_space<vmem>>, vector<2x1x128xf32>
    tpu.vector_store %arg14[%c0_101, %c1_102, %c0_103], %347 {strides = array<i32>} : memref<2x8x128xf32, #tpu.memory_space<vmem>>, vector<2x1x128xf32>,
    %349 = vector.extract_strided_slice %280 {offsets = [0, 2, 0], sizes = [2, 1, 512], strides = [1, 1, 1]} : vector<2x8x512xf32> to vector<2x1x512xf32>
    %350 = vector.shape_cast %349 : vector<2x1x512xf32> to vector<2x512xf32>
    %cst_104 = arith.constant dense<0.000000e+00> : vector<2x512xf32>
    %351 = tpu.matmul %346, %282, %cst_104 {dimension_numbers = #tpu.dot_dimension_numbers<[1], [0], [0], [1], [0, 0, 1, 1], [], []>} : vector<2x128xf32>, vector<128x512xf32>, vector<2x512xf32> -> vector<2x512xf32>
    %352 = arith.addf %350, %351 : vector<2x512xf32>
    %353 = vector.extract_strided_slice %352 {offsets = [0, 0], sizes = [2, 128], strides = [1, 1]} : vector<2x512xf32> to vector<2x128xf32>
    %354 = arith.negf %353 : vector<2x128xf32>
    %355 = math.exp %354 : vector<2x128xf32>
    %cst_105 = arith.constant 1.000000e+00 : f32
    %356 = vector.broadcast %cst_105 : f32 to vector<2x128xf32>
    %357 = arith.addf %356, %355 : vector<2x128xf32>
    %358 = arith.divf %356, %357 : vector<2x128xf32>
    %359 = vector.extract_strided_slice %352 {offsets = [0, 128], sizes = [2, 128], strides = [1, 1]} : vector<2x512xf32> to vector<2x128xf32>
    %360 = arith.negf %359 : vector<2x128xf32>
    %361 = math.exp %360 : vector<2x128xf32>
    %cst_106 = arith.constant 1.000000e+00 : f32
    %362 = vector.broadcast %cst_106 : f32 to vector<2x128xf32>
    %363 = arith.addf %362, %361 : vector<2x128xf32>
    %364 = arith.divf %362, %363 : vector<2x128xf32>
    %365 = vector.extract_strided_slice %352 {offsets = [0, 256], sizes = [2, 128], strides = [1, 1]} : vector<2x512xf32> to vector<2x128xf32>
    %366 = math.tanh %365 : vector<2x128xf32>
    %367 = vector.extract_strided_slice %352 {offsets = [0, 384], sizes = [2, 128], strides = [1, 1]} : vector<2x512xf32> to vector<2x128xf32>
    %368 = arith.negf %367 : vector<2x128xf32>
    %369 = math.exp %368 : vector<2x128xf32>
    %cst_107 = arith.constant 1.000000e+00 : f32
    %370 = vector.broadcast %cst_107 : f32 to vector<2x128xf32>
    %371 = arith.addf %370, %369 : vector<2x128xf32>
    %372 = arith.divf %370, %371 : vector<2x128xf32>
    %373 = arith.mulf %364, %344 : vector<2x128xf32>
    %374 = arith.mulf %358, %366 : vector<2x128xf32>
    %375 = arith.addf %373, %374 : vector<2x128xf32>
    %376 = math.tanh %375 : vector<2x128xf32>
    %377 = arith.mulf %372, %376 : vector<2x128xf32>
    %378 = vector.shape_cast %377 : vector<2x128xf32> to vector<2x1x128xf32>
    %c0_108 = arith.constant 0 : index
    %c2_109 = arith.constant 2 : index
    %c0_110 = arith.constant 0 : index
    %379 = vector.load %arg14[%c0_108, %c2_109, %c0_110] : memref<2x8x128xf32, #tpu.memory_space<vmem>>, vector<2x1x128xf32>
    tpu.vector_store %arg14[%c0_108, %c2_109, %c0_110], %378 {strides = array<i32>} : memref<2x8x128xf32, #tpu.memory_space<vmem>>, vector<2x1x128xf32>,
    %380 = vector.extract_strided_slice %280 {offsets = [0, 3, 0], sizes = [2, 1, 512], strides = [1, 1, 1]} : vector<2x8x512xf32> to vector<2x1x512xf32>
    %381 = vector.shape_cast %380 : vector<2x1x512xf32> to vector<2x512xf32>
    %cst_111 = arith.constant dense<0.000000e+00> : vector<2x512xf32>
    %382 = tpu.matmul %377, %282, %cst_111 {dimension_numbers = #tpu.dot_dimension_numbers<[1], [0], [0], [1], [0, 0, 1, 1], [], []>} : vector<2x128xf32>, vector<128x512xf32>, vector<2x512xf32> -> vector<2x512xf32>
    %383 = arith.addf %381, %382 : vector<2x512xf32>
    %384 = vector.extract_strided_slice %383 {offsets = [0, 0], sizes = [2, 128], strides = [1, 1]} : vector<2x512xf32> to vector<2x128xf32>
    %385 = arith.negf %384 : vector<2x128xf32>
    %386 = math.exp %385 : vector<2x128xf32>
    %cst_112 = arith.constant 1.000000e+00 : f32
    %387 = vector.broadcast %cst_112 : f32 to vector<2x128xf32>
    %388 = arith.addf %387, %386 : vector<2x128xf32>
    %389 = arith.divf %387, %388 : vector<2x128xf32>
    %390 = vector.extract_strided_slice %383 {offsets = [0, 128], sizes = [2, 128], strides = [1, 1]} : vector<2x512xf32> to vector<2x128xf32>
    %391 = arith.negf %390 : vector<2x128xf32>
    %392 = math.exp %391 : vector<2x128xf32>
    %cst_113 = arith.constant 1.000000e+00 : f32
    %393 = vector.broadcast %cst_113 : f32 to vector<2x128xf32>
    %394 = arith.addf %393, %392 : vector<2x128xf32>
    %395 = arith.divf %393, %394 : vector<2x128xf32>
    %396 = vector.extract_strided_slice %383 {offsets = [0, 256], sizes = [2, 128], strides = [1, 1]} : vector<2x512xf32> to vector<2x128xf32>
    %397 = math.tanh %396 : vector<2x128xf32>
    %398 = vector.extract_strided_slice %383 {offsets = [0, 384], sizes = [2, 128], strides = [1, 1]} : vector<2x512xf32> to vector<2x128xf32>
    %399 = arith.negf %398 : vector<2x128xf32>
    %400 = math.exp %399 : vector<2x128xf32>
    %cst_114 = arith.constant 1.000000e+00 : f32
    %401 = vector.broadcast %cst_114 : f32 to vector<2x128xf32>
    %402 = arith.addf %401, %400 : vector<2x128xf32>
    %403 = arith.divf %401, %402 : vector<2x128xf32>
    %404 = arith.mulf %395, %375 : vector<2x128xf32>
    %405 = arith.mulf %389, %397 : vector<2x128xf32>
    %406 = arith.addf %404, %405 : vector<2x128xf32>
    %407 = math.tanh %406 : vector<2x128xf32>
    %408 = arith.mulf %403, %407 : vector<2x128xf32>
    %409 = vector.shape_cast %408 : vector<2x128xf32> to vector<2x1x128xf32>
    %c0_115 = arith.constant 0 : index
    %c3_116 = arith.constant 3 : index
    %c0_117 = arith.constant 0 : index
    %410 = vector.load %arg14[%c0_115, %c3_116, %c0_117] : memref<2x8x128xf32, #tpu.memory_space<vmem>>, vector<2x1x128xf32>
    tpu.vector_store %arg14[%c0_115, %c3_116, %c0_117], %409 {strides = array<i32>} : memref<2x8x128xf32, #tpu.memory_space<vmem>>, vector<2x1x128xf32>,
    %411 = vector.extract_strided_slice %280 {offsets = [0, 4, 0], sizes = [2, 1, 512], strides = [1, 1, 1]} : vector<2x8x512xf32> to vector<2x1x512xf32>
    %412 = vector.shape_cast %411 : vector<2x1x512xf32> to vector<2x512xf32>
    %cst_118 = arith.constant dense<0.000000e+00> : vector<2x512xf32>
    %413 = tpu.matmul %408, %282, %cst_118 {dimension_numbers = #tpu.dot_dimension_numbers<[1], [0], [0], [1], [0, 0, 1, 1], [], []>} : vector<2x128xf32>, vector<128x512xf32>, vector<2x512xf32> -> vector<2x512xf32>
    %414 = arith.addf %412, %413 : vector<2x512xf32>
    %415 = vector.extract_strided_slice %414 {offsets = [0, 0], sizes = [2, 128], strides = [1, 1]} : vector<2x512xf32> to vector<2x128xf32>
    %416 = arith.negf %415 : vector<2x128xf32>
    %417 = math.exp %416 : vector<2x128xf32>
    %cst_119 = arith.constant 1.000000e+00 : f32
    %418 = vector.broadcast %cst_119 : f32 to vector<2x128xf32>
    %419 = arith.addf %418, %417 : vector<2x128xf32>
    %420 = arith.divf %418, %419 : vector<2x128xf32>
    %421 = vector.extract_strided_slice %414 {offsets = [0, 128], sizes = [2, 128], strides = [1, 1]} : vector<2x512xf32> to vector<2x128xf32>
    %422 = arith.negf %421 : vector<2x128xf32>
    %423 = math.exp %422 : vector<2x128xf32>
    %cst_120 = arith.constant 1.000000e+00 : f32
    %424 = vector.broadcast %cst_120 : f32 to vector<2x128xf32>
    %425 = arith.addf %424, %423 : vector<2x128xf32>
    %426 = arith.divf %424, %425 : vector<2x128xf32>
    %427 = vector.extract_strided_slice %414 {offsets = [0, 256], sizes = [2, 128], strides = [1, 1]} : vector<2x512xf32> to vector<2x128xf32>
    %428 = math.tanh %427 : vector<2x128xf32>
    %429 = vector.extract_strided_slice %414 {offsets = [0, 384], sizes = [2, 128], strides = [1, 1]} : vector<2x512xf32> to vector<2x128xf32>
    %430 = arith.negf %429 : vector<2x128xf32>
    %431 = math.exp %430 : vector<2x128xf32>
    %cst_121 = arith.constant 1.000000e+00 : f32
    %432 = vector.broadcast %cst_121 : f32 to vector<2x128xf32>
    %433 = arith.addf %432, %431 : vector<2x128xf32>
    %434 = arith.divf %432, %433 : vector<2x128xf32>
    %435 = arith.mulf %426, %406 : vector<2x128xf32>
    %436 = arith.mulf %420, %428 : vector<2x128xf32>
    %437 = arith.addf %435, %436 : vector<2x128xf32>
    %438 = math.tanh %437 : vector<2x128xf32>
    %439 = arith.mulf %434, %438 : vector<2x128xf32>
    %440 = vector.shape_cast %439 : vector<2x128xf32> to vector<2x1x128xf32>
    %c0_122 = arith.constant 0 : index
    %c4_123 = arith.constant 4 : index
    %c0_124 = arith.constant 0 : index
    %441 = vector.load %arg14[%c0_122, %c4_123, %c0_124] : memref<2x8x128xf32, #tpu.memory_space<vmem>>, vector<2x1x128xf32>
    tpu.vector_store %arg14[%c0_122, %c4_123, %c0_124], %440 {strides = array<i32>} : memref<2x8x128xf32, #tpu.memory_space<vmem>>, vector<2x1x128xf32>,
    %442 = vector.extract_strided_slice %280 {offsets = [0, 5, 0], sizes = [2, 1, 512], strides = [1, 1, 1]} : vector<2x8x512xf32> to vector<2x1x512xf32>
    %443 = vector.shape_cast %442 : vector<2x1x512xf32> to vector<2x512xf32>
    %cst_125 = arith.constant dense<0.000000e+00> : vector<2x512xf32>
    %444 = tpu.matmul %439, %282, %cst_125 {dimension_numbers = #tpu.dot_dimension_numbers<[1], [0], [0], [1], [0, 0, 1, 1], [], []>} : vector<2x128xf32>, vector<128x512xf32>, vector<2x512xf32> -> vector<2x512xf32>
    %445 = arith.addf %443, %444 : vector<2x512xf32>
    %446 = vector.extract_strided_slice %445 {offsets = [0, 0], sizes = [2, 128], strides = [1, 1]} : vector<2x512xf32> to vector<2x128xf32>
    %447 = arith.negf %446 : vector<2x128xf32>
    %448 = math.exp %447 : vector<2x128xf32>
    %cst_126 = arith.constant 1.000000e+00 : f32
    %449 = vector.broadcast %cst_126 : f32 to vector<2x128xf32>
    %450 = arith.addf %449, %448 : vector<2x128xf32>
    %451 = arith.divf %449, %450 : vector<2x128xf32>
    %452 = vector.extract_strided_slice %445 {offsets = [0, 128], sizes = [2, 128], strides = [1, 1]} : vector<2x512xf32> to vector<2x128xf32>
    %453 = arith.negf %452 : vector<2x128xf32>
    %454 = math.exp %453 : vector<2x128xf32>
    %cst_127 = arith.constant 1.000000e+00 : f32
    %455 = vector.broadcast %cst_127 : f32 to vector<2x128xf32>
    %456 = arith.addf %455, %454 : vector<2x128xf32>
    %457 = arith.divf %455, %456 : vector<2x128xf32>
    %458 = vector.extract_strided_slice %445 {offsets = [0, 256], sizes = [2, 128], strides = [1, 1]} : vector<2x512xf32> to vector<2x128xf32>
    %459 = math.tanh %458 : vector<2x128xf32>
    %460 = vector.extract_strided_slice %445 {offsets = [0, 384], sizes = [2, 128], strides = [1, 1]} : vector<2x512xf32> to vector<2x128xf32>
    %461 = arith.negf %460 : vector<2x128xf32>
    %462 = math.exp %461 : vector<2x128xf32>
    %cst_128 = arith.constant 1.000000e+00 : f32
    %463 = vector.broadcast %cst_128 : f32 to vector<2x128xf32>
    %464 = arith.addf %463, %462 : vector<2x128xf32>
    %465 = arith.divf %463, %464 : vector<2x128xf32>
    %466 = arith.mulf %457, %437 : vector<2x128xf32>
    %467 = arith.mulf %451, %459 : vector<2x128xf32>
    %468 = arith.addf %466, %467 : vector<2x128xf32>
    %469 = math.tanh %468 : vector<2x128xf32>
    %470 = arith.mulf %465, %469 : vector<2x128xf32>
    %471 = vector.shape_cast %470 : vector<2x128xf32> to vector<2x1x128xf32>
    %c0_129 = arith.constant 0 : index
    %c5_130 = arith.constant 5 : index
    %c0_131 = arith.constant 0 : index
    %472 = vector.load %arg14[%c0_129, %c5_130, %c0_131] : memref<2x8x128xf32, #tpu.memory_space<vmem>>, vector<2x1x128xf32>
    tpu.vector_store %arg14[%c0_129, %c5_130, %c0_131], %471 {strides = array<i32>} : memref<2x8x128xf32, #tpu.memory_space<vmem>>, vector<2x1x128xf32>,
    %473 = vector.extract_strided_slice %280 {offsets = [0, 6, 0], sizes = [2, 1, 512], strides = [1, 1, 1]} : vector<2x8x512xf32> to vector<2x1x512xf32>
    %474 = vector.shape_cast %473 : vector<2x1x512xf32> to vector<2x512xf32>
    %cst_132 = arith.constant dense<0.000000e+00> : vector<2x512xf32>
    %475 = tpu.matmul %470, %282, %cst_132 {dimension_numbers = #tpu.dot_dimension_numbers<[1], [0], [0], [1], [0, 0, 1, 1], [], []>} : vector<2x128xf32>, vector<128x512xf32>, vector<2x512xf32> -> vector<2x512xf32>
    %476 = arith.addf %474, %475 : vector<2x512xf32>
    %477 = vector.extract_strided_slice %476 {offsets = [0, 0], sizes = [2, 128], strides = [1, 1]} : vector<2x512xf32> to vector<2x128xf32>
    %478 = arith.negf %477 : vector<2x128xf32>
    %479 = math.exp %478 : vector<2x128xf32>
    %cst_133 = arith.constant 1.000000e+00 : f32
    %480 = vector.broadcast %cst_133 : f32 to vector<2x128xf32>
    %481 = arith.addf %480, %479 : vector<2x128xf32>
    %482 = arith.divf %480, %481 : vector<2x128xf32>
    %483 = vector.extract_strided_slice %476 {offsets = [0, 128], sizes = [2, 128], strides = [1, 1]} : vector<2x512xf32> to vector<2x128xf32>
    %484 = arith.negf %483 : vector<2x128xf32>
    %485 = math.exp %484 : vector<2x128xf32>
    %cst_134 = arith.constant 1.000000e+00 : f32
    %486 = vector.broadcast %cst_134 : f32 to vector<2x128xf32>
    %487 = arith.addf %486, %485 : vector<2x128xf32>
    %488 = arith.divf %486, %487 : vector<2x128xf32>
    %489 = vector.extract_strided_slice %476 {offsets = [0, 256], sizes = [2, 128], strides = [1, 1]} : vector<2x512xf32> to vector<2x128xf32>
    %490 = math.tanh %489 : vector<2x128xf32>
    %491 = vector.extract_strided_slice %476 {offsets = [0, 384], sizes = [2, 128], strides = [1, 1]} : vector<2x512xf32> to vector<2x128xf32>
    %492 = arith.negf %491 : vector<2x128xf32>
    %493 = math.exp %492 : vector<2x128xf32>
    %cst_135 = arith.constant 1.000000e+00 : f32
    %494 = vector.broadcast %cst_135 : f32 to vector<2x128xf32>
    %495 = arith.addf %494, %493 : vector<2x128xf32>
    %496 = arith.divf %494, %495 : vector<2x128xf32>
    %497 = arith.mulf %488, %468 : vector<2x128xf32>
    %498 = arith.mulf %482, %490 : vector<2x128xf32>
    %499 = arith.addf %497, %498 : vector<2x128xf32>
    %500 = math.tanh %499 : vector<2x128xf32>
    %501 = arith.mulf %496, %500 : vector<2x128xf32>
    %502 = vector.shape_cast %501 : vector<2x128xf32> to vector<2x1x128xf32>
    %c0_136 = arith.constant 0 : index
    %c6_137 = arith.constant 6 : index
    %c0_138 = arith.constant 0 : index
    %503 = vector.load %arg14[%c0_136, %c6_137, %c0_138] : memref<2x8x128xf32, #tpu.memory_space<vmem>>, vector<2x1x128xf32>
    tpu.vector_store %arg14[%c0_136, %c6_137, %c0_138], %502 {strides = array<i32>} : memref<2x8x128xf32, #tpu.memory_space<vmem>>, vector<2x1x128xf32>,
    %504 = vector.extract_strided_slice %280 {offsets = [0, 7, 0], sizes = [2, 1, 512], strides = [1, 1, 1]} : vector<2x8x512xf32> to vector<2x1x512xf32>
    %505 = vector.shape_cast %504 : vector<2x1x512xf32> to vector<2x512xf32>
    %cst_139 = arith.constant dense<0.000000e+00> : vector<2x512xf32>
    %506 = tpu.matmul %501, %282, %cst_139 {dimension_numbers = #tpu.dot_dimension_numbers<[1], [0], [0], [1], [0, 0, 1, 1], [], []>} : vector<2x128xf32>, vector<128x512xf32>, vector<2x512xf32> -> vector<2x512xf32>
    %507 = arith.addf %505, %506 : vector<2x512xf32>
    %508 = vector.extract_strided_slice %507 {offsets = [0, 0], sizes = [2, 128], strides = [1, 1]} : vector<2x512xf32> to vector<2x128xf32>
    %509 = arith.negf %508 : vector<2x128xf32>
    %510 = math.exp %509 : vector<2x128xf32>
    %cst_140 = arith.constant 1.000000e+00 : f32
    %511 = vector.broadcast %cst_140 : f32 to vector<2x128xf32>
    %512 = arith.addf %511, %510 : vector<2x128xf32>
    %513 = arith.divf %511, %512 : vector<2x128xf32>
    %514 = vector.extract_strided_slice %507 {offsets = [0, 128], sizes = [2, 128], strides = [1, 1]} : vector<2x512xf32> to vector<2x128xf32>
    %515 = arith.negf %514 : vector<2x128xf32>
    %516 = math.exp %515 : vector<2x128xf32>
    %cst_141 = arith.constant 1.000000e+00 : f32
    %517 = vector.broadcast %cst_141 : f32 to vector<2x128xf32>
    %518 = arith.addf %517, %516 : vector<2x128xf32>
    %519 = arith.divf %517, %518 : vector<2x128xf32>
    %520 = vector.extract_strided_slice %507 {offsets = [0, 256], sizes = [2, 128], strides = [1, 1]} : vector<2x512xf32> to vector<2x128xf32>
    %521 = math.tanh %520 : vector<2x128xf32>
    %522 = vector.extract_strided_slice %507 {offsets = [0, 384], sizes = [2, 128], strides = [1, 1]} : vector<2x512xf32> to vector<2x128xf32>
    %523 = arith.negf %522 : vector<2x128xf32>
    %524 = math.exp %523 : vector<2x128xf32>
    %cst_142 = arith.constant 1.000000e+00 : f32
    %525 = vector.broadcast %cst_142 : f32 to vector<2x128xf32>
    %526 = arith.addf %525, %524 : vector<2x128xf32>
    %527 = arith.divf %525, %526 : vector<2x128xf32>
    %528 = arith.mulf %519, %499 : vector<2x128xf32>
    %529 = arith.mulf %513, %521 : vector<2x128xf32>
    %530 = arith.addf %528, %529 : vector<2x128xf32>
    %531 = math.tanh %530 : vector<2x128xf32>
    %532 = arith.mulf %527, %531 : vector<2x128xf32>
    %533 = vector.shape_cast %532 : vector<2x128xf32> to vector<2x1x128xf32>
    %c0_143 = arith.constant 0 : index
    %c7_144 = arith.constant 7 : index
    %c0_145 = arith.constant 0 : index
    %534 = vector.load %arg14[%c0_143, %c7_144, %c0_145] : memref<2x8x128xf32, #tpu.memory_space<vmem>>, vector<2x1x128xf32>
    tpu.vector_store %arg14[%c0_143, %c7_144, %c0_145], %533 {strides = array<i32>} : memref<2x8x128xf32, #tpu.memory_space<vmem>>, vector<2x1x128xf32>,
    %535 = vector.extract_strided_slice %532 {offsets = [0, 0], sizes = [2, 54], strides = [1, 1]} : vector<2x128xf32> to vector<2x54xf32>
    %c1_146 = arith.constant 1 : index
    %c0_147 = arith.constant 0 : index
    %c0_148 = arith.constant 0 : index
    %536 = vector.load %arg12[%c1_146, %c0_147, %c0_148] : memref<4x2x54xf32, #tpu.memory_space<vmem>>, vector<1x2x54xf32>
    %537 = vector.shape_cast %536 : vector<1x2x54xf32> to vector<2x54xf32>
    %538 = vector.shape_cast %535 : vector<2x54xf32> to vector<1x2x54xf32>
    tpu.vector_store %arg12[%c1_146, %c0_147, %c0_148], %538 {strides = array<i32>} : memref<4x2x54xf32, #tpu.memory_space<vmem>>, vector<1x2x54xf32>,
    %539 = vector.extract_strided_slice %530 {offsets = [0, 0], sizes = [2, 54], strides = [1, 1]} : vector<2x128xf32> to vector<2x54xf32>
    %c1_149 = arith.constant 1 : index
    %c0_150 = arith.constant 0 : index
    %c0_151 = arith.constant 0 : index
    %540 = vector.load %arg13[%c1_149, %c0_150, %c0_151] : memref<4x2x54xf32, #tpu.memory_space<vmem>>, vector<1x2x54xf32>
    %541 = vector.shape_cast %540 : vector<1x2x54xf32> to vector<2x54xf32>
    %542 = vector.shape_cast %539 : vector<2x54xf32> to vector<1x2x54xf32>
    tpu.vector_store %arg13[%c1_149, %c0_150, %c0_151], %542 {strides = array<i32>} : memref<4x2x54xf32, #tpu.memory_space<vmem>>, vector<1x2x54xf32>,
    %c0_152 = arith.constant 0 : index
    %c0_153 = arith.constant 0 : index
    %c0_154 = arith.constant 0 : index
    %543 = vector.load %arg14[%c0_152, %c0_153, %c0_154] : memref<2x8x128xf32, #tpu.memory_space<vmem>>, vector<2x8x128xf32>
    %544 = vector.shape_cast %543 : vector<2x8x128xf32> to vector<16x128xf32>
    %c1_155 = arith.constant 1 : index
    %c0_156 = arith.constant 0 : index
    %c0_157 = arith.constant 0 : index
    %545 = vector.load %arg4[%c1_155, %c0_156, %c0_157] : memref<3x128x512xf32, #tpu.memory_space<vmem>>, vector<1x128x512xf32>
    %546 = vector.shape_cast %545 : vector<1x128x512xf32> to vector<128x512xf32>
    %cst_158 = arith.constant dense<0.000000e+00> : vector<16x512xf32>
    %547 = tpu.matmul %544, %546, %cst_158 {dimension_numbers = #tpu.dot_dimension_numbers<[1], [0], [0], [1], [0, 0, 1, 1], [], []>} : vector<16x128xf32>, vector<128x512xf32>, vector<16x512xf32> -> vector<16x512xf32>
    %c2_159 = arith.constant 2 : index
    %c0_160 = arith.constant 0 : index
    %c0_161 = arith.constant 0 : index
    %548 = vector.load %arg6[%c2_159, %c0_160, %c0_161] : memref<4x1x512xf32, #tpu.memory_space<vmem>>, vector<1x1x512xf32>
    %549 = vector.shape_cast %548 : vector<1x1x512xf32> to vector<1x512xf32>
    %550 = vector.broadcast %549 : vector<1x512xf32> to vector<16x512xf32>
    %551 = arith.addf %547, %550 : vector<16x512xf32>
    %552 = vector.shape_cast %551 : vector<16x512xf32> to vector<2x8x512xf32>
    %c2_162 = arith.constant 2 : index
    %c0_163 = arith.constant 0 : index
    %c0_164 = arith.constant 0 : index
    %553 = vector.load %arg5[%c2_162, %c0_163, %c0_164] : memref<4x128x512xf32, #tpu.memory_space<vmem>>, vector<1x128x512xf32>
    %554 = vector.shape_cast %553 : vector<1x128x512xf32> to vector<128x512xf32>
    %c2_165 = arith.constant 2 : index
    %c0_166 = arith.constant 0 : index
    %c0_167 = arith.constant 0 : index
    %555 = vector.load %arg1[%c2_165, %c0_166, %c0_167] : memref<4x2x128xf32, #tpu.memory_space<vmem>>, vector<1x2x128xf32>
    %556 = vector.shape_cast %555 : vector<1x2x128xf32> to vector<2x128xf32>
    %c2_168 = arith.constant 2 : index
    %c0_169 = arith.constant 0 : index
    %c0_170 = arith.constant 0 : index
    %557 = vector.load %arg2[%c2_168, %c0_169, %c0_170] : memref<4x2x128xf32, #tpu.memory_space<vmem>>, vector<1x2x128xf32>
    %558 = vector.shape_cast %557 : vector<1x2x128xf32> to vector<2x128xf32>
    %559 = vector.extract_strided_slice %552 {offsets = [0, 0, 0], sizes = [2, 1, 512], strides = [1, 1, 1]} : vector<2x8x512xf32> to vector<2x1x512xf32>
    %560 = vector.shape_cast %559 : vector<2x1x512xf32> to vector<2x512xf32>
    %cst_171 = arith.constant dense<0.000000e+00> : vector<2x512xf32>
    %561 = tpu.matmul %556, %554, %cst_171 {dimension_numbers = #tpu.dot_dimension_numbers<[1], [0], [0], [1], [0, 0, 1, 1], [], []>} : vector<2x128xf32>, vector<128x512xf32>, vector<2x512xf32> -> vector<2x512xf32>
    %562 = arith.addf %560, %561 : vector<2x512xf32>
    %563 = vector.extract_strided_slice %562 {offsets = [0, 0], sizes = [2, 128], strides = [1, 1]} : vector<2x512xf32> to vector<2x128xf32>
    %564 = arith.negf %563 : vector<2x128xf32>
    %565 = math.exp %564 : vector<2x128xf32>
    %cst_172 = arith.constant 1.000000e+00 : f32
    %566 = vector.broadcast %cst_172 : f32 to vector<2x128xf32>
    %567 = arith.addf %566, %565 : vector<2x128xf32>
    %568 = arith.divf %566, %567 : vector<2x128xf32>
    %569 = vector.extract_strided_slice %562 {offsets = [0, 128], sizes = [2, 128], strides = [1, 1]} : vector<2x512xf32> to vector<2x128xf32>
    %570 = arith.negf %569 : vector<2x128xf32>
    %571 = math.exp %570 : vector<2x128xf32>
    %cst_173 = arith.constant 1.000000e+00 : f32
    %572 = vector.broadcast %cst_173 : f32 to vector<2x128xf32>
    %573 = arith.addf %572, %571 : vector<2x128xf32>
    %574 = arith.divf %572, %573 : vector<2x128xf32>
    %575 = vector.extract_strided_slice %562 {offsets = [0, 256], sizes = [2, 128], strides = [1, 1]} : vector<2x512xf32> to vector<2x128xf32>
    %576 = math.tanh %575 : vector<2x128xf32>
    %577 = vector.extract_strided_slice %562 {offsets = [0, 384], sizes = [2, 128], strides = [1, 1]} : vector<2x512xf32> to vector<2x128xf32>
    %578 = arith.negf %577 : vector<2x128xf32>
    %579 = math.exp %578 : vector<2x128xf32>
    %cst_174 = arith.constant 1.000000e+00 : f32
    %580 = vector.broadcast %cst_174 : f32 to vector<2x128xf32>
    %581 = arith.addf %580, %579 : vector<2x128xf32>
    %582 = arith.divf %580, %581 : vector<2x128xf32>
    %583 = arith.mulf %574, %558 : vector<2x128xf32>
    %584 = arith.mulf %568, %576 : vector<2x128xf32>
    %585 = arith.addf %583, %584 : vector<2x128xf32>
    %586 = math.tanh %585 : vector<2x128xf32>
    %587 = arith.mulf %582, %586 : vector<2x128xf32>
    %588 = vector.shape_cast %587 : vector<2x128xf32> to vector<2x1x128xf32>
    %c0_175 = arith.constant 0 : index
    %c0_176 = arith.constant 0 : index
    %c0_177 = arith.constant 0 : index
    %589 = vector.load %arg14[%c0_175, %c0_176, %c0_177] : memref<2x8x128xf32, #tpu.memory_space<vmem>>, vector<2x1x128xf32>
    tpu.vector_store %arg14[%c0_175, %c0_176, %c0_177], %588 {strides = array<i32>} : memref<2x8x128xf32, #tpu.memory_space<vmem>>, vector<2x1x128xf32>,
    %590 = vector.extract_strided_slice %552 {offsets = [0, 1, 0], sizes = [2, 1, 512], strides = [1, 1, 1]} : vector<2x8x512xf32> to vector<2x1x512xf32>
    %591 = vector.shape_cast %590 : vector<2x1x512xf32> to vector<2x512xf32>
    %cst_178 = arith.constant dense<0.000000e+00> : vector<2x512xf32>
    %592 = tpu.matmul %587, %554, %cst_178 {dimension_numbers = #tpu.dot_dimension_numbers<[1], [0], [0], [1], [0, 0, 1, 1], [], []>} : vector<2x128xf32>, vector<128x512xf32>, vector<2x512xf32> -> vector<2x512xf32>
    %593 = arith.addf %591, %592 : vector<2x512xf32>
    %594 = vector.extract_strided_slice %593 {offsets = [0, 0], sizes = [2, 128], strides = [1, 1]} : vector<2x512xf32> to vector<2x128xf32>
    %595 = arith.negf %594 : vector<2x128xf32>
    %596 = math.exp %595 : vector<2x128xf32>
    %cst_179 = arith.constant 1.000000e+00 : f32
    %597 = vector.broadcast %cst_179 : f32 to vector<2x128xf32>
    %598 = arith.addf %597, %596 : vector<2x128xf32>
    %599 = arith.divf %597, %598 : vector<2x128xf32>
    %600 = vector.extract_strided_slice %593 {offsets = [0, 128], sizes = [2, 128], strides = [1, 1]} : vector<2x512xf32> to vector<2x128xf32>
    %601 = arith.negf %600 : vector<2x128xf32>
    %602 = math.exp %601 : vector<2x128xf32>
    %cst_180 = arith.constant 1.000000e+00 : f32
    %603 = vector.broadcast %cst_180 : f32 to vector<2x128xf32>
    %604 = arith.addf %603, %602 : vector<2x128xf32>
    %605 = arith.divf %603, %604 : vector<2x128xf32>
    %606 = vector.extract_strided_slice %593 {offsets = [0, 256], sizes = [2, 128], strides = [1, 1]} : vector<2x512xf32> to vector<2x128xf32>
    %607 = math.tanh %606 : vector<2x128xf32>
    %608 = vector.extract_strided_slice %593 {offsets = [0, 384], sizes = [2, 128], strides = [1, 1]} : vector<2x512xf32> to vector<2x128xf32>
    %609 = arith.negf %608 : vector<2x128xf32>
    %610 = math.exp %609 : vector<2x128xf32>
    %cst_181 = arith.constant 1.000000e+00 : f32
    %611 = vector.broadcast %cst_181 : f32 to vector<2x128xf32>
    %612 = arith.addf %611, %610 : vector<2x128xf32>
    %613 = arith.divf %611, %612 : vector<2x128xf32>
    %614 = arith.mulf %605, %585 : vector<2x128xf32>
    %615 = arith.mulf %599, %607 : vector<2x128xf32>
    %616 = arith.addf %614, %615 : vector<2x128xf32>
    %617 = math.tanh %616 : vector<2x128xf32>
    %618 = arith.mulf %613, %617 : vector<2x128xf32>
    %619 = vector.shape_cast %618 : vector<2x128xf32> to vector<2x1x128xf32>
    %c0_182 = arith.constant 0 : index
    %c1_183 = arith.constant 1 : index
    %c0_184 = arith.constant 0 : index
    %620 = vector.load %arg14[%c0_182, %c1_183, %c0_184] : memref<2x8x128xf32, #tpu.memory_space<vmem>>, vector<2x1x128xf32>
    tpu.vector_store %arg14[%c0_182, %c1_183, %c0_184], %619 {strides = array<i32>} : memref<2x8x128xf32, #tpu.memory_space<vmem>>, vector<2x1x128xf32>,
    %621 = vector.extract_strided_slice %552 {offsets = [0, 2, 0], sizes = [2, 1, 512], strides = [1, 1, 1]} : vector<2x8x512xf32> to vector<2x1x512xf32>
    %622 = vector.shape_cast %621 : vector<2x1x512xf32> to vector<2x512xf32>
    %cst_185 = arith.constant dense<0.000000e+00> : vector<2x512xf32>
    %623 = tpu.matmul %618, %554, %cst_185 {dimension_numbers = #tpu.dot_dimension_numbers<[1], [0], [0], [1], [0, 0, 1, 1], [], []>} : vector<2x128xf32>, vector<128x512xf32>, vector<2x512xf32> -> vector<2x512xf32>
    %624 = arith.addf %622, %623 : vector<2x512xf32>
    %625 = vector.extract_strided_slice %624 {offsets = [0, 0], sizes = [2, 128], strides = [1, 1]} : vector<2x512xf32> to vector<2x128xf32>
    %626 = arith.negf %625 : vector<2x128xf32>
    %627 = math.exp %626 : vector<2x128xf32>
    %cst_186 = arith.constant 1.000000e+00 : f32
    %628 = vector.broadcast %cst_186 : f32 to vector<2x128xf32>
    %629 = arith.addf %628, %627 : vector<2x128xf32>
    %630 = arith.divf %628, %629 : vector<2x128xf32>
    %631 = vector.extract_strided_slice %624 {offsets = [0, 128], sizes = [2, 128], strides = [1, 1]} : vector<2x512xf32> to vector<2x128xf32>
    %632 = arith.negf %631 : vector<2x128xf32>
    %633 = math.exp %632 : vector<2x128xf32>
    %cst_187 = arith.constant 1.000000e+00 : f32
    %634 = vector.broadcast %cst_187 : f32 to vector<2x128xf32>
    %635 = arith.addf %634, %633 : vector<2x128xf32>
    %636 = arith.divf %634, %635 : vector<2x128xf32>
    %637 = vector.extract_strided_slice %624 {offsets = [0, 256], sizes = [2, 128], strides = [1, 1]} : vector<2x512xf32> to vector<2x128xf32>
    %638 = math.tanh %637 : vector<2x128xf32>
    %639 = vector.extract_strided_slice %624 {offsets = [0, 384], sizes = [2, 128], strides = [1, 1]} : vector<2x512xf32> to vector<2x128xf32>
    %640 = arith.negf %639 : vector<2x128xf32>
    %641 = math.exp %640 : vector<2x128xf32>
    %cst_188 = arith.constant 1.000000e+00 : f32
    %642 = vector.broadcast %cst_188 : f32 to vector<2x128xf32>
    %643 = arith.addf %642, %641 : vector<2x128xf32>
    %644 = arith.divf %642, %643 : vector<2x128xf32>
    %645 = arith.mulf %636, %616 : vector<2x128xf32>
    %646 = arith.mulf %630, %638 : vector<2x128xf32>
    %647 = arith.addf %645, %646 : vector<2x128xf32>
    %648 = math.tanh %647 : vector<2x128xf32>
    %649 = arith.mulf %644, %648 : vector<2x128xf32>
    %650 = vector.shape_cast %649 : vector<2x128xf32> to vector<2x1x128xf32>
    %c0_189 = arith.constant 0 : index
    %c2_190 = arith.constant 2 : index
    %c0_191 = arith.constant 0 : index
    %651 = vector.load %arg14[%c0_189, %c2_190, %c0_191] : memref<2x8x128xf32, #tpu.memory_space<vmem>>, vector<2x1x128xf32>
    tpu.vector_store %arg14[%c0_189, %c2_190, %c0_191], %650 {strides = array<i32>} : memref<2x8x128xf32, #tpu.memory_space<vmem>>, vector<2x1x128xf32>,
    %652 = vector.extract_strided_slice %552 {offsets = [0, 3, 0], sizes = [2, 1, 512], strides = [1, 1, 1]} : vector<2x8x512xf32> to vector<2x1x512xf32>
    %653 = vector.shape_cast %652 : vector<2x1x512xf32> to vector<2x512xf32>
    %cst_192 = arith.constant dense<0.000000e+00> : vector<2x512xf32>
    %654 = tpu.matmul %649, %554, %cst_192 {dimension_numbers = #tpu.dot_dimension_numbers<[1], [0], [0], [1], [0, 0, 1, 1], [], []>} : vector<2x128xf32>, vector<128x512xf32>, vector<2x512xf32> -> vector<2x512xf32>
    %655 = arith.addf %653, %654 : vector<2x512xf32>
    %656 = vector.extract_strided_slice %655 {offsets = [0, 0], sizes = [2, 128], strides = [1, 1]} : vector<2x512xf32> to vector<2x128xf32>
    %657 = arith.negf %656 : vector<2x128xf32>
    %658 = math.exp %657 : vector<2x128xf32>
    %cst_193 = arith.constant 1.000000e+00 : f32
    %659 = vector.broadcast %cst_193 : f32 to vector<2x128xf32>
    %660 = arith.addf %659, %658 : vector<2x128xf32>
    %661 = arith.divf %659, %660 : vector<2x128xf32>
    %662 = vector.extract_strided_slice %655 {offsets = [0, 128], sizes = [2, 128], strides = [1, 1]} : vector<2x512xf32> to vector<2x128xf32>
    %663 = arith.negf %662 : vector<2x128xf32>
    %664 = math.exp %663 : vector<2x128xf32>
    %cst_194 = arith.constant 1.000000e+00 : f32
    %665 = vector.broadcast %cst_194 : f32 to vector<2x128xf32>
    %666 = arith.addf %665, %664 : vector<2x128xf32>
    %667 = arith.divf %665, %666 : vector<2x128xf32>
    %668 = vector.extract_strided_slice %655 {offsets = [0, 256], sizes = [2, 128], strides = [1, 1]} : vector<2x512xf32> to vector<2x128xf32>
    %669 = math.tanh %668 : vector<2x128xf32>
    %670 = vector.extract_strided_slice %655 {offsets = [0, 384], sizes = [2, 128], strides = [1, 1]} : vector<2x512xf32> to vector<2x128xf32>
    %671 = arith.negf %670 : vector<2x128xf32>
    %672 = math.exp %671 : vector<2x128xf32>
    %cst_195 = arith.constant 1.000000e+00 : f32
    %673 = vector.broadcast %cst_195 : f32 to vector<2x128xf32>
    %674 = arith.addf %673, %672 : vector<2x128xf32>
    %675 = arith.divf %673, %674 : vector<2x128xf32>
    %676 = arith.mulf %667, %647 : vector<2x128xf32>
    %677 = arith.mulf %661, %669 : vector<2x128xf32>
    %678 = arith.addf %676, %677 : vector<2x128xf32>
    %679 = math.tanh %678 : vector<2x128xf32>
    %680 = arith.mulf %675, %679 : vector<2x128xf32>
    %681 = vector.shape_cast %680 : vector<2x128xf32> to vector<2x1x128xf32>
    %c0_196 = arith.constant 0 : index
    %c3_197 = arith.constant 3 : index
    %c0_198 = arith.constant 0 : index
    %682 = vector.load %arg14[%c0_196, %c3_197, %c0_198] : memref<2x8x128xf32, #tpu.memory_space<vmem>>, vector<2x1x128xf32>
    tpu.vector_store %arg14[%c0_196, %c3_197, %c0_198], %681 {strides = array<i32>} : memref<2x8x128xf32, #tpu.memory_space<vmem>>, vector<2x1x128xf32>,
    %683 = vector.extract_strided_slice %552 {offsets = [0, 4, 0], sizes = [2, 1, 512], strides = [1, 1, 1]} : vector<2x8x512xf32> to vector<2x1x512xf32>
    %684 = vector.shape_cast %683 : vector<2x1x512xf32> to vector<2x512xf32>
    %cst_199 = arith.constant dense<0.000000e+00> : vector<2x512xf32>
    %685 = tpu.matmul %680, %554, %cst_199 {dimension_numbers = #tpu.dot_dimension_numbers<[1], [0], [0], [1], [0, 0, 1, 1], [], []>} : vector<2x128xf32>, vector<128x512xf32>, vector<2x512xf32> -> vector<2x512xf32>
    %686 = arith.addf %684, %685 : vector<2x512xf32>
    %687 = vector.extract_strided_slice %686 {offsets = [0, 0], sizes = [2, 128], strides = [1, 1]} : vector<2x512xf32> to vector<2x128xf32>
    %688 = arith.negf %687 : vector<2x128xf32>
    %689 = math.exp %688 : vector<2x128xf32>
    %cst_200 = arith.constant 1.000000e+00 : f32
    %690 = vector.broadcast %cst_200 : f32 to vector<2x128xf32>
    %691 = arith.addf %690, %689 : vector<2x128xf32>
    %692 = arith.divf %690, %691 : vector<2x128xf32>
    %693 = vector.extract_strided_slice %686 {offsets = [0, 128], sizes = [2, 128], strides = [1, 1]} : vector<2x512xf32> to vector<2x128xf32>
    %694 = arith.negf %693 : vector<2x128xf32>
    %695 = math.exp %694 : vector<2x128xf32>
    %cst_201 = arith.constant 1.000000e+00 : f32
    %696 = vector.broadcast %cst_201 : f32 to vector<2x128xf32>
    %697 = arith.addf %696, %695 : vector<2x128xf32>
    %698 = arith.divf %696, %697 : vector<2x128xf32>
    %699 = vector.extract_strided_slice %686 {offsets = [0, 256], sizes = [2, 128], strides = [1, 1]} : vector<2x512xf32> to vector<2x128xf32>
    %700 = math.tanh %699 : vector<2x128xf32>
    %701 = vector.extract_strided_slice %686 {offsets = [0, 384], sizes = [2, 128], strides = [1, 1]} : vector<2x512xf32> to vector<2x128xf32>
    %702 = arith.negf %701 : vector<2x128xf32>
    %703 = math.exp %702 : vector<2x128xf32>
    %cst_202 = arith.constant 1.000000e+00 : f32
    %704 = vector.broadcast %cst_202 : f32 to vector<2x128xf32>
    %705 = arith.addf %704, %703 : vector<2x128xf32>
    %706 = arith.divf %704, %705 : vector<2x128xf32>
    %707 = arith.mulf %698, %678 : vector<2x128xf32>
    %708 = arith.mulf %692, %700 : vector<2x128xf32>
    %709 = arith.addf %707, %708 : vector<2x128xf32>
    %710 = math.tanh %709 : vector<2x128xf32>
    %711 = arith.mulf %706, %710 : vector<2x128xf32>
    %712 = vector.shape_cast %711 : vector<2x128xf32> to vector<2x1x128xf32>
    %c0_203 = arith.constant 0 : index
    %c4_204 = arith.constant 4 : index
    %c0_205 = arith.constant 0 : index
    %713 = vector.load %arg14[%c0_203, %c4_204, %c0_205] : memref<2x8x128xf32, #tpu.memory_space<vmem>>, vector<2x1x128xf32>
    tpu.vector_store %arg14[%c0_203, %c4_204, %c0_205], %712 {strides = array<i32>} : memref<2x8x128xf32, #tpu.memory_space<vmem>>, vector<2x1x128xf32>,
    %714 = vector.extract_strided_slice %552 {offsets = [0, 5, 0], sizes = [2, 1, 512], strides = [1, 1, 1]} : vector<2x8x512xf32> to vector<2x1x512xf32>
    %715 = vector.shape_cast %714 : vector<2x1x512xf32> to vector<2x512xf32>
    %cst_206 = arith.constant dense<0.000000e+00> : vector<2x512xf32>
    %716 = tpu.matmul %711, %554, %cst_206 {dimension_numbers = #tpu.dot_dimension_numbers<[1], [0], [0], [1], [0, 0, 1, 1], [], []>} : vector<2x128xf32>, vector<128x512xf32>, vector<2x512xf32> -> vector<2x512xf32>
    %717 = arith.addf %715, %716 : vector<2x512xf32>
    %718 = vector.extract_strided_slice %717 {offsets = [0, 0], sizes = [2, 128], strides = [1, 1]} : vector<2x512xf32> to vector<2x128xf32>
    %719 = arith.negf %718 : vector<2x128xf32>
    %720 = math.exp %719 : vector<2x128xf32>
    %cst_207 = arith.constant 1.000000e+00 : f32
    %721 = vector.broadcast %cst_207 : f32 to vector<2x128xf32>
    %722 = arith.addf %721, %720 : vector<2x128xf32>
    %723 = arith.divf %721, %722 : vector<2x128xf32>
    %724 = vector.extract_strided_slice %717 {offsets = [0, 128], sizes = [2, 128], strides = [1, 1]} : vector<2x512xf32> to vector<2x128xf32>
    %725 = arith.negf %724 : vector<2x128xf32>
    %726 = math.exp %725 : vector<2x128xf32>
    %cst_208 = arith.constant 1.000000e+00 : f32
    %727 = vector.broadcast %cst_208 : f32 to vector<2x128xf32>
    %728 = arith.addf %727, %726 : vector<2x128xf32>
    %729 = arith.divf %727, %728 : vector<2x128xf32>
    %730 = vector.extract_strided_slice %717 {offsets = [0, 256], sizes = [2, 128], strides = [1, 1]} : vector<2x512xf32> to vector<2x128xf32>
    %731 = math.tanh %730 : vector<2x128xf32>
    %732 = vector.extract_strided_slice %717 {offsets = [0, 384], sizes = [2, 128], strides = [1, 1]} : vector<2x512xf32> to vector<2x128xf32>
    %733 = arith.negf %732 : vector<2x128xf32>
    %734 = math.exp %733 : vector<2x128xf32>
    %cst_209 = arith.constant 1.000000e+00 : f32
    %735 = vector.broadcast %cst_209 : f32 to vector<2x128xf32>
    %736 = arith.addf %735, %734 : vector<2x128xf32>
    %737 = arith.divf %735, %736 : vector<2x128xf32>
    %738 = arith.mulf %729, %709 : vector<2x128xf32>
    %739 = arith.mulf %723, %731 : vector<2x128xf32>
    %740 = arith.addf %738, %739 : vector<2x128xf32>
    %741 = math.tanh %740 : vector<2x128xf32>
    %742 = arith.mulf %737, %741 : vector<2x128xf32>
    %743 = vector.shape_cast %742 : vector<2x128xf32> to vector<2x1x128xf32>
    %c0_210 = arith.constant 0 : index
    %c5_211 = arith.constant 5 : index
    %c0_212 = arith.constant 0 : index
    %744 = vector.load %arg14[%c0_210, %c5_211, %c0_212] : memref<2x8x128xf32, #tpu.memory_space<vmem>>, vector<2x1x128xf32>
    tpu.vector_store %arg14[%c0_210, %c5_211, %c0_212], %743 {strides = array<i32>} : memref<2x8x128xf32, #tpu.memory_space<vmem>>, vector<2x1x128xf32>,
    %745 = vector.extract_strided_slice %552 {offsets = [0, 6, 0], sizes = [2, 1, 512], strides = [1, 1, 1]} : vector<2x8x512xf32> to vector<2x1x512xf32>
    %746 = vector.shape_cast %745 : vector<2x1x512xf32> to vector<2x512xf32>
    %cst_213 = arith.constant dense<0.000000e+00> : vector<2x512xf32>
    %747 = tpu.matmul %742, %554, %cst_213 {dimension_numbers = #tpu.dot_dimension_numbers<[1], [0], [0], [1], [0, 0, 1, 1], [], []>} : vector<2x128xf32>, vector<128x512xf32>, vector<2x512xf32> -> vector<2x512xf32>
    %748 = arith.addf %746, %747 : vector<2x512xf32>
    %749 = vector.extract_strided_slice %748 {offsets = [0, 0], sizes = [2, 128], strides = [1, 1]} : vector<2x512xf32> to vector<2x128xf32>
    %750 = arith.negf %749 : vector<2x128xf32>
    %751 = math.exp %750 : vector<2x128xf32>
    %cst_214 = arith.constant 1.000000e+00 : f32
    %752 = vector.broadcast %cst_214 : f32 to vector<2x128xf32>
    %753 = arith.addf %752, %751 : vector<2x128xf32>
    %754 = arith.divf %752, %753 : vector<2x128xf32>
    %755 = vector.extract_strided_slice %748 {offsets = [0, 128], sizes = [2, 128], strides = [1, 1]} : vector<2x512xf32> to vector<2x128xf32>
    %756 = arith.negf %755 : vector<2x128xf32>
    %757 = math.exp %756 : vector<2x128xf32>
    %cst_215 = arith.constant 1.000000e+00 : f32
    %758 = vector.broadcast %cst_215 : f32 to vector<2x128xf32>
    %759 = arith.addf %758, %757 : vector<2x128xf32>
    %760 = arith.divf %758, %759 : vector<2x128xf32>
    %761 = vector.extract_strided_slice %748 {offsets = [0, 256], sizes = [2, 128], strides = [1, 1]} : vector<2x512xf32> to vector<2x128xf32>
    %762 = math.tanh %761 : vector<2x128xf32>
    %763 = vector.extract_strided_slice %748 {offsets = [0, 384], sizes = [2, 128], strides = [1, 1]} : vector<2x512xf32> to vector<2x128xf32>
    %764 = arith.negf %763 : vector<2x128xf32>
    %765 = math.exp %764 : vector<2x128xf32>
    %cst_216 = arith.constant 1.000000e+00 : f32
    %766 = vector.broadcast %cst_216 : f32 to vector<2x128xf32>
    %767 = arith.addf %766, %765 : vector<2x128xf32>
    %768 = arith.divf %766, %767 : vector<2x128xf32>
    %769 = arith.mulf %760, %740 : vector<2x128xf32>
    %770 = arith.mulf %754, %762 : vector<2x128xf32>
    %771 = arith.addf %769, %770 : vector<2x128xf32>
    %772 = math.tanh %771 : vector<2x128xf32>
    %773 = arith.mulf %768, %772 : vector<2x128xf32>
    %774 = vector.shape_cast %773 : vector<2x128xf32> to vector<2x1x128xf32>
    %c0_217 = arith.constant 0 : index
    %c6_218 = arith.constant 6 : index
    %c0_219 = arith.constant 0 : index
    %775 = vector.load %arg14[%c0_217, %c6_218, %c0_219] : memref<2x8x128xf32, #tpu.memory_space<vmem>>, vector<2x1x128xf32>
    tpu.vector_store %arg14[%c0_217, %c6_218, %c0_219], %774 {strides = array<i32>} : memref<2x8x128xf32, #tpu.memory_space<vmem>>, vector<2x1x128xf32>,
    %776 = vector.extract_strided_slice %552 {offsets = [0, 7, 0], sizes = [2, 1, 512], strides = [1, 1, 1]} : vector<2x8x512xf32> to vector<2x1x512xf32>
    %777 = vector.shape_cast %776 : vector<2x1x512xf32> to vector<2x512xf32>
    %cst_220 = arith.constant dense<0.000000e+00> : vector<2x512xf32>
    %778 = tpu.matmul %773, %554, %cst_220 {dimension_numbers = #tpu.dot_dimension_numbers<[1], [0], [0], [1], [0, 0, 1, 1], [], []>} : vector<2x128xf32>, vector<128x512xf32>, vector<2x512xf32> -> vector<2x512xf32>
    %779 = arith.addf %777, %778 : vector<2x512xf32>
    %780 = vector.extract_strided_slice %779 {offsets = [0, 0], sizes = [2, 128], strides = [1, 1]} : vector<2x512xf32> to vector<2x128xf32>
    %781 = arith.negf %780 : vector<2x128xf32>
    %782 = math.exp %781 : vector<2x128xf32>
    %cst_221 = arith.constant 1.000000e+00 : f32
    %783 = vector.broadcast %cst_221 : f32 to vector<2x128xf32>
    %784 = arith.addf %783, %782 : vector<2x128xf32>
    %785 = arith.divf %783, %784 : vector<2x128xf32>
    %786 = vector.extract_strided_slice %779 {offsets = [0, 128], sizes = [2, 128], strides = [1, 1]} : vector<2x512xf32> to vector<2x128xf32>
    %787 = arith.negf %786 : vector<2x128xf32>
    %788 = math.exp %787 : vector<2x128xf32>
    %cst_222 = arith.constant 1.000000e+00 : f32
    %789 = vector.broadcast %cst_222 : f32 to vector<2x128xf32>
    %790 = arith.addf %789, %788 : vector<2x128xf32>
    %791 = arith.divf %789, %790 : vector<2x128xf32>
    %792 = vector.extract_strided_slice %779 {offsets = [0, 256], sizes = [2, 128], strides = [1, 1]} : vector<2x512xf32> to vector<2x128xf32>
    %793 = math.tanh %792 : vector<2x128xf32>
    %794 = vector.extract_strided_slice %779 {offsets = [0, 384], sizes = [2, 128], strides = [1, 1]} : vector<2x512xf32> to vector<2x128xf32>
    %795 = arith.negf %794 : vector<2x128xf32>
    %796 = math.exp %795 : vector<2x128xf32>
    %cst_223 = arith.constant 1.000000e+00 : f32
    %797 = vector.broadcast %cst_223 : f32 to vector<2x128xf32>
    %798 = arith.addf %797, %796 : vector<2x128xf32>
    %799 = arith.divf %797, %798 : vector<2x128xf32>
    %800 = arith.mulf %791, %771 : vector<2x128xf32>
    %801 = arith.mulf %785, %793 : vector<2x128xf32>
    %802 = arith.addf %800, %801 : vector<2x128xf32>
    %803 = math.tanh %802 : vector<2x128xf32>
    %804 = arith.mulf %799, %803 : vector<2x128xf32>
    %805 = vector.shape_cast %804 : vector<2x128xf32> to vector<2x1x128xf32>
    %c0_224 = arith.constant 0 : index
    %c7_225 = arith.constant 7 : index
    %c0_226 = arith.constant 0 : index
    %806 = vector.load %arg14[%c0_224, %c7_225, %c0_226] : memref<2x8x128xf32, #tpu.memory_space<vmem>>, vector<2x1x128xf32>
    tpu.vector_store %arg14[%c0_224, %c7_225, %c0_226], %805 {strides = array<i32>} : memref<2x8x128xf32, #tpu.memory_space<vmem>>, vector<2x1x128xf32>,
    %807 = vector.extract_strided_slice %804 {offsets = [0, 0], sizes = [2, 54], strides = [1, 1]} : vector<2x128xf32> to vector<2x54xf32>
    %c2_227 = arith.constant 2 : index
    %c0_228 = arith.constant 0 : index
    %c0_229 = arith.constant 0 : index
    %808 = vector.load %arg12[%c2_227, %c0_228, %c0_229] : memref<4x2x54xf32, #tpu.memory_space<vmem>>, vector<1x2x54xf32>
    %809 = vector.shape_cast %808 : vector<1x2x54xf32> to vector<2x54xf32>
    %810 = vector.shape_cast %807 : vector<2x54xf32> to vector<1x2x54xf32>
    tpu.vector_store %arg12[%c2_227, %c0_228, %c0_229], %810 {strides = array<i32>} : memref<4x2x54xf32, #tpu.memory_space<vmem>>, vector<1x2x54xf32>,
    %811 = vector.extract_strided_slice %802 {offsets = [0, 0], sizes = [2, 54], strides = [1, 1]} : vector<2x128xf32> to vector<2x54xf32>
    %c2_230 = arith.constant 2 : index
    %c0_231 = arith.constant 0 : index
    %c0_232 = arith.constant 0 : index
    %812 = vector.load %arg13[%c2_230, %c0_231, %c0_232] : memref<4x2x54xf32, #tpu.memory_space<vmem>>, vector<1x2x54xf32>
    %813 = vector.shape_cast %812 : vector<1x2x54xf32> to vector<2x54xf32>
    %814 = vector.shape_cast %811 : vector<2x54xf32> to vector<1x2x54xf32>
    tpu.vector_store %arg13[%c2_230, %c0_231, %c0_232], %814 {strides = array<i32>} : memref<4x2x54xf32, #tpu.memory_space<vmem>>, vector<1x2x54xf32>,
    %c0_233 = arith.constant 0 : index
    %c0_234 = arith.constant 0 : index
    %c0_235 = arith.constant 0 : index
    %815 = vector.load %arg14[%c0_233, %c0_234, %c0_235] : memref<2x8x128xf32, #tpu.memory_space<vmem>>, vector<2x8x128xf32>
    %816 = vector.shape_cast %815 : vector<2x8x128xf32> to vector<16x128xf32>
    %c2_236 = arith.constant 2 : index
    %c0_237 = arith.constant 0 : index
    %c0_238 = arith.constant 0 : index
    %817 = vector.load %arg4[%c2_236, %c0_237, %c0_238] : memref<3x128x512xf32, #tpu.memory_space<vmem>>, vector<1x128x512xf32>
    %818 = vector.shape_cast %817 : vector<1x128x512xf32> to vector<128x512xf32>
    %cst_239 = arith.constant dense<0.000000e+00> : vector<16x512xf32>
    %819 = tpu.matmul %816, %818, %cst_239 {dimension_numbers = #tpu.dot_dimension_numbers<[1], [0], [0], [1], [0, 0, 1, 1], [], []>} : vector<16x128xf32>, vector<128x512xf32>, vector<16x512xf32> -> vector<16x512xf32>
    %c3_240 = arith.constant 3 : index
    %c0_241 = arith.constant 0 : index
    %c0_242 = arith.constant 0 : index
    %820 = vector.load %arg6[%c3_240, %c0_241, %c0_242] : memref<4x1x512xf32, #tpu.memory_space<vmem>>, vector<1x1x512xf32>
    %821 = vector.shape_cast %820 : vector<1x1x512xf32> to vector<1x512xf32>
    %822 = vector.broadcast %821 : vector<1x512xf32> to vector<16x512xf32>
    %823 = arith.addf %819, %822 : vector<16x512xf32>
    %824 = vector.shape_cast %823 : vector<16x512xf32> to vector<2x8x512xf32>
    %c3_243 = arith.constant 3 : index
    %c0_244 = arith.constant 0 : index
    %c0_245 = arith.constant 0 : index
    %825 = vector.load %arg5[%c3_243, %c0_244, %c0_245] : memref<4x128x512xf32, #tpu.memory_space<vmem>>, vector<1x128x512xf32>
    %826 = vector.shape_cast %825 : vector<1x128x512xf32> to vector<128x512xf32>
    %c3_246 = arith.constant 3 : index
    %c0_247 = arith.constant 0 : index
    %c0_248 = arith.constant 0 : index
    %827 = vector.load %arg1[%c3_246, %c0_247, %c0_248] : memref<4x2x128xf32, #tpu.memory_space<vmem>>, vector<1x2x128xf32>
    %828 = vector.shape_cast %827 : vector<1x2x128xf32> to vector<2x128xf32>
    %c3_249 = arith.constant 3 : index
    %c0_250 = arith.constant 0 : index
    %c0_251 = arith.constant 0 : index
    %829 = vector.load %arg2[%c3_249, %c0_250, %c0_251] : memref<4x2x128xf32, #tpu.memory_space<vmem>>, vector<1x2x128xf32>
    %830 = vector.shape_cast %829 : vector<1x2x128xf32> to vector<2x128xf32>
    %831 = vector.extract_strided_slice %824 {offsets = [0, 0, 0], sizes = [2, 1, 512], strides = [1, 1, 1]} : vector<2x8x512xf32> to vector<2x1x512xf32>
    %832 = vector.shape_cast %831 : vector<2x1x512xf32> to vector<2x512xf32>
    %cst_252 = arith.constant dense<0.000000e+00> : vector<2x512xf32>
    %833 = tpu.matmul %828, %826, %cst_252 {dimension_numbers = #tpu.dot_dimension_numbers<[1], [0], [0], [1], [0, 0, 1, 1], [], []>} : vector<2x128xf32>, vector<128x512xf32>, vector<2x512xf32> -> vector<2x512xf32>
    %834 = arith.addf %832, %833 : vector<2x512xf32>
    %835 = vector.extract_strided_slice %834 {offsets = [0, 0], sizes = [2, 128], strides = [1, 1]} : vector<2x512xf32> to vector<2x128xf32>
    %836 = arith.negf %835 : vector<2x128xf32>
    %837 = math.exp %836 : vector<2x128xf32>
    %cst_253 = arith.constant 1.000000e+00 : f32
    %838 = vector.broadcast %cst_253 : f32 to vector<2x128xf32>
    %839 = arith.addf %838, %837 : vector<2x128xf32>
    %840 = arith.divf %838, %839 : vector<2x128xf32>
    %841 = vector.extract_strided_slice %834 {offsets = [0, 128], sizes = [2, 128], strides = [1, 1]} : vector<2x512xf32> to vector<2x128xf32>
    %842 = arith.negf %841 : vector<2x128xf32>
    %843 = math.exp %842 : vector<2x128xf32>
    %cst_254 = arith.constant 1.000000e+00 : f32
    %844 = vector.broadcast %cst_254 : f32 to vector<2x128xf32>
    %845 = arith.addf %844, %843 : vector<2x128xf32>
    %846 = arith.divf %844, %845 : vector<2x128xf32>
    %847 = vector.extract_strided_slice %834 {offsets = [0, 256], sizes = [2, 128], strides = [1, 1]} : vector<2x512xf32> to vector<2x128xf32>
    %848 = math.tanh %847 : vector<2x128xf32>
    %849 = vector.extract_strided_slice %834 {offsets = [0, 384], sizes = [2, 128], strides = [1, 1]} : vector<2x512xf32> to vector<2x128xf32>
    %850 = arith.negf %849 : vector<2x128xf32>
    %851 = math.exp %850 : vector<2x128xf32>
    %cst_255 = arith.constant 1.000000e+00 : f32
    %852 = vector.broadcast %cst_255 : f32 to vector<2x128xf32>
    %853 = arith.addf %852, %851 : vector<2x128xf32>
    %854 = arith.divf %852, %853 : vector<2x128xf32>
    %855 = arith.mulf %846, %830 : vector<2x128xf32>
    %856 = arith.mulf %840, %848 : vector<2x128xf32>
    %857 = arith.addf %855, %856 : vector<2x128xf32>
    %858 = math.tanh %857 : vector<2x128xf32>
    %859 = arith.mulf %854, %858 : vector<2x128xf32>
    %860 = vector.shape_cast %859 : vector<2x128xf32> to vector<2x1x128xf32>
    %c0_256 = arith.constant 0 : index
    %c0_257 = arith.constant 0 : index
    %c0_258 = arith.constant 0 : index
    %861 = vector.load %arg14[%c0_256, %c0_257, %c0_258] : memref<2x8x128xf32, #tpu.memory_space<vmem>>, vector<2x1x128xf32>
    tpu.vector_store %arg14[%c0_256, %c0_257, %c0_258], %860 {strides = array<i32>} : memref<2x8x128xf32, #tpu.memory_space<vmem>>, vector<2x1x128xf32>,
    %862 = vector.extract_strided_slice %824 {offsets = [0, 1, 0], sizes = [2, 1, 512], strides = [1, 1, 1]} : vector<2x8x512xf32> to vector<2x1x512xf32>
    %863 = vector.shape_cast %862 : vector<2x1x512xf32> to vector<2x512xf32>
    %cst_259 = arith.constant dense<0.000000e+00> : vector<2x512xf32>
    %864 = tpu.matmul %859, %826, %cst_259 {dimension_numbers = #tpu.dot_dimension_numbers<[1], [0], [0], [1], [0, 0, 1, 1], [], []>} : vector<2x128xf32>, vector<128x512xf32>, vector<2x512xf32> -> vector<2x512xf32>
    %865 = arith.addf %863, %864 : vector<2x512xf32>
    %866 = vector.extract_strided_slice %865 {offsets = [0, 0], sizes = [2, 128], strides = [1, 1]} : vector<2x512xf32> to vector<2x128xf32>
    %867 = arith.negf %866 : vector<2x128xf32>
    %868 = math.exp %867 : vector<2x128xf32>
    %cst_260 = arith.constant 1.000000e+00 : f32
    %869 = vector.broadcast %cst_260 : f32 to vector<2x128xf32>
    %870 = arith.addf %869, %868 : vector<2x128xf32>
    %871 = arith.divf %869, %870 : vector<2x128xf32>
    %872 = vector.extract_strided_slice %865 {offsets = [0, 128], sizes = [2, 128], strides = [1, 1]} : vector<2x512xf32> to vector<2x128xf32>
    %873 = arith.negf %872 : vector<2x128xf32>
    %874 = math.exp %873 : vector<2x128xf32>
    %cst_261 = arith.constant 1.000000e+00 : f32
    %875 = vector.broadcast %cst_261 : f32 to vector<2x128xf32>
    %876 = arith.addf %875, %874 : vector<2x128xf32>
    %877 = arith.divf %875, %876 : vector<2x128xf32>
    %878 = vector.extract_strided_slice %865 {offsets = [0, 256], sizes = [2, 128], strides = [1, 1]} : vector<2x512xf32> to vector<2x128xf32>
    %879 = math.tanh %878 : vector<2x128xf32>
    %880 = vector.extract_strided_slice %865 {offsets = [0, 384], sizes = [2, 128], strides = [1, 1]} : vector<2x512xf32> to vector<2x128xf32>
    %881 = arith.negf %880 : vector<2x128xf32>
    %882 = math.exp %881 : vector<2x128xf32>
    %cst_262 = arith.constant 1.000000e+00 : f32
    %883 = vector.broadcast %cst_262 : f32 to vector<2x128xf32>
    %884 = arith.addf %883, %882 : vector<2x128xf32>
    %885 = arith.divf %883, %884 : vector<2x128xf32>
    %886 = arith.mulf %877, %857 : vector<2x128xf32>
    %887 = arith.mulf %871, %879 : vector<2x128xf32>
    %888 = arith.addf %886, %887 : vector<2x128xf32>
    %889 = math.tanh %888 : vector<2x128xf32>
    %890 = arith.mulf %885, %889 : vector<2x128xf32>
    %891 = vector.shape_cast %890 : vector<2x128xf32> to vector<2x1x128xf32>
    %c0_263 = arith.constant 0 : index
    %c1_264 = arith.constant 1 : index
    %c0_265 = arith.constant 0 : index
    %892 = vector.load %arg14[%c0_263, %c1_264, %c0_265] : memref<2x8x128xf32, #tpu.memory_space<vmem>>, vector<2x1x128xf32>
    tpu.vector_store %arg14[%c0_263, %c1_264, %c0_265], %891 {strides = array<i32>} : memref<2x8x128xf32, #tpu.memory_space<vmem>>, vector<2x1x128xf32>,
    %893 = vector.extract_strided_slice %824 {offsets = [0, 2, 0], sizes = [2, 1, 512], strides = [1, 1, 1]} : vector<2x8x512xf32> to vector<2x1x512xf32>
    %894 = vector.shape_cast %893 : vector<2x1x512xf32> to vector<2x512xf32>
    %cst_266 = arith.constant dense<0.000000e+00> : vector<2x512xf32>
    %895 = tpu.matmul %890, %826, %cst_266 {dimension_numbers = #tpu.dot_dimension_numbers<[1], [0], [0], [1], [0, 0, 1, 1], [], []>} : vector<2x128xf32>, vector<128x512xf32>, vector<2x512xf32> -> vector<2x512xf32>
    %896 = arith.addf %894, %895 : vector<2x512xf32>
    %897 = vector.extract_strided_slice %896 {offsets = [0, 0], sizes = [2, 128], strides = [1, 1]} : vector<2x512xf32> to vector<2x128xf32>
    %898 = arith.negf %897 : vector<2x128xf32>
    %899 = math.exp %898 : vector<2x128xf32>
    %cst_267 = arith.constant 1.000000e+00 : f32
    %900 = vector.broadcast %cst_267 : f32 to vector<2x128xf32>
    %901 = arith.addf %900, %899 : vector<2x128xf32>
    %902 = arith.divf %900, %901 : vector<2x128xf32>
    %903 = vector.extract_strided_slice %896 {offsets = [0, 128], sizes = [2, 128], strides = [1, 1]} : vector<2x512xf32> to vector<2x128xf32>
    %904 = arith.negf %903 : vector<2x128xf32>
    %905 = math.exp %904 : vector<2x128xf32>
    %cst_268 = arith.constant 1.000000e+00 : f32
    %906 = vector.broadcast %cst_268 : f32 to vector<2x128xf32>
    %907 = arith.addf %906, %905 : vector<2x128xf32>
    %908 = arith.divf %906, %907 : vector<2x128xf32>
    %909 = vector.extract_strided_slice %896 {offsets = [0, 256], sizes = [2, 128], strides = [1, 1]} : vector<2x512xf32> to vector<2x128xf32>
    %910 = math.tanh %909 : vector<2x128xf32>
    %911 = vector.extract_strided_slice %896 {offsets = [0, 384], sizes = [2, 128], strides = [1, 1]} : vector<2x512xf32> to vector<2x128xf32>
    %912 = arith.negf %911 : vector<2x128xf32>
    %913 = math.exp %912 : vector<2x128xf32>
    %cst_269 = arith.constant 1.000000e+00 : f32
    %914 = vector.broadcast %cst_269 : f32 to vector<2x128xf32>
    %915 = arith.addf %914, %913 : vector<2x128xf32>
    %916 = arith.divf %914, %915 : vector<2x128xf32>
    %917 = arith.mulf %908, %888 : vector<2x128xf32>
    %918 = arith.mulf %902, %910 : vector<2x128xf32>
    %919 = arith.addf %917, %918 : vector<2x128xf32>
    %920 = math.tanh %919 : vector<2x128xf32>
    %921 = arith.mulf %916, %920 : vector<2x128xf32>
    %922 = vector.shape_cast %921 : vector<2x128xf32> to vector<2x1x128xf32>
    %c0_270 = arith.constant 0 : index
    %c2_271 = arith.constant 2 : index
    %c0_272 = arith.constant 0 : index
    %923 = vector.load %arg14[%c0_270, %c2_271, %c0_272] : memref<2x8x128xf32, #tpu.memory_space<vmem>>, vector<2x1x128xf32>
    tpu.vector_store %arg14[%c0_270, %c2_271, %c0_272], %922 {strides = array<i32>} : memref<2x8x128xf32, #tpu.memory_space<vmem>>, vector<2x1x128xf32>,
    %924 = vector.extract_strided_slice %824 {offsets = [0, 3, 0], sizes = [2, 1, 512], strides = [1, 1, 1]} : vector<2x8x512xf32> to vector<2x1x512xf32>
    %925 = vector.shape_cast %924 : vector<2x1x512xf32> to vector<2x512xf32>
    %cst_273 = arith.constant dense<0.000000e+00> : vector<2x512xf32>
    %926 = tpu.matmul %921, %826, %cst_273 {dimension_numbers = #tpu.dot_dimension_numbers<[1], [0], [0], [1], [0, 0, 1, 1], [], []>} : vector<2x128xf32>, vector<128x512xf32>, vector<2x512xf32> -> vector<2x512xf32>
    %927 = arith.addf %925, %926 : vector<2x512xf32>
    %928 = vector.extract_strided_slice %927 {offsets = [0, 0], sizes = [2, 128], strides = [1, 1]} : vector<2x512xf32> to vector<2x128xf32>
    %929 = arith.negf %928 : vector<2x128xf32>
    %930 = math.exp %929 : vector<2x128xf32>
    %cst_274 = arith.constant 1.000000e+00 : f32
    %931 = vector.broadcast %cst_274 : f32 to vector<2x128xf32>
    %932 = arith.addf %931, %930 : vector<2x128xf32>
    %933 = arith.divf %931, %932 : vector<2x128xf32>
    %934 = vector.extract_strided_slice %927 {offsets = [0, 128], sizes = [2, 128], strides = [1, 1]} : vector<2x512xf32> to vector<2x128xf32>
    %935 = arith.negf %934 : vector<2x128xf32>
    %936 = math.exp %935 : vector<2x128xf32>
    %cst_275 = arith.constant 1.000000e+00 : f32
    %937 = vector.broadcast %cst_275 : f32 to vector<2x128xf32>
    %938 = arith.addf %937, %936 : vector<2x128xf32>
    %939 = arith.divf %937, %938 : vector<2x128xf32>
    %940 = vector.extract_strided_slice %927 {offsets = [0, 256], sizes = [2, 128], strides = [1, 1]} : vector<2x512xf32> to vector<2x128xf32>
    %941 = math.tanh %940 : vector<2x128xf32>
    %942 = vector.extract_strided_slice %927 {offsets = [0, 384], sizes = [2, 128], strides = [1, 1]} : vector<2x512xf32> to vector<2x128xf32>
    %943 = arith.negf %942 : vector<2x128xf32>
    %944 = math.exp %943 : vector<2x128xf32>
    %cst_276 = arith.constant 1.000000e+00 : f32
    %945 = vector.broadcast %cst_276 : f32 to vector<2x128xf32>
    %946 = arith.addf %945, %944 : vector<2x128xf32>
    %947 = arith.divf %945, %946 : vector<2x128xf32>
    %948 = arith.mulf %939, %919 : vector<2x128xf32>
    %949 = arith.mulf %933, %941 : vector<2x128xf32>
    %950 = arith.addf %948, %949 : vector<2x128xf32>
    %951 = math.tanh %950 : vector<2x128xf32>
    %952 = arith.mulf %947, %951 : vector<2x128xf32>
    %953 = vector.shape_cast %952 : vector<2x128xf32> to vector<2x1x128xf32>
    %c0_277 = arith.constant 0 : index
    %c3_278 = arith.constant 3 : index
    %c0_279 = arith.constant 0 : index
    %954 = vector.load %arg14[%c0_277, %c3_278, %c0_279] : memref<2x8x128xf32, #tpu.memory_space<vmem>>, vector<2x1x128xf32>
    tpu.vector_store %arg14[%c0_277, %c3_278, %c0_279], %953 {strides = array<i32>} : memref<2x8x128xf32, #tpu.memory_space<vmem>>, vector<2x1x128xf32>,
    %955 = vector.extract_strided_slice %824 {offsets = [0, 4, 0], sizes = [2, 1, 512], strides = [1, 1, 1]} : vector<2x8x512xf32> to vector<2x1x512xf32>
    %956 = vector.shape_cast %955 : vector<2x1x512xf32> to vector<2x512xf32>
    %cst_280 = arith.constant dense<0.000000e+00> : vector<2x512xf32>
    %957 = tpu.matmul %952, %826, %cst_280 {dimension_numbers = #tpu.dot_dimension_numbers<[1], [0], [0], [1], [0, 0, 1, 1], [], []>} : vector<2x128xf32>, vector<128x512xf32>, vector<2x512xf32> -> vector<2x512xf32>
    %958 = arith.addf %956, %957 : vector<2x512xf32>
    %959 = vector.extract_strided_slice %958 {offsets = [0, 0], sizes = [2, 128], strides = [1, 1]} : vector<2x512xf32> to vector<2x128xf32>
    %960 = arith.negf %959 : vector<2x128xf32>
    %961 = math.exp %960 : vector<2x128xf32>
    %cst_281 = arith.constant 1.000000e+00 : f32
    %962 = vector.broadcast %cst_281 : f32 to vector<2x128xf32>
    %963 = arith.addf %962, %961 : vector<2x128xf32>
    %964 = arith.divf %962, %963 : vector<2x128xf32>
    %965 = vector.extract_strided_slice %958 {offsets = [0, 128], sizes = [2, 128], strides = [1, 1]} : vector<2x512xf32> to vector<2x128xf32>
    %966 = arith.negf %965 : vector<2x128xf32>
    %967 = math.exp %966 : vector<2x128xf32>
    %cst_282 = arith.constant 1.000000e+00 : f32
    %968 = vector.broadcast %cst_282 : f32 to vector<2x128xf32>
    %969 = arith.addf %968, %967 : vector<2x128xf32>
    %970 = arith.divf %968, %969 : vector<2x128xf32>
    %971 = vector.extract_strided_slice %958 {offsets = [0, 256], sizes = [2, 128], strides = [1, 1]} : vector<2x512xf32> to vector<2x128xf32>
    %972 = math.tanh %971 : vector<2x128xf32>
    %973 = vector.extract_strided_slice %958 {offsets = [0, 384], sizes = [2, 128], strides = [1, 1]} : vector<2x512xf32> to vector<2x128xf32>
    %974 = arith.negf %973 : vector<2x128xf32>
    %975 = math.exp %974 : vector<2x128xf32>
    %cst_283 = arith.constant 1.000000e+00 : f32
    %976 = vector.broadcast %cst_283 : f32 to vector<2x128xf32>
    %977 = arith.addf %976, %975 : vector<2x128xf32>
    %978 = arith.divf %976, %977 : vector<2x128xf32>
    %979 = arith.mulf %970, %950 : vector<2x128xf32>
    %980 = arith.mulf %964, %972 : vector<2x128xf32>
    %981 = arith.addf %979, %980 : vector<2x128xf32>
    %982 = math.tanh %981 : vector<2x128xf32>
    %983 = arith.mulf %978, %982 : vector<2x128xf32>
    %984 = vector.shape_cast %983 : vector<2x128xf32> to vector<2x1x128xf32>
    %c0_284 = arith.constant 0 : index
    %c4_285 = arith.constant 4 : index
    %c0_286 = arith.constant 0 : index
    %985 = vector.load %arg14[%c0_284, %c4_285, %c0_286] : memref<2x8x128xf32, #tpu.memory_space<vmem>>, vector<2x1x128xf32>
    tpu.vector_store %arg14[%c0_284, %c4_285, %c0_286], %984 {strides = array<i32>} : memref<2x8x128xf32, #tpu.memory_space<vmem>>, vector<2x1x128xf32>,
    %986 = vector.extract_strided_slice %824 {offsets = [0, 5, 0], sizes = [2, 1, 512], strides = [1, 1, 1]} : vector<2x8x512xf32> to vector<2x1x512xf32>
    %987 = vector.shape_cast %986 : vector<2x1x512xf32> to vector<2x512xf32>
    %cst_287 = arith.constant dense<0.000000e+00> : vector<2x512xf32>
    %988 = tpu.matmul %983, %826, %cst_287 {dimension_numbers = #tpu.dot_dimension_numbers<[1], [0], [0], [1], [0, 0, 1, 1], [], []>} : vector<2x128xf32>, vector<128x512xf32>, vector<2x512xf32> -> vector<2x512xf32>
    %989 = arith.addf %987, %988 : vector<2x512xf32>
    %990 = vector.extract_strided_slice %989 {offsets = [0, 0], sizes = [2, 128], strides = [1, 1]} : vector<2x512xf32> to vector<2x128xf32>
    %991 = arith.negf %990 : vector<2x128xf32>
    %992 = math.exp %991 : vector<2x128xf32>
    %cst_288 = arith.constant 1.000000e+00 : f32
    %993 = vector.broadcast %cst_288 : f32 to vector<2x128xf32>
    %994 = arith.addf %993, %992 : vector<2x128xf32>
    %995 = arith.divf %993, %994 : vector<2x128xf32>
    %996 = vector.extract_strided_slice %989 {offsets = [0, 128], sizes = [2, 128], strides = [1, 1]} : vector<2x512xf32> to vector<2x128xf32>
    %997 = arith.negf %996 : vector<2x128xf32>
    %998 = math.exp %997 : vector<2x128xf32>
    %cst_289 = arith.constant 1.000000e+00 : f32
    %999 = vector.broadcast %cst_289 : f32 to vector<2x128xf32>
    %1000 = arith.addf %999, %998 : vector<2x128xf32>
    %1001 = arith.divf %999, %1000 : vector<2x128xf32>
    %1002 = vector.extract_strided_slice %989 {offsets = [0, 256], sizes = [2, 128], strides = [1, 1]} : vector<2x512xf32> to vector<2x128xf32>
    %1003 = math.tanh %1002 : vector<2x128xf32>
    %1004 = vector.extract_strided_slice %989 {offsets = [0, 384], sizes = [2, 128], strides = [1, 1]} : vector<2x512xf32> to vector<2x128xf32>
    %1005 = arith.negf %1004 : vector<2x128xf32>
    %1006 = math.exp %1005 : vector<2x128xf32>
    %cst_290 = arith.constant 1.000000e+00 : f32
    %1007 = vector.broadcast %cst_290 : f32 to vector<2x128xf32>
    %1008 = arith.addf %1007, %1006 : vector<2x128xf32>
    %1009 = arith.divf %1007, %1008 : vector<2x128xf32>
    %1010 = arith.mulf %1001, %981 : vector<2x128xf32>
    %1011 = arith.mulf %995, %1003 : vector<2x128xf32>
    %1012 = arith.addf %1010, %1011 : vector<2x128xf32>
    %1013 = math.tanh %1012 : vector<2x128xf32>
    %1014 = arith.mulf %1009, %1013 : vector<2x128xf32>
    %1015 = vector.shape_cast %1014 : vector<2x128xf32> to vector<2x1x128xf32>
    %c0_291 = arith.constant 0 : index
    %c5_292 = arith.constant 5 : index
    %c0_293 = arith.constant 0 : index
    %1016 = vector.load %arg14[%c0_291, %c5_292, %c0_293] : memref<2x8x128xf32, #tpu.memory_space<vmem>>, vector<2x1x128xf32>
    tpu.vector_store %arg14[%c0_291, %c5_292, %c0_293], %1015 {strides = array<i32>} : memref<2x8x128xf32, #tpu.memory_space<vmem>>, vector<2x1x128xf32>,
    %1017 = vector.extract_strided_slice %824 {offsets = [0, 6, 0], sizes = [2, 1, 512], strides = [1, 1, 1]} : vector<2x8x512xf32> to vector<2x1x512xf32>
    %1018 = vector.shape_cast %1017 : vector<2x1x512xf32> to vector<2x512xf32>
    %cst_294 = arith.constant dense<0.000000e+00> : vector<2x512xf32>
    %1019 = tpu.matmul %1014, %826, %cst_294 {dimension_numbers = #tpu.dot_dimension_numbers<[1], [0], [0], [1], [0, 0, 1, 1], [], []>} : vector<2x128xf32>, vector<128x512xf32>, vector<2x512xf32> -> vector<2x512xf32>
    %1020 = arith.addf %1018, %1019 : vector<2x512xf32>
    %1021 = vector.extract_strided_slice %1020 {offsets = [0, 0], sizes = [2, 128], strides = [1, 1]} : vector<2x512xf32> to vector<2x128xf32>
    %1022 = arith.negf %1021 : vector<2x128xf32>
    %1023 = math.exp %1022 : vector<2x128xf32>
    %cst_295 = arith.constant 1.000000e+00 : f32
    %1024 = vector.broadcast %cst_295 : f32 to vector<2x128xf32>
    %1025 = arith.addf %1024, %1023 : vector<2x128xf32>
    %1026 = arith.divf %1024, %1025 : vector<2x128xf32>
    %1027 = vector.extract_strided_slice %1020 {offsets = [0, 128], sizes = [2, 128], strides = [1, 1]} : vector<2x512xf32> to vector<2x128xf32>
    %1028 = arith.negf %1027 : vector<2x128xf32>
    %1029 = math.exp %1028 : vector<2x128xf32>
    %cst_296 = arith.constant 1.000000e+00 : f32
    %1030 = vector.broadcast %cst_296 : f32 to vector<2x128xf32>
    %1031 = arith.addf %1030, %1029 : vector<2x128xf32>
    %1032 = arith.divf %1030, %1031 : vector<2x128xf32>
    %1033 = vector.extract_strided_slice %1020 {offsets = [0, 256], sizes = [2, 128], strides = [1, 1]} : vector<2x512xf32> to vector<2x128xf32>
    %1034 = math.tanh %1033 : vector<2x128xf32>
    %1035 = vector.extract_strided_slice %1020 {offsets = [0, 384], sizes = [2, 128], strides = [1, 1]} : vector<2x512xf32> to vector<2x128xf32>
    %1036 = arith.negf %1035 : vector<2x128xf32>
    %1037 = math.exp %1036 : vector<2x128xf32>
    %cst_297 = arith.constant 1.000000e+00 : f32
    %1038 = vector.broadcast %cst_297 : f32 to vector<2x128xf32>
    %1039 = arith.addf %1038, %1037 : vector<2x128xf32>
    %1040 = arith.divf %1038, %1039 : vector<2x128xf32>
    %1041 = arith.mulf %1032, %1012 : vector<2x128xf32>
    %1042 = arith.mulf %1026, %1034 : vector<2x128xf32>
    %1043 = arith.addf %1041, %1042 : vector<2x128xf32>
    %1044 = math.tanh %1043 : vector<2x128xf32>
    %1045 = arith.mulf %1040, %1044 : vector<2x128xf32>
    %1046 = vector.shape_cast %1045 : vector<2x128xf32> to vector<2x1x128xf32>
    %c0_298 = arith.constant 0 : index
    %c6_299 = arith.constant 6 : index
    %c0_300 = arith.constant 0 : index
    %1047 = vector.load %arg14[%c0_298, %c6_299, %c0_300] : memref<2x8x128xf32, #tpu.memory_space<vmem>>, vector<2x1x128xf32>
    tpu.vector_store %arg14[%c0_298, %c6_299, %c0_300], %1046 {strides = array<i32>} : memref<2x8x128xf32, #tpu.memory_space<vmem>>, vector<2x1x128xf32>,
    %1048 = vector.extract_strided_slice %824 {offsets = [0, 7, 0], sizes = [2, 1, 512], strides = [1, 1, 1]} : vector<2x8x512xf32> to vector<2x1x512xf32>
    %1049 = vector.shape_cast %1048 : vector<2x1x512xf32> to vector<2x512xf32>
    %cst_301 = arith.constant dense<0.000000e+00> : vector<2x512xf32>
    %1050 = tpu.matmul %1045, %826, %cst_301 {dimension_numbers = #tpu.dot_dimension_numbers<[1], [0], [0], [1], [0, 0, 1, 1], [], []>} : vector<2x128xf32>, vector<128x512xf32>, vector<2x512xf32> -> vector<2x512xf32>
    %1051 = arith.addf %1049, %1050 : vector<2x512xf32>
    %1052 = vector.extract_strided_slice %1051 {offsets = [0, 0], sizes = [2, 128], strides = [1, 1]} : vector<2x512xf32> to vector<2x128xf32>
    %1053 = arith.negf %1052 : vector<2x128xf32>
    %1054 = math.exp %1053 : vector<2x128xf32>
    %cst_302 = arith.constant 1.000000e+00 : f32
    %1055 = vector.broadcast %cst_302 : f32 to vector<2x128xf32>
    %1056 = arith.addf %1055, %1054 : vector<2x128xf32>
    %1057 = arith.divf %1055, %1056 : vector<2x128xf32>
    %1058 = vector.extract_strided_slice %1051 {offsets = [0, 128], sizes = [2, 128], strides = [1, 1]} : vector<2x512xf32> to vector<2x128xf32>
    %1059 = arith.negf %1058 : vector<2x128xf32>
    %1060 = math.exp %1059 : vector<2x128xf32>
    %cst_303 = arith.constant 1.000000e+00 : f32
    %1061 = vector.broadcast %cst_303 : f32 to vector<2x128xf32>
    %1062 = arith.addf %1061, %1060 : vector<2x128xf32>
    %1063 = arith.divf %1061, %1062 : vector<2x128xf32>
    %1064 = vector.extract_strided_slice %1051 {offsets = [0, 256], sizes = [2, 128], strides = [1, 1]} : vector<2x512xf32> to vector<2x128xf32>
    %1065 = math.tanh %1064 : vector<2x128xf32>
    %1066 = vector.extract_strided_slice %1051 {offsets = [0, 384], sizes = [2, 128], strides = [1, 1]} : vector<2x512xf32> to vector<2x128xf32>
    %1067 = arith.negf %1066 : vector<2x128xf32>
    %1068 = math.exp %1067 : vector<2x128xf32>
    %cst_304 = arith.constant 1.000000e+00 : f32
    %1069 = vector.broadcast %cst_304 : f32 to vector<2x128xf32>
    %1070 = arith.addf %1069, %1068 : vector<2x128xf32>
    %1071 = arith.divf %1069, %1070 : vector<2x128xf32>
    %1072 = arith.mulf %1063, %1043 : vector<2x128xf32>
    %1073 = arith.mulf %1057, %1065 : vector<2x128xf32>
    %1074 = arith.addf %1072, %1073 : vector<2x128xf32>
    %1075 = math.tanh %1074 : vector<2x128xf32>
    %1076 = arith.mulf %1071, %1075 : vector<2x128xf32>
    %1077 = vector.shape_cast %1076 : vector<2x128xf32> to vector<2x1x128xf32>
    %c0_305 = arith.constant 0 : index
    %c7_306 = arith.constant 7 : index
    %c0_307 = arith.constant 0 : index
    %1078 = vector.load %arg14[%c0_305, %c7_306, %c0_307] : memref<2x8x128xf32, #tpu.memory_space<vmem>>, vector<2x1x128xf32>
    tpu.vector_store %arg14[%c0_305, %c7_306, %c0_307], %1077 {strides = array<i32>} : memref<2x8x128xf32, #tpu.memory_space<vmem>>, vector<2x1x128xf32>,
    %1079 = vector.extract_strided_slice %1076 {offsets = [0, 0], sizes = [2, 54], strides = [1, 1]} : vector<2x128xf32> to vector<2x54xf32>
    %c3_308 = arith.constant 3 : index
    %c0_309 = arith.constant 0 : index
    %c0_310 = arith.constant 0 : index
    %1080 = vector.load %arg12[%c3_308, %c0_309, %c0_310] : memref<4x2x54xf32, #tpu.memory_space<vmem>>, vector<1x2x54xf32>
    %1081 = vector.shape_cast %1080 : vector<1x2x54xf32> to vector<2x54xf32>
    %1082 = vector.shape_cast %1079 : vector<2x54xf32> to vector<1x2x54xf32>
    tpu.vector_store %arg12[%c3_308, %c0_309, %c0_310], %1082 {strides = array<i32>} : memref<4x2x54xf32, #tpu.memory_space<vmem>>, vector<1x2x54xf32>,
    %1083 = vector.extract_strided_slice %1074 {offsets = [0, 0], sizes = [2, 54], strides = [1, 1]} : vector<2x128xf32> to vector<2x54xf32>
    %c3_311 = arith.constant 3 : index
    %c0_312 = arith.constant 0 : index
    %c0_313 = arith.constant 0 : index
    %1084 = vector.load %arg13[%c3_311, %c0_312, %c0_313] : memref<4x2x54xf32, #tpu.memory_space<vmem>>, vector<1x2x54xf32>
    %1085 = vector.shape_cast %1084 : vector<1x2x54xf32> to vector<2x54xf32>
    %1086 = vector.shape_cast %1083 : vector<2x54xf32> to vector<1x2x54xf32>
    tpu.vector_store %arg13[%c3_311, %c0_312, %c0_313], %1086 {strides = array<i32>} : memref<4x2x54xf32, #tpu.memory_space<vmem>>, vector<1x2x54xf32>,
    %c0_314 = arith.constant 0 : index
    %c0_315 = arith.constant 0 : index
    %c0_316 = arith.constant 0 : index
    %1087 = vector.load %arg14[%c0_314, %c0_315, %c0_316] : memref<2x8x128xf32, #tpu.memory_space<vmem>>, vector<2x8x128xf32>
    %1088 = vector.shape_cast %1087 : vector<2x8x128xf32> to vector<16x128xf32>
    %c0_317 = arith.constant 0 : index
    %c0_318 = arith.constant 0 : index
    %1089 = vector.load %arg7[%c0_317, %c0_318] : memref<128x27xf32, #tpu.memory_space<vmem>>, vector<128x27xf32>
    %cst_319 = arith.constant dense<0.000000e+00> : vector<16x27xf32>
    %1090 = tpu.matmul %1088, %1089, %cst_319 {dimension_numbers = #tpu.dot_dimension_numbers<[1], [0], [0], [1], [0, 0, 1, 1], [], []>} : vector<16x128xf32>, vector<128x27xf32>, vector<16x27xf32> -> vector<16x27xf32>
    %c0_320 = arith.constant 0 : index
    %c0_321 = arith.constant 0 : index
    %1091 = vector.load %arg8[%c0_320, %c0_321] : memref<1x27xf32, #tpu.memory_space<vmem>>, vector<1x27xf32>
    %1092 = vector.broadcast %1091 : vector<1x27xf32> to vector<16x27xf32>
    %1093 = arith.addf %1090, %1092 : vector<16x27xf32>
    %cst_322 = arith.constant 0.000000e+00 : f32
    %1094 = vector.broadcast %cst_322 : f32 to vector<16x27xf32>
    %1095 = arith.maximumf %1093, %1094 : vector<16x27xf32>
    %c0_323 = arith.constant 0 : index
    %c0_324 = arith.constant 0 : index
    %1096 = vector.load %arg9[%c0_323, %c0_324] : memref<27x27xf32, #tpu.memory_space<vmem>>, vector<27x27xf32>
    %cst_325 = arith.constant dense<0.000000e+00> : vector<16x27xf32>
    %1097 = tpu.matmul %1095, %1096, %cst_325 {dimension_numbers = #tpu.dot_dimension_numbers<[1], [0], [0], [1], [0, 0, 1, 1], [], []>} : vector<16x27xf32>, vector<27x27xf32>, vector<16x27xf32> -> vector<16x27xf32>
    %c0_326 = arith.constant 0 : index
    %c0_327 = arith.constant 0 : index
    %1098 = vector.load %arg10[%c0_326, %c0_327] : memref<1x27xf32, #tpu.memory_space<vmem>>, vector<1x27xf32>
    %1099 = vector.broadcast %1098 : vector<1x27xf32> to vector<16x27xf32>
    %1100 = arith.addf %1097, %1099 : vector<16x27xf32>
    %1101 = vector.shape_cast %1100 : vector<16x27xf32> to vector<2x8x27xf32>
    %c0_328 = arith.constant 0 : index
    %c0_329 = arith.constant 0 : index
    %c0_330 = arith.constant 0 : index
    %1102 = vector.load %arg11[%c0_328, %c0_329, %c0_330] : memref<2x8x27xf32, #tpu.memory_space<vmem>>, vector<2x8x27xf32>
    tpu.vector_store %arg11[%c0_328, %c0_329, %c0_330], %1101 {strides = array<i32>} : memref<2x8x27xf32, #tpu.memory_space<vmem>>, vector<2x8x27xf32>,
    return
  }
}

</mosaic_0001>

<llo_original>
// kernel: model_forward.1
$region0: #{model_forward.1}
  #allocation0 [shape = 'u32[]', space=smem, size = 0x4, offset = 0x4, fixed_abs, tag = 'smem constant byte address 0x4 - core index']
  #allocation1 [shape = 'u32[144,128]{1,0:T(1,128)}', space=vmem, size = 0x12000, scoped, tag = 'internal scratch']
  #allocation2 [shape = 'f32[2,8,128]{2,1,0:T(8,128)}', space=vmem, size = 0x2000, scoped, tag = 'scratch operand']
  %s0 = inlined_call_operand.vmem [shape: f32[2,8,27], index: 0, kind: input, shape index: {}]
  %s1 = inlined_call_operand.vmem [shape: f32[4,2,128], index: 1, kind: input, shape index: {}]
  %s2 = inlined_call_operand.vmem [shape: f32[4,2,128], index: 2, kind: input, shape index: {}]
  %s3 = inlined_call_operand.vmem [shape: f32[27,512], index: 3, kind: input, shape index: {}]
  %s4 = inlined_call_operand.hbm [shape: f32[3,128,512], index: 4, kind: input, shape index: {}]
  %s5 = inlined_call_operand.hbm [shape: f32[4,128,512], index: 5, kind: input, shape index: {}]
  %s6 = inlined_call_operand.vmem [shape: f32[4,1,512], index: 6, kind: input, shape index: {}]
  %s7 = inlined_call_operand.vmem [shape: f32[128,27], index: 7, kind: input, shape index: {}]
  %s8 = inlined_call_operand.vmem [shape: f32[1,27], index: 8, kind: input, shape index: {}]
  %s9 = inlined_call_operand.vmem [shape: f32[27,27], index: 9, kind: input, shape index: {}]
  %s10 = inlined_call_operand.vmem [shape: f32[1,27], index: 10, kind: input, shape index: {}]
  %s11 = inlined_call_operand.hbm [shape: f32[2,8,27], index: 11, kind: output, shape index: {0}]
  %s12 = inlined_call_operand.hbm [shape: f32[4,2,54], index: 12, kind: output, shape index: {1}]
  %s13 = inlined_call_operand.hbm [shape: f32[4,2,54], index: 13, kind: output, shape index: {2}]
  %14 = xla_tuple %s11, %s12, %s13
  %s15 = sld [smem:[#allocation0]]
  $region78: #{model_forward.1} parent=0
    _
  %s17 = ssub.s32 1, %s15
  %s18 = scalar_select 0, %s17, %s15
  $region1: #{model_forward.1} parent=0
    #allocation3 [shape = 'u8[786432]{0}', space=vmem, size = 0xc0000, scoped, tag = 'input window, operand 4, single buffered']
    #allocation4 [shape = 's32[1]{0}', space=sflag, size = 0x4, scoped, tag = 'scoped memory for model_forward.1']
    #allocation5 [shape = 's32[1]{0}', space=sflag, size = 0x4, scoped, tag = 'scoped memory for model_forward.1']
    #allocation6 [shape = 'u8[1048576]{0}', space=vmem, size = 0x100000, scoped, tag = 'input window, operand 5, single buffered']
    #allocation7 [shape = 's32[1]{0}', space=sflag, size = 0x4, scoped, tag = 'scoped memory for model_forward.1']
    #allocation8 [shape = 'u8[8192]{0}', space=vmem, size = 0x2000, scoped, tag = 'output window, operand 0, single buffered']
    #allocation9 [shape = 'u8[4096]{0}', space=vmem, size = 0x1000, scoped, tag = 'output window, operand 1, single buffered']
    #allocation10 [shape = 's32[1]{0}', space=sflag, size = 0x4, scoped, tag = 'scoped memory for model_forward.1']
    #allocation11 [shape = 'u8[4096]{0}', space=vmem, size = 0x1000, scoped, tag = 'output window, operand 2, single buffered']
    %19 = vsyncpa [#allocation4], 0
    %20 = vsyncpa [#allocation7], 0
    %21 = vsyncpa [#allocation5], 0
    %22 = vsyncpa [#allocation10], 0
    // Predicated region
    $region2: #{model_forward.1} parent=1 // pred_check
      _
    $region3: #{model_forward.1} parent=1 // pred_check_branch
      %24 = sbr.rel (0) target = $region5
    $region4: #{model_forward.1} parent=1 // pred_region
      _
    $region5: #{model_forward.1} parent=1 // pred_fallthru
      _
    // Predicated region
    $region6: #{model_forward.1} parent=1 // pred_check
      _
    $region7: #{model_forward.1} parent=1 // pred_check_branch
      %26 = sbr.rel (0) target = $region9
    $region8: #{model_forward.1} parent=1 // pred_region
      _
    $region9: #{model_forward.1} parent=1 // pred_fallthru
      _
    // Predicated region
    $region10: #{model_forward.1} parent=1 // pred_check
      _
    $region11: #{model_forward.1} parent=1 // pred_check_branch
      %28 = sbr.rel (0) target = $region13
    $region12: #{model_forward.1} parent=1 // pred_region
      _
    $region13: #{model_forward.1} parent=1 // pred_fallthru
      _
    // Predicated region
    $region14: #{model_forward.1} parent=1 // pred_check
      _
    $region15: #{model_forward.1} parent=1 // pred_check_branch
      %30 = sbr.rel (0) target = $region17
    $region16: #{model_forward.1} parent=1 // pred_region
      _
    $region17: #{model_forward.1} parent=1 // pred_fallthru
      _
    // Predicated region
    $region18: #{model_forward.1} parent=1 // pred_check
      _
    $region19: #{model_forward.1} parent=1 // pred_check_branch
      %32 = sbr.rel (0) target = $region21
    $region20: #{model_forward.1} parent=1 // pred_region
      %s34 = ssub.s32 24576, 24576
      %35 = vsyncadd [#allocation4], %s34
      %s36 = sshll.u32 [#allocation3], 4
      %s37 = int_to_ptr.vmem [resolvable:$true] %s36
      %42 = dma.hbm_to_vmem [thread:$0]  %s4, 24576, %s37, [#allocation4], 512, 512, 32
    $region21: #{model_forward.1} parent=1 // pred_fallthru
      _
    // Predicated region
    $region22: #{model_forward.1} parent=1 // pred_check
      _
    $region23: #{model_forward.1} parent=1 // pred_check_branch
      %44 = sbr.rel (0) target = $region25
    $region24: #{model_forward.1} parent=1 // pred_region
      %s46 = ssub.s32 32768, 32768
      %47 = vsyncadd [#allocation7], %s46
      %s48 = sshll.u32 [#allocation6], 4
      %s49 = int_to_ptr.vmem [resolvable:$true] %s48
      %54 = dma.hbm_to_vmem [thread:$0]  %s5, 32768, %s49, [#allocation7], 512, 512, 32
    $region25: #{model_forward.1} parent=1 // pred_fallthru
      _
    // Predicated region
    $region26: #{model_forward.1} parent=1 // pred_check
      _
    $region27: #{model_forward.1} parent=1 // pred_check_branch
      %56 = sbr.rel (0) target = $region29
    $region28: #{model_forward.1} parent=1 // pred_region
      _
    $region29: #{model_forward.1} parent=1 // pred_fallthru
      _
    // Predicated region
    $region30: #{model_forward.1} parent=1 // pred_check
      _
    $region31: #{model_forward.1} parent=1 // pred_check_branch
      %58 = sbr.rel (0) target = $region33
    $region32: #{model_forward.1} parent=1 // pred_region
      _
    $region33: #{model_forward.1} parent=1 // pred_fallthru
      _
    // Predicated region
    $region34: #{model_forward.1} parent=1 // pred_check
      _
    $region35: #{model_forward.1} parent=1 // pred_check_branch
      %60 = sbr.rel (0) target = $region37
    $region36: #{model_forward.1} parent=1 // pred_region
      _
    $region37: #{model_forward.1} parent=1 // pred_fallthru
      _
    // Predicated region
    $region38: #{model_forward.1} parent=1 // pred_check
      _
    $region39: #{model_forward.1} parent=1 // pred_check_branch
      %62 = sbr.rel (0) target = $region41
    $region40: #{model_forward.1} parent=1 // pred_region
      _
    $region41: #{model_forward.1} parent=1 // pred_fallthru
      _
    // Predicated region
    $region42: #{model_forward.1} parent=1 // pred_check
      _
    $region43: #{model_forward.1} parent=1 // pred_check_branch
      %64 = sbr.rel (0) target = $region45
    $region44: #{model_forward.1} parent=1 // pred_region
      _
    $region45: #{model_forward.1} parent=1 // pred_fallthru
      _
    // Predicated region
    $region46: #{model_forward.1} parent=1 // pred_check
      _
    $region47: #{model_forward.1} parent=1 // pred_check_branch
      %66 = sbr.rel (0) target = $region49
    $region48: #{model_forward.1} parent=1 // pred_region
      %67 = dma.done [#allocation4], 24576
    $region49: #{model_forward.1} parent=1 // pred_fallthru
      _
    // Predicated region
    $region50: #{model_forward.1} parent=1 // pred_check
      _
    $region51: #{model_forward.1} parent=1 // pred_check_branch
      %69 = sbr.rel (0) target = $region53
    $region52: #{model_forward.1} parent=1 // pred_region
      %70 = dma.done [#allocation7], 32768
    $region53: #{model_forward.1} parent=1 // pred_fallthru
      _
    %v71 = vld [vmem:[%s0] sm:$0xff]
    %v72 = vld [vmem:[%s0 + $0x8] sm:$0xff]
    %v73 = vld [vmem:[%s3] sm:$0xff]
    %v74 = vld [vmem:[%s3 + $0x8] sm:$0xff]
    %v75 = vld [vmem:[%s3 + $0x10] sm:$0xff]
    %v76 = vld [vmem:[%s3 + $0x18] sm:$0xff]
    %v77 = vld [vmem:[%s3 + $0x20] sm:$0xff]
    %v78 = vld [vmem:[%s3 + $0x28] sm:$0xff]
    %v79 = vld [vmem:[%s3 + $0x30] sm:$0xff]
    %v80 = vld [vmem:[%s3 + $0x38] sm:$0xff]
    %v81 = vld [vmem:[%s3 + $0x40] sm:$0xff]
    %v82 = vld [vmem:[%s3 + $0x48] sm:$0xff]
    %v83 = vld [vmem:[%s3 + $0x50] sm:$0xff]
    %v84 = vld [vmem:[%s3 + $0x58] sm:$0xff]
    %v85 = vld [vmem:[%s3 + $0x60] sm:$0x7]
    %v86 = vld [vmem:[%s3 + $0x68] sm:$0x7]
    %v87 = vld [vmem:[%s3 + $0x70] sm:$0x7]
    %v88 = vld [vmem:[%s3 + $0x78] sm:$0x7]
    %v89 = vld [vmem:[%s6] sm:$0xf]
    %v91 = vlaneseq
    %v92 = vshrl.u32 %v91, 7
    %v93 = vsub.s32 0, %v92
    %v94 = vrot.slane %v89, %v93
    %v95 = vlaneseq
    %v96 = vshrl.u32 %v95, 7
    %v97 = vsub.s32 1, %v96
    %v98 = vrot.slane %v89, %v97
    %v99 = vlaneseq
    %v100 = vshrl.u32 %v99, 7
    %v101 = vsub.s32 2, %v100
    %v102 = vrot.slane %v89, %v101
    %v103 = vlaneseq
    %v104 = vshrl.u32 %v103, 7
    %v105 = vsub.s32 3, %v104
    %v106 = vrot.slane %v89, %v105
    %vm111 = vcmask 220160
    %v113 = vsel %vm111, %v71, 0
    %v116 = vsel %vm111, %v72, 0
    %vm118 = vcmask 1042432
    %v120 = vsel %vm118, %v85, 0
    %v123 = vsel %vm118, %v86, 0
    %v126 = vsel %vm118, %v87, 0
    %v129 = vsel %vm118, %v88, 0
    %131 = vmatprep.subr.mxu0 0.0
    %132 = vmatpush1.msra.mxu0 0.0
    %133 = vmatprep.subr.mxu0 0.0
    %134 = vmatpush1.msra.mxu0 0.0
    %135 = vmatprep.subr.mxu0 0.0
    %136 = vmatpush1.msra.mxu0 0.0
    %137 = vmatprep.subr.mxu0 0.0
    %138 = vmatpush1.msra.mxu0 0.0
    %139 = vmatprep.subr.mxu0 0.0
    %140 = vmatpush1.msra.mxu0 0.0
    %141 = vmatprep.subr.mxu0 0.0
    %142 = vmatpush1.msra.mxu0 0.0
    %143 = vmatprep.subr.mxu0 0.0
    %144 = vmatpush1.msra.mxu0 0.0
    %145 = vmatprep.subr.mxu0 0.0
    %146 = vmatpush1.msra.mxu0 0.0
    %147 = vmatprep.subr.mxu0 0.0
    %148 = vmatpush1.msra.mxu0 0.0
    %149 = vmatprep.subr.mxu0 0.0
    %150 = vmatpush1.msra.mxu0 0.0
    %151 = vmatprep.subr.mxu0 0.0
    %152 = vmatpush1.msra.mxu0 0.0
    %153 = vmatprep.subr.mxu0 0.0
    %154 = vmatpush1.msra.mxu0 0.0
    %155 = vmatprep.subr.mxu0 %v123
    %156 = vmatpush1.msra.mxu0 %v120
    %157 = vmatprep.subr.mxu0 %v82
    %158 = vmatpush1.msra.mxu0 %v81
    %159 = vmatprep.subr.mxu0 %v78
    %160 = vmatpush1.msra.mxu0 %v77
    %161 = vmatprep.subr.mxu0 %v74
    %162 = vmatpush1.msra.mxu0 %v73
    %163 = vmatprep.subr.mxu0 0.0
    %164 = vmatpush2.msra.mxu0 0.0
    %165 = vmatprep.subr.mxu0 0.0
    %166 = vmatpush2.msra.mxu0 0.0
    %167 = vmatprep.subr.mxu0 0.0
    %168 = vmatpush2.msra.mxu0 0.0
    %169 = vmatprep.subr.mxu0 0.0
    %170 = vmatpush2.msra.mxu0 0.0
    %171 = vmatprep.subr.mxu0 0.0
    %172 = vmatpush2.msra.mxu0 0.0
    %173 = vmatprep.subr.mxu0 0.0
    %174 = vmatpush2.msra.mxu0 0.0
    %175 = vmatprep.subr.mxu0 0.0
    %176 = vmatpush2.msra.mxu0 0.0
    %177 = vmatprep.subr.mxu0 0.0
    %178 = vmatpush2.msra.mxu0 0.0
    %179 = vmatprep.subr.mxu0 0.0
    %180 = vmatpush2.msra.mxu0 0.0
    %181 = vmatprep.subr.mxu0 0.0
    %182 = vmatpush2.msra.mxu0 0.0
    %183 = vmatprep.subr.mxu0 0.0
    %184 = vmatpush2.msra.mxu0 0.0
    %185 = vmatprep.subr.mxu0 0.0
    %186 = vmatpush2.msra.mxu0 0.0
    %187 = vmatprep.subr.mxu0 0.0
    %188 = vmatpush2.msra.mxu0 0.0
    %189 = vmatprep.subr.mxu0 0.0
    %190 = vmatpush2.msra.mxu0 0.0
    %191 = vmatprep.subr.mxu0 0.0
    %192 = vmatpush2.msra.mxu0 0.0
    %193 = vmatprep.subr.mxu0 0.0
    %194 = vmatpush2.msra.mxu0 0.0
    %195 = vmatprep.mubr.f32.mxu0 0.0
    %196 = vmatmul.mubr.f32.gmra.mxu0 %v113
    %v197 = vpop.f32.mrf.mxu0
    %v198 = vadd.f32 %v94, %v197
    %v199 = vpop.f32.mrf.mxu0
    %v200 = vadd.f32 %v98, %v199
    %201 = vmatprep.mubr.f32.mxu0 0.0
    %202 = vmatmul.mubr.f32.gmra.mxu0 %v116
    %v203 = vpop.f32.mrf.mxu0
    %v204 = vadd.f32 %v94, %v203
    %v205 = vpop.f32.mrf.mxu0
    %v206 = vadd.f32 %v98, %v205
    %207 = vdwg.mxu0
    %208 = vmatprep.subr.mxu0 0.0
    %209 = vmatpush1.msra.mxu0 0.0
    %210 = vmatprep.subr.mxu0 0.0
    %211 = vmatpush1.msra.mxu0 0.0
    %212 = vmatprep.subr.mxu0 0.0
    %213 = vmatpush1.msra.mxu0 0.0
    %214 = vmatprep.subr.mxu0 0.0
    %215 = vmatpush1.msra.mxu0 0.0
    %216 = vmatprep.subr.mxu0 0.0
    %217 = vmatpush1.msra.mxu0 0.0
    %218 = vmatprep.subr.mxu0 0.0
    %219 = vmatpush1.msra.mxu0 0.0
    %220 = vmatprep.subr.mxu0 0.0
    %221 = vmatpush1.msra.mxu0 0.0
    %222 = vmatprep.subr.mxu0 0.0
    %223 = vmatpush1.msra.mxu0 0.0
    %224 = vmatprep.subr.mxu0 0.0
    %225 = vmatpush1.msra.mxu0 0.0
    %226 = vmatprep.subr.mxu0 0.0
    %227 = vmatpush1.msra.mxu0 0.0
    %228 = vmatprep.subr.mxu0 0.0
    %229 = vmatpush1.msra.mxu0 0.0
    %230 = vmatprep.subr.mxu0 0.0
    %231 = vmatpush1.msra.mxu0 0.0
    %232 = vmatprep.subr.mxu0 %v129
    %233 = vmatpush1.msra.mxu0 %v126
    %234 = vmatprep.subr.mxu0 %v84
    %235 = vmatpush1.msra.mxu0 %v83
    %236 = vmatprep.subr.mxu0 %v80
    %237 = vmatpush1.msra.mxu0 %v79
    %238 = vmatprep.subr.mxu0 %v76
    %239 = vmatpush1.msra.mxu0 %v75
    %240 = vmatprep.subr.mxu0 0.0
    %241 = vmatpush2.msra.mxu0 0.0
    %242 = vmatprep.subr.mxu0 0.0
    %243 = vmatpush2.msra.mxu0 0.0
    %244 = vmatprep.subr.mxu0 0.0
    %245 = vmatpush2.msra.mxu0 0.0
    %246 = vmatprep.subr.mxu0 0.0
    %247 = vmatpush2.msra.mxu0 0.0
    %248 = vmatprep.subr.mxu0 0.0
    %249 = vmatpush2.msra.mxu0 0.0
    %250 = vmatprep.subr.mxu0 0.0
    %251 = vmatpush2.msra.mxu0 0.0
    %252 = vmatprep.subr.mxu0 0.0
    %253 = vmatpush2.msra.mxu0 0.0
    %254 = vmatprep.subr.mxu0 0.0
    %255 = vmatpush2.msra.mxu0 0.0
    %256 = vmatprep.subr.mxu0 0.0
    %257 = vmatpush2.msra.mxu0 0.0
    %258 = vmatprep.subr.mxu0 0.0
    %259 = vmatpush2.msra.mxu0 0.0
    %260 = vmatprep.subr.mxu0 0.0
    %261 = vmatpush2.msra.mxu0 0.0
    %262 = vmatprep.subr.mxu0 0.0
    %263 = vmatpush2.msra.mxu0 0.0
    %264 = vmatprep.subr.mxu0 0.0
    %265 = vmatpush2.msra.mxu0 0.0
    %266 = vmatprep.subr.mxu0 0.0
    %267 = vmatpush2.msra.mxu0 0.0
    %268 = vmatprep.subr.mxu0 0.0
    %269 = vmatpush2.msra.mxu0 0.0
    %270 = vmatprep.subr.mxu0 0.0
    %271 = vmatpush2.msra.mxu0 0.0
    %272 = vmatprep.mubr.f32.mxu0 0.0
    %273 = vmatmul.mubr.f32.gmra.mxu0 %v113
    %v274 = vpop.f32.mrf.mxu0
    %v275 = vadd.f32 %v102, %v274
    %v276 = vpop.f32.mrf.mxu0
    %v277 = vadd.f32 %v106, %v276
    %278 = vmatprep.mubr.f32.mxu0 0.0
    %279 = vmatmul.mubr.f32.gmra.mxu0 %v116
    %v280 = vpop.f32.mrf.mxu0
    %v281 = vadd.f32 %v102, %v280
    %v282 = vpop.f32.mrf.mxu0
    %v283 = vadd.f32 %v106, %v282
    %284 = vdwg.mxu0
    %v285 = vld [vmem:[#allocation6] sm:$0xff]
    %v286 = vld [vmem:[#allocation6 + $0x8] sm:$0xff]
    %v287 = vld [vmem:[#allocation6 + $0x10] sm:$0xff]
    %v288 = vld [vmem:[#allocation6 + $0x18] sm:$0xff]
    %v289 = vld [vmem:[#allocation6 + $0x20] sm:$0xff]
    %v290 = vld [vmem:[#allocation6 + $0x28] sm:$0xff]
    %v291 = vld [vmem:[#allocation6 + $0x30] sm:$0xff]
    %v292 = vld [vmem:[#allocation6 + $0x38] sm:$0xff]
    %v293 = vld [vmem:[#allocation6 + $0x40] sm:$0xff]
    %v294 = vld [vmem:[#allocation6 + $0x48] sm:$0xff]
    %v295 = vld [vmem:[#allocation6 + $0x50] sm:$0xff]
    %v296 = vld [vmem:[#allocation6 + $0x58] sm:$0xff]
    %v297 = vld [vmem:[#allocation6 + $0x60] sm:$0xff]
    %v298 = vld [vmem:[#allocation6 + $0x68] sm:$0xff]
    %v299 = vld [vmem:[#allocation6 + $0x70] sm:$0xff]
    %v300 = vld [vmem:[#allocation6 + $0x78] sm:$0xff]
    %v301 = vld [vmem:[#allocation6 + $0x80] sm:$0xff]
    %v302 = vld [vmem:[#allocation6 + $0x88] sm:$0xff]
    %v303 = vld [vmem:[#allocation6 + $0x90] sm:$0xff]
    %v304 = vld [vmem:[#allocation6 + $0x98] sm:$0xff]
    %v305 = vld [vmem:[#allocation6 + $0xa0] sm:$0xff]
    %v306 = vld [vmem:[#allocation6 + $0xa8] sm:$0xff]
    %v307 = vld [vmem:[#allocation6 + $0xb0] sm:$0xff]
    %v308 = vld [vmem:[#allocation6 + $0xb8] sm:$0xff]
    %v309 = vld [vmem:[#allocation6 + $0xc0] sm:$0xff]
    %v310 = vld [vmem:[#allocation6 + $0xc8] sm:$0xff]
    %v311 = vld [vmem:[#allocation6 + $0xd0] sm:$0xff]
    %v312 = vld [vmem:[#allocation6 + $0xd8] sm:$0xff]
    %v313 = vld [vmem:[#allocation6 + $0xe0] sm:$0xff]
    %v314 = vld [vmem:[#allocation6 + $0xe8] sm:$0xff]
    %v315 = vld [vmem:[#allocation6 + $0xf0] sm:$0xff]
    %v316 = vld [vmem:[#allocation6 + $0xf8] sm:$0xff]
    %v317 = vld [vmem:[#allocation6 + $0x100] sm:$0xff]
    %v318 = vld [vmem:[#allocation6 + $0x108] sm:$0xff]
    %v319 = vld [vmem:[#allocation6 + $0x110] sm:$0xff]
    %v320 = vld [vmem:[#allocation6 + $0x118] sm:$0xff]
    %v321 = vld [vmem:[#allocation6 + $0x120] sm:$0xff]
    %v322 = vld [vmem:[#allocation6 + $0x128] sm:$0xff]
    %v323 = vld [vmem:[#allocation6 + $0x130] sm:$0xff]
    %v324 = vld [vmem:[#allocation6 + $0x138] sm:$0xff]
    %v325 = vld [vmem:[#allocation6 + $0x140] sm:$0xff]
    %v326 = vld [vmem:[#allocation6 + $0x148] sm:$0xff]
    %v327 = vld [vmem:[#allocation6 + $0x150] sm:$0xff]
    %v328 = vld [vmem:[#allocation6 + $0x158] sm:$0xff]
    %v329 = vld [vmem:[#allocation6 + $0x160] sm:$0xff]
    %v330 = vld [vmem:[#allocation6 + $0x168] sm:$0xff]
    %v331 = vld [vmem:[#allocation6 + $0x170] sm:$0xff]
    %v332 = vld [vmem:[#allocation6 + $0x178] sm:$0xff]
    %v333 = vld [vmem:[#allocation6 + $0x180] sm:$0xff]
    %v334 = vld [vmem:[#allocation6 + $0x188] sm:$0xff]
    %v335 = vld [vmem:[#allocation6 + $0x190] sm:$0xff]
    %v336 = vld [vmem:[#allocation6 + $0x198] sm:$0xff]
    %v337 = vld [vmem:[#allocation6 + $0x1a0] sm:$0xff]
    %v338 = vld [vmem:[#allocation6 + $0x1a8] sm:$0xff]
    %v339 = vld [vmem:[#allocation6 + $0x1b0] sm:$0xff]
    %v340 = vld [vmem:[#allocation6 + $0x1b8] sm:$0xff]
    %v341 = vld [vmem:[#allocation6 + $0x1c0] sm:$0xff]
    %v342 = vld [vmem:[#allocation6 + $0x1c8] sm:$0xff]
    %v343 = vld [vmem:[#allocation6 + $0x1d0] sm:$0xff]
    %v344 = vld [vmem:[#allocation6 + $0x1d8] sm:$0xff]
    %v345 = vld [vmem:[#allocation6 + $0x1e0] sm:$0xff]
    %v346 = vld [vmem:[#allocation6 + $0x1e8] sm:$0xff]
    %v347 = vld [vmem:[#allocation6 + $0x1f0] sm:$0xff]
    %v348 = vld [vmem:[#allocation6 + $0x1f8] sm:$0xff]
    %v349 = vld [vmem:[%s1] sm:$0x3]
    %v350 = vld [vmem:[%s2] sm:$0x3]
    %351 = vmatprep.subr.mxu0 %v346
    %352 = vmatpush1.msra.mxu0 %v345
    %353 = vmatprep.subr.mxu0 %v342
    %354 = vmatpush1.msra.mxu0 %v341
    %355 = vmatprep.subr.mxu0 %v338
    %356 = vmatpush1.msra.mxu0 %v337
    %357 = vmatprep.subr.mxu0 %v334
    %358 = vmatpush1.msra.mxu0 %v333
    %359 = vmatprep.subr.mxu0 %v330
    %360 = vmatpush1.msra.mxu0 %v329
    %361 = vmatprep.subr.mxu0 %v326
    %362 = vmatpush1.msra.mxu0 %v325
    %363 = vmatprep.subr.mxu0 %v322
    %364 = vmatpush1.msra.mxu0 %v321
    %365 = vmatprep.subr.mxu0 %v318
    %366 = vmatpush1.msra.mxu0 %v317
    %367 = vmatprep.subr.mxu0 %v314
    %368 = vmatpush1.msra.mxu0 %v313
    %369 = vmatprep.subr.mxu0 %v310
    %370 = vmatpush1.msra.mxu0 %v309
    %371 = vmatprep.subr.mxu0 %v306
    %372 = vmatpush1.msra.mxu0 %v305
    %373 = vmatprep.subr.mxu0 %v302
    %374 = vmatpush1.msra.mxu0 %v301
    %375 = vmatprep.subr.mxu0 %v298
    %376 = vmatpush1.msra.mxu0 %v297
    %377 = vmatprep.subr.mxu0 %v294
    %378 = vmatpush1.msra.mxu0 %v293
    %379 = vmatprep.subr.mxu0 %v290
    %380 = vmatpush1.msra.mxu0 %v289
    %381 = vmatprep.subr.mxu0 %v286
    %382 = vmatpush1.msra.mxu0 %v285
    %383 = vmatprep.subr.mxu0 0.0
    %384 = vmatpush2.msra.mxu0 0.0
    %385 = vmatprep.subr.mxu0 0.0
    %386 = vmatpush2.msra.mxu0 0.0
    %387 = vmatprep.subr.mxu0 0.0
    %388 = vmatpush2.msra.mxu0 0.0
    %389 = vmatprep.subr.mxu0 0.0
    %390 = vmatpush2.msra.mxu0 0.0
    %391 = vmatprep.subr.mxu0 0.0
    %392 = vmatpush2.msra.mxu0 0.0
    %393 = vmatprep.subr.mxu0 0.0
    %394 = vmatpush2.msra.mxu0 0.0
    %395 = vmatprep.subr.mxu0 0.0
    %396 = vmatpush2.msra.mxu0 0.0
    %397 = vmatprep.subr.mxu0 0.0
    %398 = vmatpush2.msra.mxu0 0.0
    %399 = vmatprep.subr.mxu0 0.0
    %400 = vmatpush2.msra.mxu0 0.0
    %401 = vmatprep.subr.mxu0 0.0
    %402 = vmatpush2.msra.mxu0 0.0
    %403 = vmatprep.subr.mxu0 0.0
    %404 = vmatpush2.msra.mxu0 0.0
    %405 = vmatprep.subr.mxu0 0.0
    %406 = vmatpush2.msra.mxu0 0.0
    %407 = vmatprep.subr.mxu0 0.0
    %408 = vmatpush2.msra.mxu0 0.0
    %409 = vmatprep.subr.mxu0 0.0
    %410 = vmatpush2.msra.mxu0 0.0
    %411 = vmatprep.subr.mxu0 0.0
    %412 = vmatpush2.msra.mxu0 0.0
    %413 = vmatprep.subr.mxu0 0.0
    %414 = vmatpush2.msra.mxu0 0.0
    %415 = vmatprep.mubr.f32.mxu0 0.0
    %416 = vmatmul.mubr.f32.gmra.mxu0 %v349
    %v417 = vpop.f32.mrf.mxu0
    %v418 = vadd.f32 0.0, %v417
    %v419 = vpop.f32.mrf.mxu0
    %v420 = vadd.f32 0.0, %v419
    %421 = vdwg.mxu0
    %422 = vmatprep.subr.mxu0 %v348
    %423 = vmatpush1.msra.mxu0 %v347
    %424 = vmatprep.subr.mxu0 %v344
    %425 = vmatpush1.msra.mxu0 %v343
    %426 = vmatprep.subr.mxu0 %v340
    %427 = vmatpush1.msra.mxu0 %v339
    %428 = vmatprep.subr.mxu0 %v336
    %429 = vmatpush1.msra.mxu0 %v335
    %430 = vmatprep.subr.mxu0 %v332
    %431 = vmatpush1.msra.mxu0 %v331
    %432 = vmatprep.subr.mxu0 %v328
    %433 = vmatpush1.msra.mxu0 %v327
    %434 = vmatprep.subr.mxu0 %v324
    %435 = vmatpush1.msra.mxu0 %v323
    %436 = vmatprep.subr.mxu0 %v320
    %437 = vmatpush1.msra.mxu0 %v319
    %438 = vmatprep.subr.mxu0 %v316
    %439 = vmatpush1.msra.mxu0 %v315
    %440 = vmatprep.subr.mxu0 %v312
    %441 = vmatpush1.msra.mxu0 %v311
    %442 = vmatprep.subr.mxu0 %v308
    %443 = vmatpush1.msra.mxu0 %v307
    %444 = vmatprep.subr.mxu0 %v304
    %445 = vmatpush1.msra.mxu0 %v303
    %446 = vmatprep.subr.mxu0 %v300
    %447 = vmatpush1.msra.mxu0 %v299
    %448 = vmatprep.subr.mxu0 %v296
    %449 = vmatpush1.msra.mxu0 %v295
    %450 = vmatprep.subr.mxu0 %v292
    %451 = vmatpush1.msra.mxu0 %v291
    %452 = vmatprep.subr.mxu0 %v288
    %453 = vmatpush1.msra.mxu0 %v287
    %454 = vmatprep.subr.mxu0 0.0
    %455 = vmatpush2.msra.mxu0 0.0
    %456 = vmatprep.subr.mxu0 0.0
    %457 = vmatpush2.msra.mxu0 0.0
    %458 = vmatprep.subr.mxu0 0.0
    %459 = vmatpush2.msra.mxu0 0.0
    %460 = vmatprep.subr.mxu0 0.0
    %461 = vmatpush2.msra.mxu0 0.0
    %462 = vmatprep.subr.mxu0 0.0
    %463 = vmatpush2.msra.mxu0 0.0
    %464 = vmatprep.subr.mxu0 0.0
    %465 = vmatpush2.msra.mxu0 0.0
    %466 = vmatprep.subr.mxu0 0.0
    %467 = vmatpush2.msra.mxu0 0.0
    %468 = vmatprep.subr.mxu0 0.0
    %469 = vmatpush2.msra.mxu0 0.0
    %470 = vmatprep.subr.mxu0 0.0
    %471 = vmatpush2.msra.mxu0 0.0
    %472 = vmatprep.subr.mxu0 0.0
    %473 = vmatpush2.msra.mxu0 0.0
    %474 = vmatprep.subr.mxu0 0.0
    %475 = vmatpush2.msra.mxu0 0.0
    %476 = vmatprep.subr.mxu0 0.0
    %477 = vmatpush2.msra.mxu0 0.0
    %478 = vmatprep.subr.mxu0 0.0
    %479 = vmatpush2.msra.mxu0 0.0
    %480 = vmatprep.subr.mxu0 0.0
    %481 = vmatpush2.msra.mxu0 0.0
    %482 = vmatprep.subr.mxu0 0.0
    %483 = vmatpush2.msra.mxu0 0.0
    %484 = vmatprep.subr.mxu0 0.0
    %485 = vmatpush2.msra.mxu0 0.0
    %486 = vmatprep.mubr.f32.mxu0 0.0
    %487 = vmatmul.mubr.f32.gmra.mxu0 %v349
    %v488 = vpop.f32.mrf.mxu0
    %v489 = vadd.f32 0.0, %v488
    %v490 = vpop.f32.mrf.mxu0
    %v491 = vadd.f32 0.0, %v490
    %492 = vdwg.mxu0
    %v497 = vrot.slane %v418, 1
    %v498 = vrot.slane %v420, 1
    %v499 = vrot.slane %v489, 1
    %v500 = vrot.slane %v491, 1
    %v509 = vadd.f32 %v198, %v418
    %v510 = vadd.f32 %v200, %v420
    %v511 = vadd.f32 %v275, %v489
    %v512 = vadd.f32 %v277, %v491
    %v513 = vadd.f32 %v204, %v497
    %v514 = vadd.f32 %v206, %v498
    %v515 = vadd.f32 %v281, %v499
    %v516 = vadd.f32 %v283, %v500
    %v517 = vxor.u32 %v509, 2147483648
    %v518 = vxor.u32 %v513, 2147483648
    %v519 = vmul.f32 %v517, 1.442695
    %v520 = vpow.pop %v519
    %v521 = vmul.f32 %v518, 1.442695
    %v522 = vpow.pop %v521
    %v523 = vadd.f32 %v520, 1.0
    %v524 = vadd.f32 %v522, 1.0
    %v525 = vrcp.pop %v523
    %v526 = vmul.f32 1.0, %v525
    %v527 = vrcp.pop %v524
    %v528 = vmul.f32 1.0, %v527
    %v529 = vxor.u32 %v510, 2147483648
    %v530 = vxor.u32 %v514, 2147483648
    %v531 = vmul.f32 %v529, 1.442695
    %v532 = vpow.pop %v531
    %v533 = vmul.f32 %v530, 1.442695
    %v534 = vpow.pop %v533
    %v535 = vadd.f32 %v532, 1.0
    %v536 = vadd.f32 %v534, 1.0
    %v537 = vrcp.pop %v535
    %v538 = vmul.f32 1.0, %v537
    %v539 = vrcp.pop %v536
    %v540 = vmul.f32 1.0, %v539
    %v541 = vtanh.pop %v511
    %v542 = vtanh.pop %v515
    %v543 = vxor.u32 %v512, 2147483648
    %v544 = vxor.u32 %v516, 2147483648
    %v545 = vmul.f32 %v543, 1.442695
    %v546 = vpow.pop %v545
    %v547 = vmul.f32 %v544, 1.442695
    %v548 = vpow.pop %v547
    %v549 = vadd.f32 %v546, 1.0
    %v550 = vadd.f32 %v548, 1.0
    %v551 = vrcp.pop %v549
    %v552 = vmul.f32 1.0, %v551
    %v553 = vrcp.pop %v550
    %v554 = vmul.f32 1.0, %v553
    %v556 = vrot.slane %v350, 1
    %v559 = vmul.f32 %v538, %v350
    %v560 = vmul.f32 %v540, %v556
    %v561 = vmul.f32 %v526, %v541
    %v562 = vmul.f32 %v528, %v542
    %v563 = vadd.f32 %v559, %v561
    %v564 = vadd.f32 %v560, %v562
    %v565 = vtanh.pop %v563
    %v566 = vtanh.pop %v564
    %v567 = vmul.f32 %v552, %v565
    %v568 = vmul.f32 %v554, %v566
    %569 = vst [vmem:[#allocation2] sm:$0x1] %v567
    %570 = vst [vmem:[#allocation2 + $0x8] sm:$0x1] %v568
    %v573 = vrot.slane %v568, 7
    %vm574 = vcmask 1041409
    %v575 = vsel %vm574, %v573, %v567
    %577 = vmatprep.subr.mxu0 %v346
    %578 = vmatpush1.msra.mxu0 %v345
    %579 = vmatprep.subr.mxu0 %v342
    %580 = vmatpush1.msra.mxu0 %v341
    %581 = vmatprep.subr.mxu0 %v338
    %582 = vmatpush1.msra.mxu0 %v337
    %583 = vmatprep.subr.mxu0 %v334
    %584 = vmatpush1.msra.mxu0 %v333
    %585 = vmatprep.subr.mxu0 %v330
    %586 = vmatpush1.msra.mxu0 %v329
    %587 = vmatprep.subr.mxu0 %v326
    %588 = vmatpush1.msra.mxu0 %v325
    %589 = vmatprep.subr.mxu0 %v322
    %590 = vmatpush1.msra.mxu0 %v321
    %591 = vmatprep.subr.mxu0 %v318
    %592 = vmatpush1.msra.mxu0 %v317
    %593 = vmatprep.subr.mxu0 %v314
    %594 = vmatpush1.msra.mxu0 %v313
    %595 = vmatprep.subr.mxu0 %v310
    %596 = vmatpush1.msra.mxu0 %v309
    %597 = vmatprep.subr.mxu0 %v306
    %598 = vmatpush1.msra.mxu0 %v305
    %599 = vmatprep.subr.mxu0 %v302
    %600 = vmatpush1.msra.mxu0 %v301
    %601 = vmatprep.subr.mxu0 %v298
    %602 = vmatpush1.msra.mxu0 %v297
    %603 = vmatprep.subr.mxu0 %v294
    %604 = vmatpush1.msra.mxu0 %v293
    %605 = vmatprep.subr.mxu0 %v290
    %606 = vmatpush1.msra.mxu0 %v289
    %607 = vmatprep.subr.mxu0 %v286
    %608 = vmatpush1.msra.mxu0 %v285
    %609 = vmatprep.subr.mxu0 0.0
    %610 = vmatpush2.msra.mxu0 0.0
    %611 = vmatprep.subr.mxu0 0.0
    %612 = vmatpush2.msra.mxu0 0.0
    %613 = vmatprep.subr.mxu0 0.0
    %614 = vmatpush2.msra.mxu0 0.0
    %615 = vmatprep.subr.mxu0 0.0
    %616 = vmatpush2.msra.mxu0 0.0
    %617 = vmatprep.subr.mxu0 0.0
    %618 = vmatpush2.msra.mxu0 0.0
    %619 = vmatprep.subr.mxu0 0.0
    %620 = vmatpush2.msra.mxu0 0.0
    %621 = vmatprep.subr.mxu0 0.0
    %622 = vmatpush2.msra.mxu0 0.0
    %623 = vmatprep.subr.mxu0 0.0
    %624 = vmatpush2.msra.mxu0 0.0
    %625 = vmatprep.subr.mxu0 0.0
    %626 = vmatpush2.msra.mxu0 0.0
    %627 = vmatprep.subr.mxu0 0.0
    %628 = vmatpush2.msra.mxu0 0.0
    %629 = vmatprep.subr.mxu0 0.0
    %630 = vmatpush2.msra.mxu0 0.0
    %631 = vmatprep.subr.mxu0 0.0
    %632 = vmatpush2.msra.mxu0 0.0
    %633 = vmatprep.subr.mxu0 0.0
    %634 = vmatpush2.msra.mxu0 0.0
    %635 = vmatprep.subr.mxu0 0.0
    %636 = vmatpush2.msra.mxu0 0.0
    %637 = vmatprep.subr.mxu0 0.0
    %638 = vmatpush2.msra.mxu0 0.0
    %639 = vmatprep.subr.mxu0 0.0
    %640 = vmatpush2.msra.mxu0 0.0
    %641 = vmatprep.mubr.f32.mxu0 0.0
    %642 = vmatmul.mubr.f32.gmra.mxu0 %v575
    %v643 = vpop.f32.mrf.mxu0
    %v644 = vadd.f32 0.0, %v643
    %v645 = vpop.f32.mrf.mxu0
    %v646 = vadd.f32 0.0, %v645
    %647 = vdwg.mxu0
    %648 = vmatprep.subr.mxu0 %v348
    %649 = vmatpush1.msra.mxu0 %v347
    %650 = vmatprep.subr.mxu0 %v344
    %651 = vmatpush1.msra.mxu0 %v343
    %652 = vmatprep.subr.mxu0 %v340
    %653 = vmatpush1.msra.mxu0 %v339
    %654 = vmatprep.subr.mxu0 %v336
    %655 = vmatpush1.msra.mxu0 %v335
    %656 = vmatprep.subr.mxu0 %v332
    %657 = vmatpush1.msra.mxu0 %v331
    %658 = vmatprep.subr.mxu0 %v328
    %659 = vmatpush1.msra.mxu0 %v327
    %660 = vmatprep.subr.mxu0 %v324
    %661 = vmatpush1.msra.mxu0 %v323
    %662 = vmatprep.subr.mxu0 %v320
    %663 = vmatpush1.msra.mxu0 %v319
    %664 = vmatprep.subr.mxu0 %v316
    %665 = vmatpush1.msra.mxu0 %v315
    %666 = vmatprep.subr.mxu0 %v312
    %667 = vmatpush1.msra.mxu0 %v311
    %668 = vmatprep.subr.mxu0 %v308
    %669 = vmatpush1.msra.mxu0 %v307
    %670 = vmatprep.subr.mxu0 %v304
    %671 = vmatpush1.msra.mxu0 %v303
    %672 = vmatprep.subr.mxu0 %v300
    %673 = vmatpush1.msra.mxu0 %v299
    %674 = vmatprep.subr.mxu0 %v296
    %675 = vmatpush1.msra.mxu0 %v295
    %676 = vmatprep.subr.mxu0 %v292
    %677 = vmatpush1.msra.mxu0 %v291
    %678 = vmatprep.subr.mxu0 %v288
    %679 = vmatpush1.msra.mxu0 %v287
    %680 = vmatprep.subr.mxu0 0.0
    %681 = vmatpush2.msra.mxu0 0.0
    %682 = vmatprep.subr.mxu0 0.0
    %683 = vmatpush2.msra.mxu0 0.0
    %684 = vmatprep.subr.mxu0 0.0
    %685 = vmatpush2.msra.mxu0 0.0
    %686 = vmatprep.subr.mxu0 0.0
    %687 = vmatpush2.msra.mxu0 0.0
    %688 = vmatprep.subr.mxu0 0.0
    %689 = vmatpush2.msra.mxu0 0.0
    %690 = vmatprep.subr.mxu0 0.0
    %691 = vmatpush2.msra.mxu0 0.0
    %692 = vmatprep.subr.mxu0 0.0
    %693 = vmatpush2.msra.mxu0 0.0
    %694 = vmatprep.subr.mxu0 0.0
    %695 = vmatpush2.msra.mxu0 0.0
    %696 = vmatprep.subr.mxu0 0.0
    %697 = vmatpush2.msra.mxu0 0.0
    %698 = vmatprep.subr.mxu0 0.0
    %699 = vmatpush2.msra.mxu0 0.0
    %700 = vmatprep.subr.mxu0 0.0
    %701 = vmatpush2.msra.mxu0 0.0
    %702 = vmatprep.subr.mxu0 0.0
    %703 = vmatpush2.msra.mxu0 0.0
    %704 = vmatprep.subr.mxu0 0.0
    %705 = vmatpush2.msra.mxu0 0.0
    %706 = vmatprep.subr.mxu0 0.0
    %707 = vmatpush2.msra.mxu0 0.0
    %708 = vmatprep.subr.mxu0 0.0
    %709 = vmatpush2.msra.mxu0 0.0
    %710 = vmatprep.subr.mxu0 0.0
    %711 = vmatpush2.msra.mxu0 0.0
    %712 = vmatprep.mubr.f32.mxu0 0.0
    %713 = vmatmul.mubr.f32.gmra.mxu0 %v575
    %v714 = vpop.f32.mrf.mxu0
    %v715 = vadd.f32 0.0, %v714
    %v716 = vpop.f32.mrf.mxu0
    %v717 = vadd.f32 0.0, %v716
    %718 = vdwg.mxu0
    %v723 = vrot.slane %v644, 7
    %v724 = vrot.slane %v646, 7
    %v725 = vrot.slane %v715, 7
    %v726 = vrot.slane %v717, 7
    %v735 = vadd.f32 %v198, %v723
    %v736 = vadd.f32 %v200, %v724
    %v737 = vadd.f32 %v275, %v725
    %v738 = vadd.f32 %v277, %v726
    %v739 = vadd.f32 %v204, %v644
    %v740 = vadd.f32 %v206, %v646
    %v741 = vadd.f32 %v281, %v715
    %v742 = vadd.f32 %v283, %v717
    %v743 = vxor.u32 %v735, 2147483648
    %v744 = vxor.u32 %v739, 2147483648
    %v745 = vmul.f32 %v743, 1.442695
    %v746 = vpow.pop %v745
    %v747 = vmul.f32 %v744, 1.442695
    %v748 = vpow.pop %v747
    %v749 = vadd.f32 %v746, 1.0
    %v750 = vadd.f32 %v748, 1.0
    %v751 = vrcp.pop %v749
    %v752 = vmul.f32 1.0, %v751
    %v753 = vrcp.pop %v750
    %v754 = vmul.f32 1.0, %v753
    %v755 = vxor.u32 %v736, 2147483648
    %v756 = vxor.u32 %v740, 2147483648
    %v757 = vmul.f32 %v755, 1.442695
    %v758 = vpow.pop %v757
    %v759 = vmul.f32 %v756, 1.442695
    %v760 = vpow.pop %v759
    %v761 = vadd.f32 %v758, 1.0
    %v762 = vadd.f32 %v760, 1.0
    %v763 = vrcp.pop %v761
    %v764 = vmul.f32 1.0, %v763
    %v765 = vrcp.pop %v762
    %v766 = vmul.f32 1.0, %v765
    %v767 = vtanh.pop %v737
    %v768 = vtanh.pop %v741
    %v769 = vxor.u32 %v738, 2147483648
    %v770 = vxor.u32 %v742, 2147483648
    %v771 = vmul.f32 %v769, 1.442695
    %v772 = vpow.pop %v771
    %v773 = vmul.f32 %v770, 1.442695
    %v774 = vpow.pop %v773
    %v775 = vadd.f32 %v772, 1.0
    %v776 = vadd.f32 %v774, 1.0
    %v777 = vrcp.pop %v775
    %v778 = vmul.f32 1.0, %v777
    %v779 = vrcp.pop %v776
    %v780 = vmul.f32 1.0, %v779
    %v783 = vrot.slane %v563, 7
    %v784 = vrot.slane %v564, 7
    %v787 = vmul.f32 %v764, %v783
    %v788 = vmul.f32 %v766, %v784
    %v789 = vmul.f32 %v752, %v767
    %v790 = vmul.f32 %v754, %v768
    %v791 = vadd.f32 %v787, %v789
    %v792 = vadd.f32 %v788, %v790
    %v793 = vtanh.pop %v791
    %v794 = vtanh.pop %v792
    %v795 = vmul.f32 %v778, %v793
    %v796 = vmul.f32 %v780, %v794
    %797 = vst [vmem:[#allocation2] sm:$0x2] %v795
    %798 = vst [vmem:[#allocation2 + $0x8] sm:$0x2] %v796
    %v801 = vrot.slane %v795, 1
    %v802 = vsel %vm574, %v796, %v801
    %804 = vmatprep.subr.mxu0 %v346
    %805 = vmatpush1.msra.mxu0 %v345
    %806 = vmatprep.subr.mxu0 %v342
    %807 = vmatpush1.msra.mxu0 %v341
    %808 = vmatprep.subr.mxu0 %v338
    %809 = vmatpush1.msra.mxu0 %v337
    %810 = vmatprep.subr.mxu0 %v334
    %811 = vmatpush1.msra.mxu0 %v333
    %812 = vmatprep.subr.mxu0 %v330
    %813 = vmatpush1.msra.mxu0 %v329
    %814 = vmatprep.subr.mxu0 %v326
    %815 = vmatpush1.msra.mxu0 %v325
    %816 = vmatprep.subr.mxu0 %v322
    %817 = vmatpush1.msra.mxu0 %v321
    %818 = vmatprep.subr.mxu0 %v318
    %819 = vmatpush1.msra.mxu0 %v317
    %820 = vmatprep.subr.mxu0 %v314
    %821 = vmatpush1.msra.mxu0 %v313
    %822 = vmatprep.subr.mxu0 %v310
    %823 = vmatpush1.msra.mxu0 %v309
    %824 = vmatprep.subr.mxu0 %v306
    %825 = vmatpush1.msra.mxu0 %v305
    %826 = vmatprep.subr.mxu0 %v302
    %827 = vmatpush1.msra.mxu0 %v301
    %828 = vmatprep.subr.mxu0 %v298
    %829 = vmatpush1.msra.mxu0 %v297
    %830 = vmatprep.subr.mxu0 %v294
    %831 = vmatpush1.msra.mxu0 %v293
    %832 = vmatprep.subr.mxu0 %v290
    %833 = vmatpush1.msra.mxu0 %v289
    %834 = vmatprep.subr.mxu0 %v286
    %835 = vmatpush1.msra.mxu0 %v285
    %836 = vmatprep.subr.mxu0 0.0
    %837 = vmatpush2.msra.mxu0 0.0
    %838 = vmatprep.subr.mxu0 0.0
    %839 = vmatpush2.msra.mxu0 0.0
    %840 = vmatprep.subr.mxu0 0.0
    %841 = vmatpush2.msra.mxu0 0.0
    %842 = vmatprep.subr.mxu0 0.0
    %843 = vmatpush2.msra.mxu0 0.0
    %844 = vmatprep.subr.mxu0 0.0
    %845 = vmatpush2.msra.mxu0 0.0
    %846 = vmatprep.subr.mxu0 0.0
    %847 = vmatpush2.msra.mxu0 0.0
    %848 = vmatprep.subr.mxu0 0.0
    %849 = vmatpush2.msra.mxu0 0.0
    %850 = vmatprep.subr.mxu0 0.0
    %851 = vmatpush2.msra.mxu0 0.0
    %852 = vmatprep.subr.mxu0 0.0
    %853 = vmatpush2.msra.mxu0 0.0
    %854 = vmatprep.subr.mxu0 0.0
    %855 = vmatpush2.msra.mxu0 0.0
    %856 = vmatprep.subr.mxu0 0.0
    %857 = vmatpush2.msra.mxu0 0.0
    %858 = vmatprep.subr.mxu0 0.0
    %859 = vmatpush2.msra.mxu0 0.0
    %860 = vmatprep.subr.mxu0 0.0
    %861 = vmatpush2.msra.mxu0 0.0
    %862 = vmatprep.subr.mxu0 0.0
    %863 = vmatpush2.msra.mxu0 0.0
    %864 = vmatprep.subr.mxu0 0.0
    %865 = vmatpush2.msra.mxu0 0.0
    %866 = vmatprep.subr.mxu0 0.0
    %867 = vmatpush2.msra.mxu0 0.0
    %868 = vmatprep.mubr.f32.mxu0 0.0
    %869 = vmatmul.mubr.f32.gmra.mxu0 %v802
    %v870 = vpop.f32.mrf.mxu0
    %v871 = vadd.f32 0.0, %v870
    %v872 = vpop.f32.mrf.mxu0
    %v873 = vadd.f32 0.0, %v872
    %874 = vdwg.mxu0
    %875 = vmatprep.subr.mxu0 %v348
    %876 = vmatpush1.msra.mxu0 %v347
    %877 = vmatprep.subr.mxu0 %v344
    %878 = vmatpush1.msra.mxu0 %v343
    %879 = vmatprep.subr.mxu0 %v340
    %880 = vmatpush1.msra.mxu0 %v339
    %881 = vmatprep.subr.mxu0 %v336
    %882 = vmatpush1.msra.mxu0 %v335
    %883 = vmatprep.subr.mxu0 %v332
    %884 = vmatpush1.msra.mxu0 %v331
    %885 = vmatprep.subr.mxu0 %v328
    %886 = vmatpush1.msra.mxu0 %v327
    %887 = vmatprep.subr.mxu0 %v324
    %888 = vmatpush1.msra.mxu0 %v323
    %889 = vmatprep.subr.mxu0 %v320
    %890 = vmatpush1.msra.mxu0 %v319
    %891 = vmatprep.subr.mxu0 %v316
    %892 = vmatpush1.msra.mxu0 %v315
    %893 = vmatprep.subr.mxu0 %v312
    %894 = vmatpush1.msra.mxu0 %v311
    %895 = vmatprep.subr.mxu0 %v308
    %896 = vmatpush1.msra.mxu0 %v307
    %897 = vmatprep.subr.mxu0 %v304
    %898 = vmatpush1.msra.mxu0 %v303
    %899 = vmatprep.subr.mxu0 %v300
    %900 = vmatpush1.msra.mxu0 %v299
    %901 = vmatprep.subr.mxu0 %v296
    %902 = vmatpush1.msra.mxu0 %v295
    %903 = vmatprep.subr.mxu0 %v292
    %904 = vmatpush1.msra.mxu0 %v291
    %905 = vmatprep.subr.mxu0 %v288
    %906 = vmatpush1.msra.mxu0 %v287
    %907 = vmatprep.subr.mxu0 0.0
    %908 = vmatpush2.msra.mxu0 0.0
    %909 = vmatprep.subr.mxu0 0.0
    %910 = vmatpush2.msra.mxu0 0.0
    %911 = vmatprep.subr.mxu0 0.0
    %912 = vmatpush2.msra.mxu0 0.0
    %913 = vmatprep.subr.mxu0 0.0
    %914 = vmatpush2.msra.mxu0 0.0
    %915 = vmatprep.subr.mxu0 0.0
    %916 = vmatpush2.msra.mxu0 0.0
    %917 = vmatprep.subr.mxu0 0.0
    %918 = vmatpush2.msra.mxu0 0.0
    %919 = vmatprep.subr.mxu0 0.0
    %920 = vmatpush2.msra.mxu0 0.0
    %921 = vmatprep.subr.mxu0 0.0
    %922 = vmatpush2.msra.mxu0 0.0
    %923 = vmatprep.subr.mxu0 0.0
    %924 = vmatpush2.msra.mxu0 0.0
    %925 = vmatprep.subr.mxu0 0.0
    %926 = vmatpush2.msra.mxu0 0.0
    %927 = vmatprep.subr.mxu0 0.0
    %928 = vmatpush2.msra.mxu0 0.0
    %929 = vmatprep.subr.mxu0 0.0
    %930 = vmatpush2.msra.mxu0 0.0
    %931 = vmatprep.subr.mxu0 0.0
    %932 = vmatpush2.msra.mxu0 0.0
    %933 = vmatprep.subr.mxu0 0.0
    %934 = vmatpush2.msra.mxu0 0.0
    %935 = vmatprep.subr.mxu0 0.0
    %936 = vmatpush2.msra.mxu0 0.0
    %937 = vmatprep.subr.mxu0 0.0
    %938 = vmatpush2.msra.mxu0 0.0
    %939 = vmatprep.mubr.f32.mxu0 0.0
    %940 = vmatmul.mubr.f32.gmra.mxu0 %v802
    %v941 = vpop.f32.mrf.mxu0
    %v942 = vadd.f32 0.0, %v941
    %v943 = vpop.f32.mrf.mxu0
    %v944 = vadd.f32 0.0, %v943
    %945 = vdwg.mxu0
    %v950 = vrot.slane %v871, 6
    %v951 = vrot.slane %v873, 6
    %v952 = vrot.slane %v942, 6
    %v953 = vrot.slane %v944, 6
    %v954 = vrot.slane %v871, 7
    %v955 = vrot.slane %v873, 7
    %v956 = vrot.slane %v942, 7
    %v957 = vrot.slane %v944, 7
    %v966 = vadd.f32 %v198, %v950
    %v967 = vadd.f32 %v200, %v951
    %v968 = vadd.f32 %v275, %v952
    %v969 = vadd.f32 %v277, %v953
    %v970 = vadd.f32 %v204, %v954
    %v971 = vadd.f32 %v206, %v955
    %v972 = vadd.f32 %v281, %v956
    %v973 = vadd.f32 %v283, %v957
    %v974 = vxor.u32 %v966, 2147483648
    %v975 = vxor.u32 %v970, 2147483648
    %v976 = vmul.f32 %v974, 1.442695
    %v977 = vpow.pop %v976
    %v978 = vmul.f32 %v975, 1.442695
    %v979 = vpow.pop %v978
    %v980 = vadd.f32 %v977, 1.0
    %v981 = vadd.f32 %v979, 1.0
    %v982 = vrcp.pop %v980
    %v983 = vmul.f32 1.0, %v982
    %v984 = vrcp.pop %v981
    %v985 = vmul.f32 1.0, %v984
    %v986 = vxor.u32 %v967, 2147483648
    %v987 = vxor.u32 %v971, 2147483648
    %v988 = vmul.f32 %v986, 1.442695
    %v989 = vpow.pop %v988
    %v990 = vmul.f32 %v987, 1.442695
    %v991 = vpow.pop %v990
    %v992 = vadd.f32 %v989, 1.0
    %v993 = vadd.f32 %v991, 1.0
    %v994 = vrcp.pop %v992
    %v995 = vmul.f32 1.0, %v994
    %v996 = vrcp.pop %v993
    %v997 = vmul.f32 1.0, %v996
    %v998 = vtanh.pop %v968
    %v999 = vtanh.pop %v972
    %v1000 = vxor.u32 %v969, 2147483648
    %v1001 = vxor.u32 %v973, 2147483648
    %v1002 = vmul.f32 %v1000, 1.442695
    %v1003 = vpow.pop %v1002
    %v1004 = vmul.f32 %v1001, 1.442695
    %v1005 = vpow.pop %v1004
    %v1006 = vadd.f32 %v1003, 1.0
    %v1007 = vadd.f32 %v1005, 1.0
    %v1008 = vrcp.pop %v1006
    %v1009 = vmul.f32 1.0, %v1008
    %v1010 = vrcp.pop %v1007
    %v1011 = vmul.f32 1.0, %v1010
    %v1014 = vrot.slane %v791, 7
    %v1015 = vrot.slane %v792, 7
    %v1018 = vmul.f32 %v995, %v1014
    %v1019 = vmul.f32 %v997, %v1015
    %v1020 = vmul.f32 %v983, %v998
    %v1021 = vmul.f32 %v985, %v999
    %v1022 = vadd.f32 %v1018, %v1020
    %v1023 = vadd.f32 %v1019, %v1021
    %v1024 = vtanh.pop %v1022
    %v1025 = vtanh.pop %v1023
    %v1026 = vmul.f32 %v1009, %v1024
    %v1027 = vmul.f32 %v1011, %v1025
    %1028 = vst [vmem:[#allocation2] sm:$0x4] %v1026
    %1029 = vst [vmem:[#allocation2 + $0x8] sm:$0x4] %v1027
    %v1032 = vrot.slane %v1026, 2
    %v1033 = vrot.slane %v1027, 1
    %v1034 = vsel %vm574, %v1033, %v1032
    %1036 = vmatprep.subr.mxu0 %v346
    %1037 = vmatpush1.msra.mxu0 %v345
    %1038 = vmatprep.subr.mxu0 %v342
    %1039 = vmatpush1.msra.mxu0 %v341
    %1040 = vmatprep.subr.mxu0 %v338
    %1041 = vmatpush1.msra.mxu0 %v337
    %1042 = vmatprep.subr.mxu0 %v334
    %1043 = vmatpush1.msra.mxu0 %v333
    %1044 = vmatprep.subr.mxu0 %v330
    %1045 = vmatpush1.msra.mxu0 %v329
    %1046 = vmatprep.subr.mxu0 %v326
    %1047 = vmatpush1.msra.mxu0 %v325
    %1048 = vmatprep.subr.mxu0 %v322
    %1049 = vmatpush1.msra.mxu0 %v321
    %1050 = vmatprep.subr.mxu0 %v318
    %1051 = vmatpush1.msra.mxu0 %v317
    %1052 = vmatprep.subr.mxu0 %v314
    %1053 = vmatpush1.msra.mxu0 %v313
    %1054 = vmatprep.subr.mxu0 %v310
    %1055 = vmatpush1.msra.mxu0 %v309
    %1056 = vmatprep.subr.mxu0 %v306
    %1057 = vmatpush1.msra.mxu0 %v305
    %1058 = vmatprep.subr.mxu0 %v302
    %1059 = vmatpush1.msra.mxu0 %v301
    %1060 = vmatprep.subr.mxu0 %v298
    %1061 = vmatpush1.msra.mxu0 %v297
    %1062 = vmatprep.subr.mxu0 %v294
    %1063 = vmatpush1.msra.mxu0 %v293
    %1064 = vmatprep.subr.mxu0 %v290
    %1065 = vmatpush1.msra.mxu0 %v289
    %1066 = vmatprep.subr.mxu0 %v286
    %1067 = vmatpush1.msra.mxu0 %v285
    %1068 = vmatprep.subr.mxu0 0.0
    %1069 = vmatpush2.msra.mxu0 0.0
    %1070 = vmatprep.subr.mxu0 0.0
    %1071 = vmatpush2.msra.mxu0 0.0
    %1072 = vmatprep.subr.mxu0 0.0
    %1073 = vmatpush2.msra.mxu0 0.0
    %1074 = vmatprep.subr.mxu0 0.0
    %1075 = vmatpush2.msra.mxu0 0.0
    %1076 = vmatprep.subr.mxu0 0.0
    %1077 = vmatpush2.msra.mxu0 0.0
    %1078 = vmatprep.subr.mxu0 0.0
    %1079 = vmatpush2.msra.mxu0 0.0
    %1080 = vmatprep.subr.mxu0 0.0
    %1081 = vmatpush2.msra.mxu0 0.0
    %1082 = vmatprep.subr.mxu0 0.0
    %1083 = vmatpush2.msra.mxu0 0.0
    %1084 = vmatprep.subr.mxu0 0.0
    %1085 = vmatpush2.msra.mxu0 0.0
    %1086 = vmatprep.subr.mxu0 0.0
    %1087 = vmatpush2.msra.mxu0 0.0
    %1088 = vmatprep.subr.mxu0 0.0
    %1089 = vmatpush2.msra.mxu0 0.0
    %1090 = vmatprep.subr.mxu0 0.0
    %1091 = vmatpush2.msra.mxu0 0.0
    %1092 = vmatprep.subr.mxu0 0.0
    %1093 = vmatpush2.msra.mxu0 0.0
    %1094 = vmatprep.subr.mxu0 0.0
    %1095 = vmatpush2.msra.mxu0 0.0
    %1096 = vmatprep.subr.mxu0 0.0
    %1097 = vmatpush2.msra.mxu0 0.0
    %1098 = vmatprep.subr.mxu0 0.0
    %1099 = vmatpush2.msra.mxu0 0.0
    %1100 = vmatprep.mubr.f32.mxu0 0.0
    %1101 = vmatmul.mubr.f32.gmra.mxu0 %v1034
    %v1102 = vpop.f32.mrf.mxu0
    %v1103 = vadd.f32 0.0, %v1102
    %v1104 = vpop.f32.mrf.mxu0
    %v1105 = vadd.f32 0.0, %v1104
    %1106 = vdwg.mxu0
    %1107 = vmatprep.subr.mxu0 %v348
    %1108 = vmatpush1.msra.mxu0 %v347
    %1109 = vmatprep.subr.mxu0 %v344
    %1110 = vmatpush1.msra.mxu0 %v343
    %1111 = vmatprep.subr.mxu0 %v340
    %1112 = vmatpush1.msra.mxu0 %v339
    %1113 = vmatprep.subr.mxu0 %v336
    %1114 = vmatpush1.msra.mxu0 %v335
    %1115 = vmatprep.subr.mxu0 %v332
    %1116 = vmatpush1.msra.mxu0 %v331
    %1117 = vmatprep.subr.mxu0 %v328
    %1118 = vmatpush1.msra.mxu0 %v327
    %1119 = vmatprep.subr.mxu0 %v324
    %1120 = vmatpush1.msra.mxu0 %v323
    %1121 = vmatprep.subr.mxu0 %v320
    %1122 = vmatpush1.msra.mxu0 %v319
    %1123 = vmatprep.subr.mxu0 %v316
    %1124 = vmatpush1.msra.mxu0 %v315
    %1125 = vmatprep.subr.mxu0 %v312
    %1126 = vmatpush1.msra.mxu0 %v311
    %1127 = vmatprep.subr.mxu0 %v308
    %1128 = vmatpush1.msra.mxu0 %v307
    %1129 = vmatprep.subr.mxu0 %v304
    %1130 = vmatpush1.msra.mxu0 %v303
    %1131 = vmatprep.subr.mxu0 %v300
    %1132 = vmatpush1.msra.mxu0 %v299
    %1133 = vmatprep.subr.mxu0 %v296
    %1134 = vmatpush1.msra.mxu0 %v295
    %1135 = vmatprep.subr.mxu0 %v292
    %1136 = vmatpush1.msra.mxu0 %v291
    %1137 = vmatprep.subr.mxu0 %v288
    %1138 = vmatpush1.msra.mxu0 %v287
    %1139 = vmatprep.subr.mxu0 0.0
    %1140 = vmatpush2.msra.mxu0 0.0
    %1141 = vmatprep.subr.mxu0 0.0
    %1142 = vmatpush2.msra.mxu0 0.0
    %1143 = vmatprep.subr.mxu0 0.0
    %1144 = vmatpush2.msra.mxu0 0.0
    %1145 = vmatprep.subr.mxu0 0.0
    %1146 = vmatpush2.msra.mxu0 0.0
    %1147 = vmatprep.subr.mxu0 0.0
    %1148 = vmatpush2.msra.mxu0 0.0
    %1149 = vmatprep.subr.mxu0 0.0
    %1150 = vmatpush2.msra.mxu0 0.0
    %1151 = vmatprep.subr.mxu0 0.0
    %1152 = vmatpush2.msra.mxu0 0.0
    %1153 = vmatprep.subr.mxu0 0.0
    %1154 = vmatpush2.msra.mxu0 0.0
    %1155 = vmatprep.subr.mxu0 0.0
    %1156 = vmatpush2.msra.mxu0 0.0
    %1157 = vmatprep.subr.mxu0 0.0
    %1158 = vmatpush2.msra.mxu0 0.0
    %1159 = vmatprep.subr.mxu0 0.0
    %1160 = vmatpush2.msra.mxu0 0.0
    %1161 = vmatprep.subr.mxu0 0.0
    %1162 = vmatpush2.msra.mxu0 0.0
    %1163 = vmatprep.subr.mxu0 0.0
    %1164 = vmatpush2.msra.mxu0 0.0
    %1165 = vmatprep.subr.mxu0 0.0
    %1166 = vmatpush2.msra.mxu0 0.0
    %1167 = vmatprep.subr.mxu0 0.0
    %1168 = vmatpush2.msra.mxu0 0.0
    %1169 = vmatprep.subr.mxu0 0.0
    %1170 = vmatpush2.msra.mxu0 0.0
    %1171 = vmatprep.mubr.f32.mxu0 0.0
    %1172 = vmatmul.mubr.f32.gmra.mxu0 %v1034
    %v1173 = vpop.f32.mrf.mxu0
    %v1174 = vadd.f32 0.0, %v1173
    %v1175 = vpop.f32.mrf.mxu0
    %v1176 = vadd.f32 0.0, %v1175
    %1177 = vdwg.mxu0
    %v1182 = vrot.slane %v1103, 5
    %v1183 = vrot.slane %v1105, 5
    %v1184 = vrot.slane %v1174, 5
    %v1185 = vrot.slane %v1176, 5
    %v1186 = vrot.slane %v1103, 6
    %v1187 = vrot.slane %v1105, 6
    %v1188 = vrot.slane %v1174, 6
    %v1189 = vrot.slane %v1176, 6
    %v1198 = vadd.f32 %v198, %v1182
    %v1199 = vadd.f32 %v200, %v1183
    %v1200 = vadd.f32 %v275, %v1184
    %v1201 = vadd.f32 %v277, %v1185
    %v1202 = vadd.f32 %v204, %v1186
    %v1203 = vadd.f32 %v206, %v1187
    %v1204 = vadd.f32 %v281, %v1188
    %v1205 = vadd.f32 %v283, %v1189
    %v1206 = vxor.u32 %v1198, 2147483648
    %v1207 = vxor.u32 %v1202, 2147483648
    %v1208 = vmul.f32 %v1206, 1.442695
    %v1209 = vpow.pop %v1208
    %v1210 = vmul.f32 %v1207, 1.442695
    %v1211 = vpow.pop %v1210
    %v1212 = vadd.f32 %v1209, 1.0
    %v1213 = vadd.f32 %v1211, 1.0
    %v1214 = vrcp.pop %v1212
    %v1215 = vmul.f32 1.0, %v1214
    %v1216 = vrcp.pop %v1213
    %v1217 = vmul.f32 1.0, %v1216
    %v1218 = vxor.u32 %v1199, 2147483648
    %v1219 = vxor.u32 %v1203, 2147483648
    %v1220 = vmul.f32 %v1218, 1.442695
    %v1221 = vpow.pop %v1220
    %v1222 = vmul.f32 %v1219, 1.442695
    %v1223 = vpow.pop %v1222
    %v1224 = vadd.f32 %v1221, 1.0
    %v1225 = vadd.f32 %v1223, 1.0
    %v1226 = vrcp.pop %v1224
    %v1227 = vmul.f32 1.0, %v1226
    %v1228 = vrcp.pop %v1225
    %v1229 = vmul.f32 1.0, %v1228
    %v1230 = vtanh.pop %v1200
    %v1231 = vtanh.pop %v1204
    %v1232 = vxor.u32 %v1201, 2147483648
    %v1233 = vxor.u32 %v1205, 2147483648
    %v1234 = vmul.f32 %v1232, 1.442695
    %v1235 = vpow.pop %v1234
    %v1236 = vmul.f32 %v1233, 1.442695
    %v1237 = vpow.pop %v1236
    %v1238 = vadd.f32 %v1235, 1.0
    %v1239 = vadd.f32 %v1237, 1.0
    %v1240 = vrcp.pop %v1238
    %v1241 = vmul.f32 1.0, %v1240
    %v1242 = vrcp.pop %v1239
    %v1243 = vmul.f32 1.0, %v1242
    %v1246 = vrot.slane %v1022, 7
    %v1247 = vrot.slane %v1023, 7
    %v1250 = vmul.f32 %v1227, %v1246
    %v1251 = vmul.f32 %v1229, %v1247
    %v1252 = vmul.f32 %v1215, %v1230
    %v1253 = vmul.f32 %v1217, %v1231
    %v1254 = vadd.f32 %v1250, %v1252
    %v1255 = vadd.f32 %v1251, %v1253
    %v1256 = vtanh.pop %v1254
    %v1257 = vtanh.pop %v1255
    %v1258 = vmul.f32 %v1241, %v1256
    %v1259 = vmul.f32 %v1243, %v1257
    %1260 = vst [vmem:[#allocation2] sm:$0x8] %v1258
    %1261 = vst [vmem:[#allocation2 + $0x8] sm:$0x8] %v1259
    %v1264 = vrot.slane %v1258, 3
    %v1265 = vrot.slane %v1259, 2
    %v1266 = vsel %vm574, %v1265, %v1264
    %1268 = vmatprep.subr.mxu0 %v346
    %1269 = vmatpush1.msra.mxu0 %v345
    %1270 = vmatprep.subr.mxu0 %v342
    %1271 = vmatpush1.msra.mxu0 %v341
    %1272 = vmatprep.subr.mxu0 %v338
    %1273 = vmatpush1.msra.mxu0 %v337
    %1274 = vmatprep.subr.mxu0 %v334
    %1275 = vmatpush1.msra.mxu0 %v333
    %1276 = vmatprep.subr.mxu0 %v330
    %1277 = vmatpush1.msra.mxu0 %v329
    %1278 = vmatprep.subr.mxu0 %v326
    %1279 = vmatpush1.msra.mxu0 %v325
    %1280 = vmatprep.subr.mxu0 %v322
    %1281 = vmatpush1.msra.mxu0 %v321
    %1282 = vmatprep.subr.mxu0 %v318
    %1283 = vmatpush1.msra.mxu0 %v317
    %1284 = vmatprep.subr.mxu0 %v314
    %1285 = vmatpush1.msra.mxu0 %v313
    %1286 = vmatprep.subr.mxu0 %v310
    %1287 = vmatpush1.msra.mxu0 %v309
    %1288 = vmatprep.subr.mxu0 %v306
    %1289 = vmatpush1.msra.mxu0 %v305
    %1290 = vmatprep.subr.mxu0 %v302
    %1291 = vmatpush1.msra.mxu0 %v301
    %1292 = vmatprep.subr.mxu0 %v298
    %1293 = vmatpush1.msra.mxu0 %v297
    %1294 = vmatprep.subr.mxu0 %v294
    %1295 = vmatpush1.msra.mxu0 %v293
    %1296 = vmatprep.subr.mxu0 %v290
    %1297 = vmatpush1.msra.mxu0 %v289
    %1298 = vmatprep.subr.mxu0 %v286
    %1299 = vmatpush1.msra.mxu0 %v285
    %1300 = vmatprep.subr.mxu0 0.0
    %1301 = vmatpush2.msra.mxu0 0.0
    %1302 = vmatprep.subr.mxu0 0.0
    %1303 = vmatpush2.msra.mxu0 0.0
    %1304 = vmatprep.subr.mxu0 0.0
    %1305 = vmatpush2.msra.mxu0 0.0
    %1306 = vmatprep.subr.mxu0 0.0
    %1307 = vmatpush2.msra.mxu0 0.0
    %1308 = vmatprep.subr.mxu0 0.0
    %1309 = vmatpush2.msra.mxu0 0.0
    %1310 = vmatprep.subr.mxu0 0.0
    %1311 = vmatpush2.msra.mxu0 0.0
    %1312 = vmatprep.subr.mxu0 0.0
    %1313 = vmatpush2.msra.mxu0 0.0
    %1314 = vmatprep.subr.mxu0 0.0
    %1315 = vmatpush2.msra.mxu0 0.0
    %1316 = vmatprep.subr.mxu0 0.0
    %1317 = vmatpush2.msra.mxu0 0.0
    %1318 = vmatprep.subr.mxu0 0.0
    %1319 = vmatpush2.msra.mxu0 0.0
    %1320 = vmatprep.subr.mxu0 0.0
    %1321 = vmatpush2.msra.mxu0 0.0
    %1322 = vmatprep.subr.mxu0 0.0
    %1323 = vmatpush2.msra.mxu0 0.0
    %1324 = vmatprep.subr.mxu0 0.0
    %1325 = vmatpush2.msra.mxu0 0.0
    %1326 = vmatprep.subr.mxu0 0.0
    %1327 = vmatpush2.msra.mxu0 0.0
    %1328 = vmatprep.subr.mxu0 0.0
    %1329 = vmatpush2.msra.mxu0 0.0
    %1330 = vmatprep.subr.mxu0 0.0
    %1331 = vmatpush2.msra.mxu0 0.0
    %1332 = vmatprep.mubr.f32.mxu0 0.0
    %1333 = vmatmul.mubr.f32.gmra.mxu0 %v1266
    %v1334 = vpop.f32.mrf.mxu0
    %v1335 = vadd.f32 0.0, %v1334
    %v1336 = vpop.f32.mrf.mxu0
    %v1337 = vadd.f32 0.0, %v1336
    %1338 = vdwg.mxu0
    %1339 = vmatprep.subr.mxu0 %v348
    %1340 = vmatpush1.msra.mxu0 %v347
    %1341 = vmatprep.subr.mxu0 %v344
    %1342 = vmatpush1.msra.mxu0 %v343
    %1343 = vmatprep.subr.mxu0 %v340
    %1344 = vmatpush1.msra.mxu0 %v339
    %1345 = vmatprep.subr.mxu0 %v336
    %1346 = vmatpush1.msra.mxu0 %v335
    %1347 = vmatprep.subr.mxu0 %v332
    %1348 = vmatpush1.msra.mxu0 %v331
    %1349 = vmatprep.subr.mxu0 %v328
    %1350 = vmatpush1.msra.mxu0 %v327
    %1351 = vmatprep.subr.mxu0 %v324
    %1352 = vmatpush1.msra.mxu0 %v323
    %1353 = vmatprep.subr.mxu0 %v320
    %1354 = vmatpush1.msra.mxu0 %v319
    %1355 = vmatprep.subr.mxu0 %v316
    %1356 = vmatpush1.msra.mxu0 %v315
    %1357 = vmatprep.subr.mxu0 %v312
    %1358 = vmatpush1.msra.mxu0 %v311
    %1359 = vmatprep.subr.mxu0 %v308
    %1360 = vmatpush1.msra.mxu0 %v307
    %1361 = vmatprep.subr.mxu0 %v304
    %1362 = vmatpush1.msra.mxu0 %v303
    %1363 = vmatprep.subr.mxu0 %v300
    %1364 = vmatpush1.msra.mxu0 %v299
    %1365 = vmatprep.subr.mxu0 %v296
    %1366 = vmatpush1.msra.mxu0 %v295
    %1367 = vmatprep.subr.mxu0 %v292
    %1368 = vmatpush1.msra.mxu0 %v291
    %1369 = vmatprep.subr.mxu0 %v288
    %1370 = vmatpush1.msra.mxu0 %v287
    %1371 = vmatprep.subr.mxu0 0.0
    %1372 = vmatpush2.msra.mxu0 0.0
    %1373 = vmatprep.subr.mxu0 0.0
    %1374 = vmatpush2.msra.mxu0 0.0
    %1375 = vmatprep.subr.mxu0 0.0
    %1376 = vmatpush2.msra.mxu0 0.0
    %1377 = vmatprep.subr.mxu0 0.0
    %1378 = vmatpush2.msra.mxu0 0.0
    %1379 = vmatprep.subr.mxu0 0.0
    %1380 = vmatpush2.msra.mxu0 0.0
    %1381 = vmatprep.subr.mxu0 0.0
    %1382 = vmatpush2.msra.mxu0 0.0
    %1383 = vmatprep.subr.mxu0 0.0
    %1384 = vmatpush2.msra.mxu0 0.0
    %1385 = vmatprep.subr.mxu0 0.0
    %1386 = vmatpush2.msra.mxu0 0.0
    %1387 = vmatprep.subr.mxu0 0.0
    %1388 = vmatpush2.msra.mxu0 0.0
    %1389 = vmatprep.subr.mxu0 0.0
    %1390 = vmatpush2.msra.mxu0 0.0
    %1391 = vmatprep.subr.mxu0 0.0
    %1392 = vmatpush2.msra.mxu0 0.0
    %1393 = vmatprep.subr.mxu0 0.0
    %1394 = vmatpush2.msra.mxu0 0.0
    %1395 = vmatprep.subr.mxu0 0.0
    %1396 = vmatpush2.msra.mxu0 0.0
    %1397 = vmatprep.subr.mxu0 0.0
    %1398 = vmatpush2.msra.mxu0 0.0
    %1399 = vmatprep.subr.mxu0 0.0
    %1400 = vmatpush2.msra.mxu0 0.0
    %1401 = vmatprep.subr.mxu0 0.0
    %1402 = vmatpush2.msra.mxu0 0.0
    %1403 = vmatprep.mubr.f32.mxu0 0.0
    %1404 = vmatmul.mubr.f32.gmra.mxu0 %v1266
    %v1405 = vpop.f32.mrf.mxu0
    %v1406 = vadd.f32 0.0, %v1405
    %v1407 = vpop.f32.mrf.mxu0
    %v1408 = vadd.f32 0.0, %v1407
    %1409 = vdwg.mxu0
    %v1414 = vrot.slane %v1335, 4
    %v1415 = vrot.slane %v1337, 4
    %v1416 = vrot.slane %v1406, 4
    %v1417 = vrot.slane %v1408, 4
    %v1418 = vrot.slane %v1335, 5
    %v1419 = vrot.slane %v1337, 5
    %v1420 = vrot.slane %v1406, 5
    %v1421 = vrot.slane %v1408, 5
    %v1430 = vadd.f32 %v198, %v1414
    %v1431 = vadd.f32 %v200, %v1415
    %v1432 = vadd.f32 %v275, %v1416
    %v1433 = vadd.f32 %v277, %v1417
    %v1434 = vadd.f32 %v204, %v1418
    %v1435 = vadd.f32 %v206, %v1419
    %v1436 = vadd.f32 %v281, %v1420
    %v1437 = vadd.f32 %v283, %v1421
    %v1438 = vxor.u32 %v1430, 2147483648
    %v1439 = vxor.u32 %v1434, 2147483648
    %v1440 = vmul.f32 %v1438, 1.442695
    %v1441 = vpow.pop %v1440
    %v1442 = vmul.f32 %v1439, 1.442695
    %v1443 = vpow.pop %v1442
    %v1444 = vadd.f32 %v1441, 1.0
    %v1445 = vadd.f32 %v1443, 1.0
    %v1446 = vrcp.pop %v1444
    %v1447 = vmul.f32 1.0, %v1446
    %v1448 = vrcp.pop %v1445
    %v1449 = vmul.f32 1.0, %v1448
    %v1450 = vxor.u32 %v1431, 2147483648
    %v1451 = vxor.u32 %v1435, 2147483648
    %v1452 = vmul.f32 %v1450, 1.442695
    %v1453 = vpow.pop %v1452
    %v1454 = vmul.f32 %v1451, 1.442695
    %v1455 = vpow.pop %v1454
    %v1456 = vadd.f32 %v1453, 1.0
    %v1457 = vadd.f32 %v1455, 1.0
    %v1458 = vrcp.pop %v1456
    %v1459 = vmul.f32 1.0, %v1458
    %v1460 = vrcp.pop %v1457
    %v1461 = vmul.f32 1.0, %v1460
    %v1462 = vtanh.pop %v1432
    %v1463 = vtanh.pop %v1436
    %v1464 = vxor.u32 %v1433, 2147483648
    %v1465 = vxor.u32 %v1437, 2147483648
    %v1466 = vmul.f32 %v1464, 1.442695
    %v1467 = vpow.pop %v1466
    %v1468 = vmul.f32 %v1465, 1.442695
    %v1469 = vpow.pop %v1468
    %v1470 = vadd.f32 %v1467, 1.0
    %v1471 = vadd.f32 %v1469, 1.0
    %v1472 = vrcp.pop %v1470
    %v1473 = vmul.f32 1.0, %v1472
    %v1474 = vrcp.pop %v1471
    %v1475 = vmul.f32 1.0, %v1474
    %v1478 = vrot.slane %v1254, 7
    %v1479 = vrot.slane %v1255, 7
    %v1482 = vmul.f32 %v1459, %v1478
    %v1483 = vmul.f32 %v1461, %v1479
    %v1484 = vmul.f32 %v1447, %v1462
    %v1485 = vmul.f32 %v1449, %v1463
    %v1486 = vadd.f32 %v1482, %v1484
    %v1487 = vadd.f32 %v1483, %v1485
    %v1488 = vtanh.pop %v1486
    %v1489 = vtanh.pop %v1487
    %v1490 = vmul.f32 %v1473, %v1488
    %v1491 = vmul.f32 %v1475, %v1489
    %1492 = vst [vmem:[#allocation2] sm:$0x10] %v1490
    %1493 = vst [vmem:[#allocation2 + $0x8] sm:$0x10] %v1491
    %v1496 = vrot.slane %v1490, 4
    %v1497 = vrot.slane %v1491, 3
    %v1498 = vsel %vm574, %v1497, %v1496
    %1500 = vmatprep.subr.mxu0 %v346
    %1501 = vmatpush1.msra.mxu0 %v345
    %1502 = vmatprep.subr.mxu0 %v342
    %1503 = vmatpush1.msra.mxu0 %v341
    %1504 = vmatprep.subr.mxu0 %v338
    %1505 = vmatpush1.msra.mxu0 %v337
    %1506 = vmatprep.subr.mxu0 %v334
    %1507 = vmatpush1.msra.mxu0 %v333
    %1508 = vmatprep.subr.mxu0 %v330
    %1509 = vmatpush1.msra.mxu0 %v329
    %1510 = vmatprep.subr.mxu0 %v326
    %1511 = vmatpush1.msra.mxu0 %v325
    %1512 = vmatprep.subr.mxu0 %v322
    %1513 = vmatpush1.msra.mxu0 %v321
    %1514 = vmatprep.subr.mxu0 %v318
    %1515 = vmatpush1.msra.mxu0 %v317
    %1516 = vmatprep.subr.mxu0 %v314
    %1517 = vmatpush1.msra.mxu0 %v313
    %1518 = vmatprep.subr.mxu0 %v310
    %1519 = vmatpush1.msra.mxu0 %v309
    %1520 = vmatprep.subr.mxu0 %v306
    %1521 = vmatpush1.msra.mxu0 %v305
    %1522 = vmatprep.subr.mxu0 %v302
    %1523 = vmatpush1.msra.mxu0 %v301
    %1524 = vmatprep.subr.mxu0 %v298
    %1525 = vmatpush1.msra.mxu0 %v297
    %1526 = vmatprep.subr.mxu0 %v294
    %1527 = vmatpush1.msra.mxu0 %v293
    %1528 = vmatprep.subr.mxu0 %v290
    %1529 = vmatpush1.msra.mxu0 %v289
    %1530 = vmatprep.subr.mxu0 %v286
    %1531 = vmatpush1.msra.mxu0 %v285
    %1532 = vmatprep.subr.mxu0 0.0
    %1533 = vmatpush2.msra.mxu0 0.0
    %1534 = vmatprep.subr.mxu0 0.0
    %1535 = vmatpush2.msra.mxu0 0.0
    %1536 = vmatprep.subr.mxu0 0.0
    %1537 = vmatpush2.msra.mxu0 0.0
    %1538 = vmatprep.subr.mxu0 0.0
    %1539 = vmatpush2.msra.mxu0 0.0
    %1540 = vmatprep.subr.mxu0 0.0
    %1541 = vmatpush2.msra.mxu0 0.0
    %1542 = vmatprep.subr.mxu0 0.0
    %1543 = vmatpush2.msra.mxu0 0.0
    %1544 = vmatprep.subr.mxu0 0.0
    %1545 = vmatpush2.msra.mxu0 0.0
    %1546 = vmatprep.subr.mxu0 0.0
    %1547 = vmatpush2.msra.mxu0 0.0
    %1548 = vmatprep.subr.mxu0 0.0
    %1549 = vmatpush2.msra.mxu0 0.0
    %1550 = vmatprep.subr.mxu0 0.0
    %1551 = vmatpush2.msra.mxu0 0.0
    %1552 = vmatprep.subr.mxu0 0.0
    %1553 = vmatpush2.msra.mxu0 0.0
    %1554 = vmatprep.subr.mxu0 0.0
    %1555 = vmatpush2.msra.mxu0 0.0
    %1556 = vmatprep.subr.mxu0 0.0
    %1557 = vmatpush2.msra.mxu0 0.0
    %1558 = vmatprep.subr.mxu0 0.0
    %1559 = vmatpush2.msra.mxu0 0.0
    %1560 = vmatprep.subr.mxu0 0.0
    %1561 = vmatpush2.msra.mxu0 0.0
    %1562 = vmatprep.subr.mxu0 0.0
    %1563 = vmatpush2.msra.mxu0 0.0
    %1564 = vmatprep.mubr.f32.mxu0 0.0
    %1565 = vmatmul.mubr.f32.gmra.mxu0 %v1498
    %v1566 = vpop.f32.mrf.mxu0
    %v1567 = vadd.f32 0.0, %v1566
    %v1568 = vpop.f32.mrf.mxu0
    %v1569 = vadd.f32 0.0, %v1568
    %1570 = vdwg.mxu0
    %1571 = vmatprep.subr.mxu0 %v348
    %1572 = vmatpush1.msra.mxu0 %v347
    %1573 = vmatprep.subr.mxu0 %v344
    %1574 = vmatpush1.msra.mxu0 %v343
    %1575 = vmatprep.subr.mxu0 %v340
    %1576 = vmatpush1.msra.mxu0 %v339
    %1577 = vmatprep.subr.mxu0 %v336
    %1578 = vmatpush1.msra.mxu0 %v335
    %1579 = vmatprep.subr.mxu0 %v332
    %1580 = vmatpush1.msra.mxu0 %v331
    %1581 = vmatprep.subr.mxu0 %v328
    %1582 = vmatpush1.msra.mxu0 %v327
    %1583 = vmatprep.subr.mxu0 %v324
    %1584 = vmatpush1.msra.mxu0 %v323
    %1585 = vmatprep.subr.mxu0 %v320
    %1586 = vmatpush1.msra.mxu0 %v319
    %1587 = vmatprep.subr.mxu0 %v316
    %1588 = vmatpush1.msra.mxu0 %v315
    %1589 = vmatprep.subr.mxu0 %v312
    %1590 = vmatpush1.msra.mxu0 %v311
    %1591 = vmatprep.subr.mxu0 %v308
    %1592 = vmatpush1.msra.mxu0 %v307
    %1593 = vmatprep.subr.mxu0 %v304
    %1594 = vmatpush1.msra.mxu0 %v303
    %1595 = vmatprep.subr.mxu0 %v300
    %1596 = vmatpush1.msra.mxu0 %v299
    %1597 = vmatprep.subr.mxu0 %v296
    %1598 = vmatpush1.msra.mxu0 %v295
    %1599 = vmatprep.subr.mxu0 %v292
    %1600 = vmatpush1.msra.mxu0 %v291
    %1601 = vmatprep.subr.mxu0 %v288
    %1602 = vmatpush1.msra.mxu0 %v287
    %1603 = vmatprep.subr.mxu0 0.0
    %1604 = vmatpush2.msra.mxu0 0.0
    %1605 = vmatprep.subr.mxu0 0.0
    %1606 = vmatpush2.msra.mxu0 0.0
    %1607 = vmatprep.subr.mxu0 0.0
    %1608 = vmatpush2.msra.mxu0 0.0
    %1609 = vmatprep.subr.mxu0 0.0
    %1610 = vmatpush2.msra.mxu0 0.0
    %1611 = vmatprep.subr.mxu0 0.0
    %1612 = vmatpush2.msra.mxu0 0.0
    %1613 = vmatprep.subr.mxu0 0.0
    %1614 = vmatpush2.msra.mxu0 0.0
    %1615 = vmatprep.subr.mxu0 0.0
    %1616 = vmatpush2.msra.mxu0 0.0
    %1617 = vmatprep.subr.mxu0 0.0
    %1618 = vmatpush2.msra.mxu0 0.0
    %1619 = vmatprep.subr.mxu0 0.0
    %1620 = vmatpush2.msra.mxu0 0.0
    %1621 = vmatprep.subr.mxu0 0.0
    %1622 = vmatpush2.msra.mxu0 0.0
    %1623 = vmatprep.subr.mxu0 0.0
    %1624 = vmatpush2.msra.mxu0 0.0
    %1625 = vmatprep.subr.mxu0 0.0
    %1626 = vmatpush2.msra.mxu0 0.0
    %1627 = vmatprep.subr.mxu0 0.0
    %1628 = vmatpush2.msra.mxu0 0.0
    %1629 = vmatprep.subr.mxu0 0.0
    %1630 = vmatpush2.msra.mxu0 0.0
    %1631 = vmatprep.subr.mxu0 0.0
    %1632 = vmatpush2.msra.mxu0 0.0
    %1633 = vmatprep.subr.mxu0 0.0
    %1634 = vmatpush2.msra.mxu0 0.0
    %1635 = vmatprep.mubr.f32.mxu0 0.0
    %1636 = vmatmul.mubr.f32.gmra.mxu0 %v1498
    %v1637 = vpop.f32.mrf.mxu0
    %v1638 = vadd.f32 0.0, %v1637
    %v1639 = vpop.f32.mrf.mxu0
    %v1640 = vadd.f32 0.0, %v1639
    %1641 = vdwg.mxu0
    %v1646 = vrot.slane %v1567, 3
    %v1647 = vrot.slane %v1569, 3
    %v1648 = vrot.slane %v1638, 3
    %v1649 = vrot.slane %v1640, 3
    %v1650 = vrot.slane %v1567, 4
    %v1651 = vrot.slane %v1569, 4
    %v1652 = vrot.slane %v1638, 4
    %v1653 = vrot.slane %v1640, 4
    %v1662 = vadd.f32 %v198, %v1646
    %v1663 = vadd.f32 %v200, %v1647
    %v1664 = vadd.f32 %v275, %v1648
    %v1665 = vadd.f32 %v277, %v1649
    %v1666 = vadd.f32 %v204, %v1650
    %v1667 = vadd.f32 %v206, %v1651
    %v1668 = vadd.f32 %v281, %v1652
    %v1669 = vadd.f32 %v283, %v1653
    %v1670 = vxor.u32 %v1662, 2147483648
    %v1671 = vxor.u32 %v1666, 2147483648
    %v1672 = vmul.f32 %v1670, 1.442695
    %v1673 = vpow.pop %v1672
    %v1674 = vmul.f32 %v1671, 1.442695
    %v1675 = vpow.pop %v1674
    %v1676 = vadd.f32 %v1673, 1.0
    %v1677 = vadd.f32 %v1675, 1.0
    %v1678 = vrcp.pop %v1676
    %v1679 = vmul.f32 1.0, %v1678
    %v1680 = vrcp.pop %v1677
    %v1681 = vmul.f32 1.0, %v1680
    %v1682 = vxor.u32 %v1663, 2147483648
    %v1683 = vxor.u32 %v1667, 2147483648
    %v1684 = vmul.f32 %v1682, 1.442695
    %v1685 = vpow.pop %v1684
    %v1686 = vmul.f32 %v1683, 1.442695
    %v1687 = vpow.pop %v1686
    %v1688 = vadd.f32 %v1685, 1.0
    %v1689 = vadd.f32 %v1687, 1.0
    %v1690 = vrcp.pop %v1688
    %v1691 = vmul.f32 1.0, %v1690
    %v1692 = vrcp.pop %v1689
    %v1693 = vmul.f32 1.0, %v1692
    %v1694 = vtanh.pop %v1664
    %v1695 = vtanh.pop %v1668
    %v1696 = vxor.u32 %v1665, 2147483648
    %v1697 = vxor.u32 %v1669, 2147483648
    %v1698 = vmul.f32 %v1696, 1.442695
    %v1699 = vpow.pop %v1698
    %v1700 = vmul.f32 %v1697, 1.442695
    %v1701 = vpow.pop %v1700
    %v1702 = vadd.f32 %v1699, 1.0
    %v1703 = vadd.f32 %v1701, 1.0
    %v1704 = vrcp.pop %v1702
    %v1705 = vmul.f32 1.0, %v1704
    %v1706 = vrcp.pop %v1703
    %v1707 = vmul.f32 1.0, %v1706
    %v1710 = vrot.slane %v1486, 7
    %v1711 = vrot.slane %v1487, 7
    %v1714 = vmul.f32 %v1691, %v1710
    %v1715 = vmul.f32 %v1693, %v1711
    %v1716 = vmul.f32 %v1679, %v1694
    %v1717 = vmul.f32 %v1681, %v1695
    %v1718 = vadd.f32 %v1714, %v1716
    %v1719 = vadd.f32 %v1715, %v1717
    %v1720 = vtanh.pop %v1718
    %v1721 = vtanh.pop %v1719
    %v1722 = vmul.f32 %v1705, %v1720
    %v1723 = vmul.f32 %v1707, %v1721
    %1724 = vst [vmem:[#allocation2] sm:$0x20] %v1722
    %1725 = vst [vmem:[#allocation2 + $0x8] sm:$0x20] %v1723
    %v1728 = vrot.slane %v1722, 5
    %v1729 = vrot.slane %v1723, 4
    %v1730 = vsel %vm574, %v1729, %v1728
    %1732 = vmatprep.subr.mxu0 %v346
    %1733 = vmatpush1.msra.mxu0 %v345
    %1734 = vmatprep.subr.mxu0 %v342
    %1735 = vmatpush1.msra.mxu0 %v341
    %1736 = vmatprep.subr.mxu0 %v338
    %1737 = vmatpush1.msra.mxu0 %v337
    %1738 = vmatprep.subr.mxu0 %v334
    %1739 = vmatpush1.msra.mxu0 %v333
    %1740 = vmatprep.subr.mxu0 %v330
    %1741 = vmatpush1.msra.mxu0 %v329
    %1742 = vmatprep.subr.mxu0 %v326
    %1743 = vmatpush1.msra.mxu0 %v325
    %1744 = vmatprep.subr.mxu0 %v322
    %1745 = vmatpush1.msra.mxu0 %v321
    %1746 = vmatprep.subr.mxu0 %v318
    %1747 = vmatpush1.msra.mxu0 %v317
    %1748 = vmatprep.subr.mxu0 %v314
    %1749 = vmatpush1.msra.mxu0 %v313
    %1750 = vmatprep.subr.mxu0 %v310
    %1751 = vmatpush1.msra.mxu0 %v309
    %1752 = vmatprep.subr.mxu0 %v306
    %1753 = vmatpush1.msra.mxu0 %v305
    %1754 = vmatprep.subr.mxu0 %v302
    %1755 = vmatpush1.msra.mxu0 %v301
    %1756 = vmatprep.subr.mxu0 %v298
    %1757 = vmatpush1.msra.mxu0 %v297
    %1758 = vmatprep.subr.mxu0 %v294
    %1759 = vmatpush1.msra.mxu0 %v293
    %1760 = vmatprep.subr.mxu0 %v290
    %1761 = vmatpush1.msra.mxu0 %v289
    %1762 = vmatprep.subr.mxu0 %v286
    %1763 = vmatpush1.msra.mxu0 %v285
    %1764 = vmatprep.subr.mxu0 0.0
    %1765 = vmatpush2.msra.mxu0 0.0
    %1766 = vmatprep.subr.mxu0 0.0
    %1767 = vmatpush2.msra.mxu0 0.0
    %1768 = vmatprep.subr.mxu0 0.0
    %1769 = vmatpush2.msra.mxu0 0.0
    %1770 = vmatprep.subr.mxu0 0.0
    %1771 = vmatpush2.msra.mxu0 0.0
    %1772 = vmatprep.subr.mxu0 0.0
    %1773 = vmatpush2.msra.mxu0 0.0
    %1774 = vmatprep.subr.mxu0 0.0
    %1775 = vmatpush2.msra.mxu0 0.0
    %1776 = vmatprep.subr.mxu0 0.0
    %1777 = vmatpush2.msra.mxu0 0.0
    %1778 = vmatprep.subr.mxu0 0.0
    %1779 = vmatpush2.msra.mxu0 0.0
    %1780 = vmatprep.subr.mxu0 0.0
    %1781 = vmatpush2.msra.mxu0 0.0
    %1782 = vmatprep.subr.mxu0 0.0
    %1783 = vmatpush2.msra.mxu0 0.0
    %1784 = vmatprep.subr.mxu0 0.0
    %1785 = vmatpush2.msra.mxu0 0.0
    %1786 = vmatprep.subr.mxu0 0.0
    %1787 = vmatpush2.msra.mxu0 0.0
    %1788 = vmatprep.subr.mxu0 0.0
    %1789 = vmatpush2.msra.mxu0 0.0
    %1790 = vmatprep.subr.mxu0 0.0
    %1791 = vmatpush2.msra.mxu0 0.0
    %1792 = vmatprep.subr.mxu0 0.0
    %1793 = vmatpush2.msra.mxu0 0.0
    %1794 = vmatprep.subr.mxu0 0.0
    %1795 = vmatpush2.msra.mxu0 0.0
    %1796 = vmatprep.mubr.f32.mxu0 0.0
    %1797 = vmatmul.mubr.f32.gmra.mxu0 %v1730
    %v1798 = vpop.f32.mrf.mxu0
    %v1799 = vadd.f32 0.0, %v1798
    %v1800 = vpop.f32.mrf.mxu0
    %v1801 = vadd.f32 0.0, %v1800
    %1802 = vdwg.mxu0
    %1803 = vmatprep.subr.mxu0 %v348
    %1804 = vmatpush1.msra.mxu0 %v347
    %1805 = vmatprep.subr.mxu0 %v344
    %1806 = vmatpush1.msra.mxu0 %v343
    %1807 = vmatprep.subr.mxu0 %v340
    %1808 = vmatpush1.msra.mxu0 %v339
    %1809 = vmatprep.subr.mxu0 %v336
    %1810 = vmatpush1.msra.mxu0 %v335
    %1811 = vmatprep.subr.mxu0 %v332
    %1812 = vmatpush1.msra.mxu0 %v331
    %1813 = vmatprep.subr.mxu0 %v328
    %1814 = vmatpush1.msra.mxu0 %v327
    %1815 = vmatprep.subr.mxu0 %v324
    %1816 = vmatpush1.msra.mxu0 %v323
    %1817 = vmatprep.subr.mxu0 %v320
    %1818 = vmatpush1.msra.mxu0 %v319
    %1819 = vmatprep.subr.mxu0 %v316
    %1820 = vmatpush1.msra.mxu0 %v315
    %1821 = vmatprep.subr.mxu0 %v312
    %1822 = vmatpush1.msra.mxu0 %v311
    %1823 = vmatprep.subr.mxu0 %v308
    %1824 = vmatpush1.msra.mxu0 %v307
    %1825 = vmatprep.subr.mxu0 %v304
    %1826 = vmatpush1.msra.mxu0 %v303
    %1827 = vmatprep.subr.mxu0 %v300
    %1828 = vmatpush1.msra.mxu0 %v299
    %1829 = vmatprep.subr.mxu0 %v296
    %1830 = vmatpush1.msra.mxu0 %v295
    %1831 = vmatprep.subr.mxu0 %v292
    %1832 = vmatpush1.msra.mxu0 %v291
    %1833 = vmatprep.subr.mxu0 %v288
    %1834 = vmatpush1.msra.mxu0 %v287
    %1835 = vmatprep.subr.mxu0 0.0
    %1836 = vmatpush2.msra.mxu0 0.0
    %1837 = vmatprep.subr.mxu0 0.0
    %1838 = vmatpush2.msra.mxu0 0.0
    %1839 = vmatprep.subr.mxu0 0.0
    %1840 = vmatpush2.msra.mxu0 0.0
    %1841 = vmatprep.subr.mxu0 0.0
    %1842 = vmatpush2.msra.mxu0 0.0
    %1843 = vmatprep.subr.mxu0 0.0
    %1844 = vmatpush2.msra.mxu0 0.0
    %1845 = vmatprep.subr.mxu0 0.0
    %1846 = vmatpush2.msra.mxu0 0.0
    %1847 = vmatprep.subr.mxu0 0.0
    %1848 = vmatpush2.msra.mxu0 0.0
    %1849 = vmatprep.subr.mxu0 0.0
    %1850 = vmatpush2.msra.mxu0 0.0
    %1851 = vmatprep.subr.mxu0 0.0
    %1852 = vmatpush2.msra.mxu0 0.0
    %1853 = vmatprep.subr.mxu0 0.0
    %1854 = vmatpush2.msra.mxu0 0.0
    %1855 = vmatprep.subr.mxu0 0.0
    %1856 = vmatpush2.msra.mxu0 0.0
    %1857 = vmatprep.subr.mxu0 0.0
    %1858 = vmatpush2.msra.mxu0 0.0
    %1859 = vmatprep.subr.mxu0 0.0
    %1860 = vmatpush2.msra.mxu0 0.0
    %1861 = vmatprep.subr.mxu0 0.0
    %1862 = vmatpush2.msra.mxu0 0.0
    %1863 = vmatprep.subr.mxu0 0.0
    %1864 = vmatpush2.msra.mxu0 0.0
    %1865 = vmatprep.subr.mxu0 0.0
    %1866 = vmatpush2.msra.mxu0 0.0
    %1867 = vmatprep.mubr.f32.mxu0 0.0
    %1868 = vmatmul.mubr.f32.gmra.mxu0 %v1730
    %v1869 = vpop.f32.mrf.mxu0
    %v1870 = vadd.f32 0.0, %v1869
    %v1871 = vpop.f32.mrf.mxu0
    %v1872 = vadd.f32 0.0, %v1871
    %1873 = vdwg.mxu0
    %v1878 = vrot.slane %v1799, 2
    %v1879 = vrot.slane %v1801, 2
    %v1880 = vrot.slane %v1870, 2
    %v1881 = vrot.slane %v1872, 2
    %v1882 = vrot.slane %v1799, 3
    %v1883 = vrot.slane %v1801, 3
    %v1884 = vrot.slane %v1870, 3
    %v1885 = vrot.slane %v1872, 3
    %v1894 = vadd.f32 %v198, %v1878
    %v1895 = vadd.f32 %v200, %v1879
    %v1896 = vadd.f32 %v275, %v1880
    %v1897 = vadd.f32 %v277, %v1881
    %v1898 = vadd.f32 %v204, %v1882
    %v1899 = vadd.f32 %v206, %v1883
    %v1900 = vadd.f32 %v281, %v1884
    %v1901 = vadd.f32 %v283, %v1885
    %v1902 = vxor.u32 %v1894, 2147483648
    %v1903 = vxor.u32 %v1898, 2147483648
    %v1904 = vmul.f32 %v1902, 1.442695
    %v1905 = vpow.pop %v1904
    %v1906 = vmul.f32 %v1903, 1.442695
    %v1907 = vpow.pop %v1906
    %v1908 = vadd.f32 %v1905, 1.0
    %v1909 = vadd.f32 %v1907, 1.0
    %v1910 = vrcp.pop %v1908
    %v1911 = vmul.f32 1.0, %v1910
    %v1912 = vrcp.pop %v1909
    %v1913 = vmul.f32 1.0, %v1912
    %v1914 = vxor.u32 %v1895, 2147483648
    %v1915 = vxor.u32 %v1899, 2147483648
    %v1916 = vmul.f32 %v1914, 1.442695
    %v1917 = vpow.pop %v1916
    %v1918 = vmul.f32 %v1915, 1.442695
    %v1919 = vpow.pop %v1918
    %v1920 = vadd.f32 %v1917, 1.0
    %v1921 = vadd.f32 %v1919, 1.0
    %v1922 = vrcp.pop %v1920
    %v1923 = vmul.f32 1.0, %v1922
    %v1924 = vrcp.pop %v1921
    %v1925 = vmul.f32 1.0, %v1924
    %v1926 = vtanh.pop %v1896
    %v1927 = vtanh.pop %v1900
    %v1928 = vxor.u32 %v1897, 2147483648
    %v1929 = vxor.u32 %v1901, 2147483648
    %v1930 = vmul.f32 %v1928, 1.442695
    %v1931 = vpow.pop %v1930
    %v1932 = vmul.f32 %v1929, 1.442695
    %v1933 = vpow.pop %v1932
    %v1934 = vadd.f32 %v1931, 1.0
    %v1935 = vadd.f32 %v1933, 1.0
    %v1936 = vrcp.pop %v1934
    %v1937 = vmul.f32 1.0, %v1936
    %v1938 = vrcp.pop %v1935
    %v1939 = vmul.f32 1.0, %v1938
    %v1942 = vrot.slane %v1718, 7
    %v1943 = vrot.slane %v1719, 7
    %v1946 = vmul.f32 %v1923, %v1942
    %v1947 = vmul.f32 %v1925, %v1943
    %v1948 = vmul.f32 %v1911, %v1926
    %v1949 = vmul.f32 %v1913, %v1927
    %v1950 = vadd.f32 %v1946, %v1948
    %v1951 = vadd.f32 %v1947, %v1949
    %v1952 = vtanh.pop %v1950
    %v1953 = vtanh.pop %v1951
    %v1954 = vmul.f32 %v1937, %v1952
    %v1955 = vmul.f32 %v1939, %v1953
    %1956 = vst [vmem:[#allocation2] sm:$0x40] %v1954
    %1957 = vst [vmem:[#allocation2 + $0x8] sm:$0x40] %v1955
    %v1960 = vrot.slane %v1954, 6
    %v1961 = vrot.slane %v1955, 5
    %v1962 = vsel %vm574, %v1961, %v1960
    %1964 = vmatprep.subr.mxu0 %v346
    %1965 = vmatpush1.msra.mxu0 %v345
    %1966 = vmatprep.subr.mxu0 %v342
    %1967 = vmatpush1.msra.mxu0 %v341
    %1968 = vmatprep.subr.mxu0 %v338
    %1969 = vmatpush1.msra.mxu0 %v337
    %1970 = vmatprep.subr.mxu0 %v334
    %1971 = vmatpush1.msra.mxu0 %v333
    %1972 = vmatprep.subr.mxu0 %v330
    %1973 = vmatpush1.msra.mxu0 %v329
    %1974 = vmatprep.subr.mxu0 %v326
    %1975 = vmatpush1.msra.mxu0 %v325
    %1976 = vmatprep.subr.mxu0 %v322
    %1977 = vmatpush1.msra.mxu0 %v321
    %1978 = vmatprep.subr.mxu0 %v318
    %1979 = vmatpush1.msra.mxu0 %v317
    %1980 = vmatprep.subr.mxu0 %v314
    %1981 = vmatpush1.msra.mxu0 %v313
    %1982 = vmatprep.subr.mxu0 %v310
    %1983 = vmatpush1.msra.mxu0 %v309
    %1984 = vmatprep.subr.mxu0 %v306
    %1985 = vmatpush1.msra.mxu0 %v305
    %1986 = vmatprep.subr.mxu0 %v302
    %1987 = vmatpush1.msra.mxu0 %v301
    %1988 = vmatprep.subr.mxu0 %v298
    %1989 = vmatpush1.msra.mxu0 %v297
    %1990 = vmatprep.subr.mxu0 %v294
    %1991 = vmatpush1.msra.mxu0 %v293
    %1992 = vmatprep.subr.mxu0 %v290
    %1993 = vmatpush1.msra.mxu0 %v289
    %1994 = vmatprep.subr.mxu0 %v286
    %1995 = vmatpush1.msra.mxu0 %v285
    %1996 = vmatprep.subr.mxu0 0.0
    %1997 = vmatpush2.msra.mxu0 0.0
    %1998 = vmatprep.subr.mxu0 0.0
    %1999 = vmatpush2.msra.mxu0 0.0
    %2000 = vmatprep.subr.mxu0 0.0
    %2001 = vmatpush2.msra.mxu0 0.0
    %2002 = vmatprep.subr.mxu0 0.0
    %2003 = vmatpush2.msra.mxu0 0.0
    %2004 = vmatprep.subr.mxu0 0.0
    %2005 = vmatpush2.msra.mxu0 0.0
    %2006 = vmatprep.subr.mxu0 0.0
    %2007 = vmatpush2.msra.mxu0 0.0
    %2008 = vmatprep.subr.mxu0 0.0
    %2009 = vmatpush2.msra.mxu0 0.0
    %2010 = vmatprep.subr.mxu0 0.0
    %2011 = vmatpush2.msra.mxu0 0.0
    %2012 = vmatprep.subr.mxu0 0.0
    %2013 = vmatpush2.msra.mxu0 0.0
    %2014 = vmatprep.subr.mxu0 0.0
    %2015 = vmatpush2.msra.mxu0 0.0
    %2016 = vmatprep.subr.mxu0 0.0
    %2017 = vmatpush2.msra.mxu0 0.0
    %2018 = vmatprep.subr.mxu0 0.0
    %2019 = vmatpush2.msra.mxu0 0.0
    %2020 = vmatprep.subr.mxu0 0.0
    %2021 = vmatpush2.msra.mxu0 0.0
    %2022 = vmatprep.subr.mxu0 0.0
    %2023 = vmatpush2.msra.mxu0 0.0
    %2024 = vmatprep.subr.mxu0 0.0
    %2025 = vmatpush2.msra.mxu0 0.0
    %2026 = vmatprep.subr.mxu0 0.0
    %2027 = vmatpush2.msra.mxu0 0.0
    %2028 = vmatprep.mubr.f32.mxu0 0.0
    %2029 = vmatmul.mubr.f32.gmra.mxu0 %v1962
    %v2030 = vpop.f32.mrf.mxu0
    %v2031 = vadd.f32 0.0, %v2030
    %v2032 = vpop.f32.mrf.mxu0
    %v2033 = vadd.f32 0.0, %v2032
    %2034 = vdwg.mxu0
    %2035 = vmatprep.subr.mxu0 %v348
    %2036 = vmatpush1.msra.mxu0 %v347
    %2037 = vmatprep.subr.mxu0 %v344
    %2038 = vmatpush1.msra.mxu0 %v343
    %2039 = vmatprep.subr.mxu0 %v340
    %2040 = vmatpush1.msra.mxu0 %v339
    %2041 = vmatprep.subr.mxu0 %v336
    %2042 = vmatpush1.msra.mxu0 %v335
    %2043 = vmatprep.subr.mxu0 %v332
    %2044 = vmatpush1.msra.mxu0 %v331
    %2045 = vmatprep.subr.mxu0 %v328
    %2046 = vmatpush1.msra.mxu0 %v327
    %2047 = vmatprep.subr.mxu0 %v324
    %2048 = vmatpush1.msra.mxu0 %v323
    %2049 = vmatprep.subr.mxu0 %v320
    %2050 = vmatpush1.msra.mxu0 %v319
    %2051 = vmatprep.subr.mxu0 %v316
    %2052 = vmatpush1.msra.mxu0 %v315
    %2053 = vmatprep.subr.mxu0 %v312
    %2054 = vmatpush1.msra.mxu0 %v311
    %2055 = vmatprep.subr.mxu0 %v308
    %2056 = vmatpush1.msra.mxu0 %v307
    %2057 = vmatprep.subr.mxu0 %v304
    %2058 = vmatpush1.msra.mxu0 %v303
    %2059 = vmatprep.subr.mxu0 %v300
    %2060 = vmatpush1.msra.mxu0 %v299
    %2061 = vmatprep.subr.mxu0 %v296
    %2062 = vmatpush1.msra.mxu0 %v295
    %2063 = vmatprep.subr.mxu0 %v292
    %2064 = vmatpush1.msra.mxu0 %v291
    %2065 = vmatprep.subr.mxu0 %v288
    %2066 = vmatpush1.msra.mxu0 %v287
    %2067 = vmatprep.subr.mxu0 0.0
    %2068 = vmatpush2.msra.mxu0 0.0
    %2069 = vmatprep.subr.mxu0 0.0
    %2070 = vmatpush2.msra.mxu0 0.0
    %2071 = vmatprep.subr.mxu0 0.0
    %2072 = vmatpush2.msra.mxu0 0.0
    %2073 = vmatprep.subr.mxu0 0.0
    %2074 = vmatpush2.msra.mxu0 0.0
    %2075 = vmatprep.subr.mxu0 0.0
    %2076 = vmatpush2.msra.mxu0 0.0
    %2077 = vmatprep.subr.mxu0 0.0
    %2078 = vmatpush2.msra.mxu0 0.0
    %2079 = vmatprep.subr.mxu0 0.0
    %2080 = vmatpush2.msra.mxu0 0.0
    %2081 = vmatprep.subr.mxu0 0.0
    %2082 = vmatpush2.msra.mxu0 0.0
    %2083 = vmatprep.subr.mxu0 0.0
    %2084 = vmatpush2.msra.mxu0 0.0
    %2085 = vmatprep.subr.mxu0 0.0
    %2086 = vmatpush2.msra.mxu0 0.0
    %2087 = vmatprep.subr.mxu0 0.0
    %2088 = vmatpush2.msra.mxu0 0.0
    %2089 = vmatprep.subr.mxu0 0.0
    %2090 = vmatpush2.msra.mxu0 0.0
    %2091 = vmatprep.subr.mxu0 0.0
    %2092 = vmatpush2.msra.mxu0 0.0
    %2093 = vmatprep.subr.mxu0 0.0
    %2094 = vmatpush2.msra.mxu0 0.0
    %2095 = vmatprep.subr.mxu0 0.0
    %2096 = vmatpush2.msra.mxu0 0.0
    %2097 = vmatprep.subr.mxu0 0.0
    %2098 = vmatpush2.msra.mxu0 0.0
    %2099 = vmatprep.mubr.f32.mxu0 0.0
    %2100 = vmatmul.mubr.f32.gmra.mxu0 %v1962
    %v2101 = vpop.f32.mrf.mxu0
    %v2102 = vadd.f32 0.0, %v2101
    %v2103 = vpop.f32.mrf.mxu0
    %v2104 = vadd.f32 0.0, %v2103
    %2105 = vdwg.mxu0
    %v2110 = vrot.slane %v2031, 1
    %v2111 = vrot.slane %v2033, 1
    %v2112 = vrot.slane %v2102, 1
    %v2113 = vrot.slane %v2104, 1
    %v2114 = vrot.slane %v2031, 2
    %v2115 = vrot.slane %v2033, 2
    %v2116 = vrot.slane %v2102, 2
    %v2117 = vrot.slane %v2104, 2
    %v2126 = vadd.f32 %v198, %v2110
    %v2127 = vadd.f32 %v200, %v2111
    %v2128 = vadd.f32 %v275, %v2112
    %v2129 = vadd.f32 %v277, %v2113
    %v2130 = vadd.f32 %v204, %v2114
    %v2131 = vadd.f32 %v206, %v2115
    %v2132 = vadd.f32 %v281, %v2116
    %v2133 = vadd.f32 %v283, %v2117
    %v2134 = vxor.u32 %v2126, 2147483648
    %v2135 = vxor.u32 %v2130, 2147483648
    %v2136 = vmul.f32 %v2134, 1.442695
    %v2137 = vpow.pop %v2136
    %v2138 = vmul.f32 %v2135, 1.442695
    %v2139 = vpow.pop %v2138
    %v2140 = vadd.f32 %v2137, 1.0
    %v2141 = vadd.f32 %v2139, 1.0
    %v2142 = vrcp.pop %v2140
    %v2143 = vmul.f32 1.0, %v2142
    %v2144 = vrcp.pop %v2141
    %v2145 = vmul.f32 1.0, %v2144
    %v2146 = vxor.u32 %v2127, 2147483648
    %v2147 = vxor.u32 %v2131, 2147483648
    %v2148 = vmul.f32 %v2146, 1.442695
    %v2149 = vpow.pop %v2148
    %v2150 = vmul.f32 %v2147, 1.442695
    %v2151 = vpow.pop %v2150
    %v2152 = vadd.f32 %v2149, 1.0
    %v2153 = vadd.f32 %v2151, 1.0
    %v2154 = vrcp.pop %v2152
    %v2155 = vmul.f32 1.0, %v2154
    %v2156 = vrcp.pop %v2153
    %v2157 = vmul.f32 1.0, %v2156
    %v2158 = vtanh.pop %v2128
    %v2159 = vtanh.pop %v2132
    %v2160 = vxor.u32 %v2129, 2147483648
    %v2161 = vxor.u32 %v2133, 2147483648
    %v2162 = vmul.f32 %v2160, 1.442695
    %v2163 = vpow.pop %v2162
    %v2164 = vmul.f32 %v2161, 1.442695
    %v2165 = vpow.pop %v2164
    %v2166 = vadd.f32 %v2163, 1.0
    %v2167 = vadd.f32 %v2165, 1.0
    %v2168 = vrcp.pop %v2166
    %v2169 = vmul.f32 1.0, %v2168
    %v2170 = vrcp.pop %v2167
    %v2171 = vmul.f32 1.0, %v2170
    %v2174 = vrot.slane %v1950, 7
    %v2175 = vrot.slane %v1951, 7
    %v2178 = vmul.f32 %v2155, %v2174
    %v2179 = vmul.f32 %v2157, %v2175
    %v2180 = vmul.f32 %v2143, %v2158
    %v2181 = vmul.f32 %v2145, %v2159
    %v2182 = vadd.f32 %v2178, %v2180
    %v2183 = vadd.f32 %v2179, %v2181
    %v2184 = vtanh.pop %v2182
    %v2185 = vtanh.pop %v2183
    %v2186 = vmul.f32 %v2169, %v2184
    %v2187 = vmul.f32 %v2171, %v2185
    %2188 = vst [vmem:[#allocation2] sm:$0x80] %v2186
    %2189 = vst [vmem:[#allocation2 + $0x8] sm:$0x80] %v2187
    %v2192 = vrot.slane %v2187, 7
    %vm2195 = vcmask 441351
    %2196 = vst.msk [vmem:[#allocation9 - $0x7] sm:$0x80] %vm2195, %v2186
    %vm2197 = vcmask 434176
    %2198 = vst.msk [vmem:[#allocation9 + $0x1] sm:$0x1] %vm2197, %v2192
    %v2201 = vrot.slane %v2183, 7
    %2204 = vst.msk [vmem:[#allocation11 - $0x7] sm:$0x80] %vm2195, %v2182
    %2205 = vst.msk [vmem:[#allocation11 + $0x1] sm:$0x1] %vm2197, %v2201
    %v2206 = vld [vmem:[#allocation2] sm:$0xff]
    %v2207 = vld [vmem:[#allocation2 + $0x8] sm:$0xff]
    %v2208 = vld [vmem:[#allocation3] sm:$0xff]
    %v2209 = vld [vmem:[#allocation3 + $0x8] sm:$0xff]
    %v2210 = vld [vmem:[#allocation3 + $0x10] sm:$0xff]
    %v2211 = vld [vmem:[#allocation3 + $0x18] sm:$0xff]
    %v2212 = vld [vmem:[#allocation3 + $0x20] sm:$0xff]
    %v2213 = vld [vmem:[#allocation3 + $0x28] sm:$0xff]
    %v2214 = vld [vmem:[#allocation3 + $0x30] sm:$0xff]
    %v2215 = vld [vmem:[#allocation3 + $0x38] sm:$0xff]
    %v2216 = vld [vmem:[#allocation3 + $0x40] sm:$0xff]
    %v2217 = vld [vmem:[#allocation3 + $0x48] sm:$0xff]
    %v2218 = vld [vmem:[#allocation3 + $0x50] sm:$0xff]
    %v2219 = vld [vmem:[#allocation3 + $0x58] sm:$0xff]
    %v2220 = vld [vmem:[#allocation3 + $0x60] sm:$0xff]
    %v2221 = vld [vmem:[#allocation3 + $0x68] sm:$0xff]
    %v2222 = vld [vmem:[#allocation3 + $0x70] sm:$0xff]
    %v2223 = vld [vmem:[#allocation3 + $0x78] sm:$0xff]
    %v2224 = vld [vmem:[#allocation3 + $0x80] sm:$0xff]
    %v2225 = vld [vmem:[#allocation3 + $0x88] sm:$0xff]
    %v2226 = vld [vmem:[#allocation3 + $0x90] sm:$0xff]
    %v2227 = vld [vmem:[#allocation3 + $0x98] sm:$0xff]
    %v2228 = vld [vmem:[#allocation3 + $0xa0] sm:$0xff]
    %v2229 = vld [vmem:[#allocation3 + $0xa8] sm:$0xff]
    %v2230 = vld [vmem:[#allocation3 + $0xb0] sm:$0xff]
    %v2231 = vld [vmem:[#allocation3 + $0xb8] sm:$0xff]
    %v2232 = vld [vmem:[#allocation3 + $0xc0] sm:$0xff]
    %v2233 = vld [vmem:[#allocation3 + $0xc8] sm:$0xff]
    %v2234 = vld [vmem:[#allocation3 + $0xd0] sm:$0xff]
    %v2235 = vld [vmem:[#allocation3 + $0xd8] sm:$0xff]
    %v2236 = vld [vmem:[#allocation3 + $0xe0] sm:$0xff]
    %v2237 = vld [vmem:[#allocation3 + $0xe8] sm:$0xff]
    %v2238 = vld [vmem:[#allocation3 + $0xf0] sm:$0xff]
    %v2239 = vld [vmem:[#allocation3 + $0xf8] sm:$0xff]
    %v2240 = vld [vmem:[#allocation3 + $0x100] sm:$0xff]
    %v2241 = vld [vmem:[#allocation3 + $0x108] sm:$0xff]
    %v2242 = vld [vmem:[#allocation3 + $0x110] sm:$0xff]
    %v2243 = vld [vmem:[#allocation3 + $0x118] sm:$0xff]
    %v2244 = vld [vmem:[#allocation3 + $0x120] sm:$0xff]
    %v2245 = vld [vmem:[#allocation3 + $0x128] sm:$0xff]
    %v2246 = vld [vmem:[#allocation3 + $0x130] sm:$0xff]
    %v2247 = vld [vmem:[#allocation3 + $0x138] sm:$0xff]
    %v2248 = vld [vmem:[#allocation3 + $0x140] sm:$0xff]
    %v2249 = vld [vmem:[#allocation3 + $0x148] sm:$0xff]
    %v2250 = vld [vmem:[#allocation3 + $0x150] sm:$0xff]
    %v2251 = vld [vmem:[#allocation3 + $0x158] sm:$0xff]
    %v2252 = vld [vmem:[#allocation3 + $0x160] sm:$0xff]
    %v2253 = vld [vmem:[#allocation3 + $0x168] sm:$0xff]
    %v2254 = vld [vmem:[#allocation3 + $0x170] sm:$0xff]
    %v2255 = vld [vmem:[#allocation3 + $0x178] sm:$0xff]
    %v2256 = vld [vmem:[#allocation3 + $0x180] sm:$0xff]
    %v2257 = vld [vmem:[#allocation3 + $0x188] sm:$0xff]
    %v2258 = vld [vmem:[#allocation3 + $0x190] sm:$0xff]
    %v2259 = vld [vmem:[#allocation3 + $0x198] sm:$0xff]
    %v2260 = vld [vmem:[#allocation3 + $0x1a0] sm:$0xff]
    %v2261 = vld [vmem:[#allocation3 + $0x1a8] sm:$0xff]
    %v2262 = vld [vmem:[#allocation3 + $0x1b0] sm:$0xff]
    %v2263 = vld [vmem:[#allocation3 + $0x1b8] sm:$0xff]
    %v2264 = vld [vmem:[#allocation3 + $0x1c0] sm:$0xff]
    %v2265 = vld [vmem:[#allocation3 + $0x1c8] sm:$0xff]
    %v2266 = vld [vmem:[#allocation3 + $0x1d0] sm:$0xff]
    %v2267 = vld [vmem:[#allocation3 + $0x1d8] sm:$0xff]
    %v2268 = vld [vmem:[#allocation3 + $0x1e0] sm:$0xff]
    %v2269 = vld [vmem:[#allocation3 + $0x1e8] sm:$0xff]
    %v2270 = vld [vmem:[#allocation3 + $0x1f0] sm:$0xff]
    %v2271 = vld [vmem:[#allocation3 + $0x1f8] sm:$0xff]
    %s2272 = scalar_lea.vmem %s6, 4
    %v2273 = vld [vmem:[%s2272] sm:$0xf]
    %v2275 = vlaneseq
    %v2276 = vshrl.u32 %v2275, 7
    %v2277 = vsub.s32 0, %v2276
    %v2278 = vrot.slane %v2273, %v2277
    %v2279 = vlaneseq
    %v2280 = vshrl.u32 %v2279, 7
    %v2281 = vsub.s32 1, %v2280
    %v2282 = vrot.slane %v2273, %v2281
    %v2283 = vlaneseq
    %v2284 = vshrl.u32 %v2283, 7
    %v2285 = vsub.s32 2, %v2284
    %v2286 = vrot.slane %v2273, %v2285
    %v2287 = vlaneseq
    %v2288 = vshrl.u32 %v2287, 7
    %v2289 = vsub.s32 3, %v2288
    %v2290 = vrot.slane %v2273, %v2289
    %2295 = vmatprep.subr.mxu0 %v2269
    %2296 = vmatpush1.msra.mxu0 %v2268
    %2297 = vmatprep.subr.mxu0 %v2265
    %2298 = vmatpush1.msra.mxu0 %v2264
    %2299 = vmatprep.subr.mxu0 %v2261
    %2300 = vmatpush1.msra.mxu0 %v2260
    %2301 = vmatprep.subr.mxu0 %v2257
    %2302 = vmatpush1.msra.mxu0 %v2256
    %2303 = vmatprep.subr.mxu0 %v2253
    %2304 = vmatpush1.msra.mxu0 %v2252
    %2305 = vmatprep.subr.mxu0 %v2249
    %2306 = vmatpush1.msra.mxu0 %v2248
    %2307 = vmatprep.subr.mxu0 %v2245
    %2308 = vmatpush1.msra.mxu0 %v2244
    %2309 = vmatprep.subr.mxu0 %v2241
    %2310 = vmatpush1.msra.mxu0 %v2240
    %2311 = vmatprep.subr.mxu0 %v2237
    %2312 = vmatpush1.msra.mxu0 %v2236
    %2313 = vmatprep.subr.mxu0 %v2233
    %2314 = vmatpush1.msra.mxu0 %v2232
    %2315 = vmatprep.subr.mxu0 %v2229
    %2316 = vmatpush1.msra.mxu0 %v2228
    %2317 = vmatprep.subr.mxu0 %v2225
    %2318 = vmatpush1.msra.mxu0 %v2224
    %2319 = vmatprep.subr.mxu0 %v2221
    %2320 = vmatpush1.msra.mxu0 %v2220
    %2321 = vmatprep.subr.mxu0 %v2217
    %2322 = vmatpush1.msra.mxu0 %v2216
    %2323 = vmatprep.subr.mxu0 %v2213
    %2324 = vmatpush1.msra.mxu0 %v2212
    %2325 = vmatprep.subr.mxu0 %v2209
    %2326 = vmatpush1.msra.mxu0 %v2208
    %2327 = vmatprep.subr.mxu0 0.0
    %2328 = vmatpush2.msra.mxu0 0.0
    %2329 = vmatprep.subr.mxu0 0.0
    %2330 = vmatpush2.msra.mxu0 0.0
    %2331 = vmatprep.subr.mxu0 0.0
    %2332 = vmatpush2.msra.mxu0 0.0
    %2333 = vmatprep.subr.mxu0 0.0
    %2334 = vmatpush2.msra.mxu0 0.0
    %2335 = vmatprep.subr.mxu0 0.0
    %2336 = vmatpush2.msra.mxu0 0.0
    %2337 = vmatprep.subr.mxu0 0.0
    %2338 = vmatpush2.msra.mxu0 0.0
    %2339 = vmatprep.subr.mxu0 0.0
    %2340 = vmatpush2.msra.mxu0 0.0
    %2341 = vmatprep.subr.mxu0 0.0
    %2342 = vmatpush2.msra.mxu0 0.0
    %2343 = vmatprep.subr.mxu0 0.0
    %2344 = vmatpush2.msra.mxu0 0.0
    %2345 = vmatprep.subr.mxu0 0.0
    %2346 = vmatpush2.msra.mxu0 0.0
    %2347 = vmatprep.subr.mxu0 0.0
    %2348 = vmatpush2.msra.mxu0 0.0
    %2349 = vmatprep.subr.mxu0 0.0
    %2350 = vmatpush2.msra.mxu0 0.0
    %2351 = vmatprep.subr.mxu0 0.0
    %2352 = vmatpush2.msra.mxu0 0.0
    %2353 = vmatprep.subr.mxu0 0.0
    %2354 = vmatpush2.msra.mxu0 0.0
    %2355 = vmatprep.subr.mxu0 0.0
    %2356 = vmatpush2.msra.mxu0 0.0
    %2357 = vmatprep.subr.mxu0 0.0
    %2358 = vmatpush2.msra.mxu0 0.0
    %2359 = vmatprep.mubr.f32.mxu0 0.0
    %2360 = vmatmul.mubr.f32.gmra.mxu0 %v2206
    %v2361 = vpop.f32.mrf.mxu0
    %v2362 = vadd.f32 %v2278, %v2361
    %v2363 = vpop.f32.mrf.mxu0
    %v2364 = vadd.f32 %v2282, %v2363
    %2365 = vmatprep.mubr.f32.mxu0 0.0
    %2366 = vmatmul.mubr.f32.gmra.mxu0 %v2207
    %v2367 = vpop.f32.mrf.mxu0
    %v2368 = vadd.f32 %v2278, %v2367
    %v2369 = vpop.f32.mrf.mxu0
    %v2370 = vadd.f32 %v2282, %v2369
    %2371 = vdwg.mxu0
    %2372 = vmatprep.subr.mxu0 %v2271
    %2373 = vmatpush1.msra.mxu0 %v2270
    %2374 = vmatprep.subr.mxu0 %v2267
    %2375 = vmatpush1.msra.mxu0 %v2266
    %2376 = vmatprep.subr.mxu0 %v2263
    %2377 = vmatpush1.msra.mxu0 %v2262
    %2378 = vmatprep.subr.mxu0 %v2259
    %2379 = vmatpush1.msra.mxu0 %v2258
    %2380 = vmatprep.subr.mxu0 %v2255
    %2381 = vmatpush1.msra.mxu0 %v2254
    %2382 = vmatprep.subr.mxu0 %v2251
    %2383 = vmatpush1.msra.mxu0 %v2250
    %2384 = vmatprep.subr.mxu0 %v2247
    %2385 = vmatpush1.msra.mxu0 %v2246
    %2386 = vmatprep.subr.mxu0 %v2243
    %2387 = vmatpush1.msra.mxu0 %v2242
    %2388 = vmatprep.subr.mxu0 %v2239
    %2389 = vmatpush1.msra.mxu0 %v2238
    %2390 = vmatprep.subr.mxu0 %v2235
    %2391 = vmatpush1.msra.mxu0 %v2234
    %2392 = vmatprep.subr.mxu0 %v2231
    %2393 = vmatpush1.msra.mxu0 %v2230
    %2394 = vmatprep.subr.mxu0 %v2227
    %2395 = vmatpush1.msra.mxu0 %v2226
    %2396 = vmatprep.subr.mxu0 %v2223
    %2397 = vmatpush1.msra.mxu0 %v2222
    %2398 = vmatprep.subr.mxu0 %v2219
    %2399 = vmatpush1.msra.mxu0 %v2218
    %2400 = vmatprep.subr.mxu0 %v2215
    %2401 = vmatpush1.msra.mxu0 %v2214
    %2402 = vmatprep.subr.mxu0 %v2211
    %2403 = vmatpush1.msra.mxu0 %v2210
    %2404 = vmatprep.subr.mxu0 0.0
    %2405 = vmatpush2.msra.mxu0 0.0
    %2406 = vmatprep.subr.mxu0 0.0
    %2407 = vmatpush2.msra.mxu0 0.0
    %2408 = vmatprep.subr.mxu0 0.0
    %2409 = vmatpush2.msra.mxu0 0.0
    %2410 = vmatprep.subr.mxu0 0.0
    %2411 = vmatpush2.msra.mxu0 0.0
    %2412 = vmatprep.subr.mxu0 0.0
    %2413 = vmatpush2.msra.mxu0 0.0
    %2414 = vmatprep.subr.mxu0 0.0
    %2415 = vmatpush2.msra.mxu0 0.0
    %2416 = vmatprep.subr.mxu0 0.0
    %2417 = vmatpush2.msra.mxu0 0.0
    %2418 = vmatprep.subr.mxu0 0.0
    %2419 = vmatpush2.msra.mxu0 0.0
    %2420 = vmatprep.subr.mxu0 0.0
    %2421 = vmatpush2.msra.mxu0 0.0
    %2422 = vmatprep.subr.mxu0 0.0
    %2423 = vmatpush2.msra.mxu0 0.0
    %2424 = vmatprep.subr.mxu0 0.0
    %2425 = vmatpush2.msra.mxu0 0.0
    %2426 = vmatprep.subr.mxu0 0.0
    %2427 = vmatpush2.msra.mxu0 0.0
    %2428 = vmatprep.subr.mxu0 0.0
    %2429 = vmatpush2.msra.mxu0 0.0
    %2430 = vmatprep.subr.mxu0 0.0
    %2431 = vmatpush2.msra.mxu0 0.0
    %2432 = vmatprep.subr.mxu0 0.0
    %2433 = vmatpush2.msra.mxu0 0.0
    %2434 = vmatprep.subr.mxu0 0.0
    %2435 = vmatpush2.msra.mxu0 0.0
    %2436 = vmatprep.mubr.f32.mxu0 0.0
    %2437 = vmatmul.mubr.f32.gmra.mxu0 %v2206
    %v2438 = vpop.f32.mrf.mxu0
    %v2439 = vadd.f32 %v2286, %v2438
    %v2440 = vpop.f32.mrf.mxu0
    %v2441 = vadd.f32 %v2290, %v2440
    %2442 = vmatprep.mubr.f32.mxu0 0.0
    %2443 = vmatmul.mubr.f32.gmra.mxu0 %v2207
    %v2444 = vpop.f32.mrf.mxu0
    %v2445 = vadd.f32 %v2286, %v2444
    %v2446 = vpop.f32.mrf.mxu0
    %v2447 = vadd.f32 %v2290, %v2446
    %2448 = vdwg.mxu0
    %s2449 = scalar_lea.vmem [#allocation6], 512
    %v2450 = vld [vmem:[%s2449] sm:$0xff]
    %v2451 = vld [vmem:[%s2449 + $0x8] sm:$0xff]
    %v2452 = vld [vmem:[%s2449 + $0x10] sm:$0xff]
    %v2453 = vld [vmem:[%s2449 + $0x18] sm:$0xff]
    %v2454 = vld [vmem:[%s2449 + $0x20] sm:$0xff]
    %v2455 = vld [vmem:[%s2449 + $0x28] sm:$0xff]
    %v2456 = vld [vmem:[%s2449 + $0x30] sm:$0xff]
    %v2457 = vld [vmem:[%s2449 + $0x38] sm:$0xff]
    %v2458 = vld [vmem:[%s2449 + $0x40] sm:$0xff]
    %v2459 = vld [vmem:[%s2449 + $0x48] sm:$0xff]
    %v2460 = vld [vmem:[%s2449 + $0x50] sm:$0xff]
    %v2461 = vld [vmem:[%s2449 + $0x58] sm:$0xff]
    %v2462 = vld [vmem:[%s2449 + $0x60] sm:$0xff]
    %v2463 = vld [vmem:[%s2449 + $0x68] sm:$0xff]
    %v2464 = vld [vmem:[%s2449 + $0x70] sm:$0xff]
    %v2465 = vld [vmem:[%s2449 + $0x78] sm:$0xff]
    %v2466 = vld [vmem:[%s2449 + $0x80] sm:$0xff]
    %v2467 = vld [vmem:[%s2449 + $0x88] sm:$0xff]
    %v2468 = vld [vmem:[%s2449 + $0x90] sm:$0xff]
    %v2469 = vld [vmem:[%s2449 + $0x98] sm:$0xff]
    %v2470 = vld [vmem:[%s2449 + $0xa0] sm:$0xff]
    %v2471 = vld [vmem:[%s2449 + $0xa8] sm:$0xff]
    %v2472 = vld [vmem:[%s2449 + $0xb0] sm:$0xff]
    %v2473 = vld [vmem:[%s2449 + $0xb8] sm:$0xff]
    %v2474 = vld [vmem:[%s2449 + $0xc0] sm:$0xff]
    %v2475 = vld [vmem:[%s2449 + $0xc8] sm:$0xff]
    %v2476 = vld [vmem:[%s2449 + $0xd0] sm:$0xff]
    %v2477 = vld [vmem:[%s2449 + $0xd8] sm:$0xff]
    %v2478 = vld [vmem:[%s2449 + $0xe0] sm:$0xff]
    %v2479 = vld [vmem:[%s2449 + $0xe8] sm:$0xff]
    %v2480 = vld [vmem:[%s2449 + $0xf0] sm:$0xff]
    %v2481 = vld [vmem:[%s2449 + $0xf8] sm:$0xff]
    %v2482 = vld [vmem:[%s2449 + $0x100] sm:$0xff]
    %v2483 = vld [vmem:[%s2449 + $0x108] sm:$0xff]
    %v2484 = vld [vmem:[%s2449 + $0x110] sm:$0xff]
    %v2485 = vld [vmem:[%s2449 + $0x118] sm:$0xff]
    %v2486 = vld [vmem:[%s2449 + $0x120] sm:$0xff]
    %v2487 = vld [vmem:[%s2449 + $0x128] sm:$0xff]
    %v2488 = vld [vmem:[%s2449 + $0x130] sm:$0xff]
    %v2489 = vld [vmem:[%s2449 + $0x138] sm:$0xff]
    %v2490 = vld [vmem:[%s2449 + $0x140] sm:$0xff]
    %v2491 = vld [vmem:[%s2449 + $0x148] sm:$0xff]
    %v2492 = vld [vmem:[%s2449 + $0x150] sm:$0xff]
    %v2493 = vld [vmem:[%s2449 + $0x158] sm:$0xff]
    %v2494 = vld [vmem:[%s2449 + $0x160] sm:$0xff]
    %v2495 = vld [vmem:[%s2449 + $0x168] sm:$0xff]
    %v2496 = vld [vmem:[%s2449 + $0x170] sm:$0xff]
    %v2497 = vld [vmem:[%s2449 + $0x178] sm:$0xff]
    %v2498 = vld [vmem:[%s2449 + $0x180] sm:$0xff]
    %v2499 = vld [vmem:[%s2449 + $0x188] sm:$0xff]
    %v2500 = vld [vmem:[%s2449 + $0x190] sm:$0xff]
    %v2501 = vld [vmem:[%s2449 + $0x198] sm:$0xff]
    %v2502 = vld [vmem:[%s2449 + $0x1a0] sm:$0xff]
    %v2503 = vld [vmem:[%s2449 + $0x1a8] sm:$0xff]
    %v2504 = vld [vmem:[%s2449 + $0x1b0] sm:$0xff]
    %v2505 = vld [vmem:[%s2449 + $0x1b8] sm:$0xff]
    %v2506 = vld [vmem:[%s2449 + $0x1c0] sm:$0xff]
    %v2507 = vld [vmem:[%s2449 + $0x1c8] sm:$0xff]
    %v2508 = vld [vmem:[%s2449 + $0x1d0] sm:$0xff]
    %v2509 = vld [vmem:[%s2449 + $0x1d8] sm:$0xff]
    %v2510 = vld [vmem:[%s2449 + $0x1e0] sm:$0xff]
    %v2511 = vld [vmem:[%s2449 + $0x1e8] sm:$0xff]
    %v2512 = vld [vmem:[%s2449 + $0x1f0] sm:$0xff]
    %v2513 = vld [vmem:[%s2449 + $0x1f8] sm:$0xff]
    %s2514 = scalar_lea.vmem %s1, 2
    %v2515 = vld [vmem:[%s2514] sm:$0x3]
    %s2516 = scalar_lea.vmem %s2, 2
    %v2517 = vld [vmem:[%s2516] sm:$0x3]
    %2518 = vmatprep.subr.mxu0 %v2511
    %2519 = vmatpush1.msra.mxu0 %v2510
    %2520 = vmatprep.subr.mxu0 %v2507
    %2521 = vmatpush1.msra.mxu0 %v2506
    %2522 = vmatprep.subr.mxu0 %v2503
    %2523 = vmatpush1.msra.mxu0 %v2502
    %2524 = vmatprep.subr.mxu0 %v2499
    %2525 = vmatpush1.msra.mxu0 %v2498
    %2526 = vmatprep.subr.mxu0 %v2495
    %2527 = vmatpush1.msra.mxu0 %v2494
    %2528 = vmatprep.subr.mxu0 %v2491
    %2529 = vmatpush1.msra.mxu0 %v2490
    %2530 = vmatprep.subr.mxu0 %v2487
    %2531 = vmatpush1.msra.mxu0 %v2486
    %2532 = vmatprep.subr.mxu0 %v2483
    %2533 = vmatpush1.msra.mxu0 %v2482
    %2534 = vmatprep.subr.mxu0 %v2479
    %2535 = vmatpush1.msra.mxu0 %v2478
    %2536 = vmatprep.subr.mxu0 %v2475
    %2537 = vmatpush1.msra.mxu0 %v2474
    %2538 = vmatprep.subr.mxu0 %v2471
    %2539 = vmatpush1.msra.mxu0 %v2470
    %2540 = vmatprep.subr.mxu0 %v2467
    %2541 = vmatpush1.msra.mxu0 %v2466
    %2542 = vmatprep.subr.mxu0 %v2463
    %2543 = vmatpush1.msra.mxu0 %v2462
    %2544 = vmatprep.subr.mxu0 %v2459
    %2545 = vmatpush1.msra.mxu0 %v2458
    %2546 = vmatprep.subr.mxu0 %v2455
    %2547 = vmatpush1.msra.mxu0 %v2454
    %2548 = vmatprep.subr.mxu0 %v2451
    %2549 = vmatpush1.msra.mxu0 %v2450
    %2550 = vmatprep.subr.mxu0 0.0
    %2551 = vmatpush2.msra.mxu0 0.0
    %2552 = vmatprep.subr.mxu0 0.0
    %2553 = vmatpush2.msra.mxu0 0.0
    %2554 = vmatprep.subr.mxu0 0.0
    %2555 = vmatpush2.msra.mxu0 0.0
    %2556 = vmatprep.subr.mxu0 0.0
    %2557 = vmatpush2.msra.mxu0 0.0
    %2558 = vmatprep.subr.mxu0 0.0
    %2559 = vmatpush2.msra.mxu0 0.0
    %2560 = vmatprep.subr.mxu0 0.0
    %2561 = vmatpush2.msra.mxu0 0.0
    %2562 = vmatprep.subr.mxu0 0.0
    %2563 = vmatpush2.msra.mxu0 0.0
    %2564 = vmatprep.subr.mxu0 0.0
    %2565 = vmatpush2.msra.mxu0 0.0
    %2566 = vmatprep.subr.mxu0 0.0
    %2567 = vmatpush2.msra.mxu0 0.0
    %2568 = vmatprep.subr.mxu0 0.0
    %2569 = vmatpush2.msra.mxu0 0.0
    %2570 = vmatprep.subr.mxu0 0.0
    %2571 = vmatpush2.msra.mxu0 0.0
    %2572 = vmatprep.subr.mxu0 0.0
    %2573 = vmatpush2.msra.mxu0 0.0
    %2574 = vmatprep.subr.mxu0 0.0
    %2575 = vmatpush2.msra.mxu0 0.0
    %2576 = vmatprep.subr.mxu0 0.0
    %2577 = vmatpush2.msra.mxu0 0.0
    %2578 = vmatprep.subr.mxu0 0.0
    %2579 = vmatpush2.msra.mxu0 0.0
    %2580 = vmatprep.subr.mxu0 0.0
    %2581 = vmatpush2.msra.mxu0 0.0
    %2582 = vmatprep.mubr.f32.mxu0 0.0
    %2583 = vmatmul.mubr.f32.gmra.mxu0 %v2515
    %v2584 = vpop.f32.mrf.mxu0
    %v2585 = vadd.f32 0.0, %v2584
    %v2586 = vpop.f32.mrf.mxu0
    %v2587 = vadd.f32 0.0, %v2586
    %2588 = vdwg.mxu0
    %2589 = vmatprep.subr.mxu0 %v2513
    %2590 = vmatpush1.msra.mxu0 %v2512
    %2591 = vmatprep.subr.mxu0 %v2509
    %2592 = vmatpush1.msra.mxu0 %v2508
    %2593 = vmatprep.subr.mxu0 %v2505
    %2594 = vmatpush1.msra.mxu0 %v2504
    %2595 = vmatprep.subr.mxu0 %v2501
    %2596 = vmatpush1.msra.mxu0 %v2500
    %2597 = vmatprep.subr.mxu0 %v2497
    %2598 = vmatpush1.msra.mxu0 %v2496
    %2599 = vmatprep.subr.mxu0 %v2493
    %2600 = vmatpush1.msra.mxu0 %v2492
    %2601 = vmatprep.subr.mxu0 %v2489
    %2602 = vmatpush1.msra.mxu0 %v2488
    %2603 = vmatprep.subr.mxu0 %v2485
    %2604 = vmatpush1.msra.mxu0 %v2484
    %2605 = vmatprep.subr.mxu0 %v2481
    %2606 = vmatpush1.msra.mxu0 %v2480
    %2607 = vmatprep.subr.mxu0 %v2477
    %2608 = vmatpush1.msra.mxu0 %v2476
    %2609 = vmatprep.subr.mxu0 %v2473
    %2610 = vmatpush1.msra.mxu0 %v2472
    %2611 = vmatprep.subr.mxu0 %v2469
    %2612 = vmatpush1.msra.mxu0 %v2468
    %2613 = vmatprep.subr.mxu0 %v2465
    %2614 = vmatpush1.msra.mxu0 %v2464
    %2615 = vmatprep.subr.mxu0 %v2461
    %2616 = vmatpush1.msra.mxu0 %v2460
    %2617 = vmatprep.subr.mxu0 %v2457
    %2618 = vmatpush1.msra.mxu0 %v2456
    %2619 = vmatprep.subr.mxu0 %v2453
    %2620 = vmatpush1.msra.mxu0 %v2452
    %2621 = vmatprep.subr.mxu0 0.0
    %2622 = vmatpush2.msra.mxu0 0.0
    %2623 = vmatprep.subr.mxu0 0.0
    %2624 = vmatpush2.msra.mxu0 0.0
    %2625 = vmatprep.subr.mxu0 0.0
    %2626 = vmatpush2.msra.mxu0 0.0
    %2627 = vmatprep.subr.mxu0 0.0
    %2628 = vmatpush2.msra.mxu0 0.0
    %2629 = vmatprep.subr.mxu0 0.0
    %2630 = vmatpush2.msra.mxu0 0.0
    %2631 = vmatprep.subr.mxu0 0.0
    %2632 = vmatpush2.msra.mxu0 0.0
    %2633 = vmatprep.subr.mxu0 0.0
    %2634 = vmatpush2.msra.mxu0 0.0
    %2635 = vmatprep.subr.mxu0 0.0
    %2636 = vmatpush2.msra.mxu0 0.0
    %2637 = vmatprep.subr.mxu0 0.0
    %2638 = vmatpush2.msra.mxu0 0.0
    %2639 = vmatprep.subr.mxu0 0.0
    %2640 = vmatpush2.msra.mxu0 0.0
    %2641 = vmatprep.subr.mxu0 0.0
    %2642 = vmatpush2.msra.mxu0 0.0
    %2643 = vmatprep.subr.mxu0 0.0
    %2644 = vmatpush2.msra.mxu0 0.0
    %2645 = vmatprep.subr.mxu0 0.0
    %2646 = vmatpush2.msra.mxu0 0.0
    %2647 = vmatprep.subr.mxu0 0.0
    %2648 = vmatpush2.msra.mxu0 0.0
    %2649 = vmatprep.subr.mxu0 0.0
    %2650 = vmatpush2.msra.mxu0 0.0
    %2651 = vmatprep.subr.mxu0 0.0
    %2652 = vmatpush2.msra.mxu0 0.0
    %2653 = vmatprep.mubr.f32.mxu0 0.0
    %2654 = vmatmul.mubr.f32.gmra.mxu0 %v2515
    %v2655 = vpop.f32.mrf.mxu0
    %v2656 = vadd.f32 0.0, %v2655
    %v2657 = vpop.f32.mrf.mxu0
    %v2658 = vadd.f32 0.0, %v2657
    %2659 = vdwg.mxu0
    %v2664 = vrot.slane %v2585, 1
    %v2665 = vrot.slane %v2587, 1
    %v2666 = vrot.slane %v2656, 1
    %v2667 = vrot.slane %v2658, 1
    %v2676 = vadd.f32 %v2362, %v2585
    %v2677 = vadd.f32 %v2364, %v2587
    %v2678 = vadd.f32 %v2439, %v2656
    %v2679 = vadd.f32 %v2441, %v2658
    %v2680 = vadd.f32 %v2368, %v2664
    %v2681 = vadd.f32 %v2370, %v2665
    %v2682 = vadd.f32 %v2445, %v2666
    %v2683 = vadd.f32 %v2447, %v2667
    %v2684 = vxor.u32 %v2676, 2147483648
    %v2685 = vxor.u32 %v2680, 2147483648
    %v2686 = vmul.f32 %v2684, 1.442695
    %v2687 = vpow.pop %v2686
    %v2688 = vmul.f32 %v2685, 1.442695
    %v2689 = vpow.pop %v2688
    %v2690 = vadd.f32 %v2687, 1.0
    %v2691 = vadd.f32 %v2689, 1.0
    %v2692 = vrcp.pop %v2690
    %v2693 = vmul.f32 1.0, %v2692
    %v2694 = vrcp.pop %v2691
    %v2695 = vmul.f32 1.0, %v2694
    %v2696 = vxor.u32 %v2677, 2147483648
    %v2697 = vxor.u32 %v2681, 2147483648
    %v2698 = vmul.f32 %v2696, 1.442695
    %v2699 = vpow.pop %v2698
    %v2700 = vmul.f32 %v2697, 1.442695
    %v2701 = vpow.pop %v2700
    %v2702 = vadd.f32 %v2699, 1.0
    %v2703 = vadd.f32 %v2701, 1.0
    %v2704 = vrcp.pop %v2702
    %v2705 = vmul.f32 1.0, %v2704
    %v2706 = vrcp.pop %v2703
    %v2707 = vmul.f32 1.0, %v2706
    %v2708 = vtanh.pop %v2678
    %v2709 = vtanh.pop %v2682
    %v2710 = vxor.u32 %v2679, 2147483648
    %v2711 = vxor.u32 %v2683, 2147483648
    %v2712 = vmul.f32 %v2710, 1.442695
    %v2713 = vpow.pop %v2712
    %v2714 = vmul.f32 %v2711, 1.442695
    %v2715 = vpow.pop %v2714
    %v2716 = vadd.f32 %v2713, 1.0
    %v2717 = vadd.f32 %v2715, 1.0
    %v2718 = vrcp.pop %v2716
    %v2719 = vmul.f32 1.0, %v2718
    %v2720 = vrcp.pop %v2717
    %v2721 = vmul.f32 1.0, %v2720
    %v2723 = vrot.slane %v2517, 1
    %v2726 = vmul.f32 %v2705, %v2517
    %v2727 = vmul.f32 %v2707, %v2723
    %v2728 = vmul.f32 %v2693, %v2708
    %v2729 = vmul.f32 %v2695, %v2709
    %v2730 = vadd.f32 %v2726, %v2728
    %v2731 = vadd.f32 %v2727, %v2729
    %v2732 = vtanh.pop %v2730
    %v2733 = vtanh.pop %v2731
    %v2734 = vmul.f32 %v2719, %v2732
    %v2735 = vmul.f32 %v2721, %v2733
    %2736 = vst [vmem:[#allocation2] sm:$0x1] %v2734
    %2737 = vst [vmem:[#allocation2 + $0x8] sm:$0x1] %v2735
    %v2740 = vrot.slane %v2735, 7
    %v2741 = vsel %vm574, %v2740, %v2734
    %2743 = vmatprep.subr.mxu0 %v2511
    %2744 = vmatpush1.msra.mxu0 %v2510
    %2745 = vmatprep.subr.mxu0 %v2507
    %2746 = vmatpush1.msra.mxu0 %v2506
    %2747 = vmatprep.subr.mxu0 %v2503
    %2748 = vmatpush1.msra.mxu0 %v2502
    %2749 = vmatprep.subr.mxu0 %v2499
    %2750 = vmatpush1.msra.mxu0 %v2498
    %2751 = vmatprep.subr.mxu0 %v2495
    %2752 = vmatpush1.msra.mxu0 %v2494
    %2753 = vmatprep.subr.mxu0 %v2491
    %2754 = vmatpush1.msra.mxu0 %v2490
    %2755 = vmatprep.subr.mxu0 %v2487
    %2756 = vmatpush1.msra.mxu0 %v2486
    %2757 = vmatprep.subr.mxu0 %v2483
    %2758 = vmatpush1.msra.mxu0 %v2482
    %2759 = vmatprep.subr.mxu0 %v2479
    %2760 = vmatpush1.msra.mxu0 %v2478
    %2761 = vmatprep.subr.mxu0 %v2475
    %2762 = vmatpush1.msra.mxu0 %v2474
    %2763 = vmatprep.subr.mxu0 %v2471
    %2764 = vmatpush1.msra.mxu0 %v2470
    %2765 = vmatprep.subr.mxu0 %v2467
    %2766 = vmatpush1.msra.mxu0 %v2466
    %2767 = vmatprep.subr.mxu0 %v2463
    %2768 = vmatpush1.msra.mxu0 %v2462
    %2769 = vmatprep.subr.mxu0 %v2459
    %2770 = vmatpush1.msra.mxu0 %v2458
    %2771 = vmatprep.subr.mxu0 %v2455
    %2772 = vmatpush1.msra.mxu0 %v2454
    %2773 = vmatprep.subr.mxu0 %v2451
    %2774 = vmatpush1.msra.mxu0 %v2450
    %2775 = vmatprep.subr.mxu0 0.0
    %2776 = vmatpush2.msra.mxu0 0.0
    %2777 = vmatprep.subr.mxu0 0.0
    %2778 = vmatpush2.msra.mxu0 0.0
    %2779 = vmatprep.subr.mxu0 0.0
    %2780 = vmatpush2.msra.mxu0 0.0
    %2781 = vmatprep.subr.mxu0 0.0
    %2782 = vmatpush2.msra.mxu0 0.0
    %2783 = vmatprep.subr.mxu0 0.0
    %2784 = vmatpush2.msra.mxu0 0.0
    %2785 = vmatprep.subr.mxu0 0.0
    %2786 = vmatpush2.msra.mxu0 0.0
    %2787 = vmatprep.subr.mxu0 0.0
    %2788 = vmatpush2.msra.mxu0 0.0
    %2789 = vmatprep.subr.mxu0 0.0
    %2790 = vmatpush2.msra.mxu0 0.0
    %2791 = vmatprep.subr.mxu0 0.0
    %2792 = vmatpush2.msra.mxu0 0.0
    %2793 = vmatprep.subr.mxu0 0.0
    %2794 = vmatpush2.msra.mxu0 0.0
    %2795 = vmatprep.subr.mxu0 0.0
    %2796 = vmatpush2.msra.mxu0 0.0
    %2797 = vmatprep.subr.mxu0 0.0
    %2798 = vmatpush2.msra.mxu0 0.0
    %2799 = vmatprep.subr.mxu0 0.0
    %2800 = vmatpush2.msra.mxu0 0.0
    %2801 = vmatprep.subr.mxu0 0.0
    %2802 = vmatpush2.msra.mxu0 0.0
    %2803 = vmatprep.subr.mxu0 0.0
    %2804 = vmatpush2.msra.mxu0 0.0
    %2805 = vmatprep.subr.mxu0 0.0
    %2806 = vmatpush2.msra.mxu0 0.0
    %2807 = vmatprep.mubr.f32.mxu0 0.0
    %2808 = vmatmul.mubr.f32.gmra.mxu0 %v2741
    %v2809 = vpop.f32.mrf.mxu0
    %v2810 = vadd.f32 0.0, %v2809
    %v2811 = vpop.f32.mrf.mxu0
    %v2812 = vadd.f32 0.0, %v2811
    %2813 = vdwg.mxu0
    %2814 = vmatprep.subr.mxu0 %v2513
    %2815 = vmatpush1.msra.mxu0 %v2512
    %2816 = vmatprep.subr.mxu0 %v2509
    %2817 = vmatpush1.msra.mxu0 %v2508
    %2818 = vmatprep.subr.mxu0 %v2505
    %2819 = vmatpush1.msra.mxu0 %v2504
    %2820 = vmatprep.subr.mxu0 %v2501
    %2821 = vmatpush1.msra.mxu0 %v2500
    %2822 = vmatprep.subr.mxu0 %v2497
    %2823 = vmatpush1.msra.mxu0 %v2496
    %2824 = vmatprep.subr.mxu0 %v2493
    %2825 = vmatpush1.msra.mxu0 %v2492
    %2826 = vmatprep.subr.mxu0 %v2489
    %2827 = vmatpush1.msra.mxu0 %v2488
    %2828 = vmatprep.subr.mxu0 %v2485
    %2829 = vmatpush1.msra.mxu0 %v2484
    %2830 = vmatprep.subr.mxu0 %v2481
    %2831 = vmatpush1.msra.mxu0 %v2480
    %2832 = vmatprep.subr.mxu0 %v2477
    %2833 = vmatpush1.msra.mxu0 %v2476
    %2834 = vmatprep.subr.mxu0 %v2473
    %2835 = vmatpush1.msra.mxu0 %v2472
    %2836 = vmatprep.subr.mxu0 %v2469
    %2837 = vmatpush1.msra.mxu0 %v2468
    %2838 = vmatprep.subr.mxu0 %v2465
    %2839 = vmatpush1.msra.mxu0 %v2464
    %2840 = vmatprep.subr.mxu0 %v2461
    %2841 = vmatpush1.msra.mxu0 %v2460
    %2842 = vmatprep.subr.mxu0 %v2457
    %2843 = vmatpush1.msra.mxu0 %v2456
    %2844 = vmatprep.subr.mxu0 %v2453
    %2845 = vmatpush1.msra.mxu0 %v2452
    %2846 = vmatprep.subr.mxu0 0.0
    %2847 = vmatpush2.msra.mxu0 0.0
    %2848 = vmatprep.subr.mxu0 0.0
    %2849 = vmatpush2.msra.mxu0 0.0
    %2850 = vmatprep.subr.mxu0 0.0
    %2851 = vmatpush2.msra.mxu0 0.0
    %2852 = vmatprep.subr.mxu0 0.0
    %2853 = vmatpush2.msra.mxu0 0.0
    %2854 = vmatprep.subr.mxu0 0.0
    %2855 = vmatpush2.msra.mxu0 0.0
    %2856 = vmatprep.subr.mxu0 0.0
    %2857 = vmatpush2.msra.mxu0 0.0
    %2858 = vmatprep.subr.mxu0 0.0
    %2859 = vmatpush2.msra.mxu0 0.0
    %2860 = vmatprep.subr.mxu0 0.0
    %2861 = vmatpush2.msra.mxu0 0.0
    %2862 = vmatprep.subr.mxu0 0.0
    %2863 = vmatpush2.msra.mxu0 0.0
    %2864 = vmatprep.subr.mxu0 0.0
    %2865 = vmatpush2.msra.mxu0 0.0
    %2866 = vmatprep.subr.mxu0 0.0
    %2867 = vmatpush2.msra.mxu0 0.0
    %2868 = vmatprep.subr.mxu0 0.0
    %2869 = vmatpush2.msra.mxu0 0.0
    %2870 = vmatprep.subr.mxu0 0.0
    %2871 = vmatpush2.msra.mxu0 0.0
    %2872 = vmatprep.subr.mxu0 0.0
    %2873 = vmatpush2.msra.mxu0 0.0
    %2874 = vmatprep.subr.mxu0 0.0
    %2875 = vmatpush2.msra.mxu0 0.0
    %2876 = vmatprep.subr.mxu0 0.0
    %2877 = vmatpush2.msra.mxu0 0.0
    %2878 = vmatprep.mubr.f32.mxu0 0.0
    %2879 = vmatmul.mubr.f32.gmra.mxu0 %v2741
    %v2880 = vpop.f32.mrf.mxu0
    %v2881 = vadd.f32 0.0, %v2880
    %v2882 = vpop.f32.mrf.mxu0
    %v2883 = vadd.f32 0.0, %v2882
    %2884 = vdwg.mxu0
    %v2889 = vrot.slane %v2810, 7
    %v2890 = vrot.slane %v2812, 7
    %v2891 = vrot.slane %v2881, 7
    %v2892 = vrot.slane %v2883, 7
    %v2901 = vadd.f32 %v2362, %v2889
    %v2902 = vadd.f32 %v2364, %v2890
    %v2903 = vadd.f32 %v2439, %v2891
    %v2904 = vadd.f32 %v2441, %v2892
    %v2905 = vadd.f32 %v2368, %v2810
    %v2906 = vadd.f32 %v2370, %v2812
    %v2907 = vadd.f32 %v2445, %v2881
    %v2908 = vadd.f32 %v2447, %v2883
    %v2909 = vxor.u32 %v2901, 2147483648
    %v2910 = vxor.u32 %v2905, 2147483648
    %v2911 = vmul.f32 %v2909, 1.442695
    %v2912 = vpow.pop %v2911
    %v2913 = vmul.f32 %v2910, 1.442695
    %v2914 = vpow.pop %v2913
    %v2915 = vadd.f32 %v2912, 1.0
    %v2916 = vadd.f32 %v2914, 1.0
    %v2917 = vrcp.pop %v2915
    %v2918 = vmul.f32 1.0, %v2917
    %v2919 = vrcp.pop %v2916
    %v2920 = vmul.f32 1.0, %v2919
    %v2921 = vxor.u32 %v2902, 2147483648
    %v2922 = vxor.u32 %v2906, 2147483648
    %v2923 = vmul.f32 %v2921, 1.442695
    %v2924 = vpow.pop %v2923
    %v2925 = vmul.f32 %v2922, 1.442695
    %v2926 = vpow.pop %v2925
    %v2927 = vadd.f32 %v2924, 1.0
    %v2928 = vadd.f32 %v2926, 1.0
    %v2929 = vrcp.pop %v2927
    %v2930 = vmul.f32 1.0, %v2929
    %v2931 = vrcp.pop %v2928
    %v2932 = vmul.f32 1.0, %v2931
    %v2933 = vtanh.pop %v2903
    %v2934 = vtanh.pop %v2907
    %v2935 = vxor.u32 %v2904, 2147483648
    %v2936 = vxor.u32 %v2908, 2147483648
    %v2937 = vmul.f32 %v2935, 1.442695
    %v2938 = vpow.pop %v2937
    %v2939 = vmul.f32 %v2936, 1.442695
    %v2940 = vpow.pop %v2939
    %v2941 = vadd.f32 %v2938, 1.0
    %v2942 = vadd.f32 %v2940, 1.0
    %v2943 = vrcp.pop %v2941
    %v2944 = vmul.f32 1.0, %v2943
    %v2945 = vrcp.pop %v2942
    %v2946 = vmul.f32 1.0, %v2945
    %v2949 = vrot.slane %v2730, 7
    %v2950 = vrot.slane %v2731, 7
    %v2953 = vmul.f32 %v2930, %v2949
    %v2954 = vmul.f32 %v2932, %v2950
    %v2955 = vmul.f32 %v2918, %v2933
    %v2956 = vmul.f32 %v2920, %v2934
    %v2957 = vadd.f32 %v2953, %v2955
    %v2958 = vadd.f32 %v2954, %v2956
    %v2959 = vtanh.pop %v2957
    %v2960 = vtanh.pop %v2958
    %v2961 = vmul.f32 %v2944, %v2959
    %v2962 = vmul.f32 %v2946, %v2960
    %2963 = vst [vmem:[#allocation2] sm:$0x2] %v2961
    %2964 = vst [vmem:[#allocation2 + $0x8] sm:$0x2] %v2962
    %v2967 = vrot.slane %v2961, 1
    %v2968 = vsel %vm574, %v2962, %v2967
    %2970 = vmatprep.subr.mxu0 %v2511
    %2971 = vmatpush1.msra.mxu0 %v2510
    %2972 = vmatprep.subr.mxu0 %v2507
    %2973 = vmatpush1.msra.mxu0 %v2506
    %2974 = vmatprep.subr.mxu0 %v2503
    %2975 = vmatpush1.msra.mxu0 %v2502
    %2976 = vmatprep.subr.mxu0 %v2499
    %2977 = vmatpush1.msra.mxu0 %v2498
    %2978 = vmatprep.subr.mxu0 %v2495
    %2979 = vmatpush1.msra.mxu0 %v2494
    %2980 = vmatprep.subr.mxu0 %v2491
    %2981 = vmatpush1.msra.mxu0 %v2490
    %2982 = vmatprep.subr.mxu0 %v2487
    %2983 = vmatpush1.msra.mxu0 %v2486
    %2984 = vmatprep.subr.mxu0 %v2483
    %2985 = vmatpush1.msra.mxu0 %v2482
    %2986 = vmatprep.subr.mxu0 %v2479
    %2987 = vmatpush1.msra.mxu0 %v2478
    %2988 = vmatprep.subr.mxu0 %v2475
    %2989 = vmatpush1.msra.mxu0 %v2474
    %2990 = vmatprep.subr.mxu0 %v2471
    %2991 = vmatpush1.msra.mxu0 %v2470
    %2992 = vmatprep.subr.mxu0 %v2467
    %2993 = vmatpush1.msra.mxu0 %v2466
    %2994 = vmatprep.subr.mxu0 %v2463
    %2995 = vmatpush1.msra.mxu0 %v2462
    %2996 = vmatprep.subr.mxu0 %v2459
    %2997 = vmatpush1.msra.mxu0 %v2458
    %2998 = vmatprep.subr.mxu0 %v2455
    %2999 = vmatpush1.msra.mxu0 %v2454
    %3000 = vmatprep.subr.mxu0 %v2451
    %3001 = vmatpush1.msra.mxu0 %v2450
    %3002 = vmatprep.subr.mxu0 0.0
    %3003 = vmatpush2.msra.mxu0 0.0
    %3004 = vmatprep.subr.mxu0 0.0
    %3005 = vmatpush2.msra.mxu0 0.0
    %3006 = vmatprep.subr.mxu0 0.0
    %3007 = vmatpush2.msra.mxu0 0.0
    %3008 = vmatprep.subr.mxu0 0.0
    %3009 = vmatpush2.msra.mxu0 0.0
    %3010 = vmatprep.subr.mxu0 0.0
    %3011 = vmatpush2.msra.mxu0 0.0
    %3012 = vmatprep.subr.mxu0 0.0
    %3013 = vmatpush2.msra.mxu0 0.0
    %3014 = vmatprep.subr.mxu0 0.0
    %3015 = vmatpush2.msra.mxu0 0.0
    %3016 = vmatprep.subr.mxu0 0.0
    %3017 = vmatpush2.msra.mxu0 0.0
    %3018 = vmatprep.subr.mxu0 0.0
    %3019 = vmatpush2.msra.mxu0 0.0
    %3020 = vmatprep.subr.mxu0 0.0
    %3021 = vmatpush2.msra.mxu0 0.0
    %3022 = vmatprep.subr.mxu0 0.0
    %3023 = vmatpush2.msra.mxu0 0.0
    %3024 = vmatprep.subr.mxu0 0.0
    %3025 = vmatpush2.msra.mxu0 0.0
    %3026 = vmatprep.subr.mxu0 0.0
    %3027 = vmatpush2.msra.mxu0 0.0
    %3028 = vmatprep.subr.mxu0 0.0
    %3029 = vmatpush2.msra.mxu0 0.0
    %3030 = vmatprep.subr.mxu0 0.0
    %3031 = vmatpush2.msra.mxu0 0.0
    %3032 = vmatprep.subr.mxu0 0.0
    %3033 = vmatpush2.msra.mxu0 0.0
    %3034 = vmatprep.mubr.f32.mxu0 0.0
    %3035 = vmatmul.mubr.f32.gmra.mxu0 %v2968
    %v3036 = vpop.f32.mrf.mxu0
    %v3037 = vadd.f32 0.0, %v3036
    %v3038 = vpop.f32.mrf.mxu0
    %v3039 = vadd.f32 0.0, %v3038
    %3040 = vdwg.mxu0
    %3041 = vmatprep.subr.mxu0 %v2513
    %3042 = vmatpush1.msra.mxu0 %v2512
    %3043 = vmatprep.subr.mxu0 %v2509
    %3044 = vmatpush1.msra.mxu0 %v2508
    %3045 = vmatprep.subr.mxu0 %v2505
    %3046 = vmatpush1.msra.mxu0 %v2504
    %3047 = vmatprep.subr.mxu0 %v2501
    %3048 = vmatpush1.msra.mxu0 %v2500
    %3049 = vmatprep.subr.mxu0 %v2497
    %3050 = vmatpush1.msra.mxu0 %v2496
    %3051 = vmatprep.subr.mxu0 %v2493
    %3052 = vmatpush1.msra.mxu0 %v2492
    %3053 = vmatprep.subr.mxu0 %v2489
    %3054 = vmatpush1.msra.mxu0 %v2488
    %3055 = vmatprep.subr.mxu0 %v2485
    %3056 = vmatpush1.msra.mxu0 %v2484
    %3057 = vmatprep.subr.mxu0 %v2481
    %3058 = vmatpush1.msra.mxu0 %v2480
    %3059 = vmatprep.subr.mxu0 %v2477
    %3060 = vmatpush1.msra.mxu0 %v2476
    %3061 = vmatprep.subr.mxu0 %v2473
    %3062 = vmatpush1.msra.mxu0 %v2472
    %3063 = vmatprep.subr.mxu0 %v2469
    %3064 = vmatpush1.msra.mxu0 %v2468
    %3065 = vmatprep.subr.mxu0 %v2465
    %3066 = vmatpush1.msra.mxu0 %v2464
    %3067 = vmatprep.subr.mxu0 %v2461
    %3068 = vmatpush1.msra.mxu0 %v2460
    %3069 = vmatprep.subr.mxu0 %v2457
    %3070 = vmatpush1.msra.mxu0 %v2456
    %3071 = vmatprep.subr.mxu0 %v2453
    %3072 = vmatpush1.msra.mxu0 %v2452
    %3073 = vmatprep.subr.mxu0 0.0
    %3074 = vmatpush2.msra.mxu0 0.0
    %3075 = vmatprep.subr.mxu0 0.0
    %3076 = vmatpush2.msra.mxu0 0.0
    %3077 = vmatprep.subr.mxu0 0.0
    %3078 = vmatpush2.msra.mxu0 0.0
    %3079 = vmatprep.subr.mxu0 0.0
    %3080 = vmatpush2.msra.mxu0 0.0
    %3081 = vmatprep.subr.mxu0 0.0
    %3082 = vmatpush2.msra.mxu0 0.0
    %3083 = vmatprep.subr.mxu0 0.0
    %3084 = vmatpush2.msra.mxu0 0.0
    %3085 = vmatprep.subr.mxu0 0.0
    %3086 = vmatpush2.msra.mxu0 0.0
    %3087 = vmatprep.subr.mxu0 0.0
    %3088 = vmatpush2.msra.mxu0 0.0
    %3089 = vmatprep.subr.mxu0 0.0
    %3090 = vmatpush2.msra.mxu0 0.0
    %3091 = vmatprep.subr.mxu0 0.0
    %3092 = vmatpush2.msra.mxu0 0.0
    %3093 = vmatprep.subr.mxu0 0.0
    %3094 = vmatpush2.msra.mxu0 0.0
    %3095 = vmatprep.subr.mxu0 0.0
    %3096 = vmatpush2.msra.mxu0 0.0
    %3097 = vmatprep.subr.mxu0 0.0
    %3098 = vmatpush2.msra.mxu0 0.0
    %3099 = vmatprep.subr.mxu0 0.0
    %3100 = vmatpush2.msra.mxu0 0.0
    %3101 = vmatprep.subr.mxu0 0.0
    %3102 = vmatpush2.msra.mxu0 0.0
    %3103 = vmatprep.subr.mxu0 0.0
    %3104 = vmatpush2.msra.mxu0 0.0
    %3105 = vmatprep.mubr.f32.mxu0 0.0
    %3106 = vmatmul.mubr.f32.gmra.mxu0 %v2968
    %v3107 = vpop.f32.mrf.mxu0
    %v3108 = vadd.f32 0.0, %v3107
    %v3109 = vpop.f32.mrf.mxu0
    %v3110 = vadd.f32 0.0, %v3109
    %3111 = vdwg.mxu0
    %v3116 = vrot.slane %v3037, 6
    %v3117 = vrot.slane %v3039, 6
    %v3118 = vrot.slane %v3108, 6
    %v3119 = vrot.slane %v3110, 6
    %v3120 = vrot.slane %v3037, 7
    %v3121 = vrot.slane %v3039, 7
    %v3122 = vrot.slane %v3108, 7
    %v3123 = vrot.slane %v3110, 7
    %v3132 = vadd.f32 %v2362, %v3116
    %v3133 = vadd.f32 %v2364, %v3117
    %v3134 = vadd.f32 %v2439, %v3118
    %v3135 = vadd.f32 %v2441, %v3119
    %v3136 = vadd.f32 %v2368, %v3120
    %v3137 = vadd.f32 %v2370, %v3121
    %v3138 = vadd.f32 %v2445, %v3122
    %v3139 = vadd.f32 %v2447, %v3123
    %v3140 = vxor.u32 %v3132, 2147483648
    %v3141 = vxor.u32 %v3136, 2147483648
    %v3142 = vmul.f32 %v3140, 1.442695
    %v3143 = vpow.pop %v3142
    %v3144 = vmul.f32 %v3141, 1.442695
    %v3145 = vpow.pop %v3144
    %v3146 = vadd.f32 %v3143, 1.0
    %v3147 = vadd.f32 %v3145, 1.0
    %v3148 = vrcp.pop %v3146
    %v3149 = vmul.f32 1.0, %v3148
    %v3150 = vrcp.pop %v3147
    %v3151 = vmul.f32 1.0, %v3150
    %v3152 = vxor.u32 %v3133, 2147483648
    %v3153 = vxor.u32 %v3137, 2147483648
    %v3154 = vmul.f32 %v3152, 1.442695
    %v3155 = vpow.pop %v3154
    %v3156 = vmul.f32 %v3153, 1.442695
    %v3157 = vpow.pop %v3156
    %v3158 = vadd.f32 %v3155, 1.0
    %v3159 = vadd.f32 %v3157, 1.0
    %v3160 = vrcp.pop %v3158
    %v3161 = vmul.f32 1.0, %v3160
    %v3162 = vrcp.pop %v3159
    %v3163 = vmul.f32 1.0, %v3162
    %v3164 = vtanh.pop %v3134
    %v3165 = vtanh.pop %v3138
    %v3166 = vxor.u32 %v3135, 2147483648
    %v3167 = vxor.u32 %v3139, 2147483648
    %v3168 = vmul.f32 %v3166, 1.442695
    %v3169 = vpow.pop %v3168
    %v3170 = vmul.f32 %v3167, 1.442695
    %v3171 = vpow.pop %v3170
    %v3172 = vadd.f32 %v3169, 1.0
    %v3173 = vadd.f32 %v3171, 1.0
    %v3174 = vrcp.pop %v3172
    %v3175 = vmul.f32 1.0, %v3174
    %v3176 = vrcp.pop %v3173
    %v3177 = vmul.f32 1.0, %v3176
    %v3180 = vrot.slane %v2957, 7
    %v3181 = vrot.slane %v2958, 7
    %v3184 = vmul.f32 %v3161, %v3180
    %v3185 = vmul.f32 %v3163, %v3181
    %v3186 = vmul.f32 %v3149, %v3164
    %v3187 = vmul.f32 %v3151, %v3165
    %v3188 = vadd.f32 %v3184, %v3186
    %v3189 = vadd.f32 %v3185, %v3187
    %v3190 = vtanh.pop %v3188
    %v3191 = vtanh.pop %v3189
    %v3192 = vmul.f32 %v3175, %v3190
    %v3193 = vmul.f32 %v3177, %v3191
    %3194 = vst [vmem:[#allocation2] sm:$0x4] %v3192
    %3195 = vst [vmem:[#allocation2 + $0x8] sm:$0x4] %v3193
    %v3198 = vrot.slane %v3192, 2
    %v3199 = vrot.slane %v3193, 1
    %v3200 = vsel %vm574, %v3199, %v3198
    %3202 = vmatprep.subr.mxu0 %v2511
    %3203 = vmatpush1.msra.mxu0 %v2510
    %3204 = vmatprep.subr.mxu0 %v2507
    %3205 = vmatpush1.msra.mxu0 %v2506
    %3206 = vmatprep.subr.mxu0 %v2503
    %3207 = vmatpush1.msra.mxu0 %v2502
    %3208 = vmatprep.subr.mxu0 %v2499
    %3209 = vmatpush1.msra.mxu0 %v2498
    %3210 = vmatprep.subr.mxu0 %v2495
    %3211 = vmatpush1.msra.mxu0 %v2494
    %3212 = vmatprep.subr.mxu0 %v2491
    %3213 = vmatpush1.msra.mxu0 %v2490
    %3214 = vmatprep.subr.mxu0 %v2487
    %3215 = vmatpush1.msra.mxu0 %v2486
    %3216 = vmatprep.subr.mxu0 %v2483
    %3217 = vmatpush1.msra.mxu0 %v2482
    %3218 = vmatprep.subr.mxu0 %v2479
    %3219 = vmatpush1.msra.mxu0 %v2478
    %3220 = vmatprep.subr.mxu0 %v2475
    %3221 = vmatpush1.msra.mxu0 %v2474
    %3222 = vmatprep.subr.mxu0 %v2471
    %3223 = vmatpush1.msra.mxu0 %v2470
    %3224 = vmatprep.subr.mxu0 %v2467
    %3225 = vmatpush1.msra.mxu0 %v2466
    %3226 = vmatprep.subr.mxu0 %v2463
    %3227 = vmatpush1.msra.mxu0 %v2462
    %3228 = vmatprep.subr.mxu0 %v2459
    %3229 = vmatpush1.msra.mxu0 %v2458
    %3230 = vmatprep.subr.mxu0 %v2455
    %3231 = vmatpush1.msra.mxu0 %v2454
    %3232 = vmatprep.subr.mxu0 %v2451
    %3233 = vmatpush1.msra.mxu0 %v2450
    %3234 = vmatprep.subr.mxu0 0.0
    %3235 = vmatpush2.msra.mxu0 0.0
    %3236 = vmatprep.subr.mxu0 0.0
    %3237 = vmatpush2.msra.mxu0 0.0
    %3238 = vmatprep.subr.mxu0 0.0
    %3239 = vmatpush2.msra.mxu0 0.0
    %3240 = vmatprep.subr.mxu0 0.0
    %3241 = vmatpush2.msra.mxu0 0.0
    %3242 = vmatprep.subr.mxu0 0.0
    %3243 = vmatpush2.msra.mxu0 0.0
    %3244 = vmatprep.subr.mxu0 0.0
    %3245 = vmatpush2.msra.mxu0 0.0
    %3246 = vmatprep.subr.mxu0 0.0
    %3247 = vmatpush2.msra.mxu0 0.0
    %3248 = vmatprep.subr.mxu0 0.0
    %3249 = vmatpush2.msra.mxu0 0.0
    %3250 = vmatprep.subr.mxu0 0.0
    %3251 = vmatpush2.msra.mxu0 0.0
    %3252 = vmatprep.subr.mxu0 0.0
    %3253 = vmatpush2.msra.mxu0 0.0
    %3254 = vmatprep.subr.mxu0 0.0
    %3255 = vmatpush2.msra.mxu0 0.0
    %3256 = vmatprep.subr.mxu0 0.0
    %3257 = vmatpush2.msra.mxu0 0.0
    %3258 = vmatprep.subr.mxu0 0.0
    %3259 = vmatpush2.msra.mxu0 0.0
    %3260 = vmatprep.subr.mxu0 0.0
    %3261 = vmatpush2.msra.mxu0 0.0
    %3262 = vmatprep.subr.mxu0 0.0
    %3263 = vmatpush2.msra.mxu0 0.0
    %3264 = vmatprep.subr.mxu0 0.0
    %3265 = vmatpush2.msra.mxu0 0.0
    %3266 = vmatprep.mubr.f32.mxu0 0.0
    %3267 = vmatmul.mubr.f32.gmra.mxu0 %v3200
    %v3268 = vpop.f32.mrf.mxu0
    %v3269 = vadd.f32 0.0, %v3268
    %v3270 = vpop.f32.mrf.mxu0
    %v3271 = vadd.f32 0.0, %v3270
    %3272 = vdwg.mxu0
    %3273 = vmatprep.subr.mxu0 %v2513
    %3274 = vmatpush1.msra.mxu0 %v2512
    %3275 = vmatprep.subr.mxu0 %v2509
    %3276 = vmatpush1.msra.mxu0 %v2508
    %3277 = vmatprep.subr.mxu0 %v2505
    %3278 = vmatpush1.msra.mxu0 %v2504
    %3279 = vmatprep.subr.mxu0 %v2501
    %3280 = vmatpush1.msra.mxu0 %v2500
    %3281 = vmatprep.subr.mxu0 %v2497
    %3282 = vmatpush1.msra.mxu0 %v2496
    %3283 = vmatprep.subr.mxu0 %v2493
    %3284 = vmatpush1.msra.mxu0 %v2492
    %3285 = vmatprep.subr.mxu0 %v2489
    %3286 = vmatpush1.msra.mxu0 %v2488
    %3287 = vmatprep.subr.mxu0 %v2485
    %3288 = vmatpush1.msra.mxu0 %v2484
    %3289 = vmatprep.subr.mxu0 %v2481
    %3290 = vmatpush1.msra.mxu0 %v2480
    %3291 = vmatprep.subr.mxu0 %v2477
    %3292 = vmatpush1.msra.mxu0 %v2476
    %3293 = vmatprep.subr.mxu0 %v2473
    %3294 = vmatpush1.msra.mxu0 %v2472
    %3295 = vmatprep.subr.mxu0 %v2469
    %3296 = vmatpush1.msra.mxu0 %v2468
    %3297 = vmatprep.subr.mxu0 %v2465
    %3298 = vmatpush1.msra.mxu0 %v2464
    %3299 = vmatprep.subr.mxu0 %v2461
    %3300 = vmatpush1.msra.mxu0 %v2460
    %3301 = vmatprep.subr.mxu0 %v2457
    %3302 = vmatpush1.msra.mxu0 %v2456
    %3303 = vmatprep.subr.mxu0 %v2453
    %3304 = vmatpush1.msra.mxu0 %v2452
    %3305 = vmatprep.subr.mxu0 0.0
    %3306 = vmatpush2.msra.mxu0 0.0
    %3307 = vmatprep.subr.mxu0 0.0
    %3308 = vmatpush2.msra.mxu0 0.0
    %3309 = vmatprep.subr.mxu0 0.0
    %3310 = vmatpush2.msra.mxu0 0.0
    %3311 = vmatprep.subr.mxu0 0.0
    %3312 = vmatpush2.msra.mxu0 0.0
    %3313 = vmatprep.subr.mxu0 0.0
    %3314 = vmatpush2.msra.mxu0 0.0
    %3315 = vmatprep.subr.mxu0 0.0
    %3316 = vmatpush2.msra.mxu0 0.0
    %3317 = vmatprep.subr.mxu0 0.0
    %3318 = vmatpush2.msra.mxu0 0.0
    %3319 = vmatprep.subr.mxu0 0.0
    %3320 = vmatpush2.msra.mxu0 0.0
    %3321 = vmatprep.subr.mxu0 0.0
    %3322 = vmatpush2.msra.mxu0 0.0
    %3323 = vmatprep.subr.mxu0 0.0
    %3324 = vmatpush2.msra.mxu0 0.0
    %3325 = vmatprep.subr.mxu0 0.0
    %3326 = vmatpush2.msra.mxu0 0.0
    %3327 = vmatprep.subr.mxu0 0.0
    %3328 = vmatpush2.msra.mxu0 0.0
    %3329 = vmatprep.subr.mxu0 0.0
    %3330 = vmatpush2.msra.mxu0 0.0
    %3331 = vmatprep.subr.mxu0 0.0
    %3332 = vmatpush2.msra.mxu0 0.0
    %3333 = vmatprep.subr.mxu0 0.0
    %3334 = vmatpush2.msra.mxu0 0.0
    %3335 = vmatprep.subr.mxu0 0.0
    %3336 = vmatpush2.msra.mxu0 0.0
    %3337 = vmatprep.mubr.f32.mxu0 0.0
    %3338 = vmatmul.mubr.f32.gmra.mxu0 %v3200
    %v3339 = vpop.f32.mrf.mxu0
    %v3340 = vadd.f32 0.0, %v3339
    %v3341 = vpop.f32.mrf.mxu0
    %v3342 = vadd.f32 0.0, %v3341
    %3343 = vdwg.mxu0
    %v3348 = vrot.slane %v3269, 5
    %v3349 = vrot.slane %v3271, 5
    %v3350 = vrot.slane %v3340, 5
    %v3351 = vrot.slane %v3342, 5
    %v3352 = vrot.slane %v3269, 6
    %v3353 = vrot.slane %v3271, 6
    %v3354 = vrot.slane %v3340, 6
    %v3355 = vrot.slane %v3342, 6
    %v3364 = vadd.f32 %v2362, %v3348
    %v3365 = vadd.f32 %v2364, %v3349
    %v3366 = vadd.f32 %v2439, %v3350
    %v3367 = vadd.f32 %v2441, %v3351
    %v3368 = vadd.f32 %v2368, %v3352
    %v3369 = vadd.f32 %v2370, %v3353
    %v3370 = vadd.f32 %v2445, %v3354
    %v3371 = vadd.f32 %v2447, %v3355
    %v3372 = vxor.u32 %v3364, 2147483648
    %v3373 = vxor.u32 %v3368, 2147483648
    %v3374 = vmul.f32 %v3372, 1.442695
    %v3375 = vpow.pop %v3374
    %v3376 = vmul.f32 %v3373, 1.442695
    %v3377 = vpow.pop %v3376
    %v3378 = vadd.f32 %v3375, 1.0
    %v3379 = vadd.f32 %v3377, 1.0
    %v3380 = vrcp.pop %v3378
    %v3381 = vmul.f32 1.0, %v3380
    %v3382 = vrcp.pop %v3379
    %v3383 = vmul.f32 1.0, %v3382
    %v3384 = vxor.u32 %v3365, 2147483648
    %v3385 = vxor.u32 %v3369, 2147483648
    %v3386 = vmul.f32 %v3384, 1.442695
    %v3387 = vpow.pop %v3386
    %v3388 = vmul.f32 %v3385, 1.442695
    %v3389 = vpow.pop %v3388
    %v3390 = vadd.f32 %v3387, 1.0
    %v3391 = vadd.f32 %v3389, 1.0
    %v3392 = vrcp.pop %v3390
    %v3393 = vmul.f32 1.0, %v3392
    %v3394 = vrcp.pop %v3391
    %v3395 = vmul.f32 1.0, %v3394
    %v3396 = vtanh.pop %v3366
    %v3397 = vtanh.pop %v3370
    %v3398 = vxor.u32 %v3367, 2147483648
    %v3399 = vxor.u32 %v3371, 2147483648
    %v3400 = vmul.f32 %v3398, 1.442695
    %v3401 = vpow.pop %v3400
    %v3402 = vmul.f32 %v3399, 1.442695
    %v3403 = vpow.pop %v3402
    %v3404 = vadd.f32 %v3401, 1.0
    %v3405 = vadd.f32 %v3403, 1.0
    %v3406 = vrcp.pop %v3404
    %v3407 = vmul.f32 1.0, %v3406
    %v3408 = vrcp.pop %v3405
    %v3409 = vmul.f32 1.0, %v3408
    %v3412 = vrot.slane %v3188, 7
    %v3413 = vrot.slane %v3189, 7
    %v3416 = vmul.f32 %v3393, %v3412
    %v3417 = vmul.f32 %v3395, %v3413
    %v3418 = vmul.f32 %v3381, %v3396
    %v3419 = vmul.f32 %v3383, %v3397
    %v3420 = vadd.f32 %v3416, %v3418
    %v3421 = vadd.f32 %v3417, %v3419
    %v3422 = vtanh.pop %v3420
    %v3423 = vtanh.pop %v3421
    %v3424 = vmul.f32 %v3407, %v3422
    %v3425 = vmul.f32 %v3409, %v3423
    %3426 = vst [vmem:[#allocation2] sm:$0x8] %v3424
    %3427 = vst [vmem:[#allocation2 + $0x8] sm:$0x8] %v3425
    %v3430 = vrot.slane %v3424, 3
    %v3431 = vrot.slane %v3425, 2
    %v3432 = vsel %vm574, %v3431, %v3430
    %3434 = vmatprep.subr.mxu0 %v2511
    %3435 = vmatpush1.msra.mxu0 %v2510
    %3436 = vmatprep.subr.mxu0 %v2507
    %3437 = vmatpush1.msra.mxu0 %v2506
    %3438 = vmatprep.subr.mxu0 %v2503
    %3439 = vmatpush1.msra.mxu0 %v2502
    %3440 = vmatprep.subr.mxu0 %v2499
    %3441 = vmatpush1.msra.mxu0 %v2498
    %3442 = vmatprep.subr.mxu0 %v2495
    %3443 = vmatpush1.msra.mxu0 %v2494
    %3444 = vmatprep.subr.mxu0 %v2491
    %3445 = vmatpush1.msra.mxu0 %v2490
    %3446 = vmatprep.subr.mxu0 %v2487
    %3447 = vmatpush1.msra.mxu0 %v2486
    %3448 = vmatprep.subr.mxu0 %v2483
    %3449 = vmatpush1.msra.mxu0 %v2482
    %3450 = vmatprep.subr.mxu0 %v2479
    %3451 = vmatpush1.msra.mxu0 %v2478
    %3452 = vmatprep.subr.mxu0 %v2475
    %3453 = vmatpush1.msra.mxu0 %v2474
    %3454 = vmatprep.subr.mxu0 %v2471
    %3455 = vmatpush1.msra.mxu0 %v2470
    %3456 = vmatprep.subr.mxu0 %v2467
    %3457 = vmatpush1.msra.mxu0 %v2466
    %3458 = vmatprep.subr.mxu0 %v2463
    %3459 = vmatpush1.msra.mxu0 %v2462
    %3460 = vmatprep.subr.mxu0 %v2459
    %3461 = vmatpush1.msra.mxu0 %v2458
    %3462 = vmatprep.subr.mxu0 %v2455
    %3463 = vmatpush1.msra.mxu0 %v2454
    %3464 = vmatprep.subr.mxu0 %v2451
    %3465 = vmatpush1.msra.mxu0 %v2450
    %3466 = vmatprep.subr.mxu0 0.0
    %3467 = vmatpush2.msra.mxu0 0.0
    %3468 = vmatprep.subr.mxu0 0.0
    %3469 = vmatpush2.msra.mxu0 0.0
    %3470 = vmatprep.subr.mxu0 0.0
    %3471 = vmatpush2.msra.mxu0 0.0
    %3472 = vmatprep.subr.mxu0 0.0
    %3473 = vmatpush2.msra.mxu0 0.0
    %3474 = vmatprep.subr.mxu0 0.0
    %3475 = vmatpush2.msra.mxu0 0.0
    %3476 = vmatprep.subr.mxu0 0.0
    %3477 = vmatpush2.msra.mxu0 0.0
    %3478 = vmatprep.subr.mxu0 0.0
    %3479 = vmatpush2.msra.mxu0 0.0
    %3480 = vmatprep.subr.mxu0 0.0
    %3481 = vmatpush2.msra.mxu0 0.0
    %3482 = vmatprep.subr.mxu0 0.0
    %3483 = vmatpush2.msra.mxu0 0.0
    %3484 = vmatprep.subr.mxu0 0.0
    %3485 = vmatpush2.msra.mxu0 0.0
    %3486 = vmatprep.subr.mxu0 0.0
    %3487 = vmatpush2.msra.mxu0 0.0
    %3488 = vmatprep.subr.mxu0 0.0
    %3489 = vmatpush2.msra.mxu0 0.0
    %3490 = vmatprep.subr.mxu0 0.0
    %3491 = vmatpush2.msra.mxu0 0.0
    %3492 = vmatprep.subr.mxu0 0.0
    %3493 = vmatpush2.msra.mxu0 0.0
    %3494 = vmatprep.subr.mxu0 0.0
    %3495 = vmatpush2.msra.mxu0 0.0
    %3496 = vmatprep.subr.mxu0 0.0
    %3497 = vmatpush2.msra.mxu0 0.0
    %3498 = vmatprep.mubr.f32.mxu0 0.0
    %3499 = vmatmul.mubr.f32.gmra.mxu0 %v3432
    %v3500 = vpop.f32.mrf.mxu0
    %v3501 = vadd.f32 0.0, %v3500
    %v3502 = vpop.f32.mrf.mxu0
    %v3503 = vadd.f32 0.0, %v3502
    %3504 = vdwg.mxu0
    %3505 = vmatprep.subr.mxu0 %v2513
    %3506 = vmatpush1.msra.mxu0 %v2512
    %3507 = vmatprep.subr.mxu0 %v2509
    %3508 = vmatpush1.msra.mxu0 %v2508
    %3509 = vmatprep.subr.mxu0 %v2505
    %3510 = vmatpush1.msra.mxu0 %v2504
    %3511 = vmatprep.subr.mxu0 %v2501
    %3512 = vmatpush1.msra.mxu0 %v2500
    %3513 = vmatprep.subr.mxu0 %v2497
    %3514 = vmatpush1.msra.mxu0 %v2496
    %3515 = vmatprep.subr.mxu0 %v2493
    %3516 = vmatpush1.msra.mxu0 %v2492
    %3517 = vmatprep.subr.mxu0 %v2489
    %3518 = vmatpush1.msra.mxu0 %v2488
    %3519 = vmatprep.subr.mxu0 %v2485
    %3520 = vmatpush1.msra.mxu0 %v2484
    %3521 = vmatprep.subr.mxu0 %v2481
    %3522 = vmatpush1.msra.mxu0 %v2480
    %3523 = vmatprep.subr.mxu0 %v2477
    %3524 = vmatpush1.msra.mxu0 %v2476
    %3525 = vmatprep.subr.mxu0 %v2473
    %3526 = vmatpush1.msra.mxu0 %v2472
    %3527 = vmatprep.subr.mxu0 %v2469
    %3528 = vmatpush1.msra.mxu0 %v2468
    %3529 = vmatprep.subr.mxu0 %v2465
    %3530 = vmatpush1.msra.mxu0 %v2464
    %3531 = vmatprep.subr.mxu0 %v2461
    %3532 = vmatpush1.msra.mxu0 %v2460
    %3533 = vmatprep.subr.mxu0 %v2457
    %3534 = vmatpush1.msra.mxu0 %v2456
    %3535 = vmatprep.subr.mxu0 %v2453
    %3536 = vmatpush1.msra.mxu0 %v2452
    %3537 = vmatprep.subr.mxu0 0.0
    %3538 = vmatpush2.msra.mxu0 0.0
    %3539 = vmatprep.subr.mxu0 0.0
    %3540 = vmatpush2.msra.mxu0 0.0
    %3541 = vmatprep.subr.mxu0 0.0
    %3542 = vmatpush2.msra.mxu0 0.0
    %3543 = vmatprep.subr.mxu0 0.0
    %3544 = vmatpush2.msra.mxu0 0.0
    %3545 = vmatprep.subr.mxu0 0.0
    %3546 = vmatpush2.msra.mxu0 0.0
    %3547 = vmatprep.subr.mxu0 0.0
    %3548 = vmatpush2.msra.mxu0 0.0
    %3549 = vmatprep.subr.mxu0 0.0
    %3550 = vmatpush2.msra.mxu0 0.0
    %3551 = vmatprep.subr.mxu0 0.0
    %3552 = vmatpush2.msra.mxu0 0.0
    %3553 = vmatprep.subr.mxu0 0.0
    %3554 = vmatpush2.msra.mxu0 0.0
    %3555 = vmatprep.subr.mxu0 0.0
    %3556 = vmatpush2.msra.mxu0 0.0
    %3557 = vmatprep.subr.mxu0 0.0
    %3558 = vmatpush2.msra.mxu0 0.0
    %3559 = vmatprep.subr.mxu0 0.0
    %3560 = vmatpush2.msra.mxu0 0.0
    %3561 = vmatprep.subr.mxu0 0.0
    %3562 = vmatpush2.msra.mxu0 0.0
    %3563 = vmatprep.subr.mxu0 0.0
    %3564 = vmatpush2.msra.mxu0 0.0
    %3565 = vmatprep.subr.mxu0 0.0
    %3566 = vmatpush2.msra.mxu0 0.0
    %3567 = vmatprep.subr.mxu0 0.0
    %3568 = vmatpush2.msra.mxu0 0.0
    %3569 = vmatprep.mubr.f32.mxu0 0.0
    %3570 = vmatmul.mubr.f32.gmra.mxu0 %v3432
    %v3571 = vpop.f32.mrf.mxu0
    %v3572 = vadd.f32 0.0, %v3571
    %v3573 = vpop.f32.mrf.mxu0
    %v3574 = vadd.f32 0.0, %v3573
    %3575 = vdwg.mxu0
    %v3580 = vrot.slane %v3501, 4
    %v3581 = vrot.slane %v3503, 4
    %v3582 = vrot.slane %v3572, 4
    %v3583 = vrot.slane %v3574, 4
    %v3584 = vrot.slane %v3501, 5
    %v3585 = vrot.slane %v3503, 5
    %v3586 = vrot.slane %v3572, 5
    %v3587 = vrot.slane %v3574, 5
    %v3596 = vadd.f32 %v2362, %v3580
    %v3597 = vadd.f32 %v2364, %v3581
    %v3598 = vadd.f32 %v2439, %v3582
    %v3599 = vadd.f32 %v2441, %v3583
    %v3600 = vadd.f32 %v2368, %v3584
    %v3601 = vadd.f32 %v2370, %v3585
    %v3602 = vadd.f32 %v2445, %v3586
    %v3603 = vadd.f32 %v2447, %v3587
    %v3604 = vxor.u32 %v3596, 2147483648
    %v3605 = vxor.u32 %v3600, 2147483648
    %v3606 = vmul.f32 %v3604, 1.442695
    %v3607 = vpow.pop %v3606
    %v3608 = vmul.f32 %v3605, 1.442695
    %v3609 = vpow.pop %v3608
    %v3610 = vadd.f32 %v3607, 1.0
    %v3611 = vadd.f32 %v3609, 1.0
    %v3612 = vrcp.pop %v3610
    %v3613 = vmul.f32 1.0, %v3612
    %v3614 = vrcp.pop %v3611
    %v3615 = vmul.f32 1.0, %v3614
    %v3616 = vxor.u32 %v3597, 2147483648
    %v3617 = vxor.u32 %v3601, 2147483648
    %v3618 = vmul.f32 %v3616, 1.442695
    %v3619 = vpow.pop %v3618
    %v3620 = vmul.f32 %v3617, 1.442695
    %v3621 = vpow.pop %v3620
    %v3622 = vadd.f32 %v3619, 1.0
    %v3623 = vadd.f32 %v3621, 1.0
    %v3624 = vrcp.pop %v3622
    %v3625 = vmul.f32 1.0, %v3624
    %v3626 = vrcp.pop %v3623
    %v3627 = vmul.f32 1.0, %v3626
    %v3628 = vtanh.pop %v3598
    %v3629 = vtanh.pop %v3602
    %v3630 = vxor.u32 %v3599, 2147483648
    %v3631 = vxor.u32 %v3603, 2147483648
    %v3632 = vmul.f32 %v3630, 1.442695
    %v3633 = vpow.pop %v3632
    %v3634 = vmul.f32 %v3631, 1.442695
    %v3635 = vpow.pop %v3634
    %v3636 = vadd.f32 %v3633, 1.0
    %v3637 = vadd.f32 %v3635, 1.0
    %v3638 = vrcp.pop %v3636
    %v3639 = vmul.f32 1.0, %v3638
    %v3640 = vrcp.pop %v3637
    %v3641 = vmul.f32 1.0, %v3640
    %v3644 = vrot.slane %v3420, 7
    %v3645 = vrot.slane %v3421, 7
    %v3648 = vmul.f32 %v3625, %v3644
    %v3649 = vmul.f32 %v3627, %v3645
    %v3650 = vmul.f32 %v3613, %v3628
    %v3651 = vmul.f32 %v3615, %v3629
    %v3652 = vadd.f32 %v3648, %v3650
    %v3653 = vadd.f32 %v3649, %v3651
    %v3654 = vtanh.pop %v3652
    %v3655 = vtanh.pop %v3653
    %v3656 = vmul.f32 %v3639, %v3654
    %v3657 = vmul.f32 %v3641, %v3655
    %3658 = vst [vmem:[#allocation2] sm:$0x10] %v3656
    %3659 = vst [vmem:[#allocation2 + $0x8] sm:$0x10] %v3657
    %v3662 = vrot.slane %v3656, 4
    %v3663 = vrot.slane %v3657, 3
    %v3664 = vsel %vm574, %v3663, %v3662
    %3666 = vmatprep.subr.mxu0 %v2511
    %3667 = vmatpush1.msra.mxu0 %v2510
    %3668 = vmatprep.subr.mxu0 %v2507
    %3669 = vmatpush1.msra.mxu0 %v2506
    %3670 = vmatprep.subr.mxu0 %v2503
    %3671 = vmatpush1.msra.mxu0 %v2502
    %3672 = vmatprep.subr.mxu0 %v2499
    %3673 = vmatpush1.msra.mxu0 %v2498
    %3674 = vmatprep.subr.mxu0 %v2495
    %3675 = vmatpush1.msra.mxu0 %v2494
    %3676 = vmatprep.subr.mxu0 %v2491
    %3677 = vmatpush1.msra.mxu0 %v2490
    %3678 = vmatprep.subr.mxu0 %v2487
    %3679 = vmatpush1.msra.mxu0 %v2486
    %3680 = vmatprep.subr.mxu0 %v2483
    %3681 = vmatpush1.msra.mxu0 %v2482
    %3682 = vmatprep.subr.mxu0 %v2479
    %3683 = vmatpush1.msra.mxu0 %v2478
    %3684 = vmatprep.subr.mxu0 %v2475
    %3685 = vmatpush1.msra.mxu0 %v2474
    %3686 = vmatprep.subr.mxu0 %v2471
    %3687 = vmatpush1.msra.mxu0 %v2470
    %3688 = vmatprep.subr.mxu0 %v2467
    %3689 = vmatpush1.msra.mxu0 %v2466
    %3690 = vmatprep.subr.mxu0 %v2463
    %3691 = vmatpush1.msra.mxu0 %v2462
    %3692 = vmatprep.subr.mxu0 %v2459
    %3693 = vmatpush1.msra.mxu0 %v2458
    %3694 = vmatprep.subr.mxu0 %v2455
    %3695 = vmatpush1.msra.mxu0 %v2454
    %3696 = vmatprep.subr.mxu0 %v2451
    %3697 = vmatpush1.msra.mxu0 %v2450
    %3698 = vmatprep.subr.mxu0 0.0
    %3699 = vmatpush2.msra.mxu0 0.0
    %3700 = vmatprep.subr.mxu0 0.0
    %3701 = vmatpush2.msra.mxu0 0.0
    %3702 = vmatprep.subr.mxu0 0.0
    %3703 = vmatpush2.msra.mxu0 0.0
    %3704 = vmatprep.subr.mxu0 0.0
    %3705 = vmatpush2.msra.mxu0 0.0
    %3706 = vmatprep.subr.mxu0 0.0
    %3707 = vmatpush2.msra.mxu0 0.0
    %3708 = vmatprep.subr.mxu0 0.0
    %3709 = vmatpush2.msra.mxu0 0.0
    %3710 = vmatprep.subr.mxu0 0.0
    %3711 = vmatpush2.msra.mxu0 0.0
    %3712 = vmatprep.subr.mxu0 0.0
    %3713 = vmatpush2.msra.mxu0 0.0
    %3714 = vmatprep.subr.mxu0 0.0
    %3715 = vmatpush2.msra.mxu0 0.0
    %3716 = vmatprep.subr.mxu0 0.0
    %3717 = vmatpush2.msra.mxu0 0.0
    %3718 = vmatprep.subr.mxu0 0.0
    %3719 = vmatpush2.msra.mxu0 0.0
    %3720 = vmatprep.subr.mxu0 0.0
    %3721 = vmatpush2.msra.mxu0 0.0
    %3722 = vmatprep.subr.mxu0 0.0
    %3723 = vmatpush2.msra.mxu0 0.0
    %3724 = vmatprep.subr.mxu0 0.0
    %3725 = vmatpush2.msra.mxu0 0.0
    %3726 = vmatprep.subr.mxu0 0.0
    %3727 = vmatpush2.msra.mxu0 0.0
    %3728 = vmatprep.subr.mxu0 0.0
    %3729 = vmatpush2.msra.mxu0 0.0
    %3730 = vmatprep.mubr.f32.mxu0 0.0
    %3731 = vmatmul.mubr.f32.gmra.mxu0 %v3664
    %v3732 = vpop.f32.mrf.mxu0
    %v3733 = vadd.f32 0.0, %v3732
    %v3734 = vpop.f32.mrf.mxu0
    %v3735 = vadd.f32 0.0, %v3734
    %3736 = vdwg.mxu0
    %3737 = vmatprep.subr.mxu0 %v2513
    %3738 = vmatpush1.msra.mxu0 %v2512
    %3739 = vmatprep.subr.mxu0 %v2509
    %3740 = vmatpush1.msra.mxu0 %v2508
    %3741 = vmatprep.subr.mxu0 %v2505
    %3742 = vmatpush1.msra.mxu0 %v2504
    %3743 = vmatprep.subr.mxu0 %v2501
    %3744 = vmatpush1.msra.mxu0 %v2500
    %3745 = vmatprep.subr.mxu0 %v2497
    %3746 = vmatpush1.msra.mxu0 %v2496
    %3747 = vmatprep.subr.mxu0 %v2493
    %3748 = vmatpush1.msra.mxu0 %v2492
    %3749 = vmatprep.subr.mxu0 %v2489
    %3750 = vmatpush1.msra.mxu0 %v2488
    %3751 = vmatprep.subr.mxu0 %v2485
    %3752 = vmatpush1.msra.mxu0 %v2484
    %3753 = vmatprep.subr.mxu0 %v2481
    %3754 = vmatpush1.msra.mxu0 %v2480
    %3755 = vmatprep.subr.mxu0 %v2477
    %3756 = vmatpush1.msra.mxu0 %v2476
    %3757 = vmatprep.subr.mxu0 %v2473
    %3758 = vmatpush1.msra.mxu0 %v2472
    %3759 = vmatprep.subr.mxu0 %v2469
    %3760 = vmatpush1.msra.mxu0 %v2468
    %3761 = vmatprep.subr.mxu0 %v2465
    %3762 = vmatpush1.msra.mxu0 %v2464
    %3763 = vmatprep.subr.mxu0 %v2461
    %3764 = vmatpush1.msra.mxu0 %v2460
    %3765 = vmatprep.subr.mxu0 %v2457
    %3766 = vmatpush1.msra.mxu0 %v2456
    %3767 = vmatprep.subr.mxu0 %v2453
    %3768 = vmatpush1.msra.mxu0 %v2452
    %3769 = vmatprep.subr.mxu0 0.0
    %3770 = vmatpush2.msra.mxu0 0.0
    %3771 = vmatprep.subr.mxu0 0.0
    %3772 = vmatpush2.msra.mxu0 0.0
    %3773 = vmatprep.subr.mxu0 0.0
    %3774 = vmatpush2.msra.mxu0 0.0
    %3775 = vmatprep.subr.mxu0 0.0
    %3776 = vmatpush2.msra.mxu0 0.0
    %3777 = vmatprep.subr.mxu0 0.0
    %3778 = vmatpush2.msra.mxu0 0.0
    %3779 = vmatprep.subr.mxu0 0.0
    %3780 = vmatpush2.msra.mxu0 0.0
    %3781 = vmatprep.subr.mxu0 0.0
    %3782 = vmatpush2.msra.mxu0 0.0
    %3783 = vmatprep.subr.mxu0 0.0
    %3784 = vmatpush2.msra.mxu0 0.0
    %3785 = vmatprep.subr.mxu0 0.0
    %3786 = vmatpush2.msra.mxu0 0.0
    %3787 = vmatprep.subr.mxu0 0.0
    %3788 = vmatpush2.msra.mxu0 0.0
    %3789 = vmatprep.subr.mxu0 0.0
    %3790 = vmatpush2.msra.mxu0 0.0
    %3791 = vmatprep.subr.mxu0 0.0
    %3792 = vmatpush2.msra.mxu0 0.0
    %3793 = vmatprep.subr.mxu0 0.0
    %3794 = vmatpush2.msra.mxu0 0.0
    %3795 = vmatprep.subr.mxu0 0.0
    %3796 = vmatpush2.msra.mxu0 0.0
    %3797 = vmatprep.subr.mxu0 0.0
    %3798 = vmatpush2.msra.mxu0 0.0
    %3799 = vmatprep.subr.mxu0 0.0
    %3800 = vmatpush2.msra.mxu0 0.0
    %3801 = vmatprep.mubr.f32.mxu0 0.0
    %3802 = vmatmul.mubr.f32.gmra.mxu0 %v3664
    %v3803 = vpop.f32.mrf.mxu0
    %v3804 = vadd.f32 0.0, %v3803
    %v3805 = vpop.f32.mrf.mxu0
    %v3806 = vadd.f32 0.0, %v3805
    %3807 = vdwg.mxu0
    %v3812 = vrot.slane %v3733, 3
    %v3813 = vrot.slane %v3735, 3
    %v3814 = vrot.slane %v3804, 3
    %v3815 = vrot.slane %v3806, 3
    %v3816 = vrot.slane %v3733, 4
    %v3817 = vrot.slane %v3735, 4
    %v3818 = vrot.slane %v3804, 4
    %v3819 = vrot.slane %v3806, 4
    %v3828 = vadd.f32 %v2362, %v3812
    %v3829 = vadd.f32 %v2364, %v3813
    %v3830 = vadd.f32 %v2439, %v3814
    %v3831 = vadd.f32 %v2441, %v3815
    %v3832 = vadd.f32 %v2368, %v3816
    %v3833 = vadd.f32 %v2370, %v3817
    %v3834 = vadd.f32 %v2445, %v3818
    %v3835 = vadd.f32 %v2447, %v3819
    %v3836 = vxor.u32 %v3828, 2147483648
    %v3837 = vxor.u32 %v3832, 2147483648
    %v3838 = vmul.f32 %v3836, 1.442695
    %v3839 = vpow.pop %v3838
    %v3840 = vmul.f32 %v3837, 1.442695
    %v3841 = vpow.pop %v3840
    %v3842 = vadd.f32 %v3839, 1.0
    %v3843 = vadd.f32 %v3841, 1.0
    %v3844 = vrcp.pop %v3842
    %v3845 = vmul.f32 1.0, %v3844
    %v3846 = vrcp.pop %v3843
    %v3847 = vmul.f32 1.0, %v3846
    %v3848 = vxor.u32 %v3829, 2147483648
    %v3849 = vxor.u32 %v3833, 2147483648
    %v3850 = vmul.f32 %v3848, 1.442695
    %v3851 = vpow.pop %v3850
    %v3852 = vmul.f32 %v3849, 1.442695
    %v3853 = vpow.pop %v3852
    %v3854 = vadd.f32 %v3851, 1.0
    %v3855 = vadd.f32 %v3853, 1.0
    %v3856 = vrcp.pop %v3854
    %v3857 = vmul.f32 1.0, %v3856
    %v3858 = vrcp.pop %v3855
    %v3859 = vmul.f32 1.0, %v3858
    %v3860 = vtanh.pop %v3830
    %v3861 = vtanh.pop %v3834
    %v3862 = vxor.u32 %v3831, 2147483648
    %v3863 = vxor.u32 %v3835, 2147483648
    %v3864 = vmul.f32 %v3862, 1.442695
    %v3865 = vpow.pop %v3864
    %v3866 = vmul.f32 %v3863, 1.442695
    %v3867 = vpow.pop %v3866
    %v3868 = vadd.f32 %v3865, 1.0
    %v3869 = vadd.f32 %v3867, 1.0
    %v3870 = vrcp.pop %v3868
    %v3871 = vmul.f32 1.0, %v3870
    %v3872 = vrcp.pop %v3869
    %v3873 = vmul.f32 1.0, %v3872
    %v3876 = vrot.slane %v3652, 7
    %v3877 = vrot.slane %v3653, 7
    %v3880 = vmul.f32 %v3857, %v3876
    %v3881 = vmul.f32 %v3859, %v3877
    %v3882 = vmul.f32 %v3845, %v3860
    %v3883 = vmul.f32 %v3847, %v3861
    %v3884 = vadd.f32 %v3880, %v3882
    %v3885 = vadd.f32 %v3881, %v3883
    %v3886 = vtanh.pop %v3884
    %v3887 = vtanh.pop %v3885
    %v3888 = vmul.f32 %v3871, %v3886
    %v3889 = vmul.f32 %v3873, %v3887
    %3890 = vst [vmem:[#allocation2] sm:$0x20] %v3888
    %3891 = vst [vmem:[#allocation2 + $0x8] sm:$0x20] %v3889
    %v3894 = vrot.slane %v3888, 5
    %v3895 = vrot.slane %v3889, 4
    %v3896 = vsel %vm574, %v3895, %v3894
    %3898 = vmatprep.subr.mxu0 %v2511
    %3899 = vmatpush1.msra.mxu0 %v2510
    %3900 = vmatprep.subr.mxu0 %v2507
    %3901 = vmatpush1.msra.mxu0 %v2506
    %3902 = vmatprep.subr.mxu0 %v2503
    %3903 = vmatpush1.msra.mxu0 %v2502
    %3904 = vmatprep.subr.mxu0 %v2499
    %3905 = vmatpush1.msra.mxu0 %v2498
    %3906 = vmatprep.subr.mxu0 %v2495
    %3907 = vmatpush1.msra.mxu0 %v2494
    %3908 = vmatprep.subr.mxu0 %v2491
    %3909 = vmatpush1.msra.mxu0 %v2490
    %3910 = vmatprep.subr.mxu0 %v2487
    %3911 = vmatpush1.msra.mxu0 %v2486
    %3912 = vmatprep.subr.mxu0 %v2483
    %3913 = vmatpush1.msra.mxu0 %v2482
    %3914 = vmatprep.subr.mxu0 %v2479
    %3915 = vmatpush1.msra.mxu0 %v2478
    %3916 = vmatprep.subr.mxu0 %v2475
    %3917 = vmatpush1.msra.mxu0 %v2474
    %3918 = vmatprep.subr.mxu0 %v2471
    %3919 = vmatpush1.msra.mxu0 %v2470
    %3920 = vmatprep.subr.mxu0 %v2467
    %3921 = vmatpush1.msra.mxu0 %v2466
    %3922 = vmatprep.subr.mxu0 %v2463
    %3923 = vmatpush1.msra.mxu0 %v2462
    %3924 = vmatprep.subr.mxu0 %v2459
    %3925 = vmatpush1.msra.mxu0 %v2458
    %3926 = vmatprep.subr.mxu0 %v2455
    %3927 = vmatpush1.msra.mxu0 %v2454
    %3928 = vmatprep.subr.mxu0 %v2451
    %3929 = vmatpush1.msra.mxu0 %v2450
    %3930 = vmatprep.subr.mxu0 0.0
    %3931 = vmatpush2.msra.mxu0 0.0
    %3932 = vmatprep.subr.mxu0 0.0
    %3933 = vmatpush2.msra.mxu0 0.0
    %3934 = vmatprep.subr.mxu0 0.0
    %3935 = vmatpush2.msra.mxu0 0.0
    %3936 = vmatprep.subr.mxu0 0.0
    %3937 = vmatpush2.msra.mxu0 0.0
    %3938 = vmatprep.subr.mxu0 0.0
    %3939 = vmatpush2.msra.mxu0 0.0
    %3940 = vmatprep.subr.mxu0 0.0
    %3941 = vmatpush2.msra.mxu0 0.0
    %3942 = vmatprep.subr.mxu0 0.0
    %3943 = vmatpush2.msra.mxu0 0.0
    %3944 = vmatprep.subr.mxu0 0.0
    %3945 = vmatpush2.msra.mxu0 0.0
    %3946 = vmatprep.subr.mxu0 0.0
    %3947 = vmatpush2.msra.mxu0 0.0
    %3948 = vmatprep.subr.mxu0 0.0
    %3949 = vmatpush2.msra.mxu0 0.0
    %3950 = vmatprep.subr.mxu0 0.0
    %3951 = vmatpush2.msra.mxu0 0.0
    %3952 = vmatprep.subr.mxu0 0.0
    %3953 = vmatpush2.msra.mxu0 0.0
    %3954 = vmatprep.subr.mxu0 0.0
    %3955 = vmatpush2.msra.mxu0 0.0
    %3956 = vmatprep.subr.mxu0 0.0
    %3957 = vmatpush2.msra.mxu0 0.0
    %3958 = vmatprep.subr.mxu0 0.0
    %3959 = vmatpush2.msra.mxu0 0.0
    %3960 = vmatprep.subr.mxu0 0.0
    %3961 = vmatpush2.msra.mxu0 0.0
    %3962 = vmatprep.mubr.f32.mxu0 0.0
    %3963 = vmatmul.mubr.f32.gmra.mxu0 %v3896
    %v3964 = vpop.f32.mrf.mxu0
    %v3965 = vadd.f32 0.0, %v3964
    %v3966 = vpop.f32.mrf.mxu0
    %v3967 = vadd.f32 0.0, %v3966
    %3968 = vdwg.mxu0
    %3969 = vmatprep.subr.mxu0 %v2513
    %3970 = vmatpush1.msra.mxu0 %v2512
    %3971 = vmatprep.subr.mxu0 %v2509
    %3972 = vmatpush1.msra.mxu0 %v2508
    %3973 = vmatprep.subr.mxu0 %v2505
    %3974 = vmatpush1.msra.mxu0 %v2504
    %3975 = vmatprep.subr.mxu0 %v2501
    %3976 = vmatpush1.msra.mxu0 %v2500
    %3977 = vmatprep.subr.mxu0 %v2497
    %3978 = vmatpush1.msra.mxu0 %v2496
    %3979 = vmatprep.subr.mxu0 %v2493
    %3980 = vmatpush1.msra.mxu0 %v2492
    %3981 = vmatprep.subr.mxu0 %v2489
    %3982 = vmatpush1.msra.mxu0 %v2488
    %3983 = vmatprep.subr.mxu0 %v2485
    %3984 = vmatpush1.msra.mxu0 %v2484
    %3985 = vmatprep.subr.mxu0 %v2481
    %3986 = vmatpush1.msra.mxu0 %v2480
    %3987 = vmatprep.subr.mxu0 %v2477
    %3988 = vmatpush1.msra.mxu0 %v2476
    %3989 = vmatprep.subr.mxu0 %v2473
    %3990 = vmatpush1.msra.mxu0 %v2472
    %3991 = vmatprep.subr.mxu0 %v2469
    %3992 = vmatpush1.msra.mxu0 %v2468
    %3993 = vmatprep.subr.mxu0 %v2465
    %3994 = vmatpush1.msra.mxu0 %v2464
    %3995 = vmatprep.subr.mxu0 %v2461
    %3996 = vmatpush1.msra.mxu0 %v2460
    %3997 = vmatprep.subr.mxu0 %v2457
    %3998 = vmatpush1.msra.mxu0 %v2456
    %3999 = vmatprep.subr.mxu0 %v2453
    %4000 = vmatpush1.msra.mxu0 %v2452
    %4001 = vmatprep.subr.mxu0 0.0
    %4002 = vmatpush2.msra.mxu0 0.0
    %4003 = vmatprep.subr.mxu0 0.0
    %4004 = vmatpush2.msra.mxu0 0.0
    %4005 = vmatprep.subr.mxu0 0.0
    %4006 = vmatpush2.msra.mxu0 0.0
    %4007 = vmatprep.subr.mxu0 0.0
    %4008 = vmatpush2.msra.mxu0 0.0
    %4009 = vmatprep.subr.mxu0 0.0
    %4010 = vmatpush2.msra.mxu0 0.0
    %4011 = vmatprep.subr.mxu0 0.0
    %4012 = vmatpush2.msra.mxu0 0.0
    %4013 = vmatprep.subr.mxu0 0.0
    %4014 = vmatpush2.msra.mxu0 0.0
    %4015 = vmatprep.subr.mxu0 0.0
    %4016 = vmatpush2.msra.mxu0 0.0
    %4017 = vmatprep.subr.mxu0 0.0
    %4018 = vmatpush2.msra.mxu0 0.0
    %4019 = vmatprep.subr.mxu0 0.0
    %4020 = vmatpush2.msra.mxu0 0.0
    %4021 = vmatprep.subr.mxu0 0.0
    %4022 = vmatpush2.msra.mxu0 0.0
    %4023 = vmatprep.subr.mxu0 0.0
    %4024 = vmatpush2.msra.mxu0 0.0
    %4025 = vmatprep.subr.mxu0 0.0
    %4026 = vmatpush2.msra.mxu0 0.0
    %4027 = vmatprep.subr.mxu0 0.0
    %4028 = vmatpush2.msra.mxu0 0.0
    %4029 = vmatprep.subr.mxu0 0.0
    %4030 = vmatpush2.msra.mxu0 0.0
    %4031 = vmatprep.subr.mxu0 0.0
    %4032 = vmatpush2.msra.mxu0 0.0
    %4033 = vmatprep.mubr.f32.mxu0 0.0
    %4034 = vmatmul.mubr.f32.gmra.mxu0 %v3896
    %v4035 = vpop.f32.mrf.mxu0
    %v4036 = vadd.f32 0.0, %v4035
    %v4037 = vpop.f32.mrf.mxu0
    %v4038 = vadd.f32 0.0, %v4037
    %4039 = vdwg.mxu0
    %v4044 = vrot.slane %v3965, 2
    %v4045 = vrot.slane %v3967, 2
    %v4046 = vrot.slane %v4036, 2
    %v4047 = vrot.slane %v4038, 2
    %v4048 = vrot.slane %v3965, 3
    %v4049 = vrot.slane %v3967, 3
    %v4050 = vrot.slane %v4036, 3
    %v4051 = vrot.slane %v4038, 3
    %v4060 = vadd.f32 %v2362, %v4044
    %v4061 = vadd.f32 %v2364, %v4045
    %v4062 = vadd.f32 %v2439, %v4046
    %v4063 = vadd.f32 %v2441, %v4047
    %v4064 = vadd.f32 %v2368, %v4048
    %v4065 = vadd.f32 %v2370, %v4049
    %v4066 = vadd.f32 %v2445, %v4050
    %v4067 = vadd.f32 %v2447, %v4051
    %v4068 = vxor.u32 %v4060, 2147483648
    %v4069 = vxor.u32 %v4064, 2147483648
    %v4070 = vmul.f32 %v4068, 1.442695
    %v4071 = vpow.pop %v4070
    %v4072 = vmul.f32 %v4069, 1.442695
    %v4073 = vpow.pop %v4072
    %v4074 = vadd.f32 %v4071, 1.0
    %v4075 = vadd.f32 %v4073, 1.0
    %v4076 = vrcp.pop %v4074
    %v4077 = vmul.f32 1.0, %v4076
    %v4078 = vrcp.pop %v4075
    %v4079 = vmul.f32 1.0, %v4078
    %v4080 = vxor.u32 %v4061, 2147483648
    %v4081 = vxor.u32 %v4065, 2147483648
    %v4082 = vmul.f32 %v4080, 1.442695
    %v4083 = vpow.pop %v4082
    %v4084 = vmul.f32 %v4081, 1.442695
    %v4085 = vpow.pop %v4084
    %v4086 = vadd.f32 %v4083, 1.0
    %v4087 = vadd.f32 %v4085, 1.0
    %v4088 = vrcp.pop %v4086
    %v4089 = vmul.f32 1.0, %v4088
    %v4090 = vrcp.pop %v4087
    %v4091 = vmul.f32 1.0, %v4090
    %v4092 = vtanh.pop %v4062
    %v4093 = vtanh.pop %v4066
    %v4094 = vxor.u32 %v4063, 2147483648
    %v4095 = vxor.u32 %v4067, 2147483648
    %v4096 = vmul.f32 %v4094, 1.442695
    %v4097 = vpow.pop %v4096
    %v4098 = vmul.f32 %v4095, 1.442695
    %v4099 = vpow.pop %v4098
    %v4100 = vadd.f32 %v4097, 1.0
    %v4101 = vadd.f32 %v4099, 1.0
    %v4102 = vrcp.pop %v4100
    %v4103 = vmul.f32 1.0, %v4102
    %v4104 = vrcp.pop %v4101
    %v4105 = vmul.f32 1.0, %v4104
    %v4108 = vrot.slane %v3884, 7
    %v4109 = vrot.slane %v3885, 7
    %v4112 = vmul.f32 %v4089, %v4108
    %v4113 = vmul.f32 %v4091, %v4109
    %v4114 = vmul.f32 %v4077, %v4092
    %v4115 = vmul.f32 %v4079, %v4093
    %v4116 = vadd.f32 %v4112, %v4114
    %v4117 = vadd.f32 %v4113, %v4115
    %v4118 = vtanh.pop %v4116
    %v4119 = vtanh.pop %v4117
    %v4120 = vmul.f32 %v4103, %v4118
    %v4121 = vmul.f32 %v4105, %v4119
    %4122 = vst [vmem:[#allocation2] sm:$0x40] %v4120
    %4123 = vst [vmem:[#allocation2 + $0x8] sm:$0x40] %v4121
    %v4126 = vrot.slane %v4120, 6
    %v4127 = vrot.slane %v4121, 5
    %v4128 = vsel %vm574, %v4127, %v4126
    %4130 = vmatprep.subr.mxu0 %v2511
    %4131 = vmatpush1.msra.mxu0 %v2510
    %4132 = vmatprep.subr.mxu0 %v2507
    %4133 = vmatpush1.msra.mxu0 %v2506
    %4134 = vmatprep.subr.mxu0 %v2503
    %4135 = vmatpush1.msra.mxu0 %v2502
    %4136 = vmatprep.subr.mxu0 %v2499
    %4137 = vmatpush1.msra.mxu0 %v2498
    %4138 = vmatprep.subr.mxu0 %v2495
    %4139 = vmatpush1.msra.mxu0 %v2494
    %4140 = vmatprep.subr.mxu0 %v2491
    %4141 = vmatpush1.msra.mxu0 %v2490
    %4142 = vmatprep.subr.mxu0 %v2487
    %4143 = vmatpush1.msra.mxu0 %v2486
    %4144 = vmatprep.subr.mxu0 %v2483
    %4145 = vmatpush1.msra.mxu0 %v2482
    %4146 = vmatprep.subr.mxu0 %v2479
    %4147 = vmatpush1.msra.mxu0 %v2478
    %4148 = vmatprep.subr.mxu0 %v2475
    %4149 = vmatpush1.msra.mxu0 %v2474
    %4150 = vmatprep.subr.mxu0 %v2471
    %4151 = vmatpush1.msra.mxu0 %v2470
    %4152 = vmatprep.subr.mxu0 %v2467
    %4153 = vmatpush1.msra.mxu0 %v2466
    %4154 = vmatprep.subr.mxu0 %v2463
    %4155 = vmatpush1.msra.mxu0 %v2462
    %4156 = vmatprep.subr.mxu0 %v2459
    %4157 = vmatpush1.msra.mxu0 %v2458
    %4158 = vmatprep.subr.mxu0 %v2455
    %4159 = vmatpush1.msra.mxu0 %v2454
    %4160 = vmatprep.subr.mxu0 %v2451
    %4161 = vmatpush1.msra.mxu0 %v2450
    %4162 = vmatprep.subr.mxu0 0.0
    %4163 = vmatpush2.msra.mxu0 0.0
    %4164 = vmatprep.subr.mxu0 0.0
    %4165 = vmatpush2.msra.mxu0 0.0
    %4166 = vmatprep.subr.mxu0 0.0
    %4167 = vmatpush2.msra.mxu0 0.0
    %4168 = vmatprep.subr.mxu0 0.0
    %4169 = vmatpush2.msra.mxu0 0.0
    %4170 = vmatprep.subr.mxu0 0.0
    %4171 = vmatpush2.msra.mxu0 0.0
    %4172 = vmatprep.subr.mxu0 0.0
    %4173 = vmatpush2.msra.mxu0 0.0
    %4174 = vmatprep.subr.mxu0 0.0
    %4175 = vmatpush2.msra.mxu0 0.0
    %4176 = vmatprep.subr.mxu0 0.0
    %4177 = vmatpush2.msra.mxu0 0.0
    %4178 = vmatprep.subr.mxu0 0.0
    %4179 = vmatpush2.msra.mxu0 0.0
    %4180 = vmatprep.subr.mxu0 0.0
    %4181 = vmatpush2.msra.mxu0 0.0
    %4182 = vmatprep.subr.mxu0 0.0
    %4183 = vmatpush2.msra.mxu0 0.0
    %4184 = vmatprep.subr.mxu0 0.0
    %4185 = vmatpush2.msra.mxu0 0.0
    %4186 = vmatprep.subr.mxu0 0.0
    %4187 = vmatpush2.msra.mxu0 0.0
    %4188 = vmatprep.subr.mxu0 0.0
    %4189 = vmatpush2.msra.mxu0 0.0
    %4190 = vmatprep.subr.mxu0 0.0
    %4191 = vmatpush2.msra.mxu0 0.0
    %4192 = vmatprep.subr.mxu0 0.0
    %4193 = vmatpush2.msra.mxu0 0.0
    %4194 = vmatprep.mubr.f32.mxu0 0.0
    %4195 = vmatmul.mubr.f32.gmra.mxu0 %v4128
    %v4196 = vpop.f32.mrf.mxu0
    %v4197 = vadd.f32 0.0, %v4196
    %v4198 = vpop.f32.mrf.mxu0
    %v4199 = vadd.f32 0.0, %v4198
    %4200 = vdwg.mxu0
    %4201 = vmatprep.subr.mxu0 %v2513
    %4202 = vmatpush1.msra.mxu0 %v2512
    %4203 = vmatprep.subr.mxu0 %v2509
    %4204 = vmatpush1.msra.mxu0 %v2508
    %4205 = vmatprep.subr.mxu0 %v2505
    %4206 = vmatpush1.msra.mxu0 %v2504
    %4207 = vmatprep.subr.mxu0 %v2501
    %4208 = vmatpush1.msra.mxu0 %v2500
    %4209 = vmatprep.subr.mxu0 %v2497
    %4210 = vmatpush1.msra.mxu0 %v2496
    %4211 = vmatprep.subr.mxu0 %v2493
    %4212 = vmatpush1.msra.mxu0 %v2492
    %4213 = vmatprep.subr.mxu0 %v2489
    %4214 = vmatpush1.msra.mxu0 %v2488
    %4215 = vmatprep.subr.mxu0 %v2485
    %4216 = vmatpush1.msra.mxu0 %v2484
    %4217 = vmatprep.subr.mxu0 %v2481
    %4218 = vmatpush1.msra.mxu0 %v2480
    %4219 = vmatprep.subr.mxu0 %v2477
    %4220 = vmatpush1.msra.mxu0 %v2476
    %4221 = vmatprep.subr.mxu0 %v2473
    %4222 = vmatpush1.msra.mxu0 %v2472
    %4223 = vmatprep.subr.mxu0 %v2469
    %4224 = vmatpush1.msra.mxu0 %v2468
    %4225 = vmatprep.subr.mxu0 %v2465
    %4226 = vmatpush1.msra.mxu0 %v2464
    %4227 = vmatprep.subr.mxu0 %v2461
    %4228 = vmatpush1.msra.mxu0 %v2460
    %4229 = vmatprep.subr.mxu0 %v2457
    %4230 = vmatpush1.msra.mxu0 %v2456
    %4231 = vmatprep.subr.mxu0 %v2453
    %4232 = vmatpush1.msra.mxu0 %v2452
    %4233 = vmatprep.subr.mxu0 0.0
    %4234 = vmatpush2.msra.mxu0 0.0
    %4235 = vmatprep.subr.mxu0 0.0
    %4236 = vmatpush2.msra.mxu0 0.0
    %4237 = vmatprep.subr.mxu0 0.0
    %4238 = vmatpush2.msra.mxu0 0.0
    %4239 = vmatprep.subr.mxu0 0.0
    %4240 = vmatpush2.msra.mxu0 0.0
    %4241 = vmatprep.subr.mxu0 0.0
    %4242 = vmatpush2.msra.mxu0 0.0
    %4243 = vmatprep.subr.mxu0 0.0
    %4244 = vmatpush2.msra.mxu0 0.0
    %4245 = vmatprep.subr.mxu0 0.0
    %4246 = vmatpush2.msra.mxu0 0.0
    %4247 = vmatprep.subr.mxu0 0.0
    %4248 = vmatpush2.msra.mxu0 0.0
    %4249 = vmatprep.subr.mxu0 0.0
    %4250 = vmatpush2.msra.mxu0 0.0
    %4251 = vmatprep.subr.mxu0 0.0
    %4252 = vmatpush2.msra.mxu0 0.0
    %4253 = vmatprep.subr.mxu0 0.0
    %4254 = vmatpush2.msra.mxu0 0.0
    %4255 = vmatprep.subr.mxu0 0.0
    %4256 = vmatpush2.msra.mxu0 0.0
    %4257 = vmatprep.subr.mxu0 0.0
    %4258 = vmatpush2.msra.mxu0 0.0
    %4259 = vmatprep.subr.mxu0 0.0
    %4260 = vmatpush2.msra.mxu0 0.0
    %4261 = vmatprep.subr.mxu0 0.0
    %4262 = vmatpush2.msra.mxu0 0.0
    %4263 = vmatprep.subr.mxu0 0.0
    %4264 = vmatpush2.msra.mxu0 0.0
    %4265 = vmatprep.mubr.f32.mxu0 0.0
    %4266 = vmatmul.mubr.f32.gmra.mxu0 %v4128
    %v4267 = vpop.f32.mrf.mxu0
    %v4268 = vadd.f32 0.0, %v4267
    %v4269 = vpop.f32.mrf.mxu0
    %v4270 = vadd.f32 0.0, %v4269
    %4271 = vdwg.mxu0
    %v4276 = vrot.slane %v4197, 1
    %v4277 = vrot.slane %v4199, 1
    %v4278 = vrot.slane %v4268, 1
    %v4279 = vrot.slane %v4270, 1
    %v4280 = vrot.slane %v4197, 2
    %v4281 = vrot.slane %v4199, 2
    %v4282 = vrot.slane %v4268, 2
    %v4283 = vrot.slane %v4270, 2
    %v4292 = vadd.f32 %v2362, %v4276
    %v4293 = vadd.f32 %v2364, %v4277
    %v4294 = vadd.f32 %v2439, %v4278
    %v4295 = vadd.f32 %v2441, %v4279
    %v4296 = vadd.f32 %v2368, %v4280
    %v4297 = vadd.f32 %v2370, %v4281
    %v4298 = vadd.f32 %v2445, %v4282
    %v4299 = vadd.f32 %v2447, %v4283
    %v4300 = vxor.u32 %v4292, 2147483648
    %v4301 = vxor.u32 %v4296, 2147483648
    %v4302 = vmul.f32 %v4300, 1.442695
    %v4303 = vpow.pop %v4302
    %v4304 = vmul.f32 %v4301, 1.442695
    %v4305 = vpow.pop %v4304
    %v4306 = vadd.f32 %v4303, 1.0
    %v4307 = vadd.f32 %v4305, 1.0
    %v4308 = vrcp.pop %v4306
    %v4309 = vmul.f32 1.0, %v4308
    %v4310 = vrcp.pop %v4307
    %v4311 = vmul.f32 1.0, %v4310
    %v4312 = vxor.u32 %v4293, 2147483648
    %v4313 = vxor.u32 %v4297, 2147483648
    %v4314 = vmul.f32 %v4312, 1.442695
    %v4315 = vpow.pop %v4314
    %v4316 = vmul.f32 %v4313, 1.442695
    %v4317 = vpow.pop %v4316
    %v4318 = vadd.f32 %v4315, 1.0
    %v4319 = vadd.f32 %v4317, 1.0
    %v4320 = vrcp.pop %v4318
    %v4321 = vmul.f32 1.0, %v4320
    %v4322 = vrcp.pop %v4319
    %v4323 = vmul.f32 1.0, %v4322
    %v4324 = vtanh.pop %v4294
    %v4325 = vtanh.pop %v4298
    %v4326 = vxor.u32 %v4295, 2147483648
    %v4327 = vxor.u32 %v4299, 2147483648
    %v4328 = vmul.f32 %v4326, 1.442695
    %v4329 = vpow.pop %v4328
    %v4330 = vmul.f32 %v4327, 1.442695
    %v4331 = vpow.pop %v4330
    %v4332 = vadd.f32 %v4329, 1.0
    %v4333 = vadd.f32 %v4331, 1.0
    %v4334 = vrcp.pop %v4332
    %v4335 = vmul.f32 1.0, %v4334
    %v4336 = vrcp.pop %v4333
    %v4337 = vmul.f32 1.0, %v4336
    %v4340 = vrot.slane %v4116, 7
    %v4341 = vrot.slane %v4117, 7
    %v4344 = vmul.f32 %v4321, %v4340
    %v4345 = vmul.f32 %v4323, %v4341
    %v4346 = vmul.f32 %v4309, %v4324
    %v4347 = vmul.f32 %v4311, %v4325
    %v4348 = vadd.f32 %v4344, %v4346
    %v4349 = vadd.f32 %v4345, %v4347
    %v4350 = vtanh.pop %v4348
    %v4351 = vtanh.pop %v4349
    %v4352 = vmul.f32 %v4335, %v4350
    %v4353 = vmul.f32 %v4337, %v4351
    %4354 = vst [vmem:[#allocation2] sm:$0x80] %v4352
    %4355 = vst [vmem:[#allocation2 + $0x8] sm:$0x80] %v4353
    %v4358 = vrot.slane %v4353, 7
    %s4361 = scalar_lea.vmem [#allocation9], 2
    %4362 = vst.msk [vmem:[%s4361 - $0x7] sm:$0x80] %vm2195, %v4352
    %4363 = vst.msk [vmem:[%s4361 + $0x1] sm:$0x1] %vm2197, %v4358
    %v4366 = vrot.slane %v4349, 7
    %s4369 = scalar_lea.vmem [#allocation11], 2
    %4370 = vst.msk [vmem:[%s4369 - $0x7] sm:$0x80] %vm2195, %v4348
    %4371 = vst.msk [vmem:[%s4369 + $0x1] sm:$0x1] %vm2197, %v4366
    %v4372 = vld [vmem:[#allocation2] sm:$0xff]
    %v4373 = vld [vmem:[#allocation2 + $0x8] sm:$0xff]
    %s4374 = scalar_lea.vmem [#allocation3], 512
    %v4375 = vld [vmem:[%s4374] sm:$0xff]
    %v4376 = vld [vmem:[%s4374 + $0x8] sm:$0xff]
    %v4377 = vld [vmem:[%s4374 + $0x10] sm:$0xff]
    %v4378 = vld [vmem:[%s4374 + $0x18] sm:$0xff]
    %v4379 = vld [vmem:[%s4374 + $0x20] sm:$0xff]
    %v4380 = vld [vmem:[%s4374 + $0x28] sm:$0xff]
    %v4381 = vld [vmem:[%s4374 + $0x30] sm:$0xff]
    %v4382 = vld [vmem:[%s4374 + $0x38] sm:$0xff]
    %v4383 = vld [vmem:[%s4374 + $0x40] sm:$0xff]
    %v4384 = vld [vmem:[%s4374 + $0x48] sm:$0xff]
    %v4385 = vld [vmem:[%s4374 + $0x50] sm:$0xff]
    %v4386 = vld [vmem:[%s4374 + $0x58] sm:$0xff]
    %v4387 = vld [vmem:[%s4374 + $0x60] sm:$0xff]
    %v4388 = vld [vmem:[%s4374 + $0x68] sm:$0xff]
    %v4389 = vld [vmem:[%s4374 + $0x70] sm:$0xff]
    %v4390 = vld [vmem:[%s4374 + $0x78] sm:$0xff]
    %v4391 = vld [vmem:[%s4374 + $0x80] sm:$0xff]
    %v4392 = vld [vmem:[%s4374 + $0x88] sm:$0xff]
    %v4393 = vld [vmem:[%s4374 + $0x90] sm:$0xff]
    %v4394 = vld [vmem:[%s4374 + $0x98] sm:$0xff]
    %v4395 = vld [vmem:[%s4374 + $0xa0] sm:$0xff]
    %v4396 = vld [vmem:[%s4374 + $0xa8] sm:$0xff]
    %v4397 = vld [vmem:[%s4374 + $0xb0] sm:$0xff]
    %v4398 = vld [vmem:[%s4374 + $0xb8] sm:$0xff]
    %v4399 = vld [vmem:[%s4374 + $0xc0] sm:$0xff]
    %v4400 = vld [vmem:[%s4374 + $0xc8] sm:$0xff]
    %v4401 = vld [vmem:[%s4374 + $0xd0] sm:$0xff]
    %v4402 = vld [vmem:[%s4374 + $0xd8] sm:$0xff]
    %v4403 = vld [vmem:[%s4374 + $0xe0] sm:$0xff]
    %v4404 = vld [vmem:[%s4374 + $0xe8] sm:$0xff]
    %v4405 = vld [vmem:[%s4374 + $0xf0] sm:$0xff]
    %v4406 = vld [vmem:[%s4374 + $0xf8] sm:$0xff]
    %v4407 = vld [vmem:[%s4374 + $0x100] sm:$0xff]
    %v4408 = vld [vmem:[%s4374 + $0x108] sm:$0xff]
    %v4409 = vld [vmem:[%s4374 + $0x110] sm:$0xff]
    %v4410 = vld [vmem:[%s4374 + $0x118] sm:$0xff]
    %v4411 = vld [vmem:[%s4374 + $0x120] sm:$0xff]
    %v4412 = vld [vmem:[%s4374 + $0x128] sm:$0xff]
    %v4413 = vld [vmem:[%s4374 + $0x130] sm:$0xff]
    %v4414 = vld [vmem:[%s4374 + $0x138] sm:$0xff]
    %v4415 = vld [vmem:[%s4374 + $0x140] sm:$0xff]
    %v4416 = vld [vmem:[%s4374 + $0x148] sm:$0xff]
    %v4417 = vld [vmem:[%s4374 + $0x150] sm:$0xff]
    %v4418 = vld [vmem:[%s4374 + $0x158] sm:$0xff]
    %v4419 = vld [vmem:[%s4374 + $0x160] sm:$0xff]
    %v4420 = vld [vmem:[%s4374 + $0x168] sm:$0xff]
    %v4421 = vld [vmem:[%s4374 + $0x170] sm:$0xff]
    %v4422 = vld [vmem:[%s4374 + $0x178] sm:$0xff]
    %v4423 = vld [vmem:[%s4374 + $0x180] sm:$0xff]
    %v4424 = vld [vmem:[%s4374 + $0x188] sm:$0xff]
    %v4425 = vld [vmem:[%s4374 + $0x190] sm:$0xff]
    %v4426 = vld [vmem:[%s4374 + $0x198] sm:$0xff]
    %v4427 = vld [vmem:[%s4374 + $0x1a0] sm:$0xff]
    %v4428 = vld [vmem:[%s4374 + $0x1a8] sm:$0xff]
    %v4429 = vld [vmem:[%s4374 + $0x1b0] sm:$0xff]
    %v4430 = vld [vmem:[%s4374 + $0x1b8] sm:$0xff]
    %v4431 = vld [vmem:[%s4374 + $0x1c0] sm:$0xff]
    %v4432 = vld [vmem:[%s4374 + $0x1c8] sm:$0xff]
    %v4433 = vld [vmem:[%s4374 + $0x1d0] sm:$0xff]
    %v4434 = vld [vmem:[%s4374 + $0x1d8] sm:$0xff]
    %v4435 = vld [vmem:[%s4374 + $0x1e0] sm:$0xff]
    %v4436 = vld [vmem:[%s4374 + $0x1e8] sm:$0xff]
    %v4437 = vld [vmem:[%s4374 + $0x1f0] sm:$0xff]
    %v4438 = vld [vmem:[%s4374 + $0x1f8] sm:$0xff]
    %s4439 = scalar_lea.vmem %s6, 8
    %v4440 = vld [vmem:[%s4439] sm:$0xf]
    %v4442 = vlaneseq
    %v4443 = vshrl.u32 %v4442, 7
    %v4444 = vsub.s32 0, %v4443
    %v4445 = vrot.slane %v4440, %v4444
    %v4446 = vlaneseq
    %v4447 = vshrl.u32 %v4446, 7
    %v4448 = vsub.s32 1, %v4447
    %v4449 = vrot.slane %v4440, %v4448
    %v4450 = vlaneseq
    %v4451 = vshrl.u32 %v4450, 7
    %v4452 = vsub.s32 2, %v4451
    %v4453 = vrot.slane %v4440, %v4452
    %v4454 = vlaneseq
    %v4455 = vshrl.u32 %v4454, 7
    %v4456 = vsub.s32 3, %v4455
    %v4457 = vrot.slane %v4440, %v4456
    %4462 = vmatprep.subr.mxu0 %v4436
    %4463 = vmatpush1.msra.mxu0 %v4435
    %4464 = vmatprep.subr.mxu0 %v4432
    %4465 = vmatpush1.msra.mxu0 %v4431
    %4466 = vmatprep.subr.mxu0 %v4428
    %4467 = vmatpush1.msra.mxu0 %v4427
    %4468 = vmatprep.subr.mxu0 %v4424
    %4469 = vmatpush1.msra.mxu0 %v4423
    %4470 = vmatprep.subr.mxu0 %v4420
    %4471 = vmatpush1.msra.mxu0 %v4419
    %4472 = vmatprep.subr.mxu0 %v4416
    %4473 = vmatpush1.msra.mxu0 %v4415
    %4474 = vmatprep.subr.mxu0 %v4412
    %4475 = vmatpush1.msra.mxu0 %v4411
    %4476 = vmatprep.subr.mxu0 %v4408
    %4477 = vmatpush1.msra.mxu0 %v4407
    %4478 = vmatprep.subr.mxu0 %v4404
    %4479 = vmatpush1.msra.mxu0 %v4403
    %4480 = vmatprep.subr.mxu0 %v4400
    %4481 = vmatpush1.msra.mxu0 %v4399
    %4482 = vmatprep.subr.mxu0 %v4396
    %4483 = vmatpush1.msra.mxu0 %v4395
    %4484 = vmatprep.subr.mxu0 %v4392
    %4485 = vmatpush1.msra.mxu0 %v4391
    %4486 = vmatprep.subr.mxu0 %v4388
    %4487 = vmatpush1.msra.mxu0 %v4387
    %4488 = vmatprep.subr.mxu0 %v4384
    %4489 = vmatpush1.msra.mxu0 %v4383
    %4490 = vmatprep.subr.mxu0 %v4380
    %4491 = vmatpush1.msra.mxu0 %v4379
    %4492 = vmatprep.subr.mxu0 %v4376
    %4493 = vmatpush1.msra.mxu0 %v4375
    %4494 = vmatprep.subr.mxu0 0.0
    %4495 = vmatpush2.msra.mxu0 0.0
    %4496 = vmatprep.subr.mxu0 0.0
    %4497 = vmatpush2.msra.mxu0 0.0
    %4498 = vmatprep.subr.mxu0 0.0
    %4499 = vmatpush2.msra.mxu0 0.0
    %4500 = vmatprep.subr.mxu0 0.0
    %4501 = vmatpush2.msra.mxu0 0.0
    %4502 = vmatprep.subr.mxu0 0.0
    %4503 = vmatpush2.msra.mxu0 0.0
    %4504 = vmatprep.subr.mxu0 0.0
    %4505 = vmatpush2.msra.mxu0 0.0
    %4506 = vmatprep.subr.mxu0 0.0
    %4507 = vmatpush2.msra.mxu0 0.0
    %4508 = vmatprep.subr.mxu0 0.0
    %4509 = vmatpush2.msra.mxu0 0.0
    %4510 = vmatprep.subr.mxu0 0.0
    %4511 = vmatpush2.msra.mxu0 0.0
    %4512 = vmatprep.subr.mxu0 0.0
    %4513 = vmatpush2.msra.mxu0 0.0
    %4514 = vmatprep.subr.mxu0 0.0
    %4515 = vmatpush2.msra.mxu0 0.0
    %4516 = vmatprep.subr.mxu0 0.0
    %4517 = vmatpush2.msra.mxu0 0.0
    %4518 = vmatprep.subr.mxu0 0.0
    %4519 = vmatpush2.msra.mxu0 0.0
    %4520 = vmatprep.subr.mxu0 0.0
    %4521 = vmatpush2.msra.mxu0 0.0
    %4522 = vmatprep.subr.mxu0 0.0
    %4523 = vmatpush2.msra.mxu0 0.0
    %4524 = vmatprep.subr.mxu0 0.0
    %4525 = vmatpush2.msra.mxu0 0.0
    %4526 = vmatprep.mubr.f32.mxu0 0.0
    %4527 = vmatmul.mubr.f32.gmra.mxu0 %v4372
    %v4528 = vpop.f32.mrf.mxu0
    %v4529 = vadd.f32 %v4445, %v4528
    %v4530 = vpop.f32.mrf.mxu0
    %v4531 = vadd.f32 %v4449, %v4530
    %4532 = vmatprep.mubr.f32.mxu0 0.0
    %4533 = vmatmul.mubr.f32.gmra.mxu0 %v4373
    %v4534 = vpop.f32.mrf.mxu0
    %v4535 = vadd.f32 %v4445, %v4534
    %v4536 = vpop.f32.mrf.mxu0
    %v4537 = vadd.f32 %v4449, %v4536
    %4538 = vdwg.mxu0
    %4539 = vmatprep.subr.mxu0 %v4438
    %4540 = vmatpush1.msra.mxu0 %v4437
    %4541 = vmatprep.subr.mxu0 %v4434
    %4542 = vmatpush1.msra.mxu0 %v4433
    %4543 = vmatprep.subr.mxu0 %v4430
    %4544 = vmatpush1.msra.mxu0 %v4429
    %4545 = vmatprep.subr.mxu0 %v4426
    %4546 = vmatpush1.msra.mxu0 %v4425
    %4547 = vmatprep.subr.mxu0 %v4422
    %4548 = vmatpush1.msra.mxu0 %v4421
    %4549 = vmatprep.subr.mxu0 %v4418
    %4550 = vmatpush1.msra.mxu0 %v4417
    %4551 = vmatprep.subr.mxu0 %v4414
    %4552 = vmatpush1.msra.mxu0 %v4413
    %4553 = vmatprep.subr.mxu0 %v4410
    %4554 = vmatpush1.msra.mxu0 %v4409
    %4555 = vmatprep.subr.mxu0 %v4406
    %4556 = vmatpush1.msra.mxu0 %v4405
    %4557 = vmatprep.subr.mxu0 %v4402
    %4558 = vmatpush1.msra.mxu0 %v4401
    %4559 = vmatprep.subr.mxu0 %v4398
    %4560 = vmatpush1.msra.mxu0 %v4397
    %4561 = vmatprep.subr.mxu0 %v4394
    %4562 = vmatpush1.msra.mxu0 %v4393
    %4563 = vmatprep.subr.mxu0 %v4390
    %4564 = vmatpush1.msra.mxu0 %v4389
    %4565 = vmatprep.subr.mxu0 %v4386
    %4566 = vmatpush1.msra.mxu0 %v4385
    %4567 = vmatprep.subr.mxu0 %v4382
    %4568 = vmatpush1.msra.mxu0 %v4381
    %4569 = vmatprep.subr.mxu0 %v4378
    %4570 = vmatpush1.msra.mxu0 %v4377
    %4571 = vmatprep.subr.mxu0 0.0
    %4572 = vmatpush2.msra.mxu0 0.0
    %4573 = vmatprep.subr.mxu0 0.0
    %4574 = vmatpush2.msra.mxu0 0.0
    %4575 = vmatprep.subr.mxu0 0.0
    %4576 = vmatpush2.msra.mxu0 0.0
    %4577 = vmatprep.subr.mxu0 0.0
    %4578 = vmatpush2.msra.mxu0 0.0
    %4579 = vmatprep.subr.mxu0 0.0
    %4580 = vmatpush2.msra.mxu0 0.0
    %4581 = vmatprep.subr.mxu0 0.0
    %4582 = vmatpush2.msra.mxu0 0.0
    %4583 = vmatprep.subr.mxu0 0.0
    %4584 = vmatpush2.msra.mxu0 0.0
    %4585 = vmatprep.subr.mxu0 0.0
    %4586 = vmatpush2.msra.mxu0 0.0
    %4587 = vmatprep.subr.mxu0 0.0
    %4588 = vmatpush2.msra.mxu0 0.0
    %4589 = vmatprep.subr.mxu0 0.0
    %4590 = vmatpush2.msra.mxu0 0.0
    %4591 = vmatprep.subr.mxu0 0.0
    %4592 = vmatpush2.msra.mxu0 0.0
    %4593 = vmatprep.subr.mxu0 0.0
    %4594 = vmatpush2.msra.mxu0 0.0
    %4595 = vmatprep.subr.mxu0 0.0
    %4596 = vmatpush2.msra.mxu0 0.0
    %4597 = vmatprep.subr.mxu0 0.0
    %4598 = vmatpush2.msra.mxu0 0.0
    %4599 = vmatprep.subr.mxu0 0.0
    %4600 = vmatpush2.msra.mxu0 0.0
    %4601 = vmatprep.subr.mxu0 0.0
    %4602 = vmatpush2.msra.mxu0 0.0
    %4603 = vmatprep.mubr.f32.mxu0 0.0
    %4604 = vmatmul.mubr.f32.gmra.mxu0 %v4372
    %v4605 = vpop.f32.mrf.mxu0
    %v4606 = vadd.f32 %v4453, %v4605
    %v4607 = vpop.f32.mrf.mxu0
    %v4608 = vadd.f32 %v4457, %v4607
    %4609 = vmatprep.mubr.f32.mxu0 0.0
    %4610 = vmatmul.mubr.f32.gmra.mxu0 %v4373
    %v4611 = vpop.f32.mrf.mxu0
    %v4612 = vadd.f32 %v4453, %v4611
    %v4613 = vpop.f32.mrf.mxu0
    %v4614 = vadd.f32 %v4457, %v4613
    %4615 = vdwg.mxu0
    %s4616 = scalar_lea.vmem [#allocation6], 1024
    %v4617 = vld [vmem:[%s4616] sm:$0xff]
    %v4618 = vld [vmem:[%s4616 + $0x8] sm:$0xff]
    %v4619 = vld [vmem:[%s4616 + $0x10] sm:$0xff]
    %v4620 = vld [vmem:[%s4616 + $0x18] sm:$0xff]
    %v4621 = vld [vmem:[%s4616 + $0x20] sm:$0xff]
    %v4622 = vld [vmem:[%s4616 + $0x28] sm:$0xff]
    %v4623 = vld [vmem:[%s4616 + $0x30] sm:$0xff]
    %v4624 = vld [vmem:[%s4616 + $0x38] sm:$0xff]
    %v4625 = vld [vmem:[%s4616 + $0x40] sm:$0xff]
    %v4626 = vld [vmem:[%s4616 + $0x48] sm:$0xff]
    %v4627 = vld [vmem:[%s4616 + $0x50] sm:$0xff]
    %v4628 = vld [vmem:[%s4616 + $0x58] sm:$0xff]
    %v4629 = vld [vmem:[%s4616 + $0x60] sm:$0xff]
    %v4630 = vld [vmem:[%s4616 + $0x68] sm:$0xff]
    %v4631 = vld [vmem:[%s4616 + $0x70] sm:$0xff]
    %v4632 = vld [vmem:[%s4616 + $0x78] sm:$0xff]
    %v4633 = vld [vmem:[%s4616 + $0x80] sm:$0xff]
    %v4634 = vld [vmem:[%s4616 + $0x88] sm:$0xff]
    %v4635 = vld [vmem:[%s4616 + $0x90] sm:$0xff]
    %v4636 = vld [vmem:[%s4616 + $0x98] sm:$0xff]
    %v4637 = vld [vmem:[%s4616 + $0xa0] sm:$0xff]
    %v4638 = vld [vmem:[%s4616 + $0xa8] sm:$0xff]
    %v4639 = vld [vmem:[%s4616 + $0xb0] sm:$0xff]
    %v4640 = vld [vmem:[%s4616 + $0xb8] sm:$0xff]
    %v4641 = vld [vmem:[%s4616 + $0xc0] sm:$0xff]
    %v4642 = vld [vmem:[%s4616 + $0xc8] sm:$0xff]
    %v4643 = vld [vmem:[%s4616 + $0xd0] sm:$0xff]
    %v4644 = vld [vmem:[%s4616 + $0xd8] sm:$0xff]
    %v4645 = vld [vmem:[%s4616 + $0xe0] sm:$0xff]
    %v4646 = vld [vmem:[%s4616 + $0xe8] sm:$0xff]
    %v4647 = vld [vmem:[%s4616 + $0xf0] sm:$0xff]
    %v4648 = vld [vmem:[%s4616 + $0xf8] sm:$0xff]
    %v4649 = vld [vmem:[%s4616 + $0x100] sm:$0xff]
    %v4650 = vld [vmem:[%s4616 + $0x108] sm:$0xff]
    %v4651 = vld [vmem:[%s4616 + $0x110] sm:$0xff]
    %v4652 = vld [vmem:[%s4616 + $0x118] sm:$0xff]
    %v4653 = vld [vmem:[%s4616 + $0x120] sm:$0xff]
    %v4654 = vld [vmem:[%s4616 + $0x128] sm:$0xff]
    %v4655 = vld [vmem:[%s4616 + $0x130] sm:$0xff]
    %v4656 = vld [vmem:[%s4616 + $0x138] sm:$0xff]
    %v4657 = vld [vmem:[%s4616 + $0x140] sm:$0xff]
    %v4658 = vld [vmem:[%s4616 + $0x148] sm:$0xff]
    %v4659 = vld [vmem:[%s4616 + $0x150] sm:$0xff]
    %v4660 = vld [vmem:[%s4616 + $0x158] sm:$0xff]
    %v4661 = vld [vmem:[%s4616 + $0x160] sm:$0xff]
    %v4662 = vld [vmem:[%s4616 + $0x168] sm:$0xff]
    %v4663 = vld [vmem:[%s4616 + $0x170] sm:$0xff]
    %v4664 = vld [vmem:[%s4616 + $0x178] sm:$0xff]
    %v4665 = vld [vmem:[%s4616 + $0x180] sm:$0xff]
    %v4666 = vld [vmem:[%s4616 + $0x188] sm:$0xff]
    %v4667 = vld [vmem:[%s4616 + $0x190] sm:$0xff]
    %v4668 = vld [vmem:[%s4616 + $0x198] sm:$0xff]
    %v4669 = vld [vmem:[%s4616 + $0x1a0] sm:$0xff]
    %v4670 = vld [vmem:[%s4616 + $0x1a8] sm:$0xff]
    %v4671 = vld [vmem:[%s4616 + $0x1b0] sm:$0xff]
    %v4672 = vld [vmem:[%s4616 + $0x1b8] sm:$0xff]
    %v4673 = vld [vmem:[%s4616 + $0x1c0] sm:$0xff]
    %v4674 = vld [vmem:[%s4616 + $0x1c8] sm:$0xff]
    %v4675 = vld [vmem:[%s4616 + $0x1d0] sm:$0xff]
    %v4676 = vld [vmem:[%s4616 + $0x1d8] sm:$0xff]
    %v4677 = vld [vmem:[%s4616 + $0x1e0] sm:$0xff]
    %v4678 = vld [vmem:[%s4616 + $0x1e8] sm:$0xff]
    %v4679 = vld [vmem:[%s4616 + $0x1f0] sm:$0xff]
    %v4680 = vld [vmem:[%s4616 + $0x1f8] sm:$0xff]
    %s4681 = scalar_lea.vmem %s1, 4
    %v4682 = vld [vmem:[%s4681] sm:$0x3]
    %s4683 = scalar_lea.vmem %s2, 4
    %v4684 = vld [vmem:[%s4683] sm:$0x3]
    %4685 = vmatprep.subr.mxu0 %v4678
    %4686 = vmatpush1.msra.mxu0 %v4677
    %4687 = vmatprep.subr.mxu0 %v4674
    %4688 = vmatpush1.msra.mxu0 %v4673
    %4689 = vmatprep.subr.mxu0 %v4670
    %4690 = vmatpush1.msra.mxu0 %v4669
    %4691 = vmatprep.subr.mxu0 %v4666
    %4692 = vmatpush1.msra.mxu0 %v4665
    %4693 = vmatprep.subr.mxu0 %v4662
    %4694 = vmatpush1.msra.mxu0 %v4661
    %4695 = vmatprep.subr.mxu0 %v4658
    %4696 = vmatpush1.msra.mxu0 %v4657
    %4697 = vmatprep.subr.mxu0 %v4654
    %4698 = vmatpush1.msra.mxu0 %v4653
    %4699 = vmatprep.subr.mxu0 %v4650
    %4700 = vmatpush1.msra.mxu0 %v4649
    %4701 = vmatprep.subr.mxu0 %v4646
    %4702 = vmatpush1.msra.mxu0 %v4645
    %4703 = vmatprep.subr.mxu0 %v4642
    %4704 = vmatpush1.msra.mxu0 %v4641
    %4705 = vmatprep.subr.mxu0 %v4638
    %4706 = vmatpush1.msra.mxu0 %v4637
    %4707 = vmatprep.subr.mxu0 %v4634
    %4708 = vmatpush1.msra.mxu0 %v4633
    %4709 = vmatprep.subr.mxu0 %v4630
    %4710 = vmatpush1.msra.mxu0 %v4629
    %4711 = vmatprep.subr.mxu0 %v4626
    %4712 = vmatpush1.msra.mxu0 %v4625
    %4713 = vmatprep.subr.mxu0 %v4622
    %4714 = vmatpush1.msra.mxu0 %v4621
    %4715 = vmatprep.subr.mxu0 %v4618
    %4716 = vmatpush1.msra.mxu0 %v4617
    %4717 = vmatprep.subr.mxu0 0.0
    %4718 = vmatpush2.msra.mxu0 0.0
    %4719 = vmatprep.subr.mxu0 0.0
    %4720 = vmatpush2.msra.mxu0 0.0
    %4721 = vmatprep.subr.mxu0 0.0
    %4722 = vmatpush2.msra.mxu0 0.0
    %4723 = vmatprep.subr.mxu0 0.0
    %4724 = vmatpush2.msra.mxu0 0.0
    %4725 = vmatprep.subr.mxu0 0.0
    %4726 = vmatpush2.msra.mxu0 0.0
    %4727 = vmatprep.subr.mxu0 0.0
    %4728 = vmatpush2.msra.mxu0 0.0
    %4729 = vmatprep.subr.mxu0 0.0
    %4730 = vmatpush2.msra.mxu0 0.0
    %4731 = vmatprep.subr.mxu0 0.0
    %4732 = vmatpush2.msra.mxu0 0.0
    %4733 = vmatprep.subr.mxu0 0.0
    %4734 = vmatpush2.msra.mxu0 0.0
    %4735 = vmatprep.subr.mxu0 0.0
    %4736 = vmatpush2.msra.mxu0 0.0
    %4737 = vmatprep.subr.mxu0 0.0
    %4738 = vmatpush2.msra.mxu0 0.0
    %4739 = vmatprep.subr.mxu0 0.0
    %4740 = vmatpush2.msra.mxu0 0.0
    %4741 = vmatprep.subr.mxu0 0.0
    %4742 = vmatpush2.msra.mxu0 0.0
    %4743 = vmatprep.subr.mxu0 0.0
    %4744 = vmatpush2.msra.mxu0 0.0
    %4745 = vmatprep.subr.mxu0 0.0
    %4746 = vmatpush2.msra.mxu0 0.0
    %4747 = vmatprep.subr.mxu0 0.0
    %4748 = vmatpush2.msra.mxu0 0.0
    %4749 = vmatprep.mubr.f32.mxu0 0.0
    %4750 = vmatmul.mubr.f32.gmra.mxu0 %v4682
    %v4751 = vpop.f32.mrf.mxu0
    %v4752 = vadd.f32 0.0, %v4751
    %v4753 = vpop.f32.mrf.mxu0
    %v4754 = vadd.f32 0.0, %v4753
    %4755 = vdwg.mxu0
    %4756 = vmatprep.subr.mxu0 %v4680
    %4757 = vmatpush1.msra.mxu0 %v4679
    %4758 = vmatprep.subr.mxu0 %v4676
    %4759 = vmatpush1.msra.mxu0 %v4675
    %4760 = vmatprep.subr.mxu0 %v4672
    %4761 = vmatpush1.msra.mxu0 %v4671
    %4762 = vmatprep.subr.mxu0 %v4668
    %4763 = vmatpush1.msra.mxu0 %v4667
    %4764 = vmatprep.subr.mxu0 %v4664
    %4765 = vmatpush1.msra.mxu0 %v4663
    %4766 = vmatprep.subr.mxu0 %v4660
    %4767 = vmatpush1.msra.mxu0 %v4659
    %4768 = vmatprep.subr.mxu0 %v4656
    %4769 = vmatpush1.msra.mxu0 %v4655
    %4770 = vmatprep.subr.mxu0 %v4652
    %4771 = vmatpush1.msra.mxu0 %v4651
    %4772 = vmatprep.subr.mxu0 %v4648
    %4773 = vmatpush1.msra.mxu0 %v4647
    %4774 = vmatprep.subr.mxu0 %v4644
    %4775 = vmatpush1.msra.mxu0 %v4643
    %4776 = vmatprep.subr.mxu0 %v4640
    %4777 = vmatpush1.msra.mxu0 %v4639
    %4778 = vmatprep.subr.mxu0 %v4636
    %4779 = vmatpush1.msra.mxu0 %v4635
    %4780 = vmatprep.subr.mxu0 %v4632
    %4781 = vmatpush1.msra.mxu0 %v4631
    %4782 = vmatprep.subr.mxu0 %v4628
    %4783 = vmatpush1.msra.mxu0 %v4627
    %4784 = vmatprep.subr.mxu0 %v4624
    %4785 = vmatpush1.msra.mxu0 %v4623
    %4786 = vmatprep.subr.mxu0 %v4620
    %4787 = vmatpush1.msra.mxu0 %v4619
    %4788 = vmatprep.subr.mxu0 0.0
    %4789 = vmatpush2.msra.mxu0 0.0
    %4790 = vmatprep.subr.mxu0 0.0
    %4791 = vmatpush2.msra.mxu0 0.0
    %4792 = vmatprep.subr.mxu0 0.0
    %4793 = vmatpush2.msra.mxu0 0.0
    %4794 = vmatprep.subr.mxu0 0.0
    %4795 = vmatpush2.msra.mxu0 0.0
    %4796 = vmatprep.subr.mxu0 0.0
    %4797 = vmatpush2.msra.mxu0 0.0
    %4798 = vmatprep.subr.mxu0 0.0
    %4799 = vmatpush2.msra.mxu0 0.0
    %4800 = vmatprep.subr.mxu0 0.0
    %4801 = vmatpush2.msra.mxu0 0.0
    %4802 = vmatprep.subr.mxu0 0.0
    %4803 = vmatpush2.msra.mxu0 0.0
    %4804 = vmatprep.subr.mxu0 0.0
    %4805 = vmatpush2.msra.mxu0 0.0
    %4806 = vmatprep.subr.mxu0 0.0
    %4807 = vmatpush2.msra.mxu0 0.0
    %4808 = vmatprep.subr.mxu0 0.0
    %4809 = vmatpush2.msra.mxu0 0.0
    %4810 = vmatprep.subr.mxu0 0.0
    %4811 = vmatpush2.msra.mxu0 0.0
    %4812 = vmatprep.subr.mxu0 0.0
    %4813 = vmatpush2.msra.mxu0 0.0
    %4814 = vmatprep.subr.mxu0 0.0
    %4815 = vmatpush2.msra.mxu0 0.0
    %4816 = vmatprep.subr.mxu0 0.0
    %4817 = vmatpush2.msra.mxu0 0.0
    %4818 = vmatprep.subr.mxu0 0.0
    %4819 = vmatpush2.msra.mxu0 0.0
    %4820 = vmatprep.mubr.f32.mxu0 0.0
    %4821 = vmatmul.mubr.f32.gmra.mxu0 %v4682
    %v4822 = vpop.f32.mrf.mxu0
    %v4823 = vadd.f32 0.0, %v4822
    %v4824 = vpop.f32.mrf.mxu0
    %v4825 = vadd.f32 0.0, %v4824
    %4826 = vdwg.mxu0
    %v4831 = vrot.slane %v4752, 1
    %v4832 = vrot.slane %v4754, 1
    %v4833 = vrot.slane %v4823, 1
    %v4834 = vrot.slane %v4825, 1
    %v4843 = vadd.f32 %v4529, %v4752
    %v4844 = vadd.f32 %v4531, %v4754
    %v4845 = vadd.f32 %v4606, %v4823
    %v4846 = vadd.f32 %v4608, %v4825
    %v4847 = vadd.f32 %v4535, %v4831
    %v4848 = vadd.f32 %v4537, %v4832
    %v4849 = vadd.f32 %v4612, %v4833
    %v4850 = vadd.f32 %v4614, %v4834
    %v4851 = vxor.u32 %v4843, 2147483648
    %v4852 = vxor.u32 %v4847, 2147483648
    %v4853 = vmul.f32 %v4851, 1.442695
    %v4854 = vpow.pop %v4853
    %v4855 = vmul.f32 %v4852, 1.442695
    %v4856 = vpow.pop %v4855
    %v4857 = vadd.f32 %v4854, 1.0
    %v4858 = vadd.f32 %v4856, 1.0
    %v4859 = vrcp.pop %v4857
    %v4860 = vmul.f32 1.0, %v4859
    %v4861 = vrcp.pop %v4858
    %v4862 = vmul.f32 1.0, %v4861
    %v4863 = vxor.u32 %v4844, 2147483648
    %v4864 = vxor.u32 %v4848, 2147483648
    %v4865 = vmul.f32 %v4863, 1.442695
    %v4866 = vpow.pop %v4865
    %v4867 = vmul.f32 %v4864, 1.442695
    %v4868 = vpow.pop %v4867
    %v4869 = vadd.f32 %v4866, 1.0
    %v4870 = vadd.f32 %v4868, 1.0
    %v4871 = vrcp.pop %v4869
    %v4872 = vmul.f32 1.0, %v4871
    %v4873 = vrcp.pop %v4870
    %v4874 = vmul.f32 1.0, %v4873
    %v4875 = vtanh.pop %v4845
    %v4876 = vtanh.pop %v4849
    %v4877 = vxor.u32 %v4846, 2147483648
    %v4878 = vxor.u32 %v4850, 2147483648
    %v4879 = vmul.f32 %v4877, 1.442695
    %v4880 = vpow.pop %v4879
    %v4881 = vmul.f32 %v4878, 1.442695
    %v4882 = vpow.pop %v4881
    %v4883 = vadd.f32 %v4880, 1.0
    %v4884 = vadd.f32 %v4882, 1.0
    %v4885 = vrcp.pop %v4883
    %v4886 = vmul.f32 1.0, %v4885
    %v4887 = vrcp.pop %v4884
    %v4888 = vmul.f32 1.0, %v4887
    %v4890 = vrot.slane %v4684, 1
    %v4893 = vmul.f32 %v4872, %v4684
    %v4894 = vmul.f32 %v4874, %v4890
    %v4895 = vmul.f32 %v4860, %v4875
    %v4896 = vmul.f32 %v4862, %v4876
    %v4897 = vadd.f32 %v4893, %v4895
    %v4898 = vadd.f32 %v4894, %v4896
    %v4899 = vtanh.pop %v4897
    %v4900 = vtanh.pop %v4898
    %v4901 = vmul.f32 %v4886, %v4899
    %v4902 = vmul.f32 %v4888, %v4900
    %4903 = vst [vmem:[#allocation2] sm:$0x1] %v4901
    %4904 = vst [vmem:[#allocation2 + $0x8] sm:$0x1] %v4902
    %v4907 = vrot.slane %v4902, 7
    %v4908 = vsel %vm574, %v4907, %v4901
    %4910 = vmatprep.subr.mxu0 %v4678
    %4911 = vmatpush1.msra.mxu0 %v4677
    %4912 = vmatprep.subr.mxu0 %v4674
    %4913 = vmatpush1.msra.mxu0 %v4673
    %4914 = vmatprep.subr.mxu0 %v4670
    %4915 = vmatpush1.msra.mxu0 %v4669
    %4916 = vmatprep.subr.mxu0 %v4666
    %4917 = vmatpush1.msra.mxu0 %v4665
    %4918 = vmatprep.subr.mxu0 %v4662
    %4919 = vmatpush1.msra.mxu0 %v4661
    %4920 = vmatprep.subr.mxu0 %v4658
    %4921 = vmatpush1.msra.mxu0 %v4657
    %4922 = vmatprep.subr.mxu0 %v4654
    %4923 = vmatpush1.msra.mxu0 %v4653
    %4924 = vmatprep.subr.mxu0 %v4650
    %4925 = vmatpush1.msra.mxu0 %v4649
    %4926 = vmatprep.subr.mxu0 %v4646
    %4927 = vmatpush1.msra.mxu0 %v4645
    %4928 = vmatprep.subr.mxu0 %v4642
    %4929 = vmatpush1.msra.mxu0 %v4641
    %4930 = vmatprep.subr.mxu0 %v4638
    %4931 = vmatpush1.msra.mxu0 %v4637
    %4932 = vmatprep.subr.mxu0 %v4634
    %4933 = vmatpush1.msra.mxu0 %v4633
    %4934 = vmatprep.subr.mxu0 %v4630
    %4935 = vmatpush1.msra.mxu0 %v4629
    %4936 = vmatprep.subr.mxu0 %v4626
    %4937 = vmatpush1.msra.mxu0 %v4625
    %4938 = vmatprep.subr.mxu0 %v4622
    %4939 = vmatpush1.msra.mxu0 %v4621
    %4940 = vmatprep.subr.mxu0 %v4618
    %4941 = vmatpush1.msra.mxu0 %v4617
    %4942 = vmatprep.subr.mxu0 0.0
    %4943 = vmatpush2.msra.mxu0 0.0
    %4944 = vmatprep.subr.mxu0 0.0
    %4945 = vmatpush2.msra.mxu0 0.0
    %4946 = vmatprep.subr.mxu0 0.0
    %4947 = vmatpush2.msra.mxu0 0.0
    %4948 = vmatprep.subr.mxu0 0.0
    %4949 = vmatpush2.msra.mxu0 0.0
    %4950 = vmatprep.subr.mxu0 0.0
    %4951 = vmatpush2.msra.mxu0 0.0
    %4952 = vmatprep.subr.mxu0 0.0
    %4953 = vmatpush2.msra.mxu0 0.0
    %4954 = vmatprep.subr.mxu0 0.0
    %4955 = vmatpush2.msra.mxu0 0.0
    %4956 = vmatprep.subr.mxu0 0.0
    %4957 = vmatpush2.msra.mxu0 0.0
    %4958 = vmatprep.subr.mxu0 0.0
    %4959 = vmatpush2.msra.mxu0 0.0
    %4960 = vmatprep.subr.mxu0 0.0
    %4961 = vmatpush2.msra.mxu0 0.0
    %4962 = vmatprep.subr.mxu0 0.0
    %4963 = vmatpush2.msra.mxu0 0.0
    %4964 = vmatprep.subr.mxu0 0.0
    %4965 = vmatpush2.msra.mxu0 0.0
    %4966 = vmatprep.subr.mxu0 0.0
    %4967 = vmatpush2.msra.mxu0 0.0
    %4968 = vmatprep.subr.mxu0 0.0
    %4969 = vmatpush2.msra.mxu0 0.0
    %4970 = vmatprep.subr.mxu0 0.0
    %4971 = vmatpush2.msra.mxu0 0.0
    %4972 = vmatprep.subr.mxu0 0.0
    %4973 = vmatpush2.msra.mxu0 0.0
    %4974 = vmatprep.mubr.f32.mxu0 0.0
    %4975 = vmatmul.mubr.f32.gmra.mxu0 %v4908
    %v4976 = vpop.f32.mrf.mxu0
    %v4977 = vadd.f32 0.0, %v4976
    %v4978 = vpop.f32.mrf.mxu0
    %v4979 = vadd.f32 0.0, %v4978
    %4980 = vdwg.mxu0
    %4981 = vmatprep.subr.mxu0 %v4680
    %4982 = vmatpush1.msra.mxu0 %v4679
    %4983 = vmatprep.subr.mxu0 %v4676
    %4984 = vmatpush1.msra.mxu0 %v4675
    %4985 = vmatprep.subr.mxu0 %v4672
    %4986 = vmatpush1.msra.mxu0 %v4671
    %4987 = vmatprep.subr.mxu0 %v4668
    %4988 = vmatpush1.msra.mxu0 %v4667
    %4989 = vmatprep.subr.mxu0 %v4664
    %4990 = vmatpush1.msra.mxu0 %v4663
    %4991 = vmatprep.subr.mxu0 %v4660
    %4992 = vmatpush1.msra.mxu0 %v4659
    %4993 = vmatprep.subr.mxu0 %v4656
    %4994 = vmatpush1.msra.mxu0 %v4655
    %4995 = vmatprep.subr.mxu0 %v4652
    %4996 = vmatpush1.msra.mxu0 %v4651
    %4997 = vmatprep.subr.mxu0 %v4648
    %4998 = vmatpush1.msra.mxu0 %v4647
    %4999 = vmatprep.subr.mxu0 %v4644
    %5000 = vmatpush1.msra.mxu0 %v4643
    %5001 = vmatprep.subr.mxu0 %v4640
    %5002 = vmatpush1.msra.mxu0 %v4639
    %5003 = vmatprep.subr.mxu0 %v4636
    %5004 = vmatpush1.msra.mxu0 %v4635
    %5005 = vmatprep.subr.mxu0 %v4632
    %5006 = vmatpush1.msra.mxu0 %v4631
    %5007 = vmatprep.subr.mxu0 %v4628
    %5008 = vmatpush1.msra.mxu0 %v4627
    %5009 = vmatprep.subr.mxu0 %v4624
    %5010 = vmatpush1.msra.mxu0 %v4623
    %5011 = vmatprep.subr.mxu0 %v4620
    %5012 = vmatpush1.msra.mxu0 %v4619
    %5013 = vmatprep.subr.mxu0 0.0
    %5014 = vmatpush2.msra.mxu0 0.0
    %5015 = vmatprep.subr.mxu0 0.0
    %5016 = vmatpush2.msra.mxu0 0.0
    %5017 = vmatprep.subr.mxu0 0.0
    %5018 = vmatpush2.msra.mxu0 0.0
    %5019 = vmatprep.subr.mxu0 0.0
    %5020 = vmatpush2.msra.mxu0 0.0
    %5021 = vmatprep.subr.mxu0 0.0
    %5022 = vmatpush2.msra.mxu0 0.0
    %5023 = vmatprep.subr.mxu0 0.0
    %5024 = vmatpush2.msra.mxu0 0.0
    %5025 = vmatprep.subr.mxu0 0.0
    %5026 = vmatpush2.msra.mxu0 0.0
    %5027 = vmatprep.subr.mxu0 0.0
    %5028 = vmatpush2.msra.mxu0 0.0
    %5029 = vmatprep.subr.mxu0 0.0
    %5030 = vmatpush2.msra.mxu0 0.0
    %5031 = vmatprep.subr.mxu0 0.0
    %5032 = vmatpush2.msra.mxu0 0.0
    %5033 = vmatprep.subr.mxu0 0.0
    %5034 = vmatpush2.msra.mxu0 0.0
    %5035 = vmatprep.subr.mxu0 0.0
    %5036 = vmatpush2.msra.mxu0 0.0
    %5037 = vmatprep.subr.mxu0 0.0
    %5038 = vmatpush2.msra.mxu0 0.0
    %5039 = vmatprep.subr.mxu0 0.0
    %5040 = vmatpush2.msra.mxu0 0.0
    %5041 = vmatprep.subr.mxu0 0.0
    %5042 = vmatpush2.msra.mxu0 0.0
    %5043 = vmatprep.subr.mxu0 0.0
    %5044 = vmatpush2.msra.mxu0 0.0
    %5045 = vmatprep.mubr.f32.mxu0 0.0
    %5046 = vmatmul.mubr.f32.gmra.mxu0 %v4908
    %v5047 = vpop.f32.mrf.mxu0
    %v5048 = vadd.f32 0.0, %v5047
    %v5049 = vpop.f32.mrf.mxu0
    %v5050 = vadd.f32 0.0, %v5049
    %5051 = vdwg.mxu0
    %v5056 = vrot.slane %v4977, 7
    %v5057 = vrot.slane %v4979, 7
    %v5058 = vrot.slane %v5048, 7
    %v5059 = vrot.slane %v5050, 7
    %v5068 = vadd.f32 %v4529, %v5056
    %v5069 = vadd.f32 %v4531, %v5057
    %v5070 = vadd.f32 %v4606, %v5058
    %v5071 = vadd.f32 %v4608, %v5059
    %v5072 = vadd.f32 %v4535, %v4977
    %v5073 = vadd.f32 %v4537, %v4979
    %v5074 = vadd.f32 %v4612, %v5048
    %v5075 = vadd.f32 %v4614, %v5050
    %v5076 = vxor.u32 %v5068, 2147483648
    %v5077 = vxor.u32 %v5072, 2147483648
    %v5078 = vmul.f32 %v5076, 1.442695
    %v5079 = vpow.pop %v5078
    %v5080 = vmul.f32 %v5077, 1.442695
    %v5081 = vpow.pop %v5080
    %v5082 = vadd.f32 %v5079, 1.0
    %v5083 = vadd.f32 %v5081, 1.0
    %v5084 = vrcp.pop %v5082
    %v5085 = vmul.f32 1.0, %v5084
    %v5086 = vrcp.pop %v5083
    %v5087 = vmul.f32 1.0, %v5086
    %v5088 = vxor.u32 %v5069, 2147483648
    %v5089 = vxor.u32 %v5073, 2147483648
    %v5090 = vmul.f32 %v5088, 1.442695
    %v5091 = vpow.pop %v5090
    %v5092 = vmul.f32 %v5089, 1.442695
    %v5093 = vpow.pop %v5092
    %v5094 = vadd.f32 %v5091, 1.0
    %v5095 = vadd.f32 %v5093, 1.0
    %v5096 = vrcp.pop %v5094
    %v5097 = vmul.f32 1.0, %v5096
    %v5098 = vrcp.pop %v5095
    %v5099 = vmul.f32 1.0, %v5098
    %v5100 = vtanh.pop %v5070
    %v5101 = vtanh.pop %v5074
    %v5102 = vxor.u32 %v5071, 2147483648
    %v5103 = vxor.u32 %v5075, 2147483648
    %v5104 = vmul.f32 %v5102, 1.442695
    %v5105 = vpow.pop %v5104
    %v5106 = vmul.f32 %v5103, 1.442695
    %v5107 = vpow.pop %v5106
    %v5108 = vadd.f32 %v5105, 1.0
    %v5109 = vadd.f32 %v5107, 1.0
    %v5110 = vrcp.pop %v5108
    %v5111 = vmul.f32 1.0, %v5110
    %v5112 = vrcp.pop %v5109
    %v5113 = vmul.f32 1.0, %v5112
    %v5116 = vrot.slane %v4897, 7
    %v5117 = vrot.slane %v4898, 7
    %v5120 = vmul.f32 %v5097, %v5116
    %v5121 = vmul.f32 %v5099, %v5117
    %v5122 = vmul.f32 %v5085, %v5100
    %v5123 = vmul.f32 %v5087, %v5101
    %v5124 = vadd.f32 %v5120, %v5122
    %v5125 = vadd.f32 %v5121, %v5123
    %v5126 = vtanh.pop %v5124
    %v5127 = vtanh.pop %v5125
    %v5128 = vmul.f32 %v5111, %v5126
    %v5129 = vmul.f32 %v5113, %v5127
    %5130 = vst [vmem:[#allocation2] sm:$0x2] %v5128
    %5131 = vst [vmem:[#allocation2 + $0x8] sm:$0x2] %v5129
    %v5134 = vrot.slane %v5128, 1
    %v5135 = vsel %vm574, %v5129, %v5134
    %5137 = vmatprep.subr.mxu0 %v4678
    %5138 = vmatpush1.msra.mxu0 %v4677
    %5139 = vmatprep.subr.mxu0 %v4674
    %5140 = vmatpush1.msra.mxu0 %v4673
    %5141 = vmatprep.subr.mxu0 %v4670
    %5142 = vmatpush1.msra.mxu0 %v4669
    %5143 = vmatprep.subr.mxu0 %v4666
    %5144 = vmatpush1.msra.mxu0 %v4665
    %5145 = vmatprep.subr.mxu0 %v4662
    %5146 = vmatpush1.msra.mxu0 %v4661
    %5147 = vmatprep.subr.mxu0 %v4658
    %5148 = vmatpush1.msra.mxu0 %v4657
    %5149 = vmatprep.subr.mxu0 %v4654
    %5150 = vmatpush1.msra.mxu0 %v4653
    %5151 = vmatprep.subr.mxu0 %v4650
    %5152 = vmatpush1.msra.mxu0 %v4649
    %5153 = vmatprep.subr.mxu0 %v4646
    %5154 = vmatpush1.msra.mxu0 %v4645
    %5155 = vmatprep.subr.mxu0 %v4642
    %5156 = vmatpush1.msra.mxu0 %v4641
    %5157 = vmatprep.subr.mxu0 %v4638
    %5158 = vmatpush1.msra.mxu0 %v4637
    %5159 = vmatprep.subr.mxu0 %v4634
    %5160 = vmatpush1.msra.mxu0 %v4633
    %5161 = vmatprep.subr.mxu0 %v4630
    %5162 = vmatpush1.msra.mxu0 %v4629
    %5163 = vmatprep.subr.mxu0 %v4626
    %5164 = vmatpush1.msra.mxu0 %v4625
    %5165 = vmatprep.subr.mxu0 %v4622
    %5166 = vmatpush1.msra.mxu0 %v4621
    %5167 = vmatprep.subr.mxu0 %v4618
    %5168 = vmatpush1.msra.mxu0 %v4617
    %5169 = vmatprep.subr.mxu0 0.0
    %5170 = vmatpush2.msra.mxu0 0.0
    %5171 = vmatprep.subr.mxu0 0.0
    %5172 = vmatpush2.msra.mxu0 0.0
    %5173 = vmatprep.subr.mxu0 0.0
    %5174 = vmatpush2.msra.mxu0 0.0
    %5175 = vmatprep.subr.mxu0 0.0
    %5176 = vmatpush2.msra.mxu0 0.0
    %5177 = vmatprep.subr.mxu0 0.0
    %5178 = vmatpush2.msra.mxu0 0.0
    %5179 = vmatprep.subr.mxu0 0.0
    %5180 = vmatpush2.msra.mxu0 0.0
    %5181 = vmatprep.subr.mxu0 0.0
    %5182 = vmatpush2.msra.mxu0 0.0
    %5183 = vmatprep.subr.mxu0 0.0
    %5184 = vmatpush2.msra.mxu0 0.0
    %5185 = vmatprep.subr.mxu0 0.0
    %5186 = vmatpush2.msra.mxu0 0.0
    %5187 = vmatprep.subr.mxu0 0.0
    %5188 = vmatpush2.msra.mxu0 0.0
    %5189 = vmatprep.subr.mxu0 0.0
    %5190 = vmatpush2.msra.mxu0 0.0
    %5191 = vmatprep.subr.mxu0 0.0
    %5192 = vmatpush2.msra.mxu0 0.0
    %5193 = vmatprep.subr.mxu0 0.0
    %5194 = vmatpush2.msra.mxu0 0.0
    %5195 = vmatprep.subr.mxu0 0.0
    %5196 = vmatpush2.msra.mxu0 0.0
    %5197 = vmatprep.subr.mxu0 0.0
    %5198 = vmatpush2.msra.mxu0 0.0
    %5199 = vmatprep.subr.mxu0 0.0
    %5200 = vmatpush2.msra.mxu0 0.0
    %5201 = vmatprep.mubr.f32.mxu0 0.0
    %5202 = vmatmul.mubr.f32.gmra.mxu0 %v5135
    %v5203 = vpop.f32.mrf.mxu0
    %v5204 = vadd.f32 0.0, %v5203
    %v5205 = vpop.f32.mrf.mxu0
    %v5206 = vadd.f32 0.0, %v5205
    %5207 = vdwg.mxu0
    %5208 = vmatprep.subr.mxu0 %v4680
    %5209 = vmatpush1.msra.mxu0 %v4679
    %5210 = vmatprep.subr.mxu0 %v4676
    %5211 = vmatpush1.msra.mxu0 %v4675
    %5212 = vmatprep.subr.mxu0 %v4672
    %5213 = vmatpush1.msra.mxu0 %v4671
    %5214 = vmatprep.subr.mxu0 %v4668
    %5215 = vmatpush1.msra.mxu0 %v4667
    %5216 = vmatprep.subr.mxu0 %v4664
    %5217 = vmatpush1.msra.mxu0 %v4663
    %5218 = vmatprep.subr.mxu0 %v4660
    %5219 = vmatpush1.msra.mxu0 %v4659
    %5220 = vmatprep.subr.mxu0 %v4656
    %5221 = vmatpush1.msra.mxu0 %v4655
    %5222 = vmatprep.subr.mxu0 %v4652
    %5223 = vmatpush1.msra.mxu0 %v4651
    %5224 = vmatprep.subr.mxu0 %v4648
    %5225 = vmatpush1.msra.mxu0 %v4647
    %5226 = vmatprep.subr.mxu0 %v4644
    %5227 = vmatpush1.msra.mxu0 %v4643
    %5228 = vmatprep.subr.mxu0 %v4640
    %5229 = vmatpush1.msra.mxu0 %v4639
    %5230 = vmatprep.subr.mxu0 %v4636
    %5231 = vmatpush1.msra.mxu0 %v4635
    %5232 = vmatprep.subr.mxu0 %v4632
    %5233 = vmatpush1.msra.mxu0 %v4631
    %5234 = vmatprep.subr.mxu0 %v4628
    %5235 = vmatpush1.msra.mxu0 %v4627
    %5236 = vmatprep.subr.mxu0 %v4624
    %5237 = vmatpush1.msra.mxu0 %v4623
    %5238 = vmatprep.subr.mxu0 %v4620
    %5239 = vmatpush1.msra.mxu0 %v4619
    %5240 = vmatprep.subr.mxu0 0.0
    %5241 = vmatpush2.msra.mxu0 0.0
    %5242 = vmatprep.subr.mxu0 0.0
    %5243 = vmatpush2.msra.mxu0 0.0
    %5244 = vmatprep.subr.mxu0 0.0
    %5245 = vmatpush2.msra.mxu0 0.0
    %5246 = vmatprep.subr.mxu0 0.0
    %5247 = vmatpush2.msra.mxu0 0.0
    %5248 = vmatprep.subr.mxu0 0.0
    %5249 = vmatpush2.msra.mxu0 0.0
    %5250 = vmatprep.subr.mxu0 0.0
    %5251 = vmatpush2.msra.mxu0 0.0
    %5252 = vmatprep.subr.mxu0 0.0
    %5253 = vmatpush2.msra.mxu0 0.0
    %5254 = vmatprep.subr.mxu0 0.0
    %5255 = vmatpush2.msra.mxu0 0.0
    %5256 = vmatprep.subr.mxu0 0.0
    %5257 = vmatpush2.msra.mxu0 0.0
    %5258 = vmatprep.subr.mxu0 0.0
    %5259 = vmatpush2.msra.mxu0 0.0
    %5260 = vmatprep.subr.mxu0 0.0
    %5261 = vmatpush2.msra.mxu0 0.0
    %5262 = vmatprep.subr.mxu0 0.0
    %5263 = vmatpush2.msra.mxu0 0.0
    %5264 = vmatprep.subr.mxu0 0.0
    %5265 = vmatpush2.msra.mxu0 0.0
    %5266 = vmatprep.subr.mxu0 0.0
    %5267 = vmatpush2.msra.mxu0 0.0
    %5268 = vmatprep.subr.mxu0 0.0
    %5269 = vmatpush2.msra.mxu0 0.0
    %5270 = vmatprep.subr.mxu0 0.0
    %5271 = vmatpush2.msra.mxu0 0.0
    %5272 = vmatprep.mubr.f32.mxu0 0.0
    %5273 = vmatmul.mubr.f32.gmra.mxu0 %v5135
    %v5274 = vpop.f32.mrf.mxu0
    %v5275 = vadd.f32 0.0, %v5274
    %v5276 = vpop.f32.mrf.mxu0
    %v5277 = vadd.f32 0.0, %v5276
    %5278 = vdwg.mxu0
    %v5283 = vrot.slane %v5204, 6
    %v5284 = vrot.slane %v5206, 6
    %v5285 = vrot.slane %v5275, 6
    %v5286 = vrot.slane %v5277, 6
    %v5287 = vrot.slane %v5204, 7
    %v5288 = vrot.slane %v5206, 7
    %v5289 = vrot.slane %v5275, 7
    %v5290 = vrot.slane %v5277, 7
    %v5299 = vadd.f32 %v4529, %v5283
    %v5300 = vadd.f32 %v4531, %v5284
    %v5301 = vadd.f32 %v4606, %v5285
    %v5302 = vadd.f32 %v4608, %v5286
    %v5303 = vadd.f32 %v4535, %v5287
    %v5304 = vadd.f32 %v4537, %v5288
    %v5305 = vadd.f32 %v4612, %v5289
    %v5306 = vadd.f32 %v4614, %v5290
    %v5307 = vxor.u32 %v5299, 2147483648
    %v5308 = vxor.u32 %v5303, 2147483648
    %v5309 = vmul.f32 %v5307, 1.442695
    %v5310 = vpow.pop %v5309
    %v5311 = vmul.f32 %v5308, 1.442695
    %v5312 = vpow.pop %v5311
    %v5313 = vadd.f32 %v5310, 1.0
    %v5314 = vadd.f32 %v5312, 1.0
    %v5315 = vrcp.pop %v5313
    %v5316 = vmul.f32 1.0, %v5315
    %v5317 = vrcp.pop %v5314
    %v5318 = vmul.f32 1.0, %v5317
    %v5319 = vxor.u32 %v5300, 2147483648
    %v5320 = vxor.u32 %v5304, 2147483648
    %v5321 = vmul.f32 %v5319, 1.442695
    %v5322 = vpow.pop %v5321
    %v5323 = vmul.f32 %v5320, 1.442695
    %v5324 = vpow.pop %v5323
    %v5325 = vadd.f32 %v5322, 1.0
    %v5326 = vadd.f32 %v5324, 1.0
    %v5327 = vrcp.pop %v5325
    %v5328 = vmul.f32 1.0, %v5327
    %v5329 = vrcp.pop %v5326
    %v5330 = vmul.f32 1.0, %v5329
    %v5331 = vtanh.pop %v5301
    %v5332 = vtanh.pop %v5305
    %v5333 = vxor.u32 %v5302, 2147483648
    %v5334 = vxor.u32 %v5306, 2147483648
    %v5335 = vmul.f32 %v5333, 1.442695
    %v5336 = vpow.pop %v5335
    %v5337 = vmul.f32 %v5334, 1.442695
    %v5338 = vpow.pop %v5337
    %v5339 = vadd.f32 %v5336, 1.0
    %v5340 = vadd.f32 %v5338, 1.0
    %v5341 = vrcp.pop %v5339
    %v5342 = vmul.f32 1.0, %v5341
    %v5343 = vrcp.pop %v5340
    %v5344 = vmul.f32 1.0, %v5343
    %v5347 = vrot.slane %v5124, 7
    %v5348 = vrot.slane %v5125, 7
    %v5351 = vmul.f32 %v5328, %v5347
    %v5352 = vmul.f32 %v5330, %v5348
    %v5353 = vmul.f32 %v5316, %v5331
    %v5354 = vmul.f32 %v5318, %v5332
    %v5355 = vadd.f32 %v5351, %v5353
    %v5356 = vadd.f32 %v5352, %v5354
    %v5357 = vtanh.pop %v5355
    %v5358 = vtanh.pop %v5356
    %v5359 = vmul.f32 %v5342, %v5357
    %v5360 = vmul.f32 %v5344, %v5358
    %5361 = vst [vmem:[#allocation2] sm:$0x4] %v5359
    %5362 = vst [vmem:[#allocation2 + $0x8] sm:$0x4] %v5360
    %v5365 = vrot.slane %v5359, 2
    %v5366 = vrot.slane %v5360, 1
    %v5367 = vsel %vm574, %v5366, %v5365
    %5369 = vmatprep.subr.mxu0 %v4678
    %5370 = vmatpush1.msra.mxu0 %v4677
    %5371 = vmatprep.subr.mxu0 %v4674
    %5372 = vmatpush1.msra.mxu0 %v4673
    %5373 = vmatprep.subr.mxu0 %v4670
    %5374 = vmatpush1.msra.mxu0 %v4669
    %5375 = vmatprep.subr.mxu0 %v4666
    %5376 = vmatpush1.msra.mxu0 %v4665
    %5377 = vmatprep.subr.mxu0 %v4662
    %5378 = vmatpush1.msra.mxu0 %v4661
    %5379 = vmatprep.subr.mxu0 %v4658
    %5380 = vmatpush1.msra.mxu0 %v4657
    %5381 = vmatprep.subr.mxu0 %v4654
    %5382 = vmatpush1.msra.mxu0 %v4653
    %5383 = vmatprep.subr.mxu0 %v4650
    %5384 = vmatpush1.msra.mxu0 %v4649
    %5385 = vmatprep.subr.mxu0 %v4646
    %5386 = vmatpush1.msra.mxu0 %v4645
    %5387 = vmatprep.subr.mxu0 %v4642
    %5388 = vmatpush1.msra.mxu0 %v4641
    %5389 = vmatprep.subr.mxu0 %v4638
    %5390 = vmatpush1.msra.mxu0 %v4637
    %5391 = vmatprep.subr.mxu0 %v4634
    %5392 = vmatpush1.msra.mxu0 %v4633
    %5393 = vmatprep.subr.mxu0 %v4630
    %5394 = vmatpush1.msra.mxu0 %v4629
    %5395 = vmatprep.subr.mxu0 %v4626
    %5396 = vmatpush1.msra.mxu0 %v4625
    %5397 = vmatprep.subr.mxu0 %v4622
    %5398 = vmatpush1.msra.mxu0 %v4621
    %5399 = vmatprep.subr.mxu0 %v4618
    %5400 = vmatpush1.msra.mxu0 %v4617
    %5401 = vmatprep.subr.mxu0 0.0
    %5402 = vmatpush2.msra.mxu0 0.0
    %5403 = vmatprep.subr.mxu0 0.0
    %5404 = vmatpush2.msra.mxu0 0.0
    %5405 = vmatprep.subr.mxu0 0.0
    %5406 = vmatpush2.msra.mxu0 0.0
    %5407 = vmatprep.subr.mxu0 0.0
    %5408 = vmatpush2.msra.mxu0 0.0
    %5409 = vmatprep.subr.mxu0 0.0
    %5410 = vmatpush2.msra.mxu0 0.0
    %5411 = vmatprep.subr.mxu0 0.0
    %5412 = vmatpush2.msra.mxu0 0.0
    %5413 = vmatprep.subr.mxu0 0.0
    %5414 = vmatpush2.msra.mxu0 0.0
    %5415 = vmatprep.subr.mxu0 0.0
    %5416 = vmatpush2.msra.mxu0 0.0
    %5417 = vmatprep.subr.mxu0 0.0
    %5418 = vmatpush2.msra.mxu0 0.0
    %5419 = vmatprep.subr.mxu0 0.0
    %5420 = vmatpush2.msra.mxu0 0.0
    %5421 = vmatprep.subr.mxu0 0.0
    %5422 = vmatpush2.msra.mxu0 0.0
    %5423 = vmatprep.subr.mxu0 0.0
    %5424 = vmatpush2.msra.mxu0 0.0
    %5425 = vmatprep.subr.mxu0 0.0
    %5426 = vmatpush2.msra.mxu0 0.0
    %5427 = vmatprep.subr.mxu0 0.0
    %5428 = vmatpush2.msra.mxu0 0.0
    %5429 = vmatprep.subr.mxu0 0.0
    %5430 = vmatpush2.msra.mxu0 0.0
    %5431 = vmatprep.subr.mxu0 0.0
    %5432 = vmatpush2.msra.mxu0 0.0
    %5433 = vmatprep.mubr.f32.mxu0 0.0
    %5434 = vmatmul.mubr.f32.gmra.mxu0 %v5367
    %v5435 = vpop.f32.mrf.mxu0
    %v5436 = vadd.f32 0.0, %v5435
    %v5437 = vpop.f32.mrf.mxu0
    %v5438 = vadd.f32 0.0, %v5437
    %5439 = vdwg.mxu0
    %5440 = vmatprep.subr.mxu0 %v4680
    %5441 = vmatpush1.msra.mxu0 %v4679
    %5442 = vmatprep.subr.mxu0 %v4676
    %5443 = vmatpush1.msra.mxu0 %v4675
    %5444 = vmatprep.subr.mxu0 %v4672
    %5445 = vmatpush1.msra.mxu0 %v4671
    %5446 = vmatprep.subr.mxu0 %v4668
    %5447 = vmatpush1.msra.mxu0 %v4667
    %5448 = vmatprep.subr.mxu0 %v4664
    %5449 = vmatpush1.msra.mxu0 %v4663
    %5450 = vmatprep.subr.mxu0 %v4660
    %5451 = vmatpush1.msra.mxu0 %v4659
    %5452 = vmatprep.subr.mxu0 %v4656
    %5453 = vmatpush1.msra.mxu0 %v4655
    %5454 = vmatprep.subr.mxu0 %v4652
    %5455 = vmatpush1.msra.mxu0 %v4651
    %5456 = vmatprep.subr.mxu0 %v4648
    %5457 = vmatpush1.msra.mxu0 %v4647
    %5458 = vmatprep.subr.mxu0 %v4644
    %5459 = vmatpush1.msra.mxu0 %v4643
    %5460 = vmatprep.subr.mxu0 %v4640
    %5461 = vmatpush1.msra.mxu0 %v4639
    %5462 = vmatprep.subr.mxu0 %v4636
    %5463 = vmatpush1.msra.mxu0 %v4635
    %5464 = vmatprep.subr.mxu0 %v4632
    %5465 = vmatpush1.msra.mxu0 %v4631
    %5466 = vmatprep.subr.mxu0 %v4628
    %5467 = vmatpush1.msra.mxu0 %v4627
    %5468 = vmatprep.subr.mxu0 %v4624
    %5469 = vmatpush1.msra.mxu0 %v4623
    %5470 = vmatprep.subr.mxu0 %v4620
    %5471 = vmatpush1.msra.mxu0 %v4619
    %5472 = vmatprep.subr.mxu0 0.0
    %5473 = vmatpush2.msra.mxu0 0.0
    %5474 = vmatprep.subr.mxu0 0.0
    %5475 = vmatpush2.msra.mxu0 0.0
    %5476 = vmatprep.subr.mxu0 0.0
    %5477 = vmatpush2.msra.mxu0 0.0
    %5478 = vmatprep.subr.mxu0 0.0
    %5479 = vmatpush2.msra.mxu0 0.0
    %5480 = vmatprep.subr.mxu0 0.0
    %5481 = vmatpush2.msra.mxu0 0.0
    %5482 = vmatprep.subr.mxu0 0.0
    %5483 = vmatpush2.msra.mxu0 0.0
    %5484 = vmatprep.subr.mxu0 0.0
    %5485 = vmatpush2.msra.mxu0 0.0
    %5486 = vmatprep.subr.mxu0 0.0
    %5487 = vmatpush2.msra.mxu0 0.0
    %5488 = vmatprep.subr.mxu0 0.0
    %5489 = vmatpush2.msra.mxu0 0.0
    %5490 = vmatprep.subr.mxu0 0.0
    %5491 = vmatpush2.msra.mxu0 0.0
    %5492 = vmatprep.subr.mxu0 0.0
    %5493 = vmatpush2.msra.mxu0 0.0
    %5494 = vmatprep.subr.mxu0 0.0
    %5495 = vmatpush2.msra.mxu0 0.0
    %5496 = vmatprep.subr.mxu0 0.0
    %5497 = vmatpush2.msra.mxu0 0.0
    %5498 = vmatprep.subr.mxu0 0.0
    %5499 = vmatpush2.msra.mxu0 0.0
    %5500 = vmatprep.subr.mxu0 0.0
    %5501 = vmatpush2.msra.mxu0 0.0
    %5502 = vmatprep.subr.mxu0 0.0
    %5503 = vmatpush2.msra.mxu0 0.0
    %5504 = vmatprep.mubr.f32.mxu0 0.0
    %5505 = vmatmul.mubr.f32.gmra.mxu0 %v5367
    %v5506 = vpop.f32.mrf.mxu0
    %v5507 = vadd.f32 0.0, %v5506
    %v5508 = vpop.f32.mrf.mxu0
    %v5509 = vadd.f32 0.0, %v5508
    %5510 = vdwg.mxu0
    %v5515 = vrot.slane %v5436, 5
    %v5516 = vrot.slane %v5438, 5
    %v5517 = vrot.slane %v5507, 5
    %v5518 = vrot.slane %v5509, 5
    %v5519 = vrot.slane %v5436, 6
    %v5520 = vrot.slane %v5438, 6
    %v5521 = vrot.slane %v5507, 6
    %v5522 = vrot.slane %v5509, 6
    %v5531 = vadd.f32 %v4529, %v5515
    %v5532 = vadd.f32 %v4531, %v5516
    %v5533 = vadd.f32 %v4606, %v5517
    %v5534 = vadd.f32 %v4608, %v5518
    %v5535 = vadd.f32 %v4535, %v5519
    %v5536 = vadd.f32 %v4537, %v5520
    %v5537 = vadd.f32 %v4612, %v5521
    %v5538 = vadd.f32 %v4614, %v5522
    %v5539 = vxor.u32 %v5531, 2147483648
    %v5540 = vxor.u32 %v5535, 2147483648
    %v5541 = vmul.f32 %v5539, 1.442695
    %v5542 = vpow.pop %v5541
    %v5543 = vmul.f32 %v5540, 1.442695
    %v5544 = vpow.pop %v5543
    %v5545 = vadd.f32 %v5542, 1.0
    %v5546 = vadd.f32 %v5544, 1.0
    %v5547 = vrcp.pop %v5545
    %v5548 = vmul.f32 1.0, %v5547
    %v5549 = vrcp.pop %v5546
    %v5550 = vmul.f32 1.0, %v5549
    %v5551 = vxor.u32 %v5532, 2147483648
    %v5552 = vxor.u32 %v5536, 2147483648
    %v5553 = vmul.f32 %v5551, 1.442695
    %v5554 = vpow.pop %v5553
    %v5555 = vmul.f32 %v5552, 1.442695
    %v5556 = vpow.pop %v5555
    %v5557 = vadd.f32 %v5554, 1.0
    %v5558 = vadd.f32 %v5556, 1.0
    %v5559 = vrcp.pop %v5557
    %v5560 = vmul.f32 1.0, %v5559
    %v5561 = vrcp.pop %v5558
    %v5562 = vmul.f32 1.0, %v5561
    %v5563 = vtanh.pop %v5533
    %v5564 = vtanh.pop %v5537
    %v5565 = vxor.u32 %v5534, 2147483648
    %v5566 = vxor.u32 %v5538, 2147483648
    %v5567 = vmul.f32 %v5565, 1.442695
    %v5568 = vpow.pop %v5567
    %v5569 = vmul.f32 %v5566, 1.442695
    %v5570 = vpow.pop %v5569
    %v5571 = vadd.f32 %v5568, 1.0
    %v5572 = vadd.f32 %v5570, 1.0
    %v5573 = vrcp.pop %v5571
    %v5574 = vmul.f32 1.0, %v5573
    %v5575 = vrcp.pop %v5572
    %v5576 = vmul.f32 1.0, %v5575
    %v5579 = vrot.slane %v5355, 7
    %v5580 = vrot.slane %v5356, 7
    %v5583 = vmul.f32 %v5560, %v5579
    %v5584 = vmul.f32 %v5562, %v5580
    %v5585 = vmul.f32 %v5548, %v5563
    %v5586 = vmul.f32 %v5550, %v5564
    %v5587 = vadd.f32 %v5583, %v5585
    %v5588 = vadd.f32 %v5584, %v5586
    %v5589 = vtanh.pop %v5587
    %v5590 = vtanh.pop %v5588
    %v5591 = vmul.f32 %v5574, %v5589
    %v5592 = vmul.f32 %v5576, %v5590
    %5593 = vst [vmem:[#allocation2] sm:$0x8] %v5591
    %5594 = vst [vmem:[#allocation2 + $0x8] sm:$0x8] %v5592
    %v5597 = vrot.slane %v5591, 3
    %v5598 = vrot.slane %v5592, 2
    %v5599 = vsel %vm574, %v5598, %v5597
    %5601 = vmatprep.subr.mxu0 %v4678
    %5602 = vmatpush1.msra.mxu0 %v4677
    %5603 = vmatprep.subr.mxu0 %v4674
    %5604 = vmatpush1.msra.mxu0 %v4673
    %5605 = vmatprep.subr.mxu0 %v4670
    %5606 = vmatpush1.msra.mxu0 %v4669
    %5607 = vmatprep.subr.mxu0 %v4666
    %5608 = vmatpush1.msra.mxu0 %v4665
    %5609 = vmatprep.subr.mxu0 %v4662
    %5610 = vmatpush1.msra.mxu0 %v4661
    %5611 = vmatprep.subr.mxu0 %v4658
    %5612 = vmatpush1.msra.mxu0 %v4657
    %5613 = vmatprep.subr.mxu0 %v4654
    %5614 = vmatpush1.msra.mxu0 %v4653
    %5615 = vmatprep.subr.mxu0 %v4650
    %5616 = vmatpush1.msra.mxu0 %v4649
    %5617 = vmatprep.subr.mxu0 %v4646
    %5618 = vmatpush1.msra.mxu0 %v4645
    %5619 = vmatprep.subr.mxu0 %v4642
    %5620 = vmatpush1.msra.mxu0 %v4641
    %5621 = vmatprep.subr.mxu0 %v4638
    %5622 = vmatpush1.msra.mxu0 %v4637
    %5623 = vmatprep.subr.mxu0 %v4634
    %5624 = vmatpush1.msra.mxu0 %v4633
    %5625 = vmatprep.subr.mxu0 %v4630
    %5626 = vmatpush1.msra.mxu0 %v4629
    %5627 = vmatprep.subr.mxu0 %v4626
    %5628 = vmatpush1.msra.mxu0 %v4625
    %5629 = vmatprep.subr.mxu0 %v4622
    %5630 = vmatpush1.msra.mxu0 %v4621
    %5631 = vmatprep.subr.mxu0 %v4618
    %5632 = vmatpush1.msra.mxu0 %v4617
    %5633 = vmatprep.subr.mxu0 0.0
    %5634 = vmatpush2.msra.mxu0 0.0
    %5635 = vmatprep.subr.mxu0 0.0
    %5636 = vmatpush2.msra.mxu0 0.0
    %5637 = vmatprep.subr.mxu0 0.0
    %5638 = vmatpush2.msra.mxu0 0.0
    %5639 = vmatprep.subr.mxu0 0.0
    %5640 = vmatpush2.msra.mxu0 0.0
    %5641 = vmatprep.subr.mxu0 0.0
    %5642 = vmatpush2.msra.mxu0 0.0
    %5643 = vmatprep.subr.mxu0 0.0
    %5644 = vmatpush2.msra.mxu0 0.0
    %5645 = vmatprep.subr.mxu0 0.0
    %5646 = vmatpush2.msra.mxu0 0.0
    %5647 = vmatprep.subr.mxu0 0.0
    %5648 = vmatpush2.msra.mxu0 0.0
    %5649 = vmatprep.subr.mxu0 0.0
    %5650 = vmatpush2.msra.mxu0 0.0
    %5651 = vmatprep.subr.mxu0 0.0
    %5652 = vmatpush2.msra.mxu0 0.0
    %5653 = vmatprep.subr.mxu0 0.0
    %5654 = vmatpush2.msra.mxu0 0.0
    %5655 = vmatprep.subr.mxu0 0.0
    %5656 = vmatpush2.msra.mxu0 0.0
    %5657 = vmatprep.subr.mxu0 0.0
    %5658 = vmatpush2.msra.mxu0 0.0
    %5659 = vmatprep.subr.mxu0 0.0
    %5660 = vmatpush2.msra.mxu0 0.0
    %5661 = vmatprep.subr.mxu0 0.0
    %5662 = vmatpush2.msra.mxu0 0.0
    %5663 = vmatprep.subr.mxu0 0.0
    %5664 = vmatpush2.msra.mxu0 0.0
    %5665 = vmatprep.mubr.f32.mxu0 0.0
    %5666 = vmatmul.mubr.f32.gmra.mxu0 %v5599
    %v5667 = vpop.f32.mrf.mxu0
    %v5668 = vadd.f32 0.0, %v5667
    %v5669 = vpop.f32.mrf.mxu0
    %v5670 = vadd.f32 0.0, %v5669
    %5671 = vdwg.mxu0
    %5672 = vmatprep.subr.mxu0 %v4680
    %5673 = vmatpush1.msra.mxu0 %v4679
    %5674 = vmatprep.subr.mxu0 %v4676
    %5675 = vmatpush1.msra.mxu0 %v4675
    %5676 = vmatprep.subr.mxu0 %v4672
    %5677 = vmatpush1.msra.mxu0 %v4671
    %5678 = vmatprep.subr.mxu0 %v4668
    %5679 = vmatpush1.msra.mxu0 %v4667
    %5680 = vmatprep.subr.mxu0 %v4664
    %5681 = vmatpush1.msra.mxu0 %v4663
    %5682 = vmatprep.subr.mxu0 %v4660
    %5683 = vmatpush1.msra.mxu0 %v4659
    %5684 = vmatprep.subr.mxu0 %v4656
    %5685 = vmatpush1.msra.mxu0 %v4655
    %5686 = vmatprep.subr.mxu0 %v4652
    %5687 = vmatpush1.msra.mxu0 %v4651
    %5688 = vmatprep.subr.mxu0 %v4648
    %5689 = vmatpush1.msra.mxu0 %v4647
    %5690 = vmatprep.subr.mxu0 %v4644
    %5691 = vmatpush1.msra.mxu0 %v4643
    %5692 = vmatprep.subr.mxu0 %v4640
    %5693 = vmatpush1.msra.mxu0 %v4639
    %5694 = vmatprep.subr.mxu0 %v4636
    %5695 = vmatpush1.msra.mxu0 %v4635
    %5696 = vmatprep.subr.mxu0 %v4632
    %5697 = vmatpush1.msra.mxu0 %v4631
    %5698 = vmatprep.subr.mxu0 %v4628
    %5699 = vmatpush1.msra.mxu0 %v4627
    %5700 = vmatprep.subr.mxu0 %v4624
    %5701 = vmatpush1.msra.mxu0 %v4623
    %5702 = vmatprep.subr.mxu0 %v4620
    %5703 = vmatpush1.msra.mxu0 %v4619
    %5704 = vmatprep.subr.mxu0 0.0
    %5705 = vmatpush2.msra.mxu0 0.0
    %5706 = vmatprep.subr.mxu0 0.0
    %5707 = vmatpush2.msra.mxu0 0.0
    %5708 = vmatprep.subr.mxu0 0.0
    %5709 = vmatpush2.msra.mxu0 0.0
    %5710 = vmatprep.subr.mxu0 0.0
    %5711 = vmatpush2.msra.mxu0 0.0
    %5712 = vmatprep.subr.mxu0 0.0
    %5713 = vmatpush2.msra.mxu0 0.0
    %5714 = vmatprep.subr.mxu0 0.0
    %5715 = vmatpush2.msra.mxu0 0.0
    %5716 = vmatprep.subr.mxu0 0.0
    %5717 = vmatpush2.msra.mxu0 0.0
    %5718 = vmatprep.subr.mxu0 0.0
    %5719 = vmatpush2.msra.mxu0 0.0
    %5720 = vmatprep.subr.mxu0 0.0
    %5721 = vmatpush2.msra.mxu0 0.0
    %5722 = vmatprep.subr.mxu0 0.0
    %5723 = vmatpush2.msra.mxu0 0.0
    %5724 = vmatprep.subr.mxu0 0.0
    %5725 = vmatpush2.msra.mxu0 0.0
    %5726 = vmatprep.subr.mxu0 0.0
    %5727 = vmatpush2.msra.mxu0 0.0
    %5728 = vmatprep.subr.mxu0 0.0
    %5729 = vmatpush2.msra.mxu0 0.0
    %5730 = vmatprep.subr.mxu0 0.0
    %5731 = vmatpush2.msra.mxu0 0.0
    %5732 = vmatprep.subr.mxu0 0.0
    %5733 = vmatpush2.msra.mxu0 0.0
    %5734 = vmatprep.subr.mxu0 0.0
    %5735 = vmatpush2.msra.mxu0 0.0
    %5736 = vmatprep.mubr.f32.mxu0 0.0
    %5737 = vmatmul.mubr.f32.gmra.mxu0 %v5599
    %v5738 = vpop.f32.mrf.mxu0
    %v5739 = vadd.f32 0.0, %v5738
    %v5740 = vpop.f32.mrf.mxu0
    %v5741 = vadd.f32 0.0, %v5740
    %5742 = vdwg.mxu0
    %v5747 = vrot.slane %v5668, 4
    %v5748 = vrot.slane %v5670, 4
    %v5749 = vrot.slane %v5739, 4
    %v5750 = vrot.slane %v5741, 4
    %v5751 = vrot.slane %v5668, 5
    %v5752 = vrot.slane %v5670, 5
    %v5753 = vrot.slane %v5739, 5
    %v5754 = vrot.slane %v5741, 5
    %v5763 = vadd.f32 %v4529, %v5747
    %v5764 = vadd.f32 %v4531, %v5748
    %v5765 = vadd.f32 %v4606, %v5749
    %v5766 = vadd.f32 %v4608, %v5750
    %v5767 = vadd.f32 %v4535, %v5751
    %v5768 = vadd.f32 %v4537, %v5752
    %v5769 = vadd.f32 %v4612, %v5753
    %v5770 = vadd.f32 %v4614, %v5754
    %v5771 = vxor.u32 %v5763, 2147483648
    %v5772 = vxor.u32 %v5767, 2147483648
    %v5773 = vmul.f32 %v5771, 1.442695
    %v5774 = vpow.pop %v5773
    %v5775 = vmul.f32 %v5772, 1.442695
    %v5776 = vpow.pop %v5775
    %v5777 = vadd.f32 %v5774, 1.0
    %v5778 = vadd.f32 %v5776, 1.0
    %v5779 = vrcp.pop %v5777
    %v5780 = vmul.f32 1.0, %v5779
    %v5781 = vrcp.pop %v5778
    %v5782 = vmul.f32 1.0, %v5781
    %v5783 = vxor.u32 %v5764, 2147483648
    %v5784 = vxor.u32 %v5768, 2147483648
    %v5785 = vmul.f32 %v5783, 1.442695
    %v5786 = vpow.pop %v5785
    %v5787 = vmul.f32 %v5784, 1.442695
    %v5788 = vpow.pop %v5787
    %v5789 = vadd.f32 %v5786, 1.0
    %v5790 = vadd.f32 %v5788, 1.0
    %v5791 = vrcp.pop %v5789
    %v5792 = vmul.f32 1.0, %v5791
    %v5793 = vrcp.pop %v5790
    %v5794 = vmul.f32 1.0, %v5793
    %v5795 = vtanh.pop %v5765
    %v5796 = vtanh.pop %v5769
    %v5797 = vxor.u32 %v5766, 2147483648
    %v5798 = vxor.u32 %v5770, 2147483648
    %v5799 = vmul.f32 %v5797, 1.442695
    %v5800 = vpow.pop %v5799
    %v5801 = vmul.f32 %v5798, 1.442695
    %v5802 = vpow.pop %v5801
    %v5803 = vadd.f32 %v5800, 1.0
    %v5804 = vadd.f32 %v5802, 1.0
    %v5805 = vrcp.pop %v5803
    %v5806 = vmul.f32 1.0, %v5805
    %v5807 = vrcp.pop %v5804
    %v5808 = vmul.f32 1.0, %v5807
    %v5811 = vrot.slane %v5587, 7
    %v5812 = vrot.slane %v5588, 7
    %v5815 = vmul.f32 %v5792, %v5811
    %v5816 = vmul.f32 %v5794, %v5812
    %v5817 = vmul.f32 %v5780, %v5795
    %v5818 = vmul.f32 %v5782, %v5796
    %v5819 = vadd.f32 %v5815, %v5817
    %v5820 = vadd.f32 %v5816, %v5818
    %v5821 = vtanh.pop %v5819
    %v5822 = vtanh.pop %v5820
    %v5823 = vmul.f32 %v5806, %v5821
    %v5824 = vmul.f32 %v5808, %v5822
    %5825 = vst [vmem:[#allocation2] sm:$0x10] %v5823
    %5826 = vst [vmem:[#allocation2 + $0x8] sm:$0x10] %v5824
    %v5829 = vrot.slane %v5823, 4
    %v5830 = vrot.slane %v5824, 3
    %v5831 = vsel %vm574, %v5830, %v5829
    %5833 = vmatprep.subr.mxu0 %v4678
    %5834 = vmatpush1.msra.mxu0 %v4677
    %5835 = vmatprep.subr.mxu0 %v4674
    %5836 = vmatpush1.msra.mxu0 %v4673
    %5837 = vmatprep.subr.mxu0 %v4670
    %5838 = vmatpush1.msra.mxu0 %v4669
    %5839 = vmatprep.subr.mxu0 %v4666
    %5840 = vmatpush1.msra.mxu0 %v4665
    %5841 = vmatprep.subr.mxu0 %v4662
    %5842 = vmatpush1.msra.mxu0 %v4661
    %5843 = vmatprep.subr.mxu0 %v4658
    %5844 = vmatpush1.msra.mxu0 %v4657
    %5845 = vmatprep.subr.mxu0 %v4654
    %5846 = vmatpush1.msra.mxu0 %v4653
    %5847 = vmatprep.subr.mxu0 %v4650
    %5848 = vmatpush1.msra.mxu0 %v4649
    %5849 = vmatprep.subr.mxu0 %v4646
    %5850 = vmatpush1.msra.mxu0 %v4645
    %5851 = vmatprep.subr.mxu0 %v4642
    %5852 = vmatpush1.msra.mxu0 %v4641
    %5853 = vmatprep.subr.mxu0 %v4638
    %5854 = vmatpush1.msra.mxu0 %v4637
    %5855 = vmatprep.subr.mxu0 %v4634
    %5856 = vmatpush1.msra.mxu0 %v4633
    %5857 = vmatprep.subr.mxu0 %v4630
    %5858 = vmatpush1.msra.mxu0 %v4629
    %5859 = vmatprep.subr.mxu0 %v4626
    %5860 = vmatpush1.msra.mxu0 %v4625
    %5861 = vmatprep.subr.mxu0 %v4622
    %5862 = vmatpush1.msra.mxu0 %v4621
    %5863 = vmatprep.subr.mxu0 %v4618
    %5864 = vmatpush1.msra.mxu0 %v4617
    %5865 = vmatprep.subr.mxu0 0.0
    %5866 = vmatpush2.msra.mxu0 0.0
    %5867 = vmatprep.subr.mxu0 0.0
    %5868 = vmatpush2.msra.mxu0 0.0
    %5869 = vmatprep.subr.mxu0 0.0
    %5870 = vmatpush2.msra.mxu0 0.0
    %5871 = vmatprep.subr.mxu0 0.0
    %5872 = vmatpush2.msra.mxu0 0.0
    %5873 = vmatprep.subr.mxu0 0.0
    %5874 = vmatpush2.msra.mxu0 0.0
    %5875 = vmatprep.subr.mxu0 0.0
    %5876 = vmatpush2.msra.mxu0 0.0
    %5877 = vmatprep.subr.mxu0 0.0
    %5878 = vmatpush2.msra.mxu0 0.0
    %5879 = vmatprep.subr.mxu0 0.0
    %5880 = vmatpush2.msra.mxu0 0.0
    %5881 = vmatprep.subr.mxu0 0.0
    %5882 = vmatpush2.msra.mxu0 0.0
    %5883 = vmatprep.subr.mxu0 0.0
    %5884 = vmatpush2.msra.mxu0 0.0
    %5885 = vmatprep.subr.mxu0 0.0
    %5886 = vmatpush2.msra.mxu0 0.0
    %5887 = vmatprep.subr.mxu0 0.0
    %5888 = vmatpush2.msra.mxu0 0.0
    %5889 = vmatprep.subr.mxu0 0.0
    %5890 = vmatpush2.msra.mxu0 0.0
    %5891 = vmatprep.subr.mxu0 0.0
    %5892 = vmatpush2.msra.mxu0 0.0
    %5893 = vmatprep.subr.mxu0 0.0
    %5894 = vmatpush2.msra.mxu0 0.0
    %5895 = vmatprep.subr.mxu0 0.0
    %5896 = vmatpush2.msra.mxu0 0.0
    %5897 = vmatprep.mubr.f32.mxu0 0.0
    %5898 = vmatmul.mubr.f32.gmra.mxu0 %v5831
    %v5899 = vpop.f32.mrf.mxu0
    %v5900 = vadd.f32 0.0, %v5899
    %v5901 = vpop.f32.mrf.mxu0
    %v5902 = vadd.f32 0.0, %v5901
    %5903 = vdwg.mxu0
    %5904 = vmatprep.subr.mxu0 %v4680
    %5905 = vmatpush1.msra.mxu0 %v4679
    %5906 = vmatprep.subr.mxu0 %v4676
    %5907 = vmatpush1.msra.mxu0 %v4675
    %5908 = vmatprep.subr.mxu0 %v4672
    %5909 = vmatpush1.msra.mxu0 %v4671
    %5910 = vmatprep.subr.mxu0 %v4668
    %5911 = vmatpush1.msra.mxu0 %v4667
    %5912 = vmatprep.subr.mxu0 %v4664
    %5913 = vmatpush1.msra.mxu0 %v4663
    %5914 = vmatprep.subr.mxu0 %v4660
    %5915 = vmatpush1.msra.mxu0 %v4659
    %5916 = vmatprep.subr.mxu0 %v4656
    %5917 = vmatpush1.msra.mxu0 %v4655
    %5918 = vmatprep.subr.mxu0 %v4652
    %5919 = vmatpush1.msra.mxu0 %v4651
    %5920 = vmatprep.subr.mxu0 %v4648
    %5921 = vmatpush1.msra.mxu0 %v4647
    %5922 = vmatprep.subr.mxu0 %v4644
    %5923 = vmatpush1.msra.mxu0 %v4643
    %5924 = vmatprep.subr.mxu0 %v4640
    %5925 = vmatpush1.msra.mxu0 %v4639
    %5926 = vmatprep.subr.mxu0 %v4636
    %5927 = vmatpush1.msra.mxu0 %v4635
    %5928 = vmatprep.subr.mxu0 %v4632
    %5929 = vmatpush1.msra.mxu0 %v4631
    %5930 = vmatprep.subr.mxu0 %v4628
    %5931 = vmatpush1.msra.mxu0 %v4627
    %5932 = vmatprep.subr.mxu0 %v4624
    %5933 = vmatpush1.msra.mxu0 %v4623
    %5934 = vmatprep.subr.mxu0 %v4620
    %5935 = vmatpush1.msra.mxu0 %v4619
    %5936 = vmatprep.subr.mxu0 0.0
    %5937 = vmatpush2.msra.mxu0 0.0
    %5938 = vmatprep.subr.mxu0 0.0
    %5939 = vmatpush2.msra.mxu0 0.0
    %5940 = vmatprep.subr.mxu0 0.0
    %5941 = vmatpush2.msra.mxu0 0.0
    %5942 = vmatprep.subr.mxu0 0.0
    %5943 = vmatpush2.msra.mxu0 0.0
    %5944 = vmatprep.subr.mxu0 0.0
    %5945 = vmatpush2.msra.mxu0 0.0
    %5946 = vmatprep.subr.mxu0 0.0
    %5947 = vmatpush2.msra.mxu0 0.0
    %5948 = vmatprep.subr.mxu0 0.0
    %5949 = vmatpush2.msra.mxu0 0.0
    %5950 = vmatprep.subr.mxu0 0.0
    %5951 = vmatpush2.msra.mxu0 0.0
    %5952 = vmatprep.subr.mxu0 0.0
    %5953 = vmatpush2.msra.mxu0 0.0
    %5954 = vmatprep.subr.mxu0 0.0
    %5955 = vmatpush2.msra.mxu0 0.0
    %5956 = vmatprep.subr.mxu0 0.0
    %5957 = vmatpush2.msra.mxu0 0.0
    %5958 = vmatprep.subr.mxu0 0.0
    %5959 = vmatpush2.msra.mxu0 0.0
    %5960 = vmatprep.subr.mxu0 0.0
    %5961 = vmatpush2.msra.mxu0 0.0
    %5962 = vmatprep.subr.mxu0 0.0
    %5963 = vmatpush2.msra.mxu0 0.0
    %5964 = vmatprep.subr.mxu0 0.0
    %5965 = vmatpush2.msra.mxu0 0.0
    %5966 = vmatprep.subr.mxu0 0.0
    %5967 = vmatpush2.msra.mxu0 0.0
    %5968 = vmatprep.mubr.f32.mxu0 0.0
    %5969 = vmatmul.mubr.f32.gmra.mxu0 %v5831
    %v5970 = vpop.f32.mrf.mxu0
    %v5971 = vadd.f32 0.0, %v5970
    %v5972 = vpop.f32.mrf.mxu0
    %v5973 = vadd.f32 0.0, %v5972
    %5974 = vdwg.mxu0
    %v5979 = vrot.slane %v5900, 3
    %v5980 = vrot.slane %v5902, 3
    %v5981 = vrot.slane %v5971, 3
    %v5982 = vrot.slane %v5973, 3
    %v5983 = vrot.slane %v5900, 4
    %v5984 = vrot.slane %v5902, 4
    %v5985 = vrot.slane %v5971, 4
    %v5986 = vrot.slane %v5973, 4
    %v5995 = vadd.f32 %v4529, %v5979
    %v5996 = vadd.f32 %v4531, %v5980
    %v5997 = vadd.f32 %v4606, %v5981
    %v5998 = vadd.f32 %v4608, %v5982
    %v5999 = vadd.f32 %v4535, %v5983
    %v6000 = vadd.f32 %v4537, %v5984
    %v6001 = vadd.f32 %v4612, %v5985
    %v6002 = vadd.f32 %v4614, %v5986
    %v6003 = vxor.u32 %v5995, 2147483648
    %v6004 = vxor.u32 %v5999, 2147483648
    %v6005 = vmul.f32 %v6003, 1.442695
    %v6006 = vpow.pop %v6005
    %v6007 = vmul.f32 %v6004, 1.442695
    %v6008 = vpow.pop %v6007
    %v6009 = vadd.f32 %v6006, 1.0
    %v6010 = vadd.f32 %v6008, 1.0
    %v6011 = vrcp.pop %v6009
    %v6012 = vmul.f32 1.0, %v6011
    %v6013 = vrcp.pop %v6010
    %v6014 = vmul.f32 1.0, %v6013
    %v6015 = vxor.u32 %v5996, 2147483648
    %v6016 = vxor.u32 %v6000, 2147483648
    %v6017 = vmul.f32 %v6015, 1.442695
    %v6018 = vpow.pop %v6017
    %v6019 = vmul.f32 %v6016, 1.442695
    %v6020 = vpow.pop %v6019
    %v6021 = vadd.f32 %v6018, 1.0
    %v6022 = vadd.f32 %v6020, 1.0
    %v6023 = vrcp.pop %v6021
    %v6024 = vmul.f32 1.0, %v6023
    %v6025 = vrcp.pop %v6022
    %v6026 = vmul.f32 1.0, %v6025
    %v6027 = vtanh.pop %v5997
    %v6028 = vtanh.pop %v6001
    %v6029 = vxor.u32 %v5998, 2147483648
    %v6030 = vxor.u32 %v6002, 2147483648
    %v6031 = vmul.f32 %v6029, 1.442695
    %v6032 = vpow.pop %v6031
    %v6033 = vmul.f32 %v6030, 1.442695
    %v6034 = vpow.pop %v6033
    %v6035 = vadd.f32 %v6032, 1.0
    %v6036 = vadd.f32 %v6034, 1.0
    %v6037 = vrcp.pop %v6035
    %v6038 = vmul.f32 1.0, %v6037
    %v6039 = vrcp.pop %v6036
    %v6040 = vmul.f32 1.0, %v6039
    %v6043 = vrot.slane %v5819, 7
    %v6044 = vrot.slane %v5820, 7
    %v6047 = vmul.f32 %v6024, %v6043
    %v6048 = vmul.f32 %v6026, %v6044
    %v6049 = vmul.f32 %v6012, %v6027
    %v6050 = vmul.f32 %v6014, %v6028
    %v6051 = vadd.f32 %v6047, %v6049
    %v6052 = vadd.f32 %v6048, %v6050
    %v6053 = vtanh.pop %v6051
    %v6054 = vtanh.pop %v6052
    %v6055 = vmul.f32 %v6038, %v6053
    %v6056 = vmul.f32 %v6040, %v6054
    %6057 = vst [vmem:[#allocation2] sm:$0x20] %v6055
    %6058 = vst [vmem:[#allocation2 + $0x8] sm:$0x20] %v6056
    %v6061 = vrot.slane %v6055, 5
    %v6062 = vrot.slane %v6056, 4
    %v6063 = vsel %vm574, %v6062, %v6061
    %6065 = vmatprep.subr.mxu0 %v4678
    %6066 = vmatpush1.msra.mxu0 %v4677
    %6067 = vmatprep.subr.mxu0 %v4674
    %6068 = vmatpush1.msra.mxu0 %v4673
    %6069 = vmatprep.subr.mxu0 %v4670
    %6070 = vmatpush1.msra.mxu0 %v4669
    %6071 = vmatprep.subr.mxu0 %v4666
    %6072 = vmatpush1.msra.mxu0 %v4665
    %6073 = vmatprep.subr.mxu0 %v4662
    %6074 = vmatpush1.msra.mxu0 %v4661
    %6075 = vmatprep.subr.mxu0 %v4658
    %6076 = vmatpush1.msra.mxu0 %v4657
    %6077 = vmatprep.subr.mxu0 %v4654
    %6078 = vmatpush1.msra.mxu0 %v4653
    %6079 = vmatprep.subr.mxu0 %v4650
    %6080 = vmatpush1.msra.mxu0 %v4649
    %6081 = vmatprep.subr.mxu0 %v4646
    %6082 = vmatpush1.msra.mxu0 %v4645
    %6083 = vmatprep.subr.mxu0 %v4642
    %6084 = vmatpush1.msra.mxu0 %v4641
    %6085 = vmatprep.subr.mxu0 %v4638
    %6086 = vmatpush1.msra.mxu0 %v4637
    %6087 = vmatprep.subr.mxu0 %v4634
    %6088 = vmatpush1.msra.mxu0 %v4633
    %6089 = vmatprep.subr.mxu0 %v4630
    %6090 = vmatpush1.msra.mxu0 %v4629
    %6091 = vmatprep.subr.mxu0 %v4626
    %6092 = vmatpush1.msra.mxu0 %v4625
    %6093 = vmatprep.subr.mxu0 %v4622
    %6094 = vmatpush1.msra.mxu0 %v4621
    %6095 = vmatprep.subr.mxu0 %v4618
    %6096 = vmatpush1.msra.mxu0 %v4617
    %6097 = vmatprep.subr.mxu0 0.0
    %6098 = vmatpush2.msra.mxu0 0.0
    %6099 = vmatprep.subr.mxu0 0.0
    %6100 = vmatpush2.msra.mxu0 0.0
    %6101 = vmatprep.subr.mxu0 0.0
    %6102 = vmatpush2.msra.mxu0 0.0
    %6103 = vmatprep.subr.mxu0 0.0
    %6104 = vmatpush2.msra.mxu0 0.0
    %6105 = vmatprep.subr.mxu0 0.0
    %6106 = vmatpush2.msra.mxu0 0.0
    %6107 = vmatprep.subr.mxu0 0.0
    %6108 = vmatpush2.msra.mxu0 0.0
    %6109 = vmatprep.subr.mxu0 0.0
    %6110 = vmatpush2.msra.mxu0 0.0
    %6111 = vmatprep.subr.mxu0 0.0
    %6112 = vmatpush2.msra.mxu0 0.0
    %6113 = vmatprep.subr.mxu0 0.0
    %6114 = vmatpush2.msra.mxu0 0.0
    %6115 = vmatprep.subr.mxu0 0.0
    %6116 = vmatpush2.msra.mxu0 0.0
    %6117 = vmatprep.subr.mxu0 0.0
    %6118 = vmatpush2.msra.mxu0 0.0
    %6119 = vmatprep.subr.mxu0 0.0
    %6120 = vmatpush2.msra.mxu0 0.0
    %6121 = vmatprep.subr.mxu0 0.0
    %6122 = vmatpush2.msra.mxu0 0.0
    %6123 = vmatprep.subr.mxu0 0.0
    %6124 = vmatpush2.msra.mxu0 0.0
    %6125 = vmatprep.subr.mxu0 0.0
    %6126 = vmatpush2.msra.mxu0 0.0
    %6127 = vmatprep.subr.mxu0 0.0
    %6128 = vmatpush2.msra.mxu0 0.0
    %6129 = vmatprep.mubr.f32.mxu0 0.0
    %6130 = vmatmul.mubr.f32.gmra.mxu0 %v6063
    %v6131 = vpop.f32.mrf.mxu0
    %v6132 = vadd.f32 0.0, %v6131
    %v6133 = vpop.f32.mrf.mxu0
    %v6134 = vadd.f32 0.0, %v6133
    %6135 = vdwg.mxu0
    %6136 = vmatprep.subr.mxu0 %v4680
    %6137 = vmatpush1.msra.mxu0 %v4679
    %6138 = vmatprep.subr.mxu0 %v4676
    %6139 = vmatpush1.msra.mxu0 %v4675
    %6140 = vmatprep.subr.mxu0 %v4672
    %6141 = vmatpush1.msra.mxu0 %v4671
    %6142 = vmatprep.subr.mxu0 %v4668
    %6143 = vmatpush1.msra.mxu0 %v4667
    %6144 = vmatprep.subr.mxu0 %v4664
    %6145 = vmatpush1.msra.mxu0 %v4663
    %6146 = vmatprep.subr.mxu0 %v4660
    %6147 = vmatpush1.msra.mxu0 %v4659
    %6148 = vmatprep.subr.mxu0 %v4656
    %6149 = vmatpush1.msra.mxu0 %v4655
    %6150 = vmatprep.subr.mxu0 %v4652
    %6151 = vmatpush1.msra.mxu0 %v4651
    %6152 = vmatprep.subr.mxu0 %v4648
    %6153 = vmatpush1.msra.mxu0 %v4647
    %6154 = vmatprep.subr.mxu0 %v4644
    %6155 = vmatpush1.msra.mxu0 %v4643
    %6156 = vmatprep.subr.mxu0 %v4640
    %6157 = vmatpush1.msra.mxu0 %v4639
    %6158 = vmatprep.subr.mxu0 %v4636
    %6159 = vmatpush1.msra.mxu0 %v4635
    %6160 = vmatprep.subr.mxu0 %v4632
    %6161 = vmatpush1.msra.mxu0 %v4631
    %6162 = vmatprep.subr.mxu0 %v4628
    %6163 = vmatpush1.msra.mxu0 %v4627
    %6164 = vmatprep.subr.mxu0 %v4624
    %6165 = vmatpush1.msra.mxu0 %v4623
    %6166 = vmatprep.subr.mxu0 %v4620
    %6167 = vmatpush1.msra.mxu0 %v4619
    %6168 = vmatprep.subr.mxu0 0.0
    %6169 = vmatpush2.msra.mxu0 0.0
    %6170 = vmatprep.subr.mxu0 0.0
    %6171 = vmatpush2.msra.mxu0 0.0
    %6172 = vmatprep.subr.mxu0 0.0
    %6173 = vmatpush2.msra.mxu0 0.0
    %6174 = vmatprep.subr.mxu0 0.0
    %6175 = vmatpush2.msra.mxu0 0.0
    %6176 = vmatprep.subr.mxu0 0.0
    %6177 = vmatpush2.msra.mxu0 0.0
    %6178 = vmatprep.subr.mxu0 0.0
    %6179 = vmatpush2.msra.mxu0 0.0
    %6180 = vmatprep.subr.mxu0 0.0
    %6181 = vmatpush2.msra.mxu0 0.0
    %6182 = vmatprep.subr.mxu0 0.0
    %6183 = vmatpush2.msra.mxu0 0.0
    %6184 = vmatprep.subr.mxu0 0.0
    %6185 = vmatpush2.msra.mxu0 0.0
    %6186 = vmatprep.subr.mxu0 0.0
    %6187 = vmatpush2.msra.mxu0 0.0
    %6188 = vmatprep.subr.mxu0 0.0
    %6189 = vmatpush2.msra.mxu0 0.0
    %6190 = vmatprep.subr.mxu0 0.0
    %6191 = vmatpush2.msra.mxu0 0.0
    %6192 = vmatprep.subr.mxu0 0.0
    %6193 = vmatpush2.msra.mxu0 0.0
    %6194 = vmatprep.subr.mxu0 0.0
    %6195 = vmatpush2.msra.mxu0 0.0
    %6196 = vmatprep.subr.mxu0 0.0
    %6197 = vmatpush2.msra.mxu0 0.0
    %6198 = vmatprep.subr.mxu0 0.0
    %6199 = vmatpush2.msra.mxu0 0.0
    %6200 = vmatprep.mubr.f32.mxu0 0.0
    %6201 = vmatmul.mubr.f32.gmra.mxu0 %v6063
    %v6202 = vpop.f32.mrf.mxu0
    %v6203 = vadd.f32 0.0, %v6202
    %v6204 = vpop.f32.mrf.mxu0
    %v6205 = vadd.f32 0.0, %v6204
    %6206 = vdwg.mxu0
    %v6211 = vrot.slane %v6132, 2
    %v6212 = vrot.slane %v6134, 2
    %v6213 = vrot.slane %v6203, 2
    %v6214 = vrot.slane %v6205, 2
    %v6215 = vrot.slane %v6132, 3
    %v6216 = vrot.slane %v6134, 3
    %v6217 = vrot.slane %v6203, 3
    %v6218 = vrot.slane %v6205, 3
    %v6227 = vadd.f32 %v4529, %v6211
    %v6228 = vadd.f32 %v4531, %v6212
    %v6229 = vadd.f32 %v4606, %v6213
    %v6230 = vadd.f32 %v4608, %v6214
    %v6231 = vadd.f32 %v4535, %v6215
    %v6232 = vadd.f32 %v4537, %v6216
    %v6233 = vadd.f32 %v4612, %v6217
    %v6234 = vadd.f32 %v4614, %v6218
    %v6235 = vxor.u32 %v6227, 2147483648
    %v6236 = vxor.u32 %v6231, 2147483648
    %v6237 = vmul.f32 %v6235, 1.442695
    %v6238 = vpow.pop %v6237
    %v6239 = vmul.f32 %v6236, 1.442695
    %v6240 = vpow.pop %v6239
    %v6241 = vadd.f32 %v6238, 1.0
    %v6242 = vadd.f32 %v6240, 1.0
    %v6243 = vrcp.pop %v6241
    %v6244 = vmul.f32 1.0, %v6243
    %v6245 = vrcp.pop %v6242
    %v6246 = vmul.f32 1.0, %v6245
    %v6247 = vxor.u32 %v6228, 2147483648
    %v6248 = vxor.u32 %v6232, 2147483648
    %v6249 = vmul.f32 %v6247, 1.442695
    %v6250 = vpow.pop %v6249
    %v6251 = vmul.f32 %v6248, 1.442695
    %v6252 = vpow.pop %v6251
    %v6253 = vadd.f32 %v6250, 1.0
    %v6254 = vadd.f32 %v6252, 1.0
    %v6255 = vrcp.pop %v6253
    %v6256 = vmul.f32 1.0, %v6255
    %v6257 = vrcp.pop %v6254
    %v6258 = vmul.f32 1.0, %v6257
    %v6259 = vtanh.pop %v6229
    %v6260 = vtanh.pop %v6233
    %v6261 = vxor.u32 %v6230, 2147483648
    %v6262 = vxor.u32 %v6234, 2147483648
    %v6263 = vmul.f32 %v6261, 1.442695
    %v6264 = vpow.pop %v6263
    %v6265 = vmul.f32 %v6262, 1.442695
    %v6266 = vpow.pop %v6265
    %v6267 = vadd.f32 %v6264, 1.0
    %v6268 = vadd.f32 %v6266, 1.0
    %v6269 = vrcp.pop %v6267
    %v6270 = vmul.f32 1.0, %v6269
    %v6271 = vrcp.pop %v6268
    %v6272 = vmul.f32 1.0, %v6271
    %v6275 = vrot.slane %v6051, 7
    %v6276 = vrot.slane %v6052, 7
    %v6279 = vmul.f32 %v6256, %v6275
    %v6280 = vmul.f32 %v6258, %v6276
    %v6281 = vmul.f32 %v6244, %v6259
    %v6282 = vmul.f32 %v6246, %v6260
    %v6283 = vadd.f32 %v6279, %v6281
    %v6284 = vadd.f32 %v6280, %v6282
    %v6285 = vtanh.pop %v6283
    %v6286 = vtanh.pop %v6284
    %v6287 = vmul.f32 %v6270, %v6285
    %v6288 = vmul.f32 %v6272, %v6286
    %6289 = vst [vmem:[#allocation2] sm:$0x40] %v6287
    %6290 = vst [vmem:[#allocation2 + $0x8] sm:$0x40] %v6288
    %v6293 = vrot.slane %v6287, 6
    %v6294 = vrot.slane %v6288, 5
    %v6295 = vsel %vm574, %v6294, %v6293
    %6297 = vmatprep.subr.mxu0 %v4678
    %6298 = vmatpush1.msra.mxu0 %v4677
    %6299 = vmatprep.subr.mxu0 %v4674
    %6300 = vmatpush1.msra.mxu0 %v4673
    %6301 = vmatprep.subr.mxu0 %v4670
    %6302 = vmatpush1.msra.mxu0 %v4669
    %6303 = vmatprep.subr.mxu0 %v4666
    %6304 = vmatpush1.msra.mxu0 %v4665
    %6305 = vmatprep.subr.mxu0 %v4662
    %6306 = vmatpush1.msra.mxu0 %v4661
    %6307 = vmatprep.subr.mxu0 %v4658
    %6308 = vmatpush1.msra.mxu0 %v4657
    %6309 = vmatprep.subr.mxu0 %v4654
    %6310 = vmatpush1.msra.mxu0 %v4653
    %6311 = vmatprep.subr.mxu0 %v4650
    %6312 = vmatpush1.msra.mxu0 %v4649
    %6313 = vmatprep.subr.mxu0 %v4646
    %6314 = vmatpush1.msra.mxu0 %v4645
    %6315 = vmatprep.subr.mxu0 %v4642
    %6316 = vmatpush1.msra.mxu0 %v4641
    %6317 = vmatprep.subr.mxu0 %v4638
    %6318 = vmatpush1.msra.mxu0 %v4637
    %6319 = vmatprep.subr.mxu0 %v4634
    %6320 = vmatpush1.msra.mxu0 %v4633
    %6321 = vmatprep.subr.mxu0 %v4630
    %6322 = vmatpush1.msra.mxu0 %v4629
    %6323 = vmatprep.subr.mxu0 %v4626
    %6324 = vmatpush1.msra.mxu0 %v4625
    %6325 = vmatprep.subr.mxu0 %v4622
    %6326 = vmatpush1.msra.mxu0 %v4621
    %6327 = vmatprep.subr.mxu0 %v4618
    %6328 = vmatpush1.msra.mxu0 %v4617
    %6329 = vmatprep.subr.mxu0 0.0
    %6330 = vmatpush2.msra.mxu0 0.0
    %6331 = vmatprep.subr.mxu0 0.0
    %6332 = vmatpush2.msra.mxu0 0.0
    %6333 = vmatprep.subr.mxu0 0.0
    %6334 = vmatpush2.msra.mxu0 0.0
    %6335 = vmatprep.subr.mxu0 0.0
    %6336 = vmatpush2.msra.mxu0 0.0
    %6337 = vmatprep.subr.mxu0 0.0
    %6338 = vmatpush2.msra.mxu0 0.0
    %6339 = vmatprep.subr.mxu0 0.0
    %6340 = vmatpush2.msra.mxu0 0.0
    %6341 = vmatprep.subr.mxu0 0.0
    %6342 = vmatpush2.msra.mxu0 0.0
    %6343 = vmatprep.subr.mxu0 0.0
    %6344 = vmatpush2.msra.mxu0 0.0
    %6345 = vmatprep.subr.mxu0 0.0
    %6346 = vmatpush2.msra.mxu0 0.0
    %6347 = vmatprep.subr.mxu0 0.0
    %6348 = vmatpush2.msra.mxu0 0.0
    %6349 = vmatprep.subr.mxu0 0.0
    %6350 = vmatpush2.msra.mxu0 0.0
    %6351 = vmatprep.subr.mxu0 0.0
    %6352 = vmatpush2.msra.mxu0 0.0
    %6353 = vmatprep.subr.mxu0 0.0
    %6354 = vmatpush2.msra.mxu0 0.0
    %6355 = vmatprep.subr.mxu0 0.0
    %6356 = vmatpush2.msra.mxu0 0.0
    %6357 = vmatprep.subr.mxu0 0.0
    %6358 = vmatpush2.msra.mxu0 0.0
    %6359 = vmatprep.subr.mxu0 0.0
    %6360 = vmatpush2.msra.mxu0 0.0
    %6361 = vmatprep.mubr.f32.mxu0 0.0
    %6362 = vmatmul.mubr.f32.gmra.mxu0 %v6295
    %v6363 = vpop.f32.mrf.mxu0
    %v6364 = vadd.f32 0.0, %v6363
    %v6365 = vpop.f32.mrf.mxu0
    %v6366 = vadd.f32 0.0, %v6365
    %6367 = vdwg.mxu0
    %6368 = vmatprep.subr.mxu0 %v4680
    %6369 = vmatpush1.msra.mxu0 %v4679
    %6370 = vmatprep.subr.mxu0 %v4676
    %6371 = vmatpush1.msra.mxu0 %v4675
    %6372 = vmatprep.subr.mxu0 %v4672
    %6373 = vmatpush1.msra.mxu0 %v4671
    %6374 = vmatprep.subr.mxu0 %v4668
    %6375 = vmatpush1.msra.mxu0 %v4667
    %6376 = vmatprep.subr.mxu0 %v4664
    %6377 = vmatpush1.msra.mxu0 %v4663
    %6378 = vmatprep.subr.mxu0 %v4660
    %6379 = vmatpush1.msra.mxu0 %v4659
    %6380 = vmatprep.subr.mxu0 %v4656
    %6381 = vmatpush1.msra.mxu0 %v4655
    %6382 = vmatprep.subr.mxu0 %v4652
    %6383 = vmatpush1.msra.mxu0 %v4651
    %6384 = vmatprep.subr.mxu0 %v4648
    %6385 = vmatpush1.msra.mxu0 %v4647
    %6386 = vmatprep.subr.mxu0 %v4644
    %6387 = vmatpush1.msra.mxu0 %v4643
    %6388 = vmatprep.subr.mxu0 %v4640
    %6389 = vmatpush1.msra.mxu0 %v4639
    %6390 = vmatprep.subr.mxu0 %v4636
    %6391 = vmatpush1.msra.mxu0 %v4635
    %6392 = vmatprep.subr.mxu0 %v4632
    %6393 = vmatpush1.msra.mxu0 %v4631
    %6394 = vmatprep.subr.mxu0 %v4628
    %6395 = vmatpush1.msra.mxu0 %v4627
    %6396 = vmatprep.subr.mxu0 %v4624
    %6397 = vmatpush1.msra.mxu0 %v4623
    %6398 = vmatprep.subr.mxu0 %v4620
    %6399 = vmatpush1.msra.mxu0 %v4619
    %6400 = vmatprep.subr.mxu0 0.0
    %6401 = vmatpush2.msra.mxu0 0.0
    %6402 = vmatprep.subr.mxu0 0.0
    %6403 = vmatpush2.msra.mxu0 0.0
    %6404 = vmatprep.subr.mxu0 0.0
    %6405 = vmatpush2.msra.mxu0 0.0
    %6406 = vmatprep.subr.mxu0 0.0
    %6407 = vmatpush2.msra.mxu0 0.0
    %6408 = vmatprep.subr.mxu0 0.0
    %6409 = vmatpush2.msra.mxu0 0.0
    %6410 = vmatprep.subr.mxu0 0.0
    %6411 = vmatpush2.msra.mxu0 0.0
    %6412 = vmatprep.subr.mxu0 0.0
    %6413 = vmatpush2.msra.mxu0 0.0
    %6414 = vmatprep.subr.mxu0 0.0
    %6415 = vmatpush2.msra.mxu0 0.0
    %6416 = vmatprep.subr.mxu0 0.0
    %6417 = vmatpush2.msra.mxu0 0.0
    %6418 = vmatprep.subr.mxu0 0.0
    %6419 = vmatpush2.msra.mxu0 0.0
    %6420 = vmatprep.subr.mxu0 0.0
    %6421 = vmatpush2.msra.mxu0 0.0
    %6422 = vmatprep.subr.mxu0 0.0
    %6423 = vmatpush2.msra.mxu0 0.0
    %6424 = vmatprep.subr.mxu0 0.0
    %6425 = vmatpush2.msra.mxu0 0.0
    %6426 = vmatprep.subr.mxu0 0.0
    %6427 = vmatpush2.msra.mxu0 0.0
    %6428 = vmatprep.subr.mxu0 0.0
    %6429 = vmatpush2.msra.mxu0 0.0
    %6430 = vmatprep.subr.mxu0 0.0
    %6431 = vmatpush2.msra.mxu0 0.0
    %6432 = vmatprep.mubr.f32.mxu0 0.0
    %6433 = vmatmul.mubr.f32.gmra.mxu0 %v6295
    %v6434 = vpop.f32.mrf.mxu0
    %v6435 = vadd.f32 0.0, %v6434
    %v6436 = vpop.f32.mrf.mxu0
    %v6437 = vadd.f32 0.0, %v6436
    %6438 = vdwg.mxu0
    %v6443 = vrot.slane %v6364, 1
    %v6444 = vrot.slane %v6366, 1
    %v6445 = vrot.slane %v6435, 1
    %v6446 = vrot.slane %v6437, 1
    %v6447 = vrot.slane %v6364, 2
    %v6448 = vrot.slane %v6366, 2
    %v6449 = vrot.slane %v6435, 2
    %v6450 = vrot.slane %v6437, 2
    %v6459 = vadd.f32 %v4529, %v6443
    %v6460 = vadd.f32 %v4531, %v6444
    %v6461 = vadd.f32 %v4606, %v6445
    %v6462 = vadd.f32 %v4608, %v6446
    %v6463 = vadd.f32 %v4535, %v6447
    %v6464 = vadd.f32 %v4537, %v6448
    %v6465 = vadd.f32 %v4612, %v6449
    %v6466 = vadd.f32 %v4614, %v6450
    %v6467 = vxor.u32 %v6459, 2147483648
    %v6468 = vxor.u32 %v6463, 2147483648
    %v6469 = vmul.f32 %v6467, 1.442695
    %v6470 = vpow.pop %v6469
    %v6471 = vmul.f32 %v6468, 1.442695
    %v6472 = vpow.pop %v6471
    %v6473 = vadd.f32 %v6470, 1.0
    %v6474 = vadd.f32 %v6472, 1.0
    %v6475 = vrcp.pop %v6473
    %v6476 = vmul.f32 1.0, %v6475
    %v6477 = vrcp.pop %v6474
    %v6478 = vmul.f32 1.0, %v6477
    %v6479 = vxor.u32 %v6460, 2147483648
    %v6480 = vxor.u32 %v6464, 2147483648
    %v6481 = vmul.f32 %v6479, 1.442695
    %v6482 = vpow.pop %v6481
    %v6483 = vmul.f32 %v6480, 1.442695
    %v6484 = vpow.pop %v6483
    %v6485 = vadd.f32 %v6482, 1.0
    %v6486 = vadd.f32 %v6484, 1.0
    %v6487 = vrcp.pop %v6485
    %v6488 = vmul.f32 1.0, %v6487
    %v6489 = vrcp.pop %v6486
    %v6490 = vmul.f32 1.0, %v6489
    %v6491 = vtanh.pop %v6461
    %v6492 = vtanh.pop %v6465
    %v6493 = vxor.u32 %v6462, 2147483648
    %v6494 = vxor.u32 %v6466, 2147483648
    %v6495 = vmul.f32 %v6493, 1.442695
    %v6496 = vpow.pop %v6495
    %v6497 = vmul.f32 %v6494, 1.442695
    %v6498 = vpow.pop %v6497
    %v6499 = vadd.f32 %v6496, 1.0
    %v6500 = vadd.f32 %v6498, 1.0
    %v6501 = vrcp.pop %v6499
    %v6502 = vmul.f32 1.0, %v6501
    %v6503 = vrcp.pop %v6500
    %v6504 = vmul.f32 1.0, %v6503
    %v6507 = vrot.slane %v6283, 7
    %v6508 = vrot.slane %v6284, 7
    %v6511 = vmul.f32 %v6488, %v6507
    %v6512 = vmul.f32 %v6490, %v6508
    %v6513 = vmul.f32 %v6476, %v6491
    %v6514 = vmul.f32 %v6478, %v6492
    %v6515 = vadd.f32 %v6511, %v6513
    %v6516 = vadd.f32 %v6512, %v6514
    %v6517 = vtanh.pop %v6515
    %v6518 = vtanh.pop %v6516
    %v6519 = vmul.f32 %v6502, %v6517
    %v6520 = vmul.f32 %v6504, %v6518
    %6521 = vst [vmem:[#allocation2] sm:$0x80] %v6519
    %6522 = vst [vmem:[#allocation2 + $0x8] sm:$0x80] %v6520
    %v6525 = vrot.slane %v6520, 7
    %s6528 = scalar_lea.vmem [#allocation9], 4
    %6529 = vst.msk [vmem:[%s6528 - $0x7] sm:$0x80] %vm2195, %v6519
    %6530 = vst.msk [vmem:[%s6528 + $0x1] sm:$0x1] %vm2197, %v6525
    %v6533 = vrot.slane %v6516, 7
    %s6536 = scalar_lea.vmem [#allocation11], 4
    %6537 = vst.msk [vmem:[%s6536 - $0x7] sm:$0x80] %vm2195, %v6515
    %6538 = vst.msk [vmem:[%s6536 + $0x1] sm:$0x1] %vm2197, %v6533
    %v6539 = vld [vmem:[#allocation2] sm:$0xff]
    %v6540 = vld [vmem:[#allocation2 + $0x8] sm:$0xff]
    %s6541 = scalar_lea.vmem [#allocation3], 1024
    %v6542 = vld [vmem:[%s6541] sm:$0xff]
    %v6543 = vld [vmem:[%s6541 + $0x8] sm:$0xff]
    %v6544 = vld [vmem:[%s6541 + $0x10] sm:$0xff]
    %v6545 = vld [vmem:[%s6541 + $0x18] sm:$0xff]
    %v6546 = vld [vmem:[%s6541 + $0x20] sm:$0xff]
    %v6547 = vld [vmem:[%s6541 + $0x28] sm:$0xff]
    %v6548 = vld [vmem:[%s6541 + $0x30] sm:$0xff]
    %v6549 = vld [vmem:[%s6541 + $0x38] sm:$0xff]
    %v6550 = vld [vmem:[%s6541 + $0x40] sm:$0xff]
    %v6551 = vld [vmem:[%s6541 + $0x48] sm:$0xff]
    %v6552 = vld [vmem:[%s6541 + $0x50] sm:$0xff]
    %v6553 = vld [vmem:[%s6541 + $0x58] sm:$0xff]
    %v6554 = vld [vmem:[%s6541 + $0x60] sm:$0xff]
    %v6555 = vld [vmem:[%s6541 + $0x68] sm:$0xff]
    %v6556 = vld [vmem:[%s6541 + $0x70] sm:$0xff]
    %v6557 = vld [vmem:[%s6541 + $0x78] sm:$0xff]
    %v6558 = vld [vmem:[%s6541 + $0x80] sm:$0xff]
    %v6559 = vld [vmem:[%s6541 + $0x88] sm:$0xff]
    %v6560 = vld [vmem:[%s6541 + $0x90] sm:$0xff]
    %v6561 = vld [vmem:[%s6541 + $0x98] sm:$0xff]
    %v6562 = vld [vmem:[%s6541 + $0xa0] sm:$0xff]
    %v6563 = vld [vmem:[%s6541 + $0xa8] sm:$0xff]
    %v6564 = vld [vmem:[%s6541 + $0xb0] sm:$0xff]
    %v6565 = vld [vmem:[%s6541 + $0xb8] sm:$0xff]
    %v6566 = vld [vmem:[%s6541 + $0xc0] sm:$0xff]
    %v6567 = vld [vmem:[%s6541 + $0xc8] sm:$0xff]
    %v6568 = vld [vmem:[%s6541 + $0xd0] sm:$0xff]
    %v6569 = vld [vmem:[%s6541 + $0xd8] sm:$0xff]
    %v6570 = vld [vmem:[%s6541 + $0xe0] sm:$0xff]
    %v6571 = vld [vmem:[%s6541 + $0xe8] sm:$0xff]
    %v6572 = vld [vmem:[%s6541 + $0xf0] sm:$0xff]
    %v6573 = vld [vmem:[%s6541 + $0xf8] sm:$0xff]
    %v6574 = vld [vmem:[%s6541 + $0x100] sm:$0xff]
    %v6575 = vld [vmem:[%s6541 + $0x108] sm:$0xff]
    %v6576 = vld [vmem:[%s6541 + $0x110] sm:$0xff]
    %v6577 = vld [vmem:[%s6541 + $0x118] sm:$0xff]
    %v6578 = vld [vmem:[%s6541 + $0x120] sm:$0xff]
    %v6579 = vld [vmem:[%s6541 + $0x128] sm:$0xff]
    %v6580 = vld [vmem:[%s6541 + $0x130] sm:$0xff]
    %v6581 = vld [vmem:[%s6541 + $0x138] sm:$0xff]
    %v6582 = vld [vmem:[%s6541 + $0x140] sm:$0xff]
    %v6583 = vld [vmem:[%s6541 + $0x148] sm:$0xff]
    %v6584 = vld [vmem:[%s6541 + $0x150] sm:$0xff]
    %v6585 = vld [vmem:[%s6541 + $0x158] sm:$0xff]
    %v6586 = vld [vmem:[%s6541 + $0x160] sm:$0xff]
    %v6587 = vld [vmem:[%s6541 + $0x168] sm:$0xff]
    %v6588 = vld [vmem:[%s6541 + $0x170] sm:$0xff]
    %v6589 = vld [vmem:[%s6541 + $0x178] sm:$0xff]
    %v6590 = vld [vmem:[%s6541 + $0x180] sm:$0xff]
    %v6591 = vld [vmem:[%s6541 + $0x188] sm:$0xff]
    %v6592 = vld [vmem:[%s6541 + $0x190] sm:$0xff]
    %v6593 = vld [vmem:[%s6541 + $0x198] sm:$0xff]
    %v6594 = vld [vmem:[%s6541 + $0x1a0] sm:$0xff]
    %v6595 = vld [vmem:[%s6541 + $0x1a8] sm:$0xff]
    %v6596 = vld [vmem:[%s6541 + $0x1b0] sm:$0xff]
    %v6597 = vld [vmem:[%s6541 + $0x1b8] sm:$0xff]
    %v6598 = vld [vmem:[%s6541 + $0x1c0] sm:$0xff]
    %v6599 = vld [vmem:[%s6541 + $0x1c8] sm:$0xff]
    %v6600 = vld [vmem:[%s6541 + $0x1d0] sm:$0xff]
    %v6601 = vld [vmem:[%s6541 + $0x1d8] sm:$0xff]
    %v6602 = vld [vmem:[%s6541 + $0x1e0] sm:$0xff]
    %v6603 = vld [vmem:[%s6541 + $0x1e8] sm:$0xff]
    %v6604 = vld [vmem:[%s6541 + $0x1f0] sm:$0xff]
    %v6605 = vld [vmem:[%s6541 + $0x1f8] sm:$0xff]
    %s6606 = scalar_lea.vmem %s6, 12
    %v6607 = vld [vmem:[%s6606] sm:$0xf]
    %v6609 = vlaneseq
    %v6610 = vshrl.u32 %v6609, 7
    %v6611 = vsub.s32 0, %v6610
    %v6612 = vrot.slane %v6607, %v6611
    %v6613 = vlaneseq
    %v6614 = vshrl.u32 %v6613, 7
    %v6615 = vsub.s32 1, %v6614
    %v6616 = vrot.slane %v6607, %v6615
    %v6617 = vlaneseq
    %v6618 = vshrl.u32 %v6617, 7
    %v6619 = vsub.s32 2, %v6618
    %v6620 = vrot.slane %v6607, %v6619
    %v6621 = vlaneseq
    %v6622 = vshrl.u32 %v6621, 7
    %v6623 = vsub.s32 3, %v6622
    %v6624 = vrot.slane %v6607, %v6623
    %6629 = vmatprep.subr.mxu0 %v6603
    %6630 = vmatpush1.msra.mxu0 %v6602
    %6631 = vmatprep.subr.mxu0 %v6599
    %6632 = vmatpush1.msra.mxu0 %v6598
    %6633 = vmatprep.subr.mxu0 %v6595
    %6634 = vmatpush1.msra.mxu0 %v6594
    %6635 = vmatprep.subr.mxu0 %v6591
    %6636 = vmatpush1.msra.mxu0 %v6590
    %6637 = vmatprep.subr.mxu0 %v6587
    %6638 = vmatpush1.msra.mxu0 %v6586
    %6639 = vmatprep.subr.mxu0 %v6583
    %6640 = vmatpush1.msra.mxu0 %v6582
    %6641 = vmatprep.subr.mxu0 %v6579
    %6642 = vmatpush1.msra.mxu0 %v6578
    %6643 = vmatprep.subr.mxu0 %v6575
    %6644 = vmatpush1.msra.mxu0 %v6574
    %6645 = vmatprep.subr.mxu0 %v6571
    %6646 = vmatpush1.msra.mxu0 %v6570
    %6647 = vmatprep.subr.mxu0 %v6567
    %6648 = vmatpush1.msra.mxu0 %v6566
    %6649 = vmatprep.subr.mxu0 %v6563
    %6650 = vmatpush1.msra.mxu0 %v6562
    %6651 = vmatprep.subr.mxu0 %v6559
    %6652 = vmatpush1.msra.mxu0 %v6558
    %6653 = vmatprep.subr.mxu0 %v6555
    %6654 = vmatpush1.msra.mxu0 %v6554
    %6655 = vmatprep.subr.mxu0 %v6551
    %6656 = vmatpush1.msra.mxu0 %v6550
    %6657 = vmatprep.subr.mxu0 %v6547
    %6658 = vmatpush1.msra.mxu0 %v6546
    %6659 = vmatprep.subr.mxu0 %v6543
    %6660 = vmatpush1.msra.mxu0 %v6542
    %6661 = vmatprep.subr.mxu0 0.0
    %6662 = vmatpush2.msra.mxu0 0.0
    %6663 = vmatprep.subr.mxu0 0.0
    %6664 = vmatpush2.msra.mxu0 0.0
    %6665 = vmatprep.subr.mxu0 0.0
    %6666 = vmatpush2.msra.mxu0 0.0
    %6667 = vmatprep.subr.mxu0 0.0
    %6668 = vmatpush2.msra.mxu0 0.0
    %6669 = vmatprep.subr.mxu0 0.0
    %6670 = vmatpush2.msra.mxu0 0.0
    %6671 = vmatprep.subr.mxu0 0.0
    %6672 = vmatpush2.msra.mxu0 0.0
    %6673 = vmatprep.subr.mxu0 0.0
    %6674 = vmatpush2.msra.mxu0 0.0
    %6675 = vmatprep.subr.mxu0 0.0
    %6676 = vmatpush2.msra.mxu0 0.0
    %6677 = vmatprep.subr.mxu0 0.0
    %6678 = vmatpush2.msra.mxu0 0.0
    %6679 = vmatprep.subr.mxu0 0.0
    %6680 = vmatpush2.msra.mxu0 0.0
    %6681 = vmatprep.subr.mxu0 0.0
    %6682 = vmatpush2.msra.mxu0 0.0
    %6683 = vmatprep.subr.mxu0 0.0
    %6684 = vmatpush2.msra.mxu0 0.0
    %6685 = vmatprep.subr.mxu0 0.0
    %6686 = vmatpush2.msra.mxu0 0.0
    %6687 = vmatprep.subr.mxu0 0.0
    %6688 = vmatpush2.msra.mxu0 0.0
    %6689 = vmatprep.subr.mxu0 0.0
    %6690 = vmatpush2.msra.mxu0 0.0
    %6691 = vmatprep.subr.mxu0 0.0
    %6692 = vmatpush2.msra.mxu0 0.0
    %6693 = vmatprep.mubr.f32.mxu0 0.0
    %6694 = vmatmul.mubr.f32.gmra.mxu0 %v6539
    %v6695 = vpop.f32.mrf.mxu0
    %v6696 = vadd.f32 %v6612, %v6695
    %v6697 = vpop.f32.mrf.mxu0
    %v6698 = vadd.f32 %v6616, %v6697
    %6699 = vmatprep.mubr.f32.mxu0 0.0
    %6700 = vmatmul.mubr.f32.gmra.mxu0 %v6540
    %v6701 = vpop.f32.mrf.mxu0
    %v6702 = vadd.f32 %v6612, %v6701
    %v6703 = vpop.f32.mrf.mxu0
    %v6704 = vadd.f32 %v6616, %v6703
    %6705 = vdwg.mxu0
    %6706 = vmatprep.subr.mxu0 %v6605
    %6707 = vmatpush1.msra.mxu0 %v6604
    %6708 = vmatprep.subr.mxu0 %v6601
    %6709 = vmatpush1.msra.mxu0 %v6600
    %6710 = vmatprep.subr.mxu0 %v6597
    %6711 = vmatpush1.msra.mxu0 %v6596
    %6712 = vmatprep.subr.mxu0 %v6593
    %6713 = vmatpush1.msra.mxu0 %v6592
    %6714 = vmatprep.subr.mxu0 %v6589
    %6715 = vmatpush1.msra.mxu0 %v6588
    %6716 = vmatprep.subr.mxu0 %v6585
    %6717 = vmatpush1.msra.mxu0 %v6584
    %6718 = vmatprep.subr.mxu0 %v6581
    %6719 = vmatpush1.msra.mxu0 %v6580
    %6720 = vmatprep.subr.mxu0 %v6577
    %6721 = vmatpush1.msra.mxu0 %v6576
    %6722 = vmatprep.subr.mxu0 %v6573
    %6723 = vmatpush1.msra.mxu0 %v6572
    %6724 = vmatprep.subr.mxu0 %v6569
    %6725 = vmatpush1.msra.mxu0 %v6568
    %6726 = vmatprep.subr.mxu0 %v6565
    %6727 = vmatpush1.msra.mxu0 %v6564
    %6728 = vmatprep.subr.mxu0 %v6561
    %6729 = vmatpush1.msra.mxu0 %v6560
    %6730 = vmatprep.subr.mxu0 %v6557
    %6731 = vmatpush1.msra.mxu0 %v6556
    %6732 = vmatprep.subr.mxu0 %v6553
    %6733 = vmatpush1.msra.mxu0 %v6552
    %6734 = vmatprep.subr.mxu0 %v6549
    %6735 = vmatpush1.msra.mxu0 %v6548
    %6736 = vmatprep.subr.mxu0 %v6545
    %6737 = vmatpush1.msra.mxu0 %v6544
    %6738 = vmatprep.subr.mxu0 0.0
    %6739 = vmatpush2.msra.mxu0 0.0
    %6740 = vmatprep.subr.mxu0 0.0
    %6741 = vmatpush2.msra.mxu0 0.0
    %6742 = vmatprep.subr.mxu0 0.0
    %6743 = vmatpush2.msra.mxu0 0.0
    %6744 = vmatprep.subr.mxu0 0.0
    %6745 = vmatpush2.msra.mxu0 0.0
    %6746 = vmatprep.subr.mxu0 0.0
    %6747 = vmatpush2.msra.mxu0 0.0
    %6748 = vmatprep.subr.mxu0 0.0
    %6749 = vmatpush2.msra.mxu0 0.0
    %6750 = vmatprep.subr.mxu0 0.0
    %6751 = vmatpush2.msra.mxu0 0.0
    %6752 = vmatprep.subr.mxu0 0.0
    %6753 = vmatpush2.msra.mxu0 0.0
    %6754 = vmatprep.subr.mxu0 0.0
    %6755 = vmatpush2.msra.mxu0 0.0
    %6756 = vmatprep.subr.mxu0 0.0
    %6757 = vmatpush2.msra.mxu0 0.0
    %6758 = vmatprep.subr.mxu0 0.0
    %6759 = vmatpush2.msra.mxu0 0.0
    %6760 = vmatprep.subr.mxu0 0.0
    %6761 = vmatpush2.msra.mxu0 0.0
    %6762 = vmatprep.subr.mxu0 0.0
    %6763 = vmatpush2.msra.mxu0 0.0
    %6764 = vmatprep.subr.mxu0 0.0
    %6765 = vmatpush2.msra.mxu0 0.0
    %6766 = vmatprep.subr.mxu0 0.0
    %6767 = vmatpush2.msra.mxu0 0.0
    %6768 = vmatprep.subr.mxu0 0.0
    %6769 = vmatpush2.msra.mxu0 0.0
    %6770 = vmatprep.mubr.f32.mxu0 0.0
    %6771 = vmatmul.mubr.f32.gmra.mxu0 %v6539
    %v6772 = vpop.f32.mrf.mxu0
    %v6773 = vadd.f32 %v6620, %v6772
    %v6774 = vpop.f32.mrf.mxu0
    %v6775 = vadd.f32 %v6624, %v6774
    %6776 = vmatprep.mubr.f32.mxu0 0.0
    %6777 = vmatmul.mubr.f32.gmra.mxu0 %v6540
    %v6778 = vpop.f32.mrf.mxu0
    %v6779 = vadd.f32 %v6620, %v6778
    %v6780 = vpop.f32.mrf.mxu0
    %v6781 = vadd.f32 %v6624, %v6780
    %6782 = vdwg.mxu0
    %s6783 = scalar_lea.vmem [#allocation6], 1536
    %v6784 = vld [vmem:[%s6783] sm:$0xff]
    %v6785 = vld [vmem:[%s6783 + $0x8] sm:$0xff]
    %v6786 = vld [vmem:[%s6783 + $0x10] sm:$0xff]
    %v6787 = vld [vmem:[%s6783 + $0x18] sm:$0xff]
    %v6788 = vld [vmem:[%s6783 + $0x20] sm:$0xff]
    %v6789 = vld [vmem:[%s6783 + $0x28] sm:$0xff]
    %v6790 = vld [vmem:[%s6783 + $0x30] sm:$0xff]
    %v6791 = vld [vmem:[%s6783 + $0x38] sm:$0xff]
    %v6792 = vld [vmem:[%s6783 + $0x40] sm:$0xff]
    %v6793 = vld [vmem:[%s6783 + $0x48] sm:$0xff]
    %v6794 = vld [vmem:[%s6783 + $0x50] sm:$0xff]
    %v6795 = vld [vmem:[%s6783 + $0x58] sm:$0xff]
    %v6796 = vld [vmem:[%s6783 + $0x60] sm:$0xff]
    %v6797 = vld [vmem:[%s6783 + $0x68] sm:$0xff]
    %v6798 = vld [vmem:[%s6783 + $0x70] sm:$0xff]
    %v6799 = vld [vmem:[%s6783 + $0x78] sm:$0xff]
    %v6800 = vld [vmem:[%s6783 + $0x80] sm:$0xff]
    %v6801 = vld [vmem:[%s6783 + $0x88] sm:$0xff]
    %v6802 = vld [vmem:[%s6783 + $0x90] sm:$0xff]
    %v6803 = vld [vmem:[%s6783 + $0x98] sm:$0xff]
    %v6804 = vld [vmem:[%s6783 + $0xa0] sm:$0xff]
    %v6805 = vld [vmem:[%s6783 + $0xa8] sm:$0xff]
    %v6806 = vld [vmem:[%s6783 + $0xb0] sm:$0xff]
    %v6807 = vld [vmem:[%s6783 + $0xb8] sm:$0xff]
    %v6808 = vld [vmem:[%s6783 + $0xc0] sm:$0xff]
    %v6809 = vld [vmem:[%s6783 + $0xc8] sm:$0xff]
    %v6810 = vld [vmem:[%s6783 + $0xd0] sm:$0xff]
    %v6811 = vld [vmem:[%s6783 + $0xd8] sm:$0xff]
    %v6812 = vld [vmem:[%s6783 + $0xe0] sm:$0xff]
    %v6813 = vld [vmem:[%s6783 + $0xe8] sm:$0xff]
    %v6814 = vld [vmem:[%s6783 + $0xf0] sm:$0xff]
    %v6815 = vld [vmem:[%s6783 + $0xf8] sm:$0xff]
    %v6816 = vld [vmem:[%s6783 + $0x100] sm:$0xff]
    %v6817 = vld [vmem:[%s6783 + $0x108] sm:$0xff]
    %v6818 = vld [vmem:[%s6783 + $0x110] sm:$0xff]
    %v6819 = vld [vmem:[%s6783 + $0x118] sm:$0xff]
    %v6820 = vld [vmem:[%s6783 + $0x120] sm:$0xff]
    %v6821 = vld [vmem:[%s6783 + $0x128] sm:$0xff]
    %v6822 = vld [vmem:[%s6783 + $0x130] sm:$0xff]
    %v6823 = vld [vmem:[%s6783 + $0x138] sm:$0xff]
    %v6824 = vld [vmem:[%s6783 + $0x140] sm:$0xff]
    %v6825 = vld [vmem:[%s6783 + $0x148] sm:$0xff]
    %v6826 = vld [vmem:[%s6783 + $0x150] sm:$0xff]
    %v6827 = vld [vmem:[%s6783 + $0x158] sm:$0xff]
    %v6828 = vld [vmem:[%s6783 + $0x160] sm:$0xff]
    %v6829 = vld [vmem:[%s6783 + $0x168] sm:$0xff]
    %v6830 = vld [vmem:[%s6783 + $0x170] sm:$0xff]
    %v6831 = vld [vmem:[%s6783 + $0x178] sm:$0xff]
    %v6832 = vld [vmem:[%s6783 + $0x180] sm:$0xff]
    %v6833 = vld [vmem:[%s6783 + $0x188] sm:$0xff]
    %v6834 = vld [vmem:[%s6783 + $0x190] sm:$0xff]
    %v6835 = vld [vmem:[%s6783 + $0x198] sm:$0xff]
    %v6836 = vld [vmem:[%s6783 + $0x1a0] sm:$0xff]
    %v6837 = vld [vmem:[%s6783 + $0x1a8] sm:$0xff]
    %v6838 = vld [vmem:[%s6783 + $0x1b0] sm:$0xff]
    %v6839 = vld [vmem:[%s6783 + $0x1b8] sm:$0xff]
    %v6840 = vld [vmem:[%s6783 + $0x1c0] sm:$0xff]
    %v6841 = vld [vmem:[%s6783 + $0x1c8] sm:$0xff]
    %v6842 = vld [vmem:[%s6783 + $0x1d0] sm:$0xff]
    %v6843 = vld [vmem:[%s6783 + $0x1d8] sm:$0xff]
    %v6844 = vld [vmem:[%s6783 + $0x1e0] sm:$0xff]
    %v6845 = vld [vmem:[%s6783 + $0x1e8] sm:$0xff]
    %v6846 = vld [vmem:[%s6783 + $0x1f0] sm:$0xff]
    %v6847 = vld [vmem:[%s6783 + $0x1f8] sm:$0xff]
    %s6848 = scalar_lea.vmem %s1, 6
    %v6849 = vld [vmem:[%s6848] sm:$0x3]
    %s6850 = scalar_lea.vmem %s2, 6
    %v6851 = vld [vmem:[%s6850] sm:$0x3]
    %6852 = vmatprep.subr.mxu0 %v6845
    %6853 = vmatpush1.msra.mxu0 %v6844
    %6854 = vmatprep.subr.mxu0 %v6841
    %6855 = vmatpush1.msra.mxu0 %v6840
    %6856 = vmatprep.subr.mxu0 %v6837
    %6857 = vmatpush1.msra.mxu0 %v6836
    %6858 = vmatprep.subr.mxu0 %v6833
    %6859 = vmatpush1.msra.mxu0 %v6832
    %6860 = vmatprep.subr.mxu0 %v6829
    %6861 = vmatpush1.msra.mxu0 %v6828
    %6862 = vmatprep.subr.mxu0 %v6825
    %6863 = vmatpush1.msra.mxu0 %v6824
    %6864 = vmatprep.subr.mxu0 %v6821
    %6865 = vmatpush1.msra.mxu0 %v6820
    %6866 = vmatprep.subr.mxu0 %v6817
    %6867 = vmatpush1.msra.mxu0 %v6816
    %6868 = vmatprep.subr.mxu0 %v6813
    %6869 = vmatpush1.msra.mxu0 %v6812
    %6870 = vmatprep.subr.mxu0 %v6809
    %6871 = vmatpush1.msra.mxu0 %v6808
    %6872 = vmatprep.subr.mxu0 %v6805
    %6873 = vmatpush1.msra.mxu0 %v6804
    %6874 = vmatprep.subr.mxu0 %v6801
    %6875 = vmatpush1.msra.mxu0 %v6800
    %6876 = vmatprep.subr.mxu0 %v6797
    %6877 = vmatpush1.msra.mxu0 %v6796
    %6878 = vmatprep.subr.mxu0 %v6793
    %6879 = vmatpush1.msra.mxu0 %v6792
    %6880 = vmatprep.subr.mxu0 %v6789
    %6881 = vmatpush1.msra.mxu0 %v6788
    %6882 = vmatprep.subr.mxu0 %v6785
    %6883 = vmatpush1.msra.mxu0 %v6784
    %6884 = vmatprep.subr.mxu0 0.0
    %6885 = vmatpush2.msra.mxu0 0.0
    %6886 = vmatprep.subr.mxu0 0.0
    %6887 = vmatpush2.msra.mxu0 0.0
    %6888 = vmatprep.subr.mxu0 0.0
    %6889 = vmatpush2.msra.mxu0 0.0
    %6890 = vmatprep.subr.mxu0 0.0
    %6891 = vmatpush2.msra.mxu0 0.0
    %6892 = vmatprep.subr.mxu0 0.0
    %6893 = vmatpush2.msra.mxu0 0.0
    %6894 = vmatprep.subr.mxu0 0.0
    %6895 = vmatpush2.msra.mxu0 0.0
    %6896 = vmatprep.subr.mxu0 0.0
    %6897 = vmatpush2.msra.mxu0 0.0
    %6898 = vmatprep.subr.mxu0 0.0
    %6899 = vmatpush2.msra.mxu0 0.0
    %6900 = vmatprep.subr.mxu0 0.0
    %6901 = vmatpush2.msra.mxu0 0.0
    %6902 = vmatprep.subr.mxu0 0.0
    %6903 = vmatpush2.msra.mxu0 0.0
    %6904 = vmatprep.subr.mxu0 0.0
    %6905 = vmatpush2.msra.mxu0 0.0
    %6906 = vmatprep.subr.mxu0 0.0
    %6907 = vmatpush2.msra.mxu0 0.0
    %6908 = vmatprep.subr.mxu0 0.0
    %6909 = vmatpush2.msra.mxu0 0.0
    %6910 = vmatprep.subr.mxu0 0.0
    %6911 = vmatpush2.msra.mxu0 0.0
    %6912 = vmatprep.subr.mxu0 0.0
    %6913 = vmatpush2.msra.mxu0 0.0
    %6914 = vmatprep.subr.mxu0 0.0
    %6915 = vmatpush2.msra.mxu0 0.0
    %6916 = vmatprep.mubr.f32.mxu0 0.0
    %6917 = vmatmul.mubr.f32.gmra.mxu0 %v6849
    %v6918 = vpop.f32.mrf.mxu0
    %v6919 = vadd.f32 0.0, %v6918
    %v6920 = vpop.f32.mrf.mxu0
    %v6921 = vadd.f32 0.0, %v6920
    %6922 = vdwg.mxu0
    %6923 = vmatprep.subr.mxu0 %v6847
    %6924 = vmatpush1.msra.mxu0 %v6846
    %6925 = vmatprep.subr.mxu0 %v6843
    %6926 = vmatpush1.msra.mxu0 %v6842
    %6927 = vmatprep.subr.mxu0 %v6839
    %6928 = vmatpush1.msra.mxu0 %v6838
    %6929 = vmatprep.subr.mxu0 %v6835
    %6930 = vmatpush1.msra.mxu0 %v6834
    %6931 = vmatprep.subr.mxu0 %v6831
    %6932 = vmatpush1.msra.mxu0 %v6830
    %6933 = vmatprep.subr.mxu0 %v6827
    %6934 = vmatpush1.msra.mxu0 %v6826
    %6935 = vmatprep.subr.mxu0 %v6823
    %6936 = vmatpush1.msra.mxu0 %v6822
    %6937 = vmatprep.subr.mxu0 %v6819
    %6938 = vmatpush1.msra.mxu0 %v6818
    %6939 = vmatprep.subr.mxu0 %v6815
    %6940 = vmatpush1.msra.mxu0 %v6814
    %6941 = vmatprep.subr.mxu0 %v6811
    %6942 = vmatpush1.msra.mxu0 %v6810
    %6943 = vmatprep.subr.mxu0 %v6807
    %6944 = vmatpush1.msra.mxu0 %v6806
    %6945 = vmatprep.subr.mxu0 %v6803
    %6946 = vmatpush1.msra.mxu0 %v6802
    %6947 = vmatprep.subr.mxu0 %v6799
    %6948 = vmatpush1.msra.mxu0 %v6798
    %6949 = vmatprep.subr.mxu0 %v6795
    %6950 = vmatpush1.msra.mxu0 %v6794
    %6951 = vmatprep.subr.mxu0 %v6791
    %6952 = vmatpush1.msra.mxu0 %v6790
    %6953 = vmatprep.subr.mxu0 %v6787
    %6954 = vmatpush1.msra.mxu0 %v6786
    %6955 = vmatprep.subr.mxu0 0.0
    %6956 = vmatpush2.msra.mxu0 0.0
    %6957 = vmatprep.subr.mxu0 0.0
    %6958 = vmatpush2.msra.mxu0 0.0
    %6959 = vmatprep.subr.mxu0 0.0
    %6960 = vmatpush2.msra.mxu0 0.0
    %6961 = vmatprep.subr.mxu0 0.0
    %6962 = vmatpush2.msra.mxu0 0.0
    %6963 = vmatprep.subr.mxu0 0.0
    %6964 = vmatpush2.msra.mxu0 0.0
    %6965 = vmatprep.subr.mxu0 0.0
    %6966 = vmatpush2.msra.mxu0 0.0
    %6967 = vmatprep.subr.mxu0 0.0
    %6968 = vmatpush2.msra.mxu0 0.0
    %6969 = vmatprep.subr.mxu0 0.0
    %6970 = vmatpush2.msra.mxu0 0.0
    %6971 = vmatprep.subr.mxu0 0.0
    %6972 = vmatpush2.msra.mxu0 0.0
    %6973 = vmatprep.subr.mxu0 0.0
    %6974 = vmatpush2.msra.mxu0 0.0
    %6975 = vmatprep.subr.mxu0 0.0
    %6976 = vmatpush2.msra.mxu0 0.0
    %6977 = vmatprep.subr.mxu0 0.0
    %6978 = vmatpush2.msra.mxu0 0.0
    %6979 = vmatprep.subr.mxu0 0.0
    %6980 = vmatpush2.msra.mxu0 0.0
    %6981 = vmatprep.subr.mxu0 0.0
    %6982 = vmatpush2.msra.mxu0 0.0
    %6983 = vmatprep.subr.mxu0 0.0
    %6984 = vmatpush2.msra.mxu0 0.0
    %6985 = vmatprep.subr.mxu0 0.0
    %6986 = vmatpush2.msra.mxu0 0.0
    %6987 = vmatprep.mubr.f32.mxu0 0.0
    %6988 = vmatmul.mubr.f32.gmra.mxu0 %v6849
    %v6989 = vpop.f32.mrf.mxu0
    %v6990 = vadd.f32 0.0, %v6989
    %v6991 = vpop.f32.mrf.mxu0
    %v6992 = vadd.f32 0.0, %v6991
    %6993 = vdwg.mxu0
    %v6998 = vrot.slane %v6919, 1
    %v6999 = vrot.slane %v6921, 1
    %v7000 = vrot.slane %v6990, 1
    %v7001 = vrot.slane %v6992, 1
    %v7010 = vadd.f32 %v6696, %v6919
    %v7011 = vadd.f32 %v6698, %v6921
    %v7012 = vadd.f32 %v6773, %v6990
    %v7013 = vadd.f32 %v6775, %v6992
    %v7014 = vadd.f32 %v6702, %v6998
    %v7015 = vadd.f32 %v6704, %v6999
    %v7016 = vadd.f32 %v6779, %v7000
    %v7017 = vadd.f32 %v6781, %v7001
    %v7018 = vxor.u32 %v7010, 2147483648
    %v7019 = vxor.u32 %v7014, 2147483648
    %v7020 = vmul.f32 %v7018, 1.442695
    %v7021 = vpow.pop %v7020
    %v7022 = vmul.f32 %v7019, 1.442695
    %v7023 = vpow.pop %v7022
    %v7024 = vadd.f32 %v7021, 1.0
    %v7025 = vadd.f32 %v7023, 1.0
    %v7026 = vrcp.pop %v7024
    %v7027 = vmul.f32 1.0, %v7026
    %v7028 = vrcp.pop %v7025
    %v7029 = vmul.f32 1.0, %v7028
    %v7030 = vxor.u32 %v7011, 2147483648
    %v7031 = vxor.u32 %v7015, 2147483648
    %v7032 = vmul.f32 %v7030, 1.442695
    %v7033 = vpow.pop %v7032
    %v7034 = vmul.f32 %v7031, 1.442695
    %v7035 = vpow.pop %v7034
    %v7036 = vadd.f32 %v7033, 1.0
    %v7037 = vadd.f32 %v7035, 1.0
    %v7038 = vrcp.pop %v7036
    %v7039 = vmul.f32 1.0, %v7038
    %v7040 = vrcp.pop %v7037
    %v7041 = vmul.f32 1.0, %v7040
    %v7042 = vtanh.pop %v7012
    %v7043 = vtanh.pop %v7016
    %v7044 = vxor.u32 %v7013, 2147483648
    %v7045 = vxor.u32 %v7017, 2147483648
    %v7046 = vmul.f32 %v7044, 1.442695
    %v7047 = vpow.pop %v7046
    %v7048 = vmul.f32 %v7045, 1.442695
    %v7049 = vpow.pop %v7048
    %v7050 = vadd.f32 %v7047, 1.0
    %v7051 = vadd.f32 %v7049, 1.0
    %v7052 = vrcp.pop %v7050
    %v7053 = vmul.f32 1.0, %v7052
    %v7054 = vrcp.pop %v7051
    %v7055 = vmul.f32 1.0, %v7054
    %v7057 = vrot.slane %v6851, 1
    %v7060 = vmul.f32 %v7039, %v6851
    %v7061 = vmul.f32 %v7041, %v7057
    %v7062 = vmul.f32 %v7027, %v7042
    %v7063 = vmul.f32 %v7029, %v7043
    %v7064 = vadd.f32 %v7060, %v7062
    %v7065 = vadd.f32 %v7061, %v7063
    %v7066 = vtanh.pop %v7064
    %v7067 = vtanh.pop %v7065
    %v7068 = vmul.f32 %v7053, %v7066
    %v7069 = vmul.f32 %v7055, %v7067
    %7070 = vst [vmem:[#allocation2] sm:$0x1] %v7068
    %7071 = vst [vmem:[#allocation2 + $0x8] sm:$0x1] %v7069
    %v7074 = vrot.slane %v7069, 7
    %v7075 = vsel %vm574, %v7074, %v7068
    %7077 = vmatprep.subr.mxu0 %v6845
    %7078 = vmatpush1.msra.mxu0 %v6844
    %7079 = vmatprep.subr.mxu0 %v6841
    %7080 = vmatpush1.msra.mxu0 %v6840
    %7081 = vmatprep.subr.mxu0 %v6837
    %7082 = vmatpush1.msra.mxu0 %v6836
    %7083 = vmatprep.subr.mxu0 %v6833
    %7084 = vmatpush1.msra.mxu0 %v6832
    %7085 = vmatprep.subr.mxu0 %v6829
    %7086 = vmatpush1.msra.mxu0 %v6828
    %7087 = vmatprep.subr.mxu0 %v6825
    %7088 = vmatpush1.msra.mxu0 %v6824
    %7089 = vmatprep.subr.mxu0 %v6821
    %7090 = vmatpush1.msra.mxu0 %v6820
    %7091 = vmatprep.subr.mxu0 %v6817
    %7092 = vmatpush1.msra.mxu0 %v6816
    %7093 = vmatprep.subr.mxu0 %v6813
    %7094 = vmatpush1.msra.mxu0 %v6812
    %7095 = vmatprep.subr.mxu0 %v6809
    %7096 = vmatpush1.msra.mxu0 %v6808
    %7097 = vmatprep.subr.mxu0 %v6805
    %7098 = vmatpush1.msra.mxu0 %v6804
    %7099 = vmatprep.subr.mxu0 %v6801
    %7100 = vmatpush1.msra.mxu0 %v6800
    %7101 = vmatprep.subr.mxu0 %v6797
    %7102 = vmatpush1.msra.mxu0 %v6796
    %7103 = vmatprep.subr.mxu0 %v6793
    %7104 = vmatpush1.msra.mxu0 %v6792
    %7105 = vmatprep.subr.mxu0 %v6789
    %7106 = vmatpush1.msra.mxu0 %v6788
    %7107 = vmatprep.subr.mxu0 %v6785
    %7108 = vmatpush1.msra.mxu0 %v6784
    %7109 = vmatprep.subr.mxu0 0.0
    %7110 = vmatpush2.msra.mxu0 0.0
    %7111 = vmatprep.subr.mxu0 0.0
    %7112 = vmatpush2.msra.mxu0 0.0
    %7113 = vmatprep.subr.mxu0 0.0
    %7114 = vmatpush2.msra.mxu0 0.0
    %7115 = vmatprep.subr.mxu0 0.0
    %7116 = vmatpush2.msra.mxu0 0.0
    %7117 = vmatprep.subr.mxu0 0.0
    %7118 = vmatpush2.msra.mxu0 0.0
    %7119 = vmatprep.subr.mxu0 0.0
    %7120 = vmatpush2.msra.mxu0 0.0
    %7121 = vmatprep.subr.mxu0 0.0
    %7122 = vmatpush2.msra.mxu0 0.0
    %7123 = vmatprep.subr.mxu0 0.0
    %7124 = vmatpush2.msra.mxu0 0.0
    %7125 = vmatprep.subr.mxu0 0.0
    %7126 = vmatpush2.msra.mxu0 0.0
    %7127 = vmatprep.subr.mxu0 0.0
    %7128 = vmatpush2.msra.mxu0 0.0
    %7129 = vmatprep.subr.mxu0 0.0
    %7130 = vmatpush2.msra.mxu0 0.0
    %7131 = vmatprep.subr.mxu0 0.0
    %7132 = vmatpush2.msra.mxu0 0.0
    %7133 = vmatprep.subr.mxu0 0.0
    %7134 = vmatpush2.msra.mxu0 0.0
    %7135 = vmatprep.subr.mxu0 0.0
    %7136 = vmatpush2.msra.mxu0 0.0
    %7137 = vmatprep.subr.mxu0 0.0
    %7138 = vmatpush2.msra.mxu0 0.0
    %7139 = vmatprep.subr.mxu0 0.0
    %7140 = vmatpush2.msra.mxu0 0.0
    %7141 = vmatprep.mubr.f32.mxu0 0.0
    %7142 = vmatmul.mubr.f32.gmra.mxu0 %v7075
    %v7143 = vpop.f32.mrf.mxu0
    %v7144 = vadd.f32 0.0, %v7143
    %v7145 = vpop.f32.mrf.mxu0
    %v7146 = vadd.f32 0.0, %v7145
    %7147 = vdwg.mxu0
    %7148 = vmatprep.subr.mxu0 %v6847
    %7149 = vmatpush1.msra.mxu0 %v6846
    %7150 = vmatprep.subr.mxu0 %v6843
    %7151 = vmatpush1.msra.mxu0 %v6842
    %7152 = vmatprep.subr.mxu0 %v6839
    %7153 = vmatpush1.msra.mxu0 %v6838
    %7154 = vmatprep.subr.mxu0 %v6835
    %7155 = vmatpush1.msra.mxu0 %v6834
    %7156 = vmatprep.subr.mxu0 %v6831
    %7157 = vmatpush1.msra.mxu0 %v6830
    %7158 = vmatprep.subr.mxu0 %v6827
    %7159 = vmatpush1.msra.mxu0 %v6826
    %7160 = vmatprep.subr.mxu0 %v6823
    %7161 = vmatpush1.msra.mxu0 %v6822
    %7162 = vmatprep.subr.mxu0 %v6819
    %7163 = vmatpush1.msra.mxu0 %v6818
    %7164 = vmatprep.subr.mxu0 %v6815
    %7165 = vmatpush1.msra.mxu0 %v6814
    %7166 = vmatprep.subr.mxu0 %v6811
    %7167 = vmatpush1.msra.mxu0 %v6810
    %7168 = vmatprep.subr.mxu0 %v6807
    %7169 = vmatpush1.msra.mxu0 %v6806
    %7170 = vmatprep.subr.mxu0 %v6803
    %7171 = vmatpush1.msra.mxu0 %v6802
    %7172 = vmatprep.subr.mxu0 %v6799
    %7173 = vmatpush1.msra.mxu0 %v6798
    %7174 = vmatprep.subr.mxu0 %v6795
    %7175 = vmatpush1.msra.mxu0 %v6794
    %7176 = vmatprep.subr.mxu0 %v6791
    %7177 = vmatpush1.msra.mxu0 %v6790
    %7178 = vmatprep.subr.mxu0 %v6787
    %7179 = vmatpush1.msra.mxu0 %v6786
    %7180 = vmatprep.subr.mxu0 0.0
    %7181 = vmatpush2.msra.mxu0 0.0
    %7182 = vmatprep.subr.mxu0 0.0
    %7183 = vmatpush2.msra.mxu0 0.0
    %7184 = vmatprep.subr.mxu0 0.0
    %7185 = vmatpush2.msra.mxu0 0.0
    %7186 = vmatprep.subr.mxu0 0.0
    %7187 = vmatpush2.msra.mxu0 0.0
    %7188 = vmatprep.subr.mxu0 0.0
    %7189 = vmatpush2.msra.mxu0 0.0
    %7190 = vmatprep.subr.mxu0 0.0
    %7191 = vmatpush2.msra.mxu0 0.0
    %7192 = vmatprep.subr.mxu0 0.0
    %7193 = vmatpush2.msra.mxu0 0.0
    %7194 = vmatprep.subr.mxu0 0.0
    %7195 = vmatpush2.msra.mxu0 0.0
    %7196 = vmatprep.subr.mxu0 0.0
    %7197 = vmatpush2.msra.mxu0 0.0
    %7198 = vmatprep.subr.mxu0 0.0
    %7199 = vmatpush2.msra.mxu0 0.0
    %7200 = vmatprep.subr.mxu0 0.0
    %7201 = vmatpush2.msra.mxu0 0.0
    %7202 = vmatprep.subr.mxu0 0.0
    %7203 = vmatpush2.msra.mxu0 0.0
    %7204 = vmatprep.subr.mxu0 0.0
    %7205 = vmatpush2.msra.mxu0 0.0
    %7206 = vmatprep.subr.mxu0 0.0
    %7207 = vmatpush2.msra.mxu0 0.0
    %7208 = vmatprep.subr.mxu0 0.0
    %7209 = vmatpush2.msra.mxu0 0.0
    %7210 = vmatprep.subr.mxu0 0.0
    %7211 = vmatpush2.msra.mxu0 0.0
    %7212 = vmatprep.mubr.f32.mxu0 0.0
    %7213 = vmatmul.mubr.f32.gmra.mxu0 %v7075
    %v7214 = vpop.f32.mrf.mxu0
    %v7215 = vadd.f32 0.0, %v7214
    %v7216 = vpop.f32.mrf.mxu0
    %v7217 = vadd.f32 0.0, %v7216
    %7218 = vdwg.mxu0
    %v7223 = vrot.slane %v7144, 7
    %v7224 = vrot.slane %v7146, 7
    %v7225 = vrot.slane %v7215, 7
    %v7226 = vrot.slane %v7217, 7
    %v7235 = vadd.f32 %v6696, %v7223
    %v7236 = vadd.f32 %v6698, %v7224
    %v7237 = vadd.f32 %v6773, %v7225
    %v7238 = vadd.f32 %v6775, %v7226
    %v7239 = vadd.f32 %v6702, %v7144
    %v7240 = vadd.f32 %v6704, %v7146
    %v7241 = vadd.f32 %v6779, %v7215
    %v7242 = vadd.f32 %v6781, %v7217
    %v7243 = vxor.u32 %v7235, 2147483648
    %v7244 = vxor.u32 %v7239, 2147483648
    %v7245 = vmul.f32 %v7243, 1.442695
    %v7246 = vpow.pop %v7245
    %v7247 = vmul.f32 %v7244, 1.442695
    %v7248 = vpow.pop %v7247
    %v7249 = vadd.f32 %v7246, 1.0
    %v7250 = vadd.f32 %v7248, 1.0
    %v7251 = vrcp.pop %v7249
    %v7252 = vmul.f32 1.0, %v7251
    %v7253 = vrcp.pop %v7250
    %v7254 = vmul.f32 1.0, %v7253
    %v7255 = vxor.u32 %v7236, 2147483648
    %v7256 = vxor.u32 %v7240, 2147483648
    %v7257 = vmul.f32 %v7255, 1.442695
    %v7258 = vpow.pop %v7257
    %v7259 = vmul.f32 %v7256, 1.442695
    %v7260 = vpow.pop %v7259
    %v7261 = vadd.f32 %v7258, 1.0
    %v7262 = vadd.f32 %v7260, 1.0
    %v7263 = vrcp.pop %v7261
    %v7264 = vmul.f32 1.0, %v7263
    %v7265 = vrcp.pop %v7262
    %v7266 = vmul.f32 1.0, %v7265
    %v7267 = vtanh.pop %v7237
    %v7268 = vtanh.pop %v7241
    %v7269 = vxor.u32 %v7238, 2147483648
    %v7270 = vxor.u32 %v7242, 2147483648
    %v7271 = vmul.f32 %v7269, 1.442695
    %v7272 = vpow.pop %v7271
    %v7273 = vmul.f32 %v7270, 1.442695
    %v7274 = vpow.pop %v7273
    %v7275 = vadd.f32 %v7272, 1.0
    %v7276 = vadd.f32 %v7274, 1.0
    %v7277 = vrcp.pop %v7275
    %v7278 = vmul.f32 1.0, %v7277
    %v7279 = vrcp.pop %v7276
    %v7280 = vmul.f32 1.0, %v7279
    %v7283 = vrot.slane %v7064, 7
    %v7284 = vrot.slane %v7065, 7
    %v7287 = vmul.f32 %v7264, %v7283
    %v7288 = vmul.f32 %v7266, %v7284
    %v7289 = vmul.f32 %v7252, %v7267
    %v7290 = vmul.f32 %v7254, %v7268
    %v7291 = vadd.f32 %v7287, %v7289
    %v7292 = vadd.f32 %v7288, %v7290
    %v7293 = vtanh.pop %v7291
    %v7294 = vtanh.pop %v7292
    %v7295 = vmul.f32 %v7278, %v7293
    %v7296 = vmul.f32 %v7280, %v7294
    %7297 = vst [vmem:[#allocation2] sm:$0x2] %v7295
    %7298 = vst [vmem:[#allocation2 + $0x8] sm:$0x2] %v7296
    %v7301 = vrot.slane %v7295, 1
    %v7302 = vsel %vm574, %v7296, %v7301
    %7304 = vmatprep.subr.mxu0 %v6845
    %7305 = vmatpush1.msra.mxu0 %v6844
    %7306 = vmatprep.subr.mxu0 %v6841
    %7307 = vmatpush1.msra.mxu0 %v6840
    %7308 = vmatprep.subr.mxu0 %v6837
    %7309 = vmatpush1.msra.mxu0 %v6836
    %7310 = vmatprep.subr.mxu0 %v6833
    %7311 = vmatpush1.msra.mxu0 %v6832
    %7312 = vmatprep.subr.mxu0 %v6829
    %7313 = vmatpush1.msra.mxu0 %v6828
    %7314 = vmatprep.subr.mxu0 %v6825
    %7315 = vmatpush1.msra.mxu0 %v6824
    %7316 = vmatprep.subr.mxu0 %v6821
    %7317 = vmatpush1.msra.mxu0 %v6820
    %7318 = vmatprep.subr.mxu0 %v6817
    %7319 = vmatpush1.msra.mxu0 %v6816
    %7320 = vmatprep.subr.mxu0 %v6813
    %7321 = vmatpush1.msra.mxu0 %v6812
    %7322 = vmatprep.subr.mxu0 %v6809
    %7323 = vmatpush1.msra.mxu0 %v6808
    %7324 = vmatprep.subr.mxu0 %v6805
    %7325 = vmatpush1.msra.mxu0 %v6804
    %7326 = vmatprep.subr.mxu0 %v6801
    %7327 = vmatpush1.msra.mxu0 %v6800
    %7328 = vmatprep.subr.mxu0 %v6797
    %7329 = vmatpush1.msra.mxu0 %v6796
    %7330 = vmatprep.subr.mxu0 %v6793
    %7331 = vmatpush1.msra.mxu0 %v6792
    %7332 = vmatprep.subr.mxu0 %v6789
    %7333 = vmatpush1.msra.mxu0 %v6788
    %7334 = vmatprep.subr.mxu0 %v6785
    %7335 = vmatpush1.msra.mxu0 %v6784
    %7336 = vmatprep.subr.mxu0 0.0
    %7337 = vmatpush2.msra.mxu0 0.0
    %7338 = vmatprep.subr.mxu0 0.0
    %7339 = vmatpush2.msra.mxu0 0.0
    %7340 = vmatprep.subr.mxu0 0.0
    %7341 = vmatpush2.msra.mxu0 0.0
    %7342 = vmatprep.subr.mxu0 0.0
    %7343 = vmatpush2.msra.mxu0 0.0
    %7344 = vmatprep.subr.mxu0 0.0
    %7345 = vmatpush2.msra.mxu0 0.0
    %7346 = vmatprep.subr.mxu0 0.0
    %7347 = vmatpush2.msra.mxu0 0.0
    %7348 = vmatprep.subr.mxu0 0.0
    %7349 = vmatpush2.msra.mxu0 0.0
    %7350 = vmatprep.subr.mxu0 0.0
    %7351 = vmatpush2.msra.mxu0 0.0
    %7352 = vmatprep.subr.mxu0 0.0
    %7353 = vmatpush2.msra.mxu0 0.0
    %7354 = vmatprep.subr.mxu0 0.0
    %7355 = vmatpush2.msra.mxu0 0.0
    %7356 = vmatprep.subr.mxu0 0.0
    %7357 = vmatpush2.msra.mxu0 0.0
    %7358 = vmatprep.subr.mxu0 0.0
    %7359 = vmatpush2.msra.mxu0 0.0
    %7360 = vmatprep.subr.mxu0 0.0
    %7361 = vmatpush2.msra.mxu0 0.0
    %7362 = vmatprep.subr.mxu0 0.0
    %7363 = vmatpush2.msra.mxu0 0.0
    %7364 = vmatprep.subr.mxu0 0.0
    %7365 = vmatpush2.msra.mxu0 0.0
    %7366 = vmatprep.subr.mxu0 0.0
    %7367 = vmatpush2.msra.mxu0 0.0
    %7368 = vmatprep.mubr.f32.mxu0 0.0
    %7369 = vmatmul.mubr.f32.gmra.mxu0 %v7302
    %v7370 = vpop.f32.mrf.mxu0
    %v7371 = vadd.f32 0.0, %v7370
    %v7372 = vpop.f32.mrf.mxu0
    %v7373 = vadd.f32 0.0, %v7372
    %7374 = vdwg.mxu0
    %7375 = vmatprep.subr.mxu0 %v6847
    %7376 = vmatpush1.msra.mxu0 %v6846
    %7377 = vmatprep.subr.mxu0 %v6843
    %7378 = vmatpush1.msra.mxu0 %v6842
    %7379 = vmatprep.subr.mxu0 %v6839
    %7380 = vmatpush1.msra.mxu0 %v6838
    %7381 = vmatprep.subr.mxu0 %v6835
    %7382 = vmatpush1.msra.mxu0 %v6834
    %7383 = vmatprep.subr.mxu0 %v6831
    %7384 = vmatpush1.msra.mxu0 %v6830
    %7385 = vmatprep.subr.mxu0 %v6827
    %7386 = vmatpush1.msra.mxu0 %v6826
    %7387 = vmatprep.subr.mxu0 %v6823
    %7388 = vmatpush1.msra.mxu0 %v6822
    %7389 = vmatprep.subr.mxu0 %v6819
    %7390 = vmatpush1.msra.mxu0 %v6818
    %7391 = vmatprep.subr.mxu0 %v6815
    %7392 = vmatpush1.msra.mxu0 %v6814
    %7393 = vmatprep.subr.mxu0 %v6811
    %7394 = vmatpush1.msra.mxu0 %v6810
    %7395 = vmatprep.subr.mxu0 %v6807
    %7396 = vmatpush1.msra.mxu0 %v6806
    %7397 = vmatprep.subr.mxu0 %v6803
    %7398 = vmatpush1.msra.mxu0 %v6802
    %7399 = vmatprep.subr.mxu0 %v6799
    %7400 = vmatpush1.msra.mxu0 %v6798
    %7401 = vmatprep.subr.mxu0 %v6795
    %7402 = vmatpush1.msra.mxu0 %v6794
    %7403 = vmatprep.subr.mxu0 %v6791
    %7404 = vmatpush1.msra.mxu0 %v6790
    %7405 = vmatprep.subr.mxu0 %v6787
    %7406 = vmatpush1.msra.mxu0 %v6786
    %7407 = vmatprep.subr.mxu0 0.0
    %7408 = vmatpush2.msra.mxu0 0.0
    %7409 = vmatprep.subr.mxu0 0.0
    %7410 = vmatpush2.msra.mxu0 0.0
    %7411 = vmatprep.subr.mxu0 0.0
    %7412 = vmatpush2.msra.mxu0 0.0
    %7413 = vmatprep.subr.mxu0 0.0
    %7414 = vmatpush2.msra.mxu0 0.0
    %7415 = vmatprep.subr.mxu0 0.0
    %7416 = vmatpush2.msra.mxu0 0.0
    %7417 = vmatprep.subr.mxu0 0.0
    %7418 = vmatpush2.msra.mxu0 0.0
    %7419 = vmatprep.subr.mxu0 0.0
    %7420 = vmatpush2.msra.mxu0 0.0
    %7421 = vmatprep.subr.mxu0 0.0
    %7422 = vmatpush2.msra.mxu0 0.0
    %7423 = vmatprep.subr.mxu0 0.0
    %7424 = vmatpush2.msra.mxu0 0.0
    %7425 = vmatprep.subr.mxu0 0.0
    %7426 = vmatpush2.msra.mxu0 0.0
    %7427 = vmatprep.subr.mxu0 0.0
    %7428 = vmatpush2.msra.mxu0 0.0
    %7429 = vmatprep.subr.mxu0 0.0
    %7430 = vmatpush2.msra.mxu0 0.0
    %7431 = vmatprep.subr.mxu0 0.0
    %7432 = vmatpush2.msra.mxu0 0.0
    %7433 = vmatprep.subr.mxu0 0.0
    %7434 = vmatpush2.msra.mxu0 0.0
    %7435 = vmatprep.subr.mxu0 0.0
    %7436 = vmatpush2.msra.mxu0 0.0
    %7437 = vmatprep.subr.mxu0 0.0
    %7438 = vmatpush2.msra.mxu0 0.0
    %7439 = vmatprep.mubr.f32.mxu0 0.0
    %7440 = vmatmul.mubr.f32.gmra.mxu0 %v7302
    %v7441 = vpop.f32.mrf.mxu0
    %v7442 = vadd.f32 0.0, %v7441
    %v7443 = vpop.f32.mrf.mxu0
    %v7444 = vadd.f32 0.0, %v7443
    %7445 = vdwg.mxu0
    %v7450 = vrot.slane %v7371, 6
    %v7451 = vrot.slane %v7373, 6
    %v7452 = vrot.slane %v7442, 6
    %v7453 = vrot.slane %v7444, 6
    %v7454 = vrot.slane %v7371, 7
    %v7455 = vrot.slane %v7373, 7
    %v7456 = vrot.slane %v7442, 7
    %v7457 = vrot.slane %v7444, 7
    %v7466 = vadd.f32 %v6696, %v7450
    %v7467 = vadd.f32 %v6698, %v7451
    %v7468 = vadd.f32 %v6773, %v7452
    %v7469 = vadd.f32 %v6775, %v7453
    %v7470 = vadd.f32 %v6702, %v7454
    %v7471 = vadd.f32 %v6704, %v7455
    %v7472 = vadd.f32 %v6779, %v7456
    %v7473 = vadd.f32 %v6781, %v7457
    %v7474 = vxor.u32 %v7466, 2147483648
    %v7475 = vxor.u32 %v7470, 2147483648
    %v7476 = vmul.f32 %v7474, 1.442695
    %v7477 = vpow.pop %v7476
    %v7478 = vmul.f32 %v7475, 1.442695
    %v7479 = vpow.pop %v7478
    %v7480 = vadd.f32 %v7477, 1.0
    %v7481 = vadd.f32 %v7479, 1.0
    %v7482 = vrcp.pop %v7480
    %v7483 = vmul.f32 1.0, %v7482
    %v7484 = vrcp.pop %v7481
    %v7485 = vmul.f32 1.0, %v7484
    %v7486 = vxor.u32 %v7467, 2147483648
    %v7487 = vxor.u32 %v7471, 2147483648
    %v7488 = vmul.f32 %v7486, 1.442695
    %v7489 = vpow.pop %v7488
    %v7490 = vmul.f32 %v7487, 1.442695
    %v7491 = vpow.pop %v7490
    %v7492 = vadd.f32 %v7489, 1.0
    %v7493 = vadd.f32 %v7491, 1.0
    %v7494 = vrcp.pop %v7492
    %v7495 = vmul.f32 1.0, %v7494
    %v7496 = vrcp.pop %v7493
    %v7497 = vmul.f32 1.0, %v7496
    %v7498 = vtanh.pop %v7468
    %v7499 = vtanh.pop %v7472
    %v7500 = vxor.u32 %v7469, 2147483648
    %v7501 = vxor.u32 %v7473, 2147483648
    %v7502 = vmul.f32 %v7500, 1.442695
    %v7503 = vpow.pop %v7502
    %v7504 = vmul.f32 %v7501, 1.442695
    %v7505 = vpow.pop %v7504
    %v7506 = vadd.f32 %v7503, 1.0
    %v7507 = vadd.f32 %v7505, 1.0
    %v7508 = vrcp.pop %v7506
    %v7509 = vmul.f32 1.0, %v7508
    %v7510 = vrcp.pop %v7507
    %v7511 = vmul.f32 1.0, %v7510
    %v7514 = vrot.slane %v7291, 7
    %v7515 = vrot.slane %v7292, 7
    %v7518 = vmul.f32 %v7495, %v7514
    %v7519 = vmul.f32 %v7497, %v7515
    %v7520 = vmul.f32 %v7483, %v7498
    %v7521 = vmul.f32 %v7485, %v7499
    %v7522 = vadd.f32 %v7518, %v7520
    %v7523 = vadd.f32 %v7519, %v7521
    %v7524 = vtanh.pop %v7522
    %v7525 = vtanh.pop %v7523
    %v7526 = vmul.f32 %v7509, %v7524
    %v7527 = vmul.f32 %v7511, %v7525
    %7528 = vst [vmem:[#allocation2] sm:$0x4] %v7526
    %7529 = vst [vmem:[#allocation2 + $0x8] sm:$0x4] %v7527
    %v7532 = vrot.slane %v7526, 2
    %v7533 = vrot.slane %v7527, 1
    %v7534 = vsel %vm574, %v7533, %v7532
    %7536 = vmatprep.subr.mxu0 %v6845
    %7537 = vmatpush1.msra.mxu0 %v6844
    %7538 = vmatprep.subr.mxu0 %v6841
    %7539 = vmatpush1.msra.mxu0 %v6840
    %7540 = vmatprep.subr.mxu0 %v6837
    %7541 = vmatpush1.msra.mxu0 %v6836
    %7542 = vmatprep.subr.mxu0 %v6833
    %7543 = vmatpush1.msra.mxu0 %v6832
    %7544 = vmatprep.subr.mxu0 %v6829
    %7545 = vmatpush1.msra.mxu0 %v6828
    %7546 = vmatprep.subr.mxu0 %v6825
    %7547 = vmatpush1.msra.mxu0 %v6824
    %7548 = vmatprep.subr.mxu0 %v6821
    %7549 = vmatpush1.msra.mxu0 %v6820
    %7550 = vmatprep.subr.mxu0 %v6817
    %7551 = vmatpush1.msra.mxu0 %v6816
    %7552 = vmatprep.subr.mxu0 %v6813
    %7553 = vmatpush1.msra.mxu0 %v6812
    %7554 = vmatprep.subr.mxu0 %v6809
    %7555 = vmatpush1.msra.mxu0 %v6808
    %7556 = vmatprep.subr.mxu0 %v6805
    %7557 = vmatpush1.msra.mxu0 %v6804
    %7558 = vmatprep.subr.mxu0 %v6801
    %7559 = vmatpush1.msra.mxu0 %v6800
    %7560 = vmatprep.subr.mxu0 %v6797
    %7561 = vmatpush1.msra.mxu0 %v6796
    %7562 = vmatprep.subr.mxu0 %v6793
    %7563 = vmatpush1.msra.mxu0 %v6792
    %7564 = vmatprep.subr.mxu0 %v6789
    %7565 = vmatpush1.msra.mxu0 %v6788
    %7566 = vmatprep.subr.mxu0 %v6785
    %7567 = vmatpush1.msra.mxu0 %v6784
    %7568 = vmatprep.subr.mxu0 0.0
    %7569 = vmatpush2.msra.mxu0 0.0
    %7570 = vmatprep.subr.mxu0 0.0
    %7571 = vmatpush2.msra.mxu0 0.0
    %7572 = vmatprep.subr.mxu0 0.0
    %7573 = vmatpush2.msra.mxu0 0.0
    %7574 = vmatprep.subr.mxu0 0.0
    %7575 = vmatpush2.msra.mxu0 0.0
    %7576 = vmatprep.subr.mxu0 0.0
    %7577 = vmatpush2.msra.mxu0 0.0
    %7578 = vmatprep.subr.mxu0 0.0
    %7579 = vmatpush2.msra.mxu0 0.0
    %7580 = vmatprep.subr.mxu0 0.0
    %7581 = vmatpush2.msra.mxu0 0.0
    %7582 = vmatprep.subr.mxu0 0.0
    %7583 = vmatpush2.msra.mxu0 0.0
    %7584 = vmatprep.subr.mxu0 0.0
    %7585 = vmatpush2.msra.mxu0 0.0
    %7586 = vmatprep.subr.mxu0 0.0
    %7587 = vmatpush2.msra.mxu0 0.0
    %7588 = vmatprep.subr.mxu0 0.0
    %7589 = vmatpush2.msra.mxu0 0.0
    %7590 = vmatprep.subr.mxu0 0.0
    %7591 = vmatpush2.msra.mxu0 0.0
    %7592 = vmatprep.subr.mxu0 0.0
    %7593 = vmatpush2.msra.mxu0 0.0
    %7594 = vmatprep.subr.mxu0 0.0
    %7595 = vmatpush2.msra.mxu0 0.0
    %7596 = vmatprep.subr.mxu0 0.0
    %7597 = vmatpush2.msra.mxu0 0.0
    %7598 = vmatprep.subr.mxu0 0.0
    %7599 = vmatpush2.msra.mxu0 0.0
    %7600 = vmatprep.mubr.f32.mxu0 0.0
    %7601 = vmatmul.mubr.f32.gmra.mxu0 %v7534
    %v7602 = vpop.f32.mrf.mxu0
    %v7603 = vadd.f32 0.0, %v7602
    %v7604 = vpop.f32.mrf.mxu0
    %v7605 = vadd.f32 0.0, %v7604
    %7606 = vdwg.mxu0
    %7607 = vmatprep.subr.mxu0 %v6847
    %7608 = vmatpush1.msra.mxu0 %v6846
    %7609 = vmatprep.subr.mxu0 %v6843
    %7610 = vmatpush1.msra.mxu0 %v6842
    %7611 = vmatprep.subr.mxu0 %v6839
    %7612 = vmatpush1.msra.mxu0 %v6838
    %7613 = vmatprep.subr.mxu0 %v6835
    %7614 = vmatpush1.msra.mxu0 %v6834
    %7615 = vmatprep.subr.mxu0 %v6831
    %7616 = vmatpush1.msra.mxu0 %v6830
    %7617 = vmatprep.subr.mxu0 %v6827
    %7618 = vmatpush1.msra.mxu0 %v6826
    %7619 = vmatprep.subr.mxu0 %v6823
    %7620 = vmatpush1.msra.mxu0 %v6822
    %7621 = vmatprep.subr.mxu0 %v6819
    %7622 = vmatpush1.msra.mxu0 %v6818
    %7623 = vmatprep.subr.mxu0 %v6815
    %7624 = vmatpush1.msra.mxu0 %v6814
    %7625 = vmatprep.subr.mxu0 %v6811
    %7626 = vmatpush1.msra.mxu0 %v6810
    %7627 = vmatprep.subr.mxu0 %v6807
    %7628 = vmatpush1.msra.mxu0 %v6806
    %7629 = vmatprep.subr.mxu0 %v6803
    %7630 = vmatpush1.msra.mxu0 %v6802
    %7631 = vmatprep.subr.mxu0 %v6799
    %7632 = vmatpush1.msra.mxu0 %v6798
    %7633 = vmatprep.subr.mxu0 %v6795
    %7634 = vmatpush1.msra.mxu0 %v6794
    %7635 = vmatprep.subr.mxu0 %v6791
    %7636 = vmatpush1.msra.mxu0 %v6790
    %7637 = vmatprep.subr.mxu0 %v6787
    %7638 = vmatpush1.msra.mxu0 %v6786
    %7639 = vmatprep.subr.mxu0 0.0
    %7640 = vmatpush2.msra.mxu0 0.0
    %7641 = vmatprep.subr.mxu0 0.0
    %7642 = vmatpush2.msra.mxu0 0.0
    %7643 = vmatprep.subr.mxu0 0.0
    %7644 = vmatpush2.msra.mxu0 0.0
    %7645 = vmatprep.subr.mxu0 0.0
    %7646 = vmatpush2.msra.mxu0 0.0
    %7647 = vmatprep.subr.mxu0 0.0
    %7648 = vmatpush2.msra.mxu0 0.0
    %7649 = vmatprep.subr.mxu0 0.0
    %7650 = vmatpush2.msra.mxu0 0.0
    %7651 = vmatprep.subr.mxu0 0.0
    %7652 = vmatpush2.msra.mxu0 0.0
    %7653 = vmatprep.subr.mxu0 0.0
    %7654 = vmatpush2.msra.mxu0 0.0
    %7655 = vmatprep.subr.mxu0 0.0
    %7656 = vmatpush2.msra.mxu0 0.0
    %7657 = vmatprep.subr.mxu0 0.0
    %7658 = vmatpush2.msra.mxu0 0.0
    %7659 = vmatprep.subr.mxu0 0.0
    %7660 = vmatpush2.msra.mxu0 0.0
    %7661 = vmatprep.subr.mxu0 0.0
    %7662 = vmatpush2.msra.mxu0 0.0
    %7663 = vmatprep.subr.mxu0 0.0
    %7664 = vmatpush2.msra.mxu0 0.0
    %7665 = vmatprep.subr.mxu0 0.0
    %7666 = vmatpush2.msra.mxu0 0.0
    %7667 = vmatprep.subr.mxu0 0.0
    %7668 = vmatpush2.msra.mxu0 0.0
    %7669 = vmatprep.subr.mxu0 0.0
    %7670 = vmatpush2.msra.mxu0 0.0
    %7671 = vmatprep.mubr.f32.mxu0 0.0
    %7672 = vmatmul.mubr.f32.gmra.mxu0 %v7534
    %v7673 = vpop.f32.mrf.mxu0
    %v7674 = vadd.f32 0.0, %v7673
    %v7675 = vpop.f32.mrf.mxu0
    %v7676 = vadd.f32 0.0, %v7675
    %7677 = vdwg.mxu0
    %v7682 = vrot.slane %v7603, 5
    %v7683 = vrot.slane %v7605, 5
    %v7684 = vrot.slane %v7674, 5
    %v7685 = vrot.slane %v7676, 5
    %v7686 = vrot.slane %v7603, 6
    %v7687 = vrot.slane %v7605, 6
    %v7688 = vrot.slane %v7674, 6
    %v7689 = vrot.slane %v7676, 6
    %v7698 = vadd.f32 %v6696, %v7682
    %v7699 = vadd.f32 %v6698, %v7683
    %v7700 = vadd.f32 %v6773, %v7684
    %v7701 = vadd.f32 %v6775, %v7685
    %v7702 = vadd.f32 %v6702, %v7686
    %v7703 = vadd.f32 %v6704, %v7687
    %v7704 = vadd.f32 %v6779, %v7688
    %v7705 = vadd.f32 %v6781, %v7689
    %v7706 = vxor.u32 %v7698, 2147483648
    %v7707 = vxor.u32 %v7702, 2147483648
    %v7708 = vmul.f32 %v7706, 1.442695
    %v7709 = vpow.pop %v7708
    %v7710 = vmul.f32 %v7707, 1.442695
    %v7711 = vpow.pop %v7710
    %v7712 = vadd.f32 %v7709, 1.0
    %v7713 = vadd.f32 %v7711, 1.0
    %v7714 = vrcp.pop %v7712
    %v7715 = vmul.f32 1.0, %v7714
    %v7716 = vrcp.pop %v7713
    %v7717 = vmul.f32 1.0, %v7716
    %v7718 = vxor.u32 %v7699, 2147483648
    %v7719 = vxor.u32 %v7703, 2147483648
    %v7720 = vmul.f32 %v7718, 1.442695
    %v7721 = vpow.pop %v7720
    %v7722 = vmul.f32 %v7719, 1.442695
    %v7723 = vpow.pop %v7722
    %v7724 = vadd.f32 %v7721, 1.0
    %v7725 = vadd.f32 %v7723, 1.0
    %v7726 = vrcp.pop %v7724
    %v7727 = vmul.f32 1.0, %v7726
    %v7728 = vrcp.pop %v7725
    %v7729 = vmul.f32 1.0, %v7728
    %v7730 = vtanh.pop %v7700
    %v7731 = vtanh.pop %v7704
    %v7732 = vxor.u32 %v7701, 2147483648
    %v7733 = vxor.u32 %v7705, 2147483648
    %v7734 = vmul.f32 %v7732, 1.442695
    %v7735 = vpow.pop %v7734
    %v7736 = vmul.f32 %v7733, 1.442695
    %v7737 = vpow.pop %v7736
    %v7738 = vadd.f32 %v7735, 1.0
    %v7739 = vadd.f32 %v7737, 1.0
    %v7740 = vrcp.pop %v7738
    %v7741 = vmul.f32 1.0, %v7740
    %v7742 = vrcp.pop %v7739
    %v7743 = vmul.f32 1.0, %v7742
    %v7746 = vrot.slane %v7522, 7
    %v7747 = vrot.slane %v7523, 7
    %v7750 = vmul.f32 %v7727, %v7746
    %v7751 = vmul.f32 %v7729, %v7747
    %v7752 = vmul.f32 %v7715, %v7730
    %v7753 = vmul.f32 %v7717, %v7731
    %v7754 = vadd.f32 %v7750, %v7752
    %v7755 = vadd.f32 %v7751, %v7753
    %v7756 = vtanh.pop %v7754
    %v7757 = vtanh.pop %v7755
    %v7758 = vmul.f32 %v7741, %v7756
    %v7759 = vmul.f32 %v7743, %v7757
    %7760 = vst [vmem:[#allocation2] sm:$0x8] %v7758
    %7761 = vst [vmem:[#allocation2 + $0x8] sm:$0x8] %v7759
    %v7764 = vrot.slane %v7758, 3
    %v7765 = vrot.slane %v7759, 2
    %v7766 = vsel %vm574, %v7765, %v7764
    %7768 = vmatprep.subr.mxu0 %v6845
    %7769 = vmatpush1.msra.mxu0 %v6844
    %7770 = vmatprep.subr.mxu0 %v6841
    %7771 = vmatpush1.msra.mxu0 %v6840
    %7772 = vmatprep.subr.mxu0 %v6837
    %7773 = vmatpush1.msra.mxu0 %v6836
    %7774 = vmatprep.subr.mxu0 %v6833
    %7775 = vmatpush1.msra.mxu0 %v6832
    %7776 = vmatprep.subr.mxu0 %v6829
    %7777 = vmatpush1.msra.mxu0 %v6828
    %7778 = vmatprep.subr.mxu0 %v6825
    %7779 = vmatpush1.msra.mxu0 %v6824
    %7780 = vmatprep.subr.mxu0 %v6821
    %7781 = vmatpush1.msra.mxu0 %v6820
    %7782 = vmatprep.subr.mxu0 %v6817
    %7783 = vmatpush1.msra.mxu0 %v6816
    %7784 = vmatprep.subr.mxu0 %v6813
    %7785 = vmatpush1.msra.mxu0 %v6812
    %7786 = vmatprep.subr.mxu0 %v6809
    %7787 = vmatpush1.msra.mxu0 %v6808
    %7788 = vmatprep.subr.mxu0 %v6805
    %7789 = vmatpush1.msra.mxu0 %v6804
    %7790 = vmatprep.subr.mxu0 %v6801
    %7791 = vmatpush1.msra.mxu0 %v6800
    %7792 = vmatprep.subr.mxu0 %v6797
    %7793 = vmatpush1.msra.mxu0 %v6796
    %7794 = vmatprep.subr.mxu0 %v6793
    %7795 = vmatpush1.msra.mxu0 %v6792
    %7796 = vmatprep.subr.mxu0 %v6789
    %7797 = vmatpush1.msra.mxu0 %v6788
    %7798 = vmatprep.subr.mxu0 %v6785
    %7799 = vmatpush1.msra.mxu0 %v6784
    %7800 = vmatprep.subr.mxu0 0.0
    %7801 = vmatpush2.msra.mxu0 0.0
    %7802 = vmatprep.subr.mxu0 0.0
    %7803 = vmatpush2.msra.mxu0 0.0
    %7804 = vmatprep.subr.mxu0 0.0
    %7805 = vmatpush2.msra.mxu0 0.0
    %7806 = vmatprep.subr.mxu0 0.0
    %7807 = vmatpush2.msra.mxu0 0.0
    %7808 = vmatprep.subr.mxu0 0.0
    %7809 = vmatpush2.msra.mxu0 0.0
    %7810 = vmatprep.subr.mxu0 0.0
    %7811 = vmatpush2.msra.mxu0 0.0
    %7812 = vmatprep.subr.mxu0 0.0
    %7813 = vmatpush2.msra.mxu0 0.0
    %7814 = vmatprep.subr.mxu0 0.0
    %7815 = vmatpush2.msra.mxu0 0.0
    %7816 = vmatprep.subr.mxu0 0.0
    %7817 = vmatpush2.msra.mxu0 0.0
    %7818 = vmatprep.subr.mxu0 0.0
    %7819 = vmatpush2.msra.mxu0 0.0
    %7820 = vmatprep.subr.mxu0 0.0
    %7821 = vmatpush2.msra.mxu0 0.0
    %7822 = vmatprep.subr.mxu0 0.0
    %7823 = vmatpush2.msra.mxu0 0.0
    %7824 = vmatprep.subr.mxu0 0.0
    %7825 = vmatpush2.msra.mxu0 0.0
    %7826 = vmatprep.subr.mxu0 0.0
    %7827 = vmatpush2.msra.mxu0 0.0
    %7828 = vmatprep.subr.mxu0 0.0
    %7829 = vmatpush2.msra.mxu0 0.0
    %7830 = vmatprep.subr.mxu0 0.0
    %7831 = vmatpush2.msra.mxu0 0.0
    %7832 = vmatprep.mubr.f32.mxu0 0.0
    %7833 = vmatmul.mubr.f32.gmra.mxu0 %v7766
    %v7834 = vpop.f32.mrf.mxu0
    %v7835 = vadd.f32 0.0, %v7834
    %v7836 = vpop.f32.mrf.mxu0
    %v7837 = vadd.f32 0.0, %v7836
    %7838 = vdwg.mxu0
    %7839 = vmatprep.subr.mxu0 %v6847
    %7840 = vmatpush1.msra.mxu0 %v6846
    %7841 = vmatprep.subr.mxu0 %v6843
    %7842 = vmatpush1.msra.mxu0 %v6842
    %7843 = vmatprep.subr.mxu0 %v6839
    %7844 = vmatpush1.msra.mxu0 %v6838
    %7845 = vmatprep.subr.mxu0 %v6835
    %7846 = vmatpush1.msra.mxu0 %v6834
    %7847 = vmatprep.subr.mxu0 %v6831
    %7848 = vmatpush1.msra.mxu0 %v6830
    %7849 = vmatprep.subr.mxu0 %v6827
    %7850 = vmatpush1.msra.mxu0 %v6826
    %7851 = vmatprep.subr.mxu0 %v6823
    %7852 = vmatpush1.msra.mxu0 %v6822
    %7853 = vmatprep.subr.mxu0 %v6819
    %7854 = vmatpush1.msra.mxu0 %v6818
    %7855 = vmatprep.subr.mxu0 %v6815
    %7856 = vmatpush1.msra.mxu0 %v6814
    %7857 = vmatprep.subr.mxu0 %v6811
    %7858 = vmatpush1.msra.mxu0 %v6810
    %7859 = vmatprep.subr.mxu0 %v6807
    %7860 = vmatpush1.msra.mxu0 %v6806
    %7861 = vmatprep.subr.mxu0 %v6803
    %7862 = vmatpush1.msra.mxu0 %v6802
    %7863 = vmatprep.subr.mxu0 %v6799
    %7864 = vmatpush1.msra.mxu0 %v6798
    %7865 = vmatprep.subr.mxu0 %v6795
    %7866 = vmatpush1.msra.mxu0 %v6794
    %7867 = vmatprep.subr.mxu0 %v6791
    %7868 = vmatpush1.msra.mxu0 %v6790
    %7869 = vmatprep.subr.mxu0 %v6787
    %7870 = vmatpush1.msra.mxu0 %v6786
    %7871 = vmatprep.subr.mxu0 0.0
    %7872 = vmatpush2.msra.mxu0 0.0
    %7873 = vmatprep.subr.mxu0 0.0
    %7874 = vmatpush2.msra.mxu0 0.0
    %7875 = vmatprep.subr.mxu0 0.0
    %7876 = vmatpush2.msra.mxu0 0.0
    %7877 = vmatprep.subr.mxu0 0.0
    %7878 = vmatpush2.msra.mxu0 0.0
    %7879 = vmatprep.subr.mxu0 0.0
    %7880 = vmatpush2.msra.mxu0 0.0
    %7881 = vmatprep.subr.mxu0 0.0
    %7882 = vmatpush2.msra.mxu0 0.0
    %7883 = vmatprep.subr.mxu0 0.0
    %7884 = vmatpush2.msra.mxu0 0.0
    %7885 = vmatprep.subr.mxu0 0.0
    %7886 = vmatpush2.msra.mxu0 0.0
    %7887 = vmatprep.subr.mxu0 0.0
    %7888 = vmatpush2.msra.mxu0 0.0
    %7889 = vmatprep.subr.mxu0 0.0
    %7890 = vmatpush2.msra.mxu0 0.0
    %7891 = vmatprep.subr.mxu0 0.0
    %7892 = vmatpush2.msra.mxu0 0.0
    %7893 = vmatprep.subr.mxu0 0.0
    %7894 = vmatpush2.msra.mxu0 0.0
    %7895 = vmatprep.subr.mxu0 0.0
    %7896 = vmatpush2.msra.mxu0 0.0
    %7897 = vmatprep.subr.mxu0 0.0
    %7898 = vmatpush2.msra.mxu0 0.0
    %7899 = vmatprep.subr.mxu0 0.0
    %7900 = vmatpush2.msra.mxu0 0.0
    %7901 = vmatprep.subr.mxu0 0.0
    %7902 = vmatpush2.msra.mxu0 0.0
    %7903 = vmatprep.mubr.f32.mxu0 0.0
    %7904 = vmatmul.mubr.f32.gmra.mxu0 %v7766
    %v7905 = vpop.f32.mrf.mxu0
    %v7906 = vadd.f32 0.0, %v7905
    %v7907 = vpop.f32.mrf.mxu0
    %v7908 = vadd.f32 0.0, %v7907
    %7909 = vdwg.mxu0
    %v7914 = vrot.slane %v7835, 4
    %v7915 = vrot.slane %v7837, 4
    %v7916 = vrot.slane %v7906, 4
    %v7917 = vrot.slane %v7908, 4
    %v7918 = vrot.slane %v7835, 5
    %v7919 = vrot.slane %v7837, 5
    %v7920 = vrot.slane %v7906, 5
    %v7921 = vrot.slane %v7908, 5
    %v7930 = vadd.f32 %v6696, %v7914
    %v7931 = vadd.f32 %v6698, %v7915
    %v7932 = vadd.f32 %v6773, %v7916
    %v7933 = vadd.f32 %v6775, %v7917
    %v7934 = vadd.f32 %v6702, %v7918
    %v7935 = vadd.f32 %v6704, %v7919
    %v7936 = vadd.f32 %v6779, %v7920
    %v7937 = vadd.f32 %v6781, %v7921
    %v7938 = vxor.u32 %v7930, 2147483648
    %v7939 = vxor.u32 %v7934, 2147483648
    %v7940 = vmul.f32 %v7938, 1.442695
    %v7941 = vpow.pop %v7940
    %v7942 = vmul.f32 %v7939, 1.442695
    %v7943 = vpow.pop %v7942
    %v7944 = vadd.f32 %v7941, 1.0
    %v7945 = vadd.f32 %v7943, 1.0
    %v7946 = vrcp.pop %v7944
    %v7947 = vmul.f32 1.0, %v7946
    %v7948 = vrcp.pop %v7945
    %v7949 = vmul.f32 1.0, %v7948
    %v7950 = vxor.u32 %v7931, 2147483648
    %v7951 = vxor.u32 %v7935, 2147483648
    %v7952 = vmul.f32 %v7950, 1.442695
    %v7953 = vpow.pop %v7952
    %v7954 = vmul.f32 %v7951, 1.442695
    %v7955 = vpow.pop %v7954
    %v7956 = vadd.f32 %v7953, 1.0
    %v7957 = vadd.f32 %v7955, 1.0
    %v7958 = vrcp.pop %v7956
    %v7959 = vmul.f32 1.0, %v7958
    %v7960 = vrcp.pop %v7957
    %v7961 = vmul.f32 1.0, %v7960
    %v7962 = vtanh.pop %v7932
    %v7963 = vtanh.pop %v7936
    %v7964 = vxor.u32 %v7933, 2147483648
    %v7965 = vxor.u32 %v7937, 2147483648
    %v7966 = vmul.f32 %v7964, 1.442695
    %v7967 = vpow.pop %v7966
    %v7968 = vmul.f32 %v7965, 1.442695
    %v7969 = vpow.pop %v7968
    %v7970 = vadd.f32 %v7967, 1.0
    %v7971 = vadd.f32 %v7969, 1.0
    %v7972 = vrcp.pop %v7970
    %v7973 = vmul.f32 1.0, %v7972
    %v7974 = vrcp.pop %v7971
    %v7975 = vmul.f32 1.0, %v7974
    %v7978 = vrot.slane %v7754, 7
    %v7979 = vrot.slane %v7755, 7
    %v7982 = vmul.f32 %v7959, %v7978
    %v7983 = vmul.f32 %v7961, %v7979
    %v7984 = vmul.f32 %v7947, %v7962
    %v7985 = vmul.f32 %v7949, %v7963
    %v7986 = vadd.f32 %v7982, %v7984
    %v7987 = vadd.f32 %v7983, %v7985
    %v7988 = vtanh.pop %v7986
    %v7989 = vtanh.pop %v7987
    %v7990 = vmul.f32 %v7973, %v7988
    %v7991 = vmul.f32 %v7975, %v7989
    %7992 = vst [vmem:[#allocation2] sm:$0x10] %v7990
    %7993 = vst [vmem:[#allocation2 + $0x8] sm:$0x10] %v7991
    %v7996 = vrot.slane %v7990, 4
    %v7997 = vrot.slane %v7991, 3
    %v7998 = vsel %vm574, %v7997, %v7996
    %8000 = vmatprep.subr.mxu0 %v6845
    %8001 = vmatpush1.msra.mxu0 %v6844
    %8002 = vmatprep.subr.mxu0 %v6841
    %8003 = vmatpush1.msra.mxu0 %v6840
    %8004 = vmatprep.subr.mxu0 %v6837
    %8005 = vmatpush1.msra.mxu0 %v6836
    %8006 = vmatprep.subr.mxu0 %v6833
    %8007 = vmatpush1.msra.mxu0 %v6832
    %8008 = vmatprep.subr.mxu0 %v6829
    %8009 = vmatpush1.msra.mxu0 %v6828
    %8010 = vmatprep.subr.mxu0 %v6825
    %8011 = vmatpush1.msra.mxu0 %v6824
    %8012 = vmatprep.subr.mxu0 %v6821
    %8013 = vmatpush1.msra.mxu0 %v6820
    %8014 = vmatprep.subr.mxu0 %v6817
    %8015 = vmatpush1.msra.mxu0 %v6816
    %8016 = vmatprep.subr.mxu0 %v6813
    %8017 = vmatpush1.msra.mxu0 %v6812
    %8018 = vmatprep.subr.mxu0 %v6809
    %8019 = vmatpush1.msra.mxu0 %v6808
    %8020 = vmatprep.subr.mxu0 %v6805
    %8021 = vmatpush1.msra.mxu0 %v6804
    %8022 = vmatprep.subr.mxu0 %v6801
    %8023 = vmatpush1.msra.mxu0 %v6800
    %8024 = vmatprep.subr.mxu0 %v6797
    %8025 = vmatpush1.msra.mxu0 %v6796
    %8026 = vmatprep.subr.mxu0 %v6793
    %8027 = vmatpush1.msra.mxu0 %v6792
    %8028 = vmatprep.subr.mxu0 %v6789
    %8029 = vmatpush1.msra.mxu0 %v6788
    %8030 = vmatprep.subr.mxu0 %v6785
    %8031 = vmatpush1.msra.mxu0 %v6784
    %8032 = vmatprep.subr.mxu0 0.0
    %8033 = vmatpush2.msra.mxu0 0.0
    %8034 = vmatprep.subr.mxu0 0.0
    %8035 = vmatpush2.msra.mxu0 0.0
    %8036 = vmatprep.subr.mxu0 0.0
    %8037 = vmatpush2.msra.mxu0 0.0
    %8038 = vmatprep.subr.mxu0 0.0
    %8039 = vmatpush2.msra.mxu0 0.0
    %8040 = vmatprep.subr.mxu0 0.0
    %8041 = vmatpush2.msra.mxu0 0.0
    %8042 = vmatprep.subr.mxu0 0.0
    %8043 = vmatpush2.msra.mxu0 0.0
    %8044 = vmatprep.subr.mxu0 0.0
    %8045 = vmatpush2.msra.mxu0 0.0
    %8046 = vmatprep.subr.mxu0 0.0
    %8047 = vmatpush2.msra.mxu0 0.0
    %8048 = vmatprep.subr.mxu0 0.0
    %8049 = vmatpush2.msra.mxu0 0.0
    %8050 = vmatprep.subr.mxu0 0.0
    %8051 = vmatpush2.msra.mxu0 0.0
    %8052 = vmatprep.subr.mxu0 0.0
    %8053 = vmatpush2.msra.mxu0 0.0
    %8054 = vmatprep.subr.mxu0 0.0
    %8055 = vmatpush2.msra.mxu0 0.0
    %8056 = vmatprep.subr.mxu0 0.0
    %8057 = vmatpush2.msra.mxu0 0.0
    %8058 = vmatprep.subr.mxu0 0.0
    %8059 = vmatpush2.msra.mxu0 0.0
    %8060 = vmatprep.subr.mxu0 0.0
    %8061 = vmatpush2.msra.mxu0 0.0
    %8062 = vmatprep.subr.mxu0 0.0
    %8063 = vmatpush2.msra.mxu0 0.0
    %8064 = vmatprep.mubr.f32.mxu0 0.0
    %8065 = vmatmul.mubr.f32.gmra.mxu0 %v7998
    %v8066 = vpop.f32.mrf.mxu0
    %v8067 = vadd.f32 0.0, %v8066
    %v8068 = vpop.f32.mrf.mxu0
    %v8069 = vadd.f32 0.0, %v8068
    %8070 = vdwg.mxu0
    %8071 = vmatprep.subr.mxu0 %v6847
    %8072 = vmatpush1.msra.mxu0 %v6846
    %8073 = vmatprep.subr.mxu0 %v6843
    %8074 = vmatpush1.msra.mxu0 %v6842
    %8075 = vmatprep.subr.mxu0 %v6839
    %8076 = vmatpush1.msra.mxu0 %v6838
    %8077 = vmatprep.subr.mxu0 %v6835
    %8078 = vmatpush1.msra.mxu0 %v6834
    %8079 = vmatprep.subr.mxu0 %v6831
    %8080 = vmatpush1.msra.mxu0 %v6830
    %8081 = vmatprep.subr.mxu0 %v6827
    %8082 = vmatpush1.msra.mxu0 %v6826
    %8083 = vmatprep.subr.mxu0 %v6823
    %8084 = vmatpush1.msra.mxu0 %v6822
    %8085 = vmatprep.subr.mxu0 %v6819
    %8086 = vmatpush1.msra.mxu0 %v6818
    %8087 = vmatprep.subr.mxu0 %v6815
    %8088 = vmatpush1.msra.mxu0 %v6814
    %8089 = vmatprep.subr.mxu0 %v6811
    %8090 = vmatpush1.msra.mxu0 %v6810
    %8091 = vmatprep.subr.mxu0 %v6807
    %8092 = vmatpush1.msra.mxu0 %v6806
    %8093 = vmatprep.subr.mxu0 %v6803
    %8094 = vmatpush1.msra.mxu0 %v6802
    %8095 = vmatprep.subr.mxu0 %v6799
    %8096 = vmatpush1.msra.mxu0 %v6798
    %8097 = vmatprep.subr.mxu0 %v6795
    %8098 = vmatpush1.msra.mxu0 %v6794
    %8099 = vmatprep.subr.mxu0 %v6791
    %8100 = vmatpush1.msra.mxu0 %v6790
    %8101 = vmatprep.subr.mxu0 %v6787
    %8102 = vmatpush1.msra.mxu0 %v6786
    %8103 = vmatprep.subr.mxu0 0.0
    %8104 = vmatpush2.msra.mxu0 0.0
    %8105 = vmatprep.subr.mxu0 0.0
    %8106 = vmatpush2.msra.mxu0 0.0
    %8107 = vmatprep.subr.mxu0 0.0
    %8108 = vmatpush2.msra.mxu0 0.0
    %8109 = vmatprep.subr.mxu0 0.0
    %8110 = vmatpush2.msra.mxu0 0.0
    %8111 = vmatprep.subr.mxu0 0.0
    %8112 = vmatpush2.msra.mxu0 0.0
    %8113 = vmatprep.subr.mxu0 0.0
    %8114 = vmatpush2.msra.mxu0 0.0
    %8115 = vmatprep.subr.mxu0 0.0
    %8116 = vmatpush2.msra.mxu0 0.0
    %8117 = vmatprep.subr.mxu0 0.0
    %8118 = vmatpush2.msra.mxu0 0.0
    %8119 = vmatprep.subr.mxu0 0.0
    %8120 = vmatpush2.msra.mxu0 0.0
    %8121 = vmatprep.subr.mxu0 0.0
    %8122 = vmatpush2.msra.mxu0 0.0
    %8123 = vmatprep.subr.mxu0 0.0
    %8124 = vmatpush2.msra.mxu0 0.0
    %8125 = vmatprep.subr.mxu0 0.0
    %8126 = vmatpush2.msra.mxu0 0.0
    %8127 = vmatprep.subr.mxu0 0.0
    %8128 = vmatpush2.msra.mxu0 0.0
    %8129 = vmatprep.subr.mxu0 0.0
    %8130 = vmatpush2.msra.mxu0 0.0
    %8131 = vmatprep.subr.mxu0 0.0
    %8132 = vmatpush2.msra.mxu0 0.0
    %8133 = vmatprep.subr.mxu0 0.0
    %8134 = vmatpush2.msra.mxu0 0.0
    %8135 = vmatprep.mubr.f32.mxu0 0.0
    %8136 = vmatmul.mubr.f32.gmra.mxu0 %v7998
    %v8137 = vpop.f32.mrf.mxu0
    %v8138 = vadd.f32 0.0, %v8137
    %v8139 = vpop.f32.mrf.mxu0
    %v8140 = vadd.f32 0.0, %v8139
    %8141 = vdwg.mxu0
    %v8146 = vrot.slane %v8067, 3
    %v8147 = vrot.slane %v8069, 3
    %v8148 = vrot.slane %v8138, 3
    %v8149 = vrot.slane %v8140, 3
    %v8150 = vrot.slane %v8067, 4
    %v8151 = vrot.slane %v8069, 4
    %v8152 = vrot.slane %v8138, 4
    %v8153 = vrot.slane %v8140, 4
    %v8162 = vadd.f32 %v6696, %v8146
    %v8163 = vadd.f32 %v6698, %v8147
    %v8164 = vadd.f32 %v6773, %v8148
    %v8165 = vadd.f32 %v6775, %v8149
    %v8166 = vadd.f32 %v6702, %v8150
    %v8167 = vadd.f32 %v6704, %v8151
    %v8168 = vadd.f32 %v6779, %v8152
    %v8169 = vadd.f32 %v6781, %v8153
    %v8170 = vxor.u32 %v8162, 2147483648
    %v8171 = vxor.u32 %v8166, 2147483648
    %v8172 = vmul.f32 %v8170, 1.442695
    %v8173 = vpow.pop %v8172
    %v8174 = vmul.f32 %v8171, 1.442695
    %v8175 = vpow.pop %v8174
    %v8176 = vadd.f32 %v8173, 1.0
    %v8177 = vadd.f32 %v8175, 1.0
    %v8178 = vrcp.pop %v8176
    %v8179 = vmul.f32 1.0, %v8178
    %v8180 = vrcp.pop %v8177
    %v8181 = vmul.f32 1.0, %v8180
    %v8182 = vxor.u32 %v8163, 2147483648
    %v8183 = vxor.u32 %v8167, 2147483648
    %v8184 = vmul.f32 %v8182, 1.442695
    %v8185 = vpow.pop %v8184
    %v8186 = vmul.f32 %v8183, 1.442695
    %v8187 = vpow.pop %v8186
    %v8188 = vadd.f32 %v8185, 1.0
    %v8189 = vadd.f32 %v8187, 1.0
    %v8190 = vrcp.pop %v8188
    %v8191 = vmul.f32 1.0, %v8190
    %v8192 = vrcp.pop %v8189
    %v8193 = vmul.f32 1.0, %v8192
    %v8194 = vtanh.pop %v8164
    %v8195 = vtanh.pop %v8168
    %v8196 = vxor.u32 %v8165, 2147483648
    %v8197 = vxor.u32 %v8169, 2147483648
    %v8198 = vmul.f32 %v8196, 1.442695
    %v8199 = vpow.pop %v8198
    %v8200 = vmul.f32 %v8197, 1.442695
    %v8201 = vpow.pop %v8200
    %v8202 = vadd.f32 %v8199, 1.0
    %v8203 = vadd.f32 %v8201, 1.0
    %v8204 = vrcp.pop %v8202
    %v8205 = vmul.f32 1.0, %v8204
    %v8206 = vrcp.pop %v8203
    %v8207 = vmul.f32 1.0, %v8206
    %v8210 = vrot.slane %v7986, 7
    %v8211 = vrot.slane %v7987, 7
    %v8214 = vmul.f32 %v8191, %v8210
    %v8215 = vmul.f32 %v8193, %v8211
    %v8216 = vmul.f32 %v8179, %v8194
    %v8217 = vmul.f32 %v8181, %v8195
    %v8218 = vadd.f32 %v8214, %v8216
    %v8219 = vadd.f32 %v8215, %v8217
    %v8220 = vtanh.pop %v8218
    %v8221 = vtanh.pop %v8219
    %v8222 = vmul.f32 %v8205, %v8220
    %v8223 = vmul.f32 %v8207, %v8221
    %8224 = vst [vmem:[#allocation2] sm:$0x20] %v8222
    %8225 = vst [vmem:[#allocation2 + $0x8] sm:$0x20] %v8223
    %v8228 = vrot.slane %v8222, 5
    %v8229 = vrot.slane %v8223, 4
    %v8230 = vsel %vm574, %v8229, %v8228
    %8232 = vmatprep.subr.mxu0 %v6845
    %8233 = vmatpush1.msra.mxu0 %v6844
    %8234 = vmatprep.subr.mxu0 %v6841
    %8235 = vmatpush1.msra.mxu0 %v6840
    %8236 = vmatprep.subr.mxu0 %v6837
    %8237 = vmatpush1.msra.mxu0 %v6836
    %8238 = vmatprep.subr.mxu0 %v6833
    %8239 = vmatpush1.msra.mxu0 %v6832
    %8240 = vmatprep.subr.mxu0 %v6829
    %8241 = vmatpush1.msra.mxu0 %v6828
    %8242 = vmatprep.subr.mxu0 %v6825
    %8243 = vmatpush1.msra.mxu0 %v6824
    %8244 = vmatprep.subr.mxu0 %v6821
    %8245 = vmatpush1.msra.mxu0 %v6820
    %8246 = vmatprep.subr.mxu0 %v6817
    %8247 = vmatpush1.msra.mxu0 %v6816
    %8248 = vmatprep.subr.mxu0 %v6813
    %8249 = vmatpush1.msra.mxu0 %v6812
    %8250 = vmatprep.subr.mxu0 %v6809
    %8251 = vmatpush1.msra.mxu0 %v6808
    %8252 = vmatprep.subr.mxu0 %v6805
    %8253 = vmatpush1.msra.mxu0 %v6804
    %8254 = vmatprep.subr.mxu0 %v6801
    %8255 = vmatpush1.msra.mxu0 %v6800
    %8256 = vmatprep.subr.mxu0 %v6797
    %8257 = vmatpush1.msra.mxu0 %v6796
    %8258 = vmatprep.subr.mxu0 %v6793
    %8259 = vmatpush1.msra.mxu0 %v6792
    %8260 = vmatprep.subr.mxu0 %v6789
    %8261 = vmatpush1.msra.mxu0 %v6788
    %8262 = vmatprep.subr.mxu0 %v6785
    %8263 = vmatpush1.msra.mxu0 %v6784
    %8264 = vmatprep.subr.mxu0 0.0
    %8265 = vmatpush2.msra.mxu0 0.0
    %8266 = vmatprep.subr.mxu0 0.0
    %8267 = vmatpush2.msra.mxu0 0.0
    %8268 = vmatprep.subr.mxu0 0.0
    %8269 = vmatpush2.msra.mxu0 0.0
    %8270 = vmatprep.subr.mxu0 0.0
    %8271 = vmatpush2.msra.mxu0 0.0
    %8272 = vmatprep.subr.mxu0 0.0
    %8273 = vmatpush2.msra.mxu0 0.0
    %8274 = vmatprep.subr.mxu0 0.0
    %8275 = vmatpush2.msra.mxu0 0.0
    %8276 = vmatprep.subr.mxu0 0.0
    %8277 = vmatpush2.msra.mxu0 0.0
    %8278 = vmatprep.subr.mxu0 0.0
    %8279 = vmatpush2.msra.mxu0 0.0
    %8280 = vmatprep.subr.mxu0 0.0
    %8281 = vmatpush2.msra.mxu0 0.0
    %8282 = vmatprep.subr.mxu0 0.0
    %8283 = vmatpush2.msra.mxu0 0.0
    %8284 = vmatprep.subr.mxu0 0.0
    %8285 = vmatpush2.msra.mxu0 0.0
    %8286 = vmatprep.subr.mxu0 0.0
    %8287 = vmatpush2.msra.mxu0 0.0
    %8288 = vmatprep.subr.mxu0 0.0
    %8289 = vmatpush2.msra.mxu0 0.0
    %8290 = vmatprep.subr.mxu0 0.0
    %8291 = vmatpush2.msra.mxu0 0.0
    %8292 = vmatprep.subr.mxu0 0.0
    %8293 = vmatpush2.msra.mxu0 0.0
    %8294 = vmatprep.subr.mxu0 0.0
    %8295 = vmatpush2.msra.mxu0 0.0
    %8296 = vmatprep.mubr.f32.mxu0 0.0
    %8297 = vmatmul.mubr.f32.gmra.mxu0 %v8230
    %v8298 = vpop.f32.mrf.mxu0
    %v8299 = vadd.f32 0.0, %v8298
    %v8300 = vpop.f32.mrf.mxu0
    %v8301 = vadd.f32 0.0, %v8300
    %8302 = vdwg.mxu0
    %8303 = vmatprep.subr.mxu0 %v6847
    %8304 = vmatpush1.msra.mxu0 %v6846
    %8305 = vmatprep.subr.mxu0 %v6843
    %8306 = vmatpush1.msra.mxu0 %v6842
    %8307 = vmatprep.subr.mxu0 %v6839
    %8308 = vmatpush1.msra.mxu0 %v6838
    %8309 = vmatprep.subr.mxu0 %v6835
    %8310 = vmatpush1.msra.mxu0 %v6834
    %8311 = vmatprep.subr.mxu0 %v6831
    %8312 = vmatpush1.msra.mxu0 %v6830
    %8313 = vmatprep.subr.mxu0 %v6827
    %8314 = vmatpush1.msra.mxu0 %v6826
    %8315 = vmatprep.subr.mxu0 %v6823
    %8316 = vmatpush1.msra.mxu0 %v6822
    %8317 = vmatprep.subr.mxu0 %v6819
    %8318 = vmatpush1.msra.mxu0 %v6818
    %8319 = vmatprep.subr.mxu0 %v6815
    %8320 = vmatpush1.msra.mxu0 %v6814
    %8321 = vmatprep.subr.mxu0 %v6811
    %8322 = vmatpush1.msra.mxu0 %v6810
    %8323 = vmatprep.subr.mxu0 %v6807
    %8324 = vmatpush1.msra.mxu0 %v6806
    %8325 = vmatprep.subr.mxu0 %v6803
    %8326 = vmatpush1.msra.mxu0 %v6802
    %8327 = vmatprep.subr.mxu0 %v6799
    %8328 = vmatpush1.msra.mxu0 %v6798
    %8329 = vmatprep.subr.mxu0 %v6795
    %8330 = vmatpush1.msra.mxu0 %v6794
    %8331 = vmatprep.subr.mxu0 %v6791
    %8332 = vmatpush1.msra.mxu0 %v6790
    %8333 = vmatprep.subr.mxu0 %v6787
    %8334 = vmatpush1.msra.mxu0 %v6786
    %8335 = vmatprep.subr.mxu0 0.0
    %8336 = vmatpush2.msra.mxu0 0.0
    %8337 = vmatprep.subr.mxu0 0.0
    %8338 = vmatpush2.msra.mxu0 0.0
    %8339 = vmatprep.subr.mxu0 0.0
    %8340 = vmatpush2.msra.mxu0 0.0
    %8341 = vmatprep.subr.mxu0 0.0
    %8342 = vmatpush2.msra.mxu0 0.0
    %8343 = vmatprep.subr.mxu0 0.0
    %8344 = vmatpush2.msra.mxu0 0.0
    %8345 = vmatprep.subr.mxu0 0.0
    %8346 = vmatpush2.msra.mxu0 0.0
    %8347 = vmatprep.subr.mxu0 0.0
    %8348 = vmatpush2.msra.mxu0 0.0
    %8349 = vmatprep.subr.mxu0 0.0
    %8350 = vmatpush2.msra.mxu0 0.0
    %8351 = vmatprep.subr.mxu0 0.0
    %8352 = vmatpush2.msra.mxu0 0.0
    %8353 = vmatprep.subr.mxu0 0.0
    %8354 = vmatpush2.msra.mxu0 0.0
    %8355 = vmatprep.subr.mxu0 0.0
    %8356 = vmatpush2.msra.mxu0 0.0
    %8357 = vmatprep.subr.mxu0 0.0
    %8358 = vmatpush2.msra.mxu0 0.0
    %8359 = vmatprep.subr.mxu0 0.0
    %8360 = vmatpush2.msra.mxu0 0.0
    %8361 = vmatprep.subr.mxu0 0.0
    %8362 = vmatpush2.msra.mxu0 0.0
    %8363 = vmatprep.subr.mxu0 0.0
    %8364 = vmatpush2.msra.mxu0 0.0
    %8365 = vmatprep.subr.mxu0 0.0
    %8366 = vmatpush2.msra.mxu0 0.0
    %8367 = vmatprep.mubr.f32.mxu0 0.0
    %8368 = vmatmul.mubr.f32.gmra.mxu0 %v8230
    %v8369 = vpop.f32.mrf.mxu0
    %v8370 = vadd.f32 0.0, %v8369
    %v8371 = vpop.f32.mrf.mxu0
    %v8372 = vadd.f32 0.0, %v8371
    %8373 = vdwg.mxu0
    %v8378 = vrot.slane %v8299, 2
    %v8379 = vrot.slane %v8301, 2
    %v8380 = vrot.slane %v8370, 2
    %v8381 = vrot.slane %v8372, 2
    %v8382 = vrot.slane %v8299, 3
    %v8383 = vrot.slane %v8301, 3
    %v8384 = vrot.slane %v8370, 3
    %v8385 = vrot.slane %v8372, 3
    %v8394 = vadd.f32 %v6696, %v8378
    %v8395 = vadd.f32 %v6698, %v8379
    %v8396 = vadd.f32 %v6773, %v8380
    %v8397 = vadd.f32 %v6775, %v8381
    %v8398 = vadd.f32 %v6702, %v8382
    %v8399 = vadd.f32 %v6704, %v8383
    %v8400 = vadd.f32 %v6779, %v8384
    %v8401 = vadd.f32 %v6781, %v8385
    %v8402 = vxor.u32 %v8394, 2147483648
    %v8403 = vxor.u32 %v8398, 2147483648
    %v8404 = vmul.f32 %v8402, 1.442695
    %v8405 = vpow.pop %v8404
    %v8406 = vmul.f32 %v8403, 1.442695
    %v8407 = vpow.pop %v8406
    %v8408 = vadd.f32 %v8405, 1.0
    %v8409 = vadd.f32 %v8407, 1.0
    %v8410 = vrcp.pop %v8408
    %v8411 = vmul.f32 1.0, %v8410
    %v8412 = vrcp.pop %v8409
    %v8413 = vmul.f32 1.0, %v8412
    %v8414 = vxor.u32 %v8395, 2147483648
    %v8415 = vxor.u32 %v8399, 2147483648
    %v8416 = vmul.f32 %v8414, 1.442695
    %v8417 = vpow.pop %v8416
    %v8418 = vmul.f32 %v8415, 1.442695
    %v8419 = vpow.pop %v8418
    %v8420 = vadd.f32 %v8417, 1.0
    %v8421 = vadd.f32 %v8419, 1.0
    %v8422 = vrcp.pop %v8420
    %v8423 = vmul.f32 1.0, %v8422
    %v8424 = vrcp.pop %v8421
    %v8425 = vmul.f32 1.0, %v8424
    %v8426 = vtanh.pop %v8396
    %v8427 = vtanh.pop %v8400
    %v8428 = vxor.u32 %v8397, 2147483648
    %v8429 = vxor.u32 %v8401, 2147483648
    %v8430 = vmul.f32 %v8428, 1.442695
    %v8431 = vpow.pop %v8430
    %v8432 = vmul.f32 %v8429, 1.442695
    %v8433 = vpow.pop %v8432
    %v8434 = vadd.f32 %v8431, 1.0
    %v8435 = vadd.f32 %v8433, 1.0
    %v8436 = vrcp.pop %v8434
    %v8437 = vmul.f32 1.0, %v8436
    %v8438 = vrcp.pop %v8435
    %v8439 = vmul.f32 1.0, %v8438
    %v8442 = vrot.slane %v8218, 7
    %v8443 = vrot.slane %v8219, 7
    %v8446 = vmul.f32 %v8423, %v8442
    %v8447 = vmul.f32 %v8425, %v8443
    %v8448 = vmul.f32 %v8411, %v8426
    %v8449 = vmul.f32 %v8413, %v8427
    %v8450 = vadd.f32 %v8446, %v8448
    %v8451 = vadd.f32 %v8447, %v8449
    %v8452 = vtanh.pop %v8450
    %v8453 = vtanh.pop %v8451
    %v8454 = vmul.f32 %v8437, %v8452
    %v8455 = vmul.f32 %v8439, %v8453
    %8456 = vst [vmem:[#allocation2] sm:$0x40] %v8454
    %8457 = vst [vmem:[#allocation2 + $0x8] sm:$0x40] %v8455
    %v8460 = vrot.slane %v8454, 6
    %v8461 = vrot.slane %v8455, 5
    %v8462 = vsel %vm574, %v8461, %v8460
    %8464 = vmatprep.subr.mxu0 %v6845
    %8465 = vmatpush1.msra.mxu0 %v6844
    %8466 = vmatprep.subr.mxu0 %v6841
    %8467 = vmatpush1.msra.mxu0 %v6840
    %8468 = vmatprep.subr.mxu0 %v6837
    %8469 = vmatpush1.msra.mxu0 %v6836
    %8470 = vmatprep.subr.mxu0 %v6833
    %8471 = vmatpush1.msra.mxu0 %v6832
    %8472 = vmatprep.subr.mxu0 %v6829
    %8473 = vmatpush1.msra.mxu0 %v6828
    %8474 = vmatprep.subr.mxu0 %v6825
    %8475 = vmatpush1.msra.mxu0 %v6824
    %8476 = vmatprep.subr.mxu0 %v6821
    %8477 = vmatpush1.msra.mxu0 %v6820
    %8478 = vmatprep.subr.mxu0 %v6817
    %8479 = vmatpush1.msra.mxu0 %v6816
    %8480 = vmatprep.subr.mxu0 %v6813
    %8481 = vmatpush1.msra.mxu0 %v6812
    %8482 = vmatprep.subr.mxu0 %v6809
    %8483 = vmatpush1.msra.mxu0 %v6808
    %8484 = vmatprep.subr.mxu0 %v6805
    %8485 = vmatpush1.msra.mxu0 %v6804
    %8486 = vmatprep.subr.mxu0 %v6801
    %8487 = vmatpush1.msra.mxu0 %v6800
    %8488 = vmatprep.subr.mxu0 %v6797
    %8489 = vmatpush1.msra.mxu0 %v6796
    %8490 = vmatprep.subr.mxu0 %v6793
    %8491 = vmatpush1.msra.mxu0 %v6792
    %8492 = vmatprep.subr.mxu0 %v6789
    %8493 = vmatpush1.msra.mxu0 %v6788
    %8494 = vmatprep.subr.mxu0 %v6785
    %8495 = vmatpush1.msra.mxu0 %v6784
    %8496 = vmatprep.subr.mxu0 0.0
    %8497 = vmatpush2.msra.mxu0 0.0
    %8498 = vmatprep.subr.mxu0 0.0
    %8499 = vmatpush2.msra.mxu0 0.0
    %8500 = vmatprep.subr.mxu0 0.0
    %8501 = vmatpush2.msra.mxu0 0.0
    %8502 = vmatprep.subr.mxu0 0.0
    %8503 = vmatpush2.msra.mxu0 0.0
    %8504 = vmatprep.subr.mxu0 0.0
    %8505 = vmatpush2.msra.mxu0 0.0
    %8506 = vmatprep.subr.mxu0 0.0
    %8507 = vmatpush2.msra.mxu0 0.0
    %8508 = vmatprep.subr.mxu0 0.0
    %8509 = vmatpush2.msra.mxu0 0.0
    %8510 = vmatprep.subr.mxu0 0.0
    %8511 = vmatpush2.msra.mxu0 0.0
    %8512 = vmatprep.subr.mxu0 0.0
    %8513 = vmatpush2.msra.mxu0 0.0
    %8514 = vmatprep.subr.mxu0 0.0
    %8515 = vmatpush2.msra.mxu0 0.0
    %8516 = vmatprep.subr.mxu0 0.0
    %8517 = vmatpush2.msra.mxu0 0.0
    %8518 = vmatprep.subr.mxu0 0.0
    %8519 = vmatpush2.msra.mxu0 0.0
    %8520 = vmatprep.subr.mxu0 0.0
    %8521 = vmatpush2.msra.mxu0 0.0
    %8522 = vmatprep.subr.mxu0 0.0
    %8523 = vmatpush2.msra.mxu0 0.0
    %8524 = vmatprep.subr.mxu0 0.0
    %8525 = vmatpush2.msra.mxu0 0.0
    %8526 = vmatprep.subr.mxu0 0.0
    %8527 = vmatpush2.msra.mxu0 0.0
    %8528 = vmatprep.mubr.f32.mxu0 0.0
    %8529 = vmatmul.mubr.f32.gmra.mxu0 %v8462
    %v8530 = vpop.f32.mrf.mxu0
    %v8531 = vadd.f32 0.0, %v8530
    %v8532 = vpop.f32.mrf.mxu0
    %v8533 = vadd.f32 0.0, %v8532
    %8534 = vdwg.mxu0
    %8535 = vmatprep.subr.mxu0 %v6847
    %8536 = vmatpush1.msra.mxu0 %v6846
    %8537 = vmatprep.subr.mxu0 %v6843
    %8538 = vmatpush1.msra.mxu0 %v6842
    %8539 = vmatprep.subr.mxu0 %v6839
    %8540 = vmatpush1.msra.mxu0 %v6838
    %8541 = vmatprep.subr.mxu0 %v6835
    %8542 = vmatpush1.msra.mxu0 %v6834
    %8543 = vmatprep.subr.mxu0 %v6831
    %8544 = vmatpush1.msra.mxu0 %v6830
    %8545 = vmatprep.subr.mxu0 %v6827
    %8546 = vmatpush1.msra.mxu0 %v6826
    %8547 = vmatprep.subr.mxu0 %v6823
    %8548 = vmatpush1.msra.mxu0 %v6822
    %8549 = vmatprep.subr.mxu0 %v6819
    %8550 = vmatpush1.msra.mxu0 %v6818
    %8551 = vmatprep.subr.mxu0 %v6815
    %8552 = vmatpush1.msra.mxu0 %v6814
    %8553 = vmatprep.subr.mxu0 %v6811
    %8554 = vmatpush1.msra.mxu0 %v6810
    %8555 = vmatprep.subr.mxu0 %v6807
    %8556 = vmatpush1.msra.mxu0 %v6806
    %8557 = vmatprep.subr.mxu0 %v6803
    %8558 = vmatpush1.msra.mxu0 %v6802
    %8559 = vmatprep.subr.mxu0 %v6799
    %8560 = vmatpush1.msra.mxu0 %v6798
    %8561 = vmatprep.subr.mxu0 %v6795
    %8562 = vmatpush1.msra.mxu0 %v6794
    %8563 = vmatprep.subr.mxu0 %v6791
    %8564 = vmatpush1.msra.mxu0 %v6790
    %8565 = vmatprep.subr.mxu0 %v6787
    %8566 = vmatpush1.msra.mxu0 %v6786
    %8567 = vmatprep.subr.mxu0 0.0
    %8568 = vmatpush2.msra.mxu0 0.0
    %8569 = vmatprep.subr.mxu0 0.0
    %8570 = vmatpush2.msra.mxu0 0.0
    %8571 = vmatprep.subr.mxu0 0.0
    %8572 = vmatpush2.msra.mxu0 0.0
    %8573 = vmatprep.subr.mxu0 0.0
    %8574 = vmatpush2.msra.mxu0 0.0
    %8575 = vmatprep.subr.mxu0 0.0
    %8576 = vmatpush2.msra.mxu0 0.0
    %8577 = vmatprep.subr.mxu0 0.0
    %8578 = vmatpush2.msra.mxu0 0.0
    %8579 = vmatprep.subr.mxu0 0.0
    %8580 = vmatpush2.msra.mxu0 0.0
    %8581 = vmatprep.subr.mxu0 0.0
    %8582 = vmatpush2.msra.mxu0 0.0
    %8583 = vmatprep.subr.mxu0 0.0
    %8584 = vmatpush2.msra.mxu0 0.0
    %8585 = vmatprep.subr.mxu0 0.0
    %8586 = vmatpush2.msra.mxu0 0.0
    %8587 = vmatprep.subr.mxu0 0.0
    %8588 = vmatpush2.msra.mxu0 0.0
    %8589 = vmatprep.subr.mxu0 0.0
    %8590 = vmatpush2.msra.mxu0 0.0
    %8591 = vmatprep.subr.mxu0 0.0
    %8592 = vmatpush2.msra.mxu0 0.0
    %8593 = vmatprep.subr.mxu0 0.0
    %8594 = vmatpush2.msra.mxu0 0.0
    %8595 = vmatprep.subr.mxu0 0.0
    %8596 = vmatpush2.msra.mxu0 0.0
    %8597 = vmatprep.subr.mxu0 0.0
    %8598 = vmatpush2.msra.mxu0 0.0
    %8599 = vmatprep.mubr.f32.mxu0 0.0
    %8600 = vmatmul.mubr.f32.gmra.mxu0 %v8462
    %v8601 = vpop.f32.mrf.mxu0
    %v8602 = vadd.f32 0.0, %v8601
    %v8603 = vpop.f32.mrf.mxu0
    %v8604 = vadd.f32 0.0, %v8603
    %8605 = vdwg.mxu0
    %v8610 = vrot.slane %v8531, 1
    %v8611 = vrot.slane %v8533, 1
    %v8612 = vrot.slane %v8602, 1
    %v8613 = vrot.slane %v8604, 1
    %v8614 = vrot.slane %v8531, 2
    %v8615 = vrot.slane %v8533, 2
    %v8616 = vrot.slane %v8602, 2
    %v8617 = vrot.slane %v8604, 2
    %v8626 = vadd.f32 %v6696, %v8610
    %v8627 = vadd.f32 %v6698, %v8611
    %v8628 = vadd.f32 %v6773, %v8612
    %v8629 = vadd.f32 %v6775, %v8613
    %v8630 = vadd.f32 %v6702, %v8614
    %v8631 = vadd.f32 %v6704, %v8615
    %v8632 = vadd.f32 %v6779, %v8616
    %v8633 = vadd.f32 %v6781, %v8617
    %v8634 = vxor.u32 %v8626, 2147483648
    %v8635 = vxor.u32 %v8630, 2147483648
    %v8636 = vmul.f32 %v8634, 1.442695
    %v8637 = vpow.pop %v8636
    %v8638 = vmul.f32 %v8635, 1.442695
    %v8639 = vpow.pop %v8638
    %v8640 = vadd.f32 %v8637, 1.0
    %v8641 = vadd.f32 %v8639, 1.0
    %v8642 = vrcp.pop %v8640
    %v8643 = vmul.f32 1.0, %v8642
    %v8644 = vrcp.pop %v8641
    %v8645 = vmul.f32 1.0, %v8644
    %v8646 = vxor.u32 %v8627, 2147483648
    %v8647 = vxor.u32 %v8631, 2147483648
    %v8648 = vmul.f32 %v8646, 1.442695
    %v8649 = vpow.pop %v8648
    %v8650 = vmul.f32 %v8647, 1.442695
    %v8651 = vpow.pop %v8650
    %v8652 = vadd.f32 %v8649, 1.0
    %v8653 = vadd.f32 %v8651, 1.0
    %v8654 = vrcp.pop %v8652
    %v8655 = vmul.f32 1.0, %v8654
    %v8656 = vrcp.pop %v8653
    %v8657 = vmul.f32 1.0, %v8656
    %v8658 = vtanh.pop %v8628
    %v8659 = vtanh.pop %v8632
    %v8660 = vxor.u32 %v8629, 2147483648
    %v8661 = vxor.u32 %v8633, 2147483648
    %v8662 = vmul.f32 %v8660, 1.442695
    %v8663 = vpow.pop %v8662
    %v8664 = vmul.f32 %v8661, 1.442695
    %v8665 = vpow.pop %v8664
    %v8666 = vadd.f32 %v8663, 1.0
    %v8667 = vadd.f32 %v8665, 1.0
    %v8668 = vrcp.pop %v8666
    %v8669 = vmul.f32 1.0, %v8668
    %v8670 = vrcp.pop %v8667
    %v8671 = vmul.f32 1.0, %v8670
    %v8674 = vrot.slane %v8450, 7
    %v8675 = vrot.slane %v8451, 7
    %v8678 = vmul.f32 %v8655, %v8674
    %v8679 = vmul.f32 %v8657, %v8675
    %v8680 = vmul.f32 %v8643, %v8658
    %v8681 = vmul.f32 %v8645, %v8659
    %v8682 = vadd.f32 %v8678, %v8680
    %v8683 = vadd.f32 %v8679, %v8681
    %v8684 = vtanh.pop %v8682
    %v8685 = vtanh.pop %v8683
    %v8686 = vmul.f32 %v8669, %v8684
    %v8687 = vmul.f32 %v8671, %v8685
    %8688 = vst [vmem:[#allocation2] sm:$0x80] %v8686
    %8689 = vst [vmem:[#allocation2 + $0x8] sm:$0x80] %v8687
    %v8692 = vrot.slane %v8687, 7
    %s8695 = scalar_lea.vmem [#allocation9], 6
    %8696 = vst.msk [vmem:[%s8695 - $0x7] sm:$0x80] %vm2195, %v8686
    %8697 = vst.msk [vmem:[%s8695 + $0x1] sm:$0x1] %vm2197, %v8692
    %v8700 = vrot.slane %v8683, 7
    %s8703 = scalar_lea.vmem [#allocation11], 6
    %8704 = vst.msk [vmem:[%s8703 - $0x7] sm:$0x80] %vm2195, %v8682
    %8705 = vst.msk [vmem:[%s8703 + $0x1] sm:$0x1] %vm2197, %v8700
    %v8706 = vld [vmem:[#allocation2] sm:$0xff]
    %v8707 = vld [vmem:[#allocation2 + $0x8] sm:$0xff]
    %v8708 = vld [vmem:[%s7] sm:$0xff]
    %v8709 = vld [vmem:[%s7 + $0x8] sm:$0xff]
    %v8710 = vld [vmem:[%s7 + $0x10] sm:$0xff]
    %v8711 = vld [vmem:[%s7 + $0x18] sm:$0xff]
    %v8712 = vld [vmem:[%s7 + $0x20] sm:$0xff]
    %v8713 = vld [vmem:[%s7 + $0x28] sm:$0xff]
    %v8714 = vld [vmem:[%s7 + $0x30] sm:$0xff]
    %v8715 = vld [vmem:[%s7 + $0x38] sm:$0xff]
    %v8716 = vld [vmem:[%s7 + $0x40] sm:$0xff]
    %v8717 = vld [vmem:[%s7 + $0x48] sm:$0xff]
    %v8718 = vld [vmem:[%s7 + $0x50] sm:$0xff]
    %v8719 = vld [vmem:[%s7 + $0x58] sm:$0xff]
    %v8720 = vld [vmem:[%s7 + $0x60] sm:$0xff]
    %v8721 = vld [vmem:[%s7 + $0x68] sm:$0xff]
    %v8722 = vld [vmem:[%s7 + $0x70] sm:$0xff]
    %v8723 = vld [vmem:[%s7 + $0x78] sm:$0xff]
    %v8724 = vld [vmem:[%s8] sm:$0x1]
    %v8726 = vlaneseq
    %v8727 = vshrl.u32 %v8726, 7
    %v8728 = vsub.s32 0, %v8727
    %v8729 = vrot.slane %v8724, %v8728
    %8731 = vmatprep.subr.mxu0 0.0
    %8732 = vmatpush1.msra.mxu0 %v8723
    %8733 = vmatprep.subr.mxu0 0.0
    %8734 = vmatpush1.msra.mxu0 %v8722
    %8735 = vmatprep.subr.mxu0 0.0
    %8736 = vmatpush1.msra.mxu0 %v8721
    %8737 = vmatprep.subr.mxu0 0.0
    %8738 = vmatpush1.msra.mxu0 %v8720
    %8739 = vmatprep.subr.mxu0 0.0
    %8740 = vmatpush1.msra.mxu0 %v8719
    %8741 = vmatprep.subr.mxu0 0.0
    %8742 = vmatpush1.msra.mxu0 %v8718
    %8743 = vmatprep.subr.mxu0 0.0
    %8744 = vmatpush1.msra.mxu0 %v8717
    %8745 = vmatprep.subr.mxu0 0.0
    %8746 = vmatpush1.msra.mxu0 %v8716
    %8747 = vmatprep.subr.mxu0 0.0
    %8748 = vmatpush1.msra.mxu0 %v8715
    %8749 = vmatprep.subr.mxu0 0.0
    %8750 = vmatpush1.msra.mxu0 %v8714
    %8751 = vmatprep.subr.mxu0 0.0
    %8752 = vmatpush1.msra.mxu0 %v8713
    %8753 = vmatprep.subr.mxu0 0.0
    %8754 = vmatpush1.msra.mxu0 %v8712
    %8755 = vmatprep.subr.mxu0 0.0
    %8756 = vmatpush1.msra.mxu0 %v8711
    %8757 = vmatprep.subr.mxu0 0.0
    %8758 = vmatpush1.msra.mxu0 %v8710
    %8759 = vmatprep.subr.mxu0 0.0
    %8760 = vmatpush1.msra.mxu0 %v8709
    %8761 = vmatprep.subr.mxu0 0.0
    %8762 = vmatpush1.msra.mxu0 %v8708
    %8763 = vmatprep.subr.mxu0 0.0
    %8764 = vmatpush2.msra.mxu0 0.0
    %8765 = vmatprep.subr.mxu0 0.0
    %8766 = vmatpush2.msra.mxu0 0.0
    %8767 = vmatprep.subr.mxu0 0.0
    %8768 = vmatpush2.msra.mxu0 0.0
    %8769 = vmatprep.subr.mxu0 0.0
    %8770 = vmatpush2.msra.mxu0 0.0
    %8771 = vmatprep.subr.mxu0 0.0
    %8772 = vmatpush2.msra.mxu0 0.0
    %8773 = vmatprep.subr.mxu0 0.0
    %8774 = vmatpush2.msra.mxu0 0.0
    %8775 = vmatprep.subr.mxu0 0.0
    %8776 = vmatpush2.msra.mxu0 0.0
    %8777 = vmatprep.subr.mxu0 0.0
    %8778 = vmatpush2.msra.mxu0 0.0
    %8779 = vmatprep.subr.mxu0 0.0
    %8780 = vmatpush2.msra.mxu0 0.0
    %8781 = vmatprep.subr.mxu0 0.0
    %8782 = vmatpush2.msra.mxu0 0.0
    %8783 = vmatprep.subr.mxu0 0.0
    %8784 = vmatpush2.msra.mxu0 0.0
    %8785 = vmatprep.subr.mxu0 0.0
    %8786 = vmatpush2.msra.mxu0 0.0
    %8787 = vmatprep.subr.mxu0 0.0
    %8788 = vmatpush2.msra.mxu0 0.0
    %8789 = vmatprep.subr.mxu0 0.0
    %8790 = vmatpush2.msra.mxu0 0.0
    %8791 = vmatprep.subr.mxu0 0.0
    %8792 = vmatpush2.msra.mxu0 0.0
    %8793 = vmatprep.subr.mxu0 0.0
    %8794 = vmatpush2.msra.mxu0 0.0
    %8795 = vmatprep.mubr.f32.mxu0 0.0
    %8796 = vmatmul.mubr.f32.gmra.mxu0 %v8706
    %v8797 = vpop.f32.mrf.mxu0
    %v8798 = vadd.f32 %v8729, %v8797
    %v8799 = vpop.f32.mrf.mxu0
    %8800 = vmatprep.mubr.f32.mxu0 0.0
    %8801 = vmatmul.mubr.f32.gmra.mxu0 %v8707
    %v8802 = vpop.f32.mrf.mxu0
    %v8803 = vadd.f32 %v8729, %v8802
    %v8804 = vpop.f32.mrf.mxu0
    %8805 = vdwg.mxu0
    %v8806 = vmax.f32 %v8798, 0.0
    %v8807 = vmax.f32 %v8803, 0.0
    %v8808 = vld [vmem:[%s9] sm:$0xff]
    %v8809 = vld [vmem:[%s9 + $0x8] sm:$0xff]
    %v8810 = vld [vmem:[%s9 + $0x10] sm:$0xff]
    %v8811 = vld [vmem:[%s9 + $0x18] sm:$0x7]
    %v8812 = vld [vmem:[%s10] sm:$0x1]
    %v8814 = vlaneseq
    %v8815 = vshrl.u32 %v8814, 7
    %v8816 = vsub.s32 0, %v8815
    %v8817 = vrot.slane %v8812, %v8816
    %v8820 = vsel %vm111, %v8806, 0
    %v8823 = vsel %vm111, %v8807, 0
    %v8826 = vsel %vm118, %v8811, 0
    %8828 = vmatprep.subr.mxu0 0.0
    %8829 = vmatpush1.msra.mxu0 0.0
    %8830 = vmatprep.subr.mxu0 0.0
    %8831 = vmatpush1.msra.mxu0 0.0
    %8832 = vmatprep.subr.mxu0 0.0
    %8833 = vmatpush1.msra.mxu0 0.0
    %8834 = vmatprep.subr.mxu0 0.0
    %8835 = vmatpush1.msra.mxu0 0.0
    %8836 = vmatprep.subr.mxu0 0.0
    %8837 = vmatpush1.msra.mxu0 0.0
    %8838 = vmatprep.subr.mxu0 0.0
    %8839 = vmatpush1.msra.mxu0 0.0
    %8840 = vmatprep.subr.mxu0 0.0
    %8841 = vmatpush1.msra.mxu0 0.0
    %8842 = vmatprep.subr.mxu0 0.0
    %8843 = vmatpush1.msra.mxu0 0.0
    %8844 = vmatprep.subr.mxu0 0.0
    %8845 = vmatpush1.msra.mxu0 0.0
    %8846 = vmatprep.subr.mxu0 0.0
    %8847 = vmatpush1.msra.mxu0 0.0
    %8848 = vmatprep.subr.mxu0 0.0
    %8849 = vmatpush1.msra.mxu0 0.0
    %8850 = vmatprep.subr.mxu0 0.0
    %8851 = vmatpush1.msra.mxu0 0.0
    %8852 = vmatprep.subr.mxu0 0.0
    %8853 = vmatpush1.msra.mxu0 %v8826
    %8854 = vmatprep.subr.mxu0 0.0
    %8855 = vmatpush1.msra.mxu0 %v8810
    %8856 = vmatprep.subr.mxu0 0.0
    %8857 = vmatpush1.msra.mxu0 %v8809
    %8858 = vmatprep.subr.mxu0 0.0
    %8859 = vmatpush1.msra.mxu0 %v8808
    %8860 = vmatprep.subr.mxu0 0.0
    %8861 = vmatpush2.msra.mxu0 0.0
    %8862 = vmatprep.subr.mxu0 0.0
    %8863 = vmatpush2.msra.mxu0 0.0
    %8864 = vmatprep.subr.mxu0 0.0
    %8865 = vmatpush2.msra.mxu0 0.0
    %8866 = vmatprep.subr.mxu0 0.0
    %8867 = vmatpush2.msra.mxu0 0.0
    %8868 = vmatprep.subr.mxu0 0.0
    %8869 = vmatpush2.msra.mxu0 0.0
    %8870 = vmatprep.subr.mxu0 0.0
    %8871 = vmatpush2.msra.mxu0 0.0
    %8872 = vmatprep.subr.mxu0 0.0
    %8873 = vmatpush2.msra.mxu0 0.0
    %8874 = vmatprep.subr.mxu0 0.0
    %8875 = vmatpush2.msra.mxu0 0.0
    %8876 = vmatprep.subr.mxu0 0.0
    %8877 = vmatpush2.msra.mxu0 0.0
    %8878 = vmatprep.subr.mxu0 0.0
    %8879 = vmatpush2.msra.mxu0 0.0
    %8880 = vmatprep.subr.mxu0 0.0
    %8881 = vmatpush2.msra.mxu0 0.0
    %8882 = vmatprep.subr.mxu0 0.0
    %8883 = vmatpush2.msra.mxu0 0.0
    %8884 = vmatprep.subr.mxu0 0.0
    %8885 = vmatpush2.msra.mxu0 0.0
    %8886 = vmatprep.subr.mxu0 0.0
    %8887 = vmatpush2.msra.mxu0 0.0
    %8888 = vmatprep.subr.mxu0 0.0
    %8889 = vmatpush2.msra.mxu0 0.0
    %8890 = vmatprep.subr.mxu0 0.0
    %8891 = vmatpush2.msra.mxu0 0.0
    %8892 = vmatprep.mubr.f32.mxu0 0.0
    %8893 = vmatmul.mubr.f32.gmra.mxu0 %v8820
    %v8894 = vpop.f32.mrf.mxu0
    %v8895 = vadd.f32 %v8817, %v8894
    %v8896 = vpop.f32.mrf.mxu0
    %8897 = vmatprep.mubr.f32.mxu0 0.0
    %8898 = vmatmul.mubr.f32.gmra.mxu0 %v8823
    %v8899 = vpop.f32.mrf.mxu0
    %v8900 = vadd.f32 %v8817, %v8899
    %v8901 = vpop.f32.mrf.mxu0
    %8902 = vdwg.mxu0
    %8903 = vst.msk [vmem:[#allocation8] sm:$0xff] %vm111, %v8895
    %8904 = vst.msk [vmem:[#allocation8 + $0x8] sm:$0xff] %vm111, %v8900
    // Predicated region
    $region54: #{model_forward.1} parent=1 // pred_check
      _
    $region55: #{model_forward.1} parent=1 // pred_check_branch
      %8906 = sbr.rel (0) target = $region57
    $region56: #{model_forward.1} parent=1 // pred_region
      %s8908 = ssub.s32 256, 256
      %8909 = vsyncadd [#allocation5], %s8908
      %s8910 = sshll.u32 [#allocation8], 4
      %s8911 = int_to_ptr.vmem [resolvable:$true] %s8910
      %8916 = dma.vmem_to_hbm [thread:$0]  %s8911, 256, %s11, [#allocation5], 128, 128, 8
    $region57: #{model_forward.1} parent=1 // pred_fallthru
      _
    // Predicated region
    $region58: #{model_forward.1} parent=1 // pred_check
      _
    $region59: #{model_forward.1} parent=1 // pred_check_branch
      %8918 = sbr.rel (0) target = $region61
    $region60: #{model_forward.1} parent=1 // pred_region
      %s8920 = ssub.s32 128, 128
      %8921 = vsyncadd [#allocation10], %s8920
      %s8922 = sshll.u32 [#allocation9], 4
      %s8923 = int_to_ptr.vmem [resolvable:$true] %s8922
      %8928 = dma.vmem_to_hbm [thread:$0]  %s8923, 128, %s12, [#allocation10], 32, 32, 2
    $region61: #{model_forward.1} parent=1 // pred_fallthru
      _
    // Predicated region
    $region62: #{model_forward.1} parent=1 // pred_check
      _
    $region63: #{model_forward.1} parent=1 // pred_check_branch
      %8930 = sbr.rel (0) target = $region65
    $region64: #{model_forward.1} parent=1 // pred_region
      %s8932 = ssub.s32 128, 128
      %8933 = vsyncadd [#allocation10], %s8932
      %s8934 = sshll.u32 [#allocation11], 4
      %s8935 = int_to_ptr.vmem [resolvable:$true] %s8934
      %8940 = dma.vmem_to_hbm [thread:$0]  %s8935, 128, %s13, [#allocation10], 32, 32, 2
    $region65: #{model_forward.1} parent=1 // pred_fallthru
      _
    // Predicated region
    $region66: #{model_forward.1} parent=1 // pred_check
      _
    $region67: #{model_forward.1} parent=1 // pred_check_branch
      %8942 = sbr.rel (0) target = $region69
    $region68: #{model_forward.1} parent=1 // pred_region
      %8943 = dma.done [#allocation5], 256
    $region69: #{model_forward.1} parent=1 // pred_fallthru
      _
    // Predicated region
    $region70: #{model_forward.1} parent=1 // pred_check
      _
    $region71: #{model_forward.1} parent=1 // pred_check_branch
      %8945 = sbr.rel (0) target = $region73
    $region72: #{model_forward.1} parent=1 // pred_region
      %8946 = dma.done [#allocation10], 128
    $region73: #{model_forward.1} parent=1 // pred_fallthru
      _
    // Predicated region
    $region74: #{model_forward.1} parent=1 // pred_check
      _
    $region75: #{model_forward.1} parent=1 // pred_check_branch
      %8948 = sbr.rel (0) target = $region77
    $region76: #{model_forward.1} parent=1 // pred_region
      %8949 = dma.done [#allocation10], 128
    $region77: #{model_forward.1} parent=1 // pred_fallthru
      _
    %8950 = vsyncpa [#allocation4], 1
    %8951 = vsyncpa [#allocation7], 1
    %8952 = vsyncpa [#allocation5], 1
    %8953 = vsyncpa [#allocation10], 1

</llo_original>
